<compile_context>
chip_gen: v6e
topology: v6e:2x2x1
jax: 0.10.0
libtpu: 0.0.40
codegen_flags: <defaults>
</compile_context>

<pallas_src>
import functools

import numpy as np
import jax
import jax.numpy as jnp
from jax.experimental import pallas as pl
from jax.experimental.pallas import tpu as pltpu


# ----------------------------- KNRM kernel bins -----------------------------
def kernal_mus(n_kernels):
    l_mu = [1.0]
    if n_kernels == 1:
        return l_mu
    bin_size = 2.0 / (n_kernels - 1)
    l_mu.append(1 - bin_size / 2)
    for i in range(1, n_kernels - 1):
        l_mu.append(l_mu[i] - bin_size)
    return l_mu


def kernel_sigmas(n_kernels):
    bin_size = 2.0 / (n_kernels - 1)
    l_sigma = [0.001]
    if n_kernels == 1:
        return l_sigma
    l_sigma += [0.1] * (n_kernels - 1)
    return l_sigma


# ------------------------------- Pallas kernel -------------------------------
def _cknrm_kernel(Lq, Ld, K, C,
                  qw_ref, dw_ref, qlen_ref, dlen_ref, qidx_ref, didx_ref,
                  mul_ref, nis2_ref, wall_ref, ball_ref, seg_ref, wnat_ref, bd_ref,
                  feat_ref, score_ref):
    """One grid step == one batch block, fully vectorized (no per-example loop)."""
    BB = qw_ref.shape[0]
    D = qw_ref.shape[2]
    NQ = 3 * Lq                    # query n-gram stack padded per segment -> sublane aligned
    ND = 3 * Ld - 3                # dense doc n-gram stack (uni Ld | bi Ld-1 | tri Ld-2)
    hi = jax.lax.Precision.HIGHEST

    w_all = wall_ref[...]          # (D, 6C)  [W1 | W2a | W2b | W3a | W3b | W3c]
    b_all = ball_ref[...]          # (1, 3C)  [b1 | b2 | b3]

    # ---- fused uni/bi/tri convolutions: one fat matmul per stream (whole block as M) ----
    pq = jnp.dot(qw_ref[...].reshape(BB * Lq, D), w_all,
                 preferred_element_type=jnp.float32, precision=hi).reshape(BB, Lq, 6 * C)
    pd = jnp.dot(dw_ref[...].reshape(BB * Ld, D), w_all,
                 preferred_element_type=jnp.float32, precision=hi).reshape(BB, Ld, 6 * C)

    def ngram(p):
        # Shifted-row adds assemble the bi/tri windows; rows are kept at full
        # length L per segment (the wrapped tail rows are garbage and are
        # masked out downstream), which keeps concats sublane-aligned.
        def sh(x, n):
            return jnp.concatenate([x[:, n:, :], x[:, :n, :]], axis=1)
        u = p[:, :, 0:C] + b_all[:, 0:C]
        bi = p[:, :, C:2 * C] + sh(p[:, :, 2 * C:3 * C], 1) + b_all[:, C:2 * C]
        tr = (p[:, :, 3 * C:4 * C] + sh(p[:, :, 4 * C:5 * C], 1)
              + sh(p[:, :, 5 * C:6 * C], 2) + b_all[:, 2 * C:3 * C])
        return u, bi, tr

    def relu_norm(x):
        x = jnp.maximum(x, 0.0) + 1e-10
        ss = jnp.sum(x * x, axis=-1, keepdims=True)
        return x * jax.lax.rsqrt(jnp.maximum(ss, 1e-20))

    qu, qb, qt = ngram(pq)
    du, db, dt = ngram(pd)
    qn = relu_norm(jnp.concatenate([qu, qb, qt], axis=1))                    # (BB, NQ, C)
    dn = relu_norm(jnp.concatenate([du, db[:, :Ld - 1], dt[:, :Ld - 2]], axis=1))  # (BB, ND, C)

    # ---- one batched similarity matmul, lane-dense RBF pooling ----
    sim = jnp.einsum("bqc,bkc->bqk", qn, dn,
                     preferred_element_type=jnp.float32, precision=hi)       # (BB, NQ, ND)
    sim_t = jnp.concatenate([sim] * K, axis=-1)                               # (BB, NQ, K*ND)
    diff = sim_t - mul_ref[...]                                               # mu pre-tiled on lanes
    e = jnp.exp(diff * diff * nis2_ref[...])                                  # nis2 = -1/(2 sigma^2)
    dmask = (didx_ref[...] < dlen_ref[...]).astype(jnp.float32)               # (BB, 1, K*ND)
    e = e * dmask

    # doc-segment pooling sums for all (doc segment, kernel) pairs: one MXU matmul
    psum = jnp.dot(e.reshape(BB * NQ, K * ND), seg_ref[...],
                   preferred_element_type=jnp.float32, precision=hi)          # (BB*NQ, 3K)
    lp = jnp.log(jnp.maximum(psum, 1e-10)).reshape(BB, NQ, 3 * K)

    # query mask (kills padded/garbage rows and rows >= query_len) + per-segment sums
    qmask = (qidx_ref[...] < qlen_ref[...]).astype(jnp.float32)               # (BB, NQ, 1)
    lpm = lp * qmask
    f_nat = jnp.concatenate(
        [jnp.sum(lpm[:, s * Lq:(s + 1) * Lq, :], axis=1, keepdims=True) for s in range(3)],
        axis=1)                                                               # (BB, 3, 3K)

    # score against the pre-permuted dense weights (natural feature layout)
    fw = jnp.sum(f_nat * wnat_ref[...], axis=2, keepdims=True)                # (BB, 3, 1)
    score = fw[:, 0:1, :] + fw[:, 1:2, :] + fw[:, 2:3, :] + bd_ref[...]       # (BB, 1, 1)

    feat_ref[...] = f_nat
    score_ref[...] = score


# --------------------------------- wrapper ----------------------------------
def _pick_blocking(B, batch_block=None, bb_max=16):
    """Batch block size + grid length (kept even for v7x's two TensorCores)."""
    if batch_block is not None:
        bb = max(1, int(batch_block))
        steps = -(-B // bb)
        return bb, steps
    if B <= 1:
        return 1, 1
    steps = max(2, 2 * (-(-B // (2 * bb_max))))
    bb = -(-B // steps)
    steps = -(-B // bb)
    if steps > 1 and steps % 2 == 1:
        steps += 1
    return bb, steps


def cknrm_forward(params, query_idx, doc_idx, query_len, doc_len, n_kernels,
                  batch_block=None):
    emb = params["embedding"]
    qw = emb[query_idx].astype(jnp.float32)        # (B, Lq, D)  (XLA gather)
    dw = emb[doc_idx].astype(jnp.float32)          # (B, Ld, D)
    B, Lq, D = qw.shape
    Ld = dw.shape[1]
    K = n_kernels
    C = params["w_uni"].shape[1]
    assert Lq >= 3 and Ld >= 3
    ND = 3 * Ld - 3
    KND = K * ND
    NQ = 3 * Lq

    # ---- batch blocking with padded tail (no bb=1 fallback for awkward B) ----
    bb, steps = _pick_blocking(B, batch_block)
    Bp = bb * steps
    pad = Bp - B
    qw = jnp.pad(qw, ((0, pad), (0, 0), (0, 0)))
    dw = jnp.pad(dw, ((0, pad), (0, 0), (0, 0)))
    qlen = jnp.pad(query_len.astype(jnp.int32), (0, pad)).reshape(Bp, 1, 1)
    dlen = jnp.pad(doc_len.astype(jnp.int32), (0, pad)).reshape(Bp, 1, 1)

    # ---- fused conv weight slab + biases ----
    w_all = jnp.concatenate(
        [params["w_uni"],
         params["w_bi"][:D], params["w_bi"][D:2 * D],
         params["w_tri"][:D], params["w_tri"][D:2 * D], params["w_tri"][2 * D:3 * D]],
        axis=1)                                      # (D, 6C)
    b_all = jnp.concatenate(
        [params["b_uni"], params["b_bi"], params["b_tri"]], axis=1)           # (1, 3C)

    # ---- RBF constants, pre-tiled to the lane-dense exp layout (lane = k*ND + j) ----
    mu = np.asarray(kernal_mus(K), np.float32)
    sig = np.asarray(kernel_sigmas(K), np.float32)
    mu_lane = jnp.asarray(np.repeat(mu, ND).reshape(1, 1, KND))
    nis2_lane = jnp.asarray((np.repeat(-1.0 / (2.0 * sig * sig), ND)
                             .reshape(1, 1, KND)).astype(np.float32))

    # doc n-gram local positions along the K-tiled lane axis + segment one-hot S
    d_local = np.concatenate([np.arange(Ld), np.arange(Ld - 1), np.arange(Ld - 2)]).astype(np.int32)
    d_seg = np.concatenate([np.zeros(Ld), np.ones(Ld - 1), 2 * np.ones(Ld - 2)]).astype(np.int32)
    d_idx = jnp.asarray(np.tile(d_local, K).reshape(1, 1, KND))
    S = np.zeros((KND, 3 * K), np.float32)
    lanes = np.arange(KND)
    S[lanes, d_seg[lanes % ND] * K + (lanes // ND)] = 1.0
    S = jnp.asarray(S)

    # query row local index over the padded [uni(Lq)|bi(Lq)|tri(Lq)] stack;
    # garbage tail rows get a huge index so they can never pass (idx < qlen).
    q_idx = np.full(NQ, np.iinfo(np.int32).max // 2, np.int32)
    for s in range(3):
        for i in range(Lq - s):
            q_idx[s * Lq + i] = i
    q_idx = jnp.asarray(q_idx.reshape(1, NQ, 1))

    # PyTorch feature order <-> natural (q_seg, d_seg, k) order; pre-permuted dense weight
    pairs = [(0, 0), (0, 2), (0, 1), (1, 0), (2, 0), (1, 1), (1, 2), (2, 1), (2, 2)]
    perm = np.concatenate([qs * 3 * K + ds * K + np.arange(K) for qs, ds in pairs]).astype(np.int32)
    perm_j = jnp.asarray(perm)
    w_dense_flat = params["w_dense"].reshape(-1)
    w_nat = jnp.zeros((9 * K,), jnp.float32).at[perm_j].set(w_dense_flat).reshape(3, 3 * K)

    kernel = functools.partial(_cknrm_kernel, Lq, Ld, K, C)

    def full(a):
        shp = tuple(a.shape)
        return pl.BlockSpec(shp, lambda g, _s=shp: (0,) * len(_s))

    grid_spec = pltpu.PrefetchScalarGridSpec(
        num_scalar_prefetch=0,
        grid=(steps,),
        in_specs=[
            pl.BlockSpec((bb, Lq, D), lambda g: (g, 0, 0)),   # qw
            pl.BlockSpec((bb, Ld, D), lambda g: (g, 0, 0)),   # dw
            pl.BlockSpec((bb, 1, 1), lambda g: (g, 0, 0)),    # qlen
            pl.BlockSpec((bb, 1, 1), lambda g: (g, 0, 0)),    # dlen
            full(q_idx), full(d_idx), full(mu_lane), full(nis2_lane),
            full(w_all), full(b_all), full(S), full(w_nat), full(params["b_dense"]),
        ],
        out_specs=[
            pl.BlockSpec((bb, 3, 3 * K), lambda g: (g, 0, 0)),
            pl.BlockSpec((bb, 1, 1), lambda g: (g, 0, 0)),
        ],
    )

    feat_nat, score = pl.pallas_call(
        kernel,
        grid_spec=grid_spec,
        out_shape=(jax.ShapeDtypeStruct((Bp, 3, 3 * K), jnp.float32),
                   jax.ShapeDtypeStruct((Bp, 1, 1), jnp.float32)),
        compiler_params=pltpu.CompilerParams(
            dimension_semantics=("parallel",),
            vmem_limit_bytes=32 * 1024 * 1024),
    )(qw, dw, qlen, dlen, q_idx, d_idx, mu_lane, nis2_lane,
      w_all, b_all, S, w_nat, params["b_dense"])

    # wrapper-side layout plumbing: natural -> PyTorch feature order (cheap XLA gather)
    feat = feat_nat[:B].reshape(B, 9 * K)[:, perm_j]
    score = score[:B, 0, 0]
    # TODO(synk): optional raw_score concat branch (raw_score is None here).
    return score, feat


# --------------------------- deterministic params ----------------------------
def init_params(key, vocab_size, embed_dim, n_kernels, channels=128):
    ks = jax.random.split(key, 9)
    p = {}
    p["embedding"] = 0.1 * jax.random.normal(ks[0], (vocab_size, embed_dim), jnp.float32)
    p["w_uni"] = jax.random.normal(ks[1], (embed_dim, channels), jnp.float32) / np.sqrt(embed_dim)
    p["b_uni"] = 0.01 * jax.random.normal(ks[2], (1, channels), jnp.float32)
    p["w_bi"] = jax.random.normal(ks[3], (2 * embed_dim, channels), jnp.float32) / np.sqrt(2 * embed_dim)
    p["b_bi"] = 0.01 * jax.random.normal(ks[4], (1, channels), jnp.float32)
    p["w_tri"] = jax.random.normal(ks[5], (3 * embed_dim, channels), jnp.float32) / np.sqrt(3 * embed_dim)
    p["b_tri"] = 0.01 * jax.random.normal(ks[6], (1, channels), jnp.float32)
    p["w_dense"] = 0.1 * jax.random.normal(ks[7], (1, 9 * n_kernels), jnp.float32)
    p["b_dense"] = 0.1 * jax.random.normal(ks[8], (1, 1), jnp.float32)
    return p


# ------------------------------ pure-JAX reference ---------------------------
def cknrm_reference(params, query_idx, doc_idx, query_len, doc_len, K):
    hi = jax.lax.Precision.HIGHEST
    mu = jnp.array(kernal_mus(K), jnp.float32)
    sigma = jnp.array(kernel_sigmas(K), jnp.float32)
    emb = params["embedding"]
    qw = emb[query_idx]
    dw = emb[doc_idx]
    B, Lq, D = qw.shape
    Ld = dw.shape[1]
    mask_q = (jnp.arange(Lq)[None, :] < query_len[:, None]).astype(jnp.float32)
    mask_d = (jnp.arange(Ld)[None, :] < doc_len[:, None]).astype(jnp.float32)

    def unroll(x, h):
        L = x.shape[1]
        return jnp.concatenate([x[:, i:L - h + 1 + i, :] for i in range(h)], axis=-1)

    def conv_norm(x, w, b):
        y = jnp.maximum(jnp.einsum("blk,kc->blc", x, w, precision=hi) + b, 0.0) + 1e-10
        n = jnp.sqrt(jnp.sum(y * y, axis=-1, keepdims=True))
        return y / jnp.maximum(n, 1e-10)

    qu = conv_norm(unroll(qw, 1), params["w_uni"], params["b_uni"])
    qb = conv_norm(unroll(qw, 2), params["w_bi"], params["b_bi"])
    qt = conv_norm(unroll(qw, 3), params["w_tri"], params["b_tri"])
    du = conv_norm(unroll(dw, 1), params["w_uni"], params["b_uni"])
    db = conv_norm(unroll(dw, 2), params["w_bi"], params["b_bi"])
    dt = conv_norm(unroll(dw, 3), params["w_tri"], params["b_tri"])

    def intersect(q, d, amq, amd):
        sim = jnp.einsum("bqc,bkc->bqk", q, d, precision=hi)
        diff = sim[..., None] - mu
        pooling = jnp.exp(-diff * diff / (sigma * sigma) / 2.0) * amd[:, None, :, None]
        psum = jnp.sum(pooling, axis=2)
        logp = jnp.log(jnp.maximum(psum, 1e-10)) * amq[:, :, None]
        return jnp.sum(logp, axis=1)

    mqu, mqb, mqt = mask_q, mask_q[:, :Lq - 1], mask_q[:, :Lq - 2]
    mdu, mdb, mdt = mask_d, mask_d[:, :Ld - 1], mask_d[:, :Ld - 2]
    feat = jnp.concatenate([
        intersect(qu, du, mqu, mdu), intersect(qu, dt, mqu, mdt),
        intersect(qu, db, mqu, mdb), intersect(qb, du, mqb, mdu),
        intersect(qt, du, mqt, mdu), intersect(qb, db, mqb, mdb),
        intersect(qb, dt, mqb, mdt), intersect(qt, db, mqt, mdb),
        intersect(qt, dt, mqt, mdt),
    ], axis=1)
    score = jnp.sum(feat * params["w_dense"], axis=1) + params["b_dense"][0, 0]
    return score, feat


# ----------------------------------- main ------------------------------------
if __name__ == "__main__":
    B, Lq, Ld, D, V, K = 4, 8, 16, 32, 97, 11

    key = jax.random.PRNGKey(0)
    kp, kq, kd = jax.random.split(key, 3)
    params = init_params(kp, V, D, K)

    query_idx = jax.random.randint(kq, (B, Lq), 0, V, dtype=jnp.int32)
    doc_idx = jax.random.randint(kd, (B, Ld), 0, V, dtype=jnp.int32)
    query_len = jnp.array([5, 8, 3, 7], dtype=jnp.int32)
    doc_len = jnp.array([12, 16, 7, 16], dtype=jnp.int32)

    score, feat = cknrm_forward(params, query_idx, doc_idx, query_len, doc_len, K)
    jax.block_until_ready((score, feat))

    ref_score, ref_feat = cknrm_reference(params, query_idx, doc_idx, query_len, doc_len, K)
    np.testing.assert_allclose(np.asarray(feat), np.asarray(ref_feat), rtol=2e-3, atol=2e-3)
    np.testing.assert_allclose(np.asarray(score), np.asarray(ref_score), rtol=2e-3, atol=2e-3)

    print("KERNEL_OK")
</pallas_src>

<mosaic_0001>
module attributes {stable_mosaic.version = 11 : i64} {
  func.func @_cknrm_kernel(%arg0: i32, %arg1: memref<2x8x32xf32, #tpu.memory_space<vmem>>, %arg2: memref<2x16x32xf32, #tpu.memory_space<vmem>>, %arg3: memref<2x1x1xi32, #tpu.memory_space<vmem>>, %arg4: memref<2x1x1xi32, #tpu.memory_space<vmem>>, %arg5: memref<1x24x1xi32, #tpu.memory_space<vmem>>, %arg6: memref<1x1x495xi32, #tpu.memory_space<vmem>>, %arg7: memref<1x1x495xf32, #tpu.memory_space<vmem>>, %arg8: memref<1x1x495xf32, #tpu.memory_space<vmem>>, %arg9: memref<32x768xf32, #tpu.memory_space<vmem>>, %arg10: memref<1x384xf32, #tpu.memory_space<vmem>>, %arg11: memref<495x33xf32, #tpu.memory_space<vmem>>, %arg12: memref<3x33xf32, #tpu.memory_space<vmem>>, %arg13: memref<1x1xf32, #tpu.memory_space<vmem>>, %arg14: memref<2x3x33xf32, #tpu.memory_space<vmem>>, %arg15: memref<2x1x1xf32, #tpu.memory_space<vmem>>) attributes {dimension_semantics = [#tpu.dimension_semantics<parallel>], iteration_bounds = array<i64: 2>, scalar_prefetch = 0 : i64, scratch_operands = 0 : i64, tpu.core_type = #tpu.core_type<tc>, window_params = [{transform_indices = @transform_0, window_bounds = array<i64: 2, 8, 32>}, {transform_indices = @transform_1, window_bounds = array<i64: 2, 16, 32>}, {transform_indices = @transform_2, window_bounds = array<i64: 2, 1, 1>}, {transform_indices = @transform_3, window_bounds = array<i64: 2, 1, 1>}, {pipeline_mode = #tpu.pipeline_mode<synchronous>, transform_indices = @transform_4, window_bounds = array<i64: 1, 24, 1>}, {pipeline_mode = #tpu.pipeline_mode<synchronous>, transform_indices = @transform_5, window_bounds = array<i64: 1, 1, 495>}, {pipeline_mode = #tpu.pipeline_mode<synchronous>, transform_indices = @transform_6, window_bounds = array<i64: 1, 1, 495>}, {pipeline_mode = #tpu.pipeline_mode<synchronous>, transform_indices = @transform_7, window_bounds = array<i64: 1, 1, 495>}, {pipeline_mode = #tpu.pipeline_mode<synchronous>, transform_indices = @transform_8, window_bounds = array<i64: 32, 768>}, {pipeline_mode = #tpu.pipeline_mode<synchronous>, transform_indices = @transform_9, window_bounds = array<i64: 1, 384>}, {pipeline_mode = #tpu.pipeline_mode<synchronous>, transform_indices = @transform_10, window_bounds = array<i64: 495, 33>}, {pipeline_mode = #tpu.pipeline_mode<synchronous>, transform_indices = @transform_11, window_bounds = array<i64: 3, 33>}, {pipeline_mode = #tpu.pipeline_mode<synchronous>, transform_indices = @transform_12, window_bounds = array<i64: 1, 1>}, {transform_indices = @transform_13, window_bounds = array<i64: 2, 3, 33>}, {transform_indices = @transform_14, window_bounds = array<i64: 2, 1, 1>}]} {
    %c0 = arith.constant 0 : index
    %c0_0 = arith.constant 0 : index
    %0 = vector.load %arg9[%c0, %c0_0] : memref<32x768xf32, #tpu.memory_space<vmem>>, vector<32x768xf32>
    %c0_1 = arith.constant 0 : index
    %c0_2 = arith.constant 0 : index
    %1 = vector.load %arg10[%c0_1, %c0_2] : memref<1x384xf32, #tpu.memory_space<vmem>>, vector<1x384xf32>
    %c0_3 = arith.constant 0 : index
    %c0_4 = arith.constant 0 : index
    %c0_5 = arith.constant 0 : index
    %2 = vector.load %arg1[%c0_3, %c0_4, %c0_5] : memref<2x8x32xf32, #tpu.memory_space<vmem>>, vector<2x8x32xf32>
    %3 = vector.shape_cast %2 : vector<2x8x32xf32> to vector<16x32xf32>
    %cst = arith.constant dense<0.000000e+00> : vector<16x768xf32>
    %4 = tpu.matmul %3, %0, %cst {dimension_numbers = #tpu.dot_dimension_numbers<[1], [0], [0], [1], [0, 0, 1, 1], [], []>, precision = #tpu.contract_precision<fp32>} : vector<16x32xf32>, vector<32x768xf32>, vector<16x768xf32> -> vector<16x768xf32>
    %5 = vector.shape_cast %4 : vector<16x768xf32> to vector<2x8x768xf32>
    %c0_6 = arith.constant 0 : index
    %c0_7 = arith.constant 0 : index
    %c0_8 = arith.constant 0 : index
    %6 = vector.load %arg2[%c0_6, %c0_7, %c0_8] : memref<2x16x32xf32, #tpu.memory_space<vmem>>, vector<2x16x32xf32>
    %7 = vector.shape_cast %6 : vector<2x16x32xf32> to vector<32x32xf32>
    %cst_9 = arith.constant dense<0.000000e+00> : vector<32x768xf32>
    %8 = tpu.matmul %7, %0, %cst_9 {dimension_numbers = #tpu.dot_dimension_numbers<[1], [0], [0], [1], [0, 0, 1, 1], [], []>, precision = #tpu.contract_precision<fp32>} : vector<32x32xf32>, vector<32x768xf32>, vector<32x768xf32> -> vector<32x768xf32>
    %9 = vector.shape_cast %8 : vector<32x768xf32> to vector<2x16x768xf32>
    %10 = vector.extract_strided_slice %5 {offsets = [0, 0, 0], sizes = [2, 8, 128], strides = [1, 1, 1]} : vector<2x8x768xf32> to vector<2x8x128xf32>
    %11 = vector.extract_strided_slice %1 {offsets = [0, 0], sizes = [1, 128], strides = [1, 1]} : vector<1x384xf32> to vector<1x128xf32>
    %12 = vector.shape_cast %11 : vector<1x128xf32> to vector<1x1x128xf32>
    %13 = vector.broadcast %12 : vector<1x1x128xf32> to vector<2x8x128xf32>
    %14 = arith.addf %10, %13 : vector<2x8x128xf32>
    %15 = vector.extract_strided_slice %5 {offsets = [0, 0, 128], sizes = [2, 8, 128], strides = [1, 1, 1]} : vector<2x8x768xf32> to vector<2x8x128xf32>
    %16 = vector.extract_strided_slice %5 {offsets = [0, 0, 256], sizes = [2, 8, 128], strides = [1, 1, 1]} : vector<2x8x768xf32> to vector<2x8x128xf32>
    %17 = vector.extract_strided_slice %16 {offsets = [0, 1, 0], sizes = [2, 7, 128], strides = [1, 1, 1]} : vector<2x8x128xf32> to vector<2x7x128xf32>
    %18 = vector.extract_strided_slice %16 {offsets = [0, 0, 0], sizes = [2, 1, 128], strides = [1, 1, 1]} : vector<2x8x128xf32> to vector<2x1x128xf32>
    %19 = tpu.concatenate %17, %18 in 1 : vector<2x7x128xf32>, vector<2x1x128xf32> -> vector<2x8x128xf32>
    %20 = arith.addf %15, %19 : vector<2x8x128xf32>
    %21 = vector.extract_strided_slice %1 {offsets = [0, 128], sizes = [1, 128], strides = [1, 1]} : vector<1x384xf32> to vector<1x128xf32>
    %22 = vector.shape_cast %21 : vector<1x128xf32> to vector<1x1x128xf32>
    %23 = vector.broadcast %22 : vector<1x1x128xf32> to vector<2x8x128xf32>
    %24 = arith.addf %20, %23 : vector<2x8x128xf32>
    %25 = vector.extract_strided_slice %5 {offsets = [0, 0, 384], sizes = [2, 8, 128], strides = [1, 1, 1]} : vector<2x8x768xf32> to vector<2x8x128xf32>
    %26 = vector.extract_strided_slice %5 {offsets = [0, 0, 512], sizes = [2, 8, 128], strides = [1, 1, 1]} : vector<2x8x768xf32> to vector<2x8x128xf32>
    %27 = vector.extract_strided_slice %26 {offsets = [0, 1, 0], sizes = [2, 7, 128], strides = [1, 1, 1]} : vector<2x8x128xf32> to vector<2x7x128xf32>
    %28 = vector.extract_strided_slice %26 {offsets = [0, 0, 0], sizes = [2, 1, 128], strides = [1, 1, 1]} : vector<2x8x128xf32> to vector<2x1x128xf32>
    %29 = tpu.concatenate %27, %28 in 1 : vector<2x7x128xf32>, vector<2x1x128xf32> -> vector<2x8x128xf32>
    %30 = arith.addf %25, %29 : vector<2x8x128xf32>
    %31 = vector.extract_strided_slice %5 {offsets = [0, 0, 640], sizes = [2, 8, 128], strides = [1, 1, 1]} : vector<2x8x768xf32> to vector<2x8x128xf32>
    %32 = vector.extract_strided_slice %31 {offsets = [0, 2, 0], sizes = [2, 6, 128], strides = [1, 1, 1]} : vector<2x8x128xf32> to vector<2x6x128xf32>
    %33 = vector.extract_strided_slice %31 {offsets = [0, 0, 0], sizes = [2, 2, 128], strides = [1, 1, 1]} : vector<2x8x128xf32> to vector<2x2x128xf32>
    %34 = tpu.concatenate %32, %33 in 1 : vector<2x6x128xf32>, vector<2x2x128xf32> -> vector<2x8x128xf32>
    %35 = arith.addf %30, %34 : vector<2x8x128xf32>
    %36 = vector.extract_strided_slice %1 {offsets = [0, 256], sizes = [1, 128], strides = [1, 1]} : vector<1x384xf32> to vector<1x128xf32>
    %37 = vector.shape_cast %36 : vector<1x128xf32> to vector<1x1x128xf32>
    %38 = vector.broadcast %37 : vector<1x1x128xf32> to vector<2x8x128xf32>
    %39 = arith.addf %35, %38 : vector<2x8x128xf32>
    %40 = vector.extract_strided_slice %9 {offsets = [0, 0, 0], sizes = [2, 16, 128], strides = [1, 1, 1]} : vector<2x16x768xf32> to vector<2x16x128xf32>
    %41 = vector.extract_strided_slice %1 {offsets = [0, 0], sizes = [1, 128], strides = [1, 1]} : vector<1x384xf32> to vector<1x128xf32>
    %42 = vector.shape_cast %41 : vector<1x128xf32> to vector<1x1x128xf32>
    %43 = vector.broadcast %42 : vector<1x1x128xf32> to vector<2x16x128xf32>
    %44 = arith.addf %40, %43 : vector<2x16x128xf32>
    %45 = vector.extract_strided_slice %9 {offsets = [0, 0, 128], sizes = [2, 16, 128], strides = [1, 1, 1]} : vector<2x16x768xf32> to vector<2x16x128xf32>
    %46 = vector.extract_strided_slice %9 {offsets = [0, 0, 256], sizes = [2, 16, 128], strides = [1, 1, 1]} : vector<2x16x768xf32> to vector<2x16x128xf32>
    %47 = vector.extract_strided_slice %46 {offsets = [0, 1, 0], sizes = [2, 15, 128], strides = [1, 1, 1]} : vector<2x16x128xf32> to vector<2x15x128xf32>
    %48 = vector.extract_strided_slice %46 {offsets = [0, 0, 0], sizes = [2, 1, 128], strides = [1, 1, 1]} : vector<2x16x128xf32> to vector<2x1x128xf32>
    %49 = tpu.concatenate %47, %48 in 1 : vector<2x15x128xf32>, vector<2x1x128xf32> -> vector<2x16x128xf32>
    %50 = arith.addf %45, %49 : vector<2x16x128xf32>
    %51 = vector.extract_strided_slice %1 {offsets = [0, 128], sizes = [1, 128], strides = [1, 1]} : vector<1x384xf32> to vector<1x128xf32>
    %52 = vector.shape_cast %51 : vector<1x128xf32> to vector<1x1x128xf32>
    %53 = vector.broadcast %52 : vector<1x1x128xf32> to vector<2x16x128xf32>
    %54 = arith.addf %50, %53 : vector<2x16x128xf32>
    %55 = vector.extract_strided_slice %9 {offsets = [0, 0, 384], sizes = [2, 16, 128], strides = [1, 1, 1]} : vector<2x16x768xf32> to vector<2x16x128xf32>
    %56 = vector.extract_strided_slice %9 {offsets = [0, 0, 512], sizes = [2, 16, 128], strides = [1, 1, 1]} : vector<2x16x768xf32> to vector<2x16x128xf32>
    %57 = vector.extract_strided_slice %56 {offsets = [0, 1, 0], sizes = [2, 15, 128], strides = [1, 1, 1]} : vector<2x16x128xf32> to vector<2x15x128xf32>
    %58 = vector.extract_strided_slice %56 {offsets = [0, 0, 0], sizes = [2, 1, 128], strides = [1, 1, 1]} : vector<2x16x128xf32> to vector<2x1x128xf32>
    %59 = tpu.concatenate %57, %58 in 1 : vector<2x15x128xf32>, vector<2x1x128xf32> -> vector<2x16x128xf32>
    %60 = arith.addf %55, %59 : vector<2x16x128xf32>
    %61 = vector.extract_strided_slice %9 {offsets = [0, 0, 640], sizes = [2, 16, 128], strides = [1, 1, 1]} : vector<2x16x768xf32> to vector<2x16x128xf32>
    %62 = vector.extract_strided_slice %61 {offsets = [0, 2, 0], sizes = [2, 14, 128], strides = [1, 1, 1]} : vector<2x16x128xf32> to vector<2x14x128xf32>
    %63 = vector.extract_strided_slice %61 {offsets = [0, 0, 0], sizes = [2, 2, 128], strides = [1, 1, 1]} : vector<2x16x128xf32> to vector<2x2x128xf32>
    %64 = tpu.concatenate %62, %63 in 1 : vector<2x14x128xf32>, vector<2x2x128xf32> -> vector<2x16x128xf32>
    %65 = arith.addf %60, %64 : vector<2x16x128xf32>
    %66 = vector.extract_strided_slice %1 {offsets = [0, 256], sizes = [1, 128], strides = [1, 1]} : vector<1x384xf32> to vector<1x128xf32>
    %67 = vector.shape_cast %66 : vector<1x128xf32> to vector<1x1x128xf32>
    %68 = vector.broadcast %67 : vector<1x1x128xf32> to vector<2x16x128xf32>
    %69 = arith.addf %65, %68 : vector<2x16x128xf32>
    %70 = tpu.concatenate %14, %24, %39 in 1 : vector<2x8x128xf32>, vector<2x8x128xf32>, vector<2x8x128xf32> -> vector<2x24x128xf32>
    %cst_10 = arith.constant 0.000000e+00 : f32
    %71 = vector.broadcast %cst_10 : f32 to vector<2x24x128xf32>
    %72 = arith.maximumf %70, %71 : vector<2x24x128xf32>
    %cst_11 = arith.constant 1.000000e-10 : f32
    %73 = vector.broadcast %cst_11 : f32 to vector<2x24x128xf32>
    %74 = arith.addf %72, %73 : vector<2x24x128xf32>
    %75 = arith.mulf %74, %74 : vector<2x24x128xf32>
    %cst_12 = arith.constant dense<0.000000e+00> : vector<2x24xf32>
    %76 = vector.multi_reduction <add>, %75, %cst_12 [2] : vector<2x24x128xf32> to vector<2x24xf32>
    %77 = vector.shape_cast %76 : vector<2x24xf32> to vector<2x24x1xf32>
    %cst_13 = arith.constant 9.99999968E-21 : f32
    %78 = vector.broadcast %cst_13 : f32 to vector<2x24x1xf32>
    %79 = arith.maximumf %77, %78 : vector<2x24x1xf32>
    %80 = math.rsqrt %79 : vector<2x24x1xf32>
    %81 = vector.broadcast %80 : vector<2x24x1xf32> to vector<2x24x128xf32>
    %82 = arith.mulf %74, %81 : vector<2x24x128xf32>
    %83 = vector.extract_strided_slice %54 {offsets = [0, 0, 0], sizes = [2, 15, 128], strides = [1, 1, 1]} : vector<2x16x128xf32> to vector<2x15x128xf32>
    %84 = vector.extract_strided_slice %69 {offsets = [0, 0, 0], sizes = [2, 14, 128], strides = [1, 1, 1]} : vector<2x16x128xf32> to vector<2x14x128xf32>
    %85 = tpu.concatenate %44, %83, %84 in 1 : vector<2x16x128xf32>, vector<2x15x128xf32>, vector<2x14x128xf32> -> vector<2x45x128xf32>
    %cst_14 = arith.constant 0.000000e+00 : f32
    %86 = vector.broadcast %cst_14 : f32 to vector<2x45x128xf32>
    %87 = arith.maximumf %85, %86 : vector<2x45x128xf32>
    %cst_15 = arith.constant 1.000000e-10 : f32
    %88 = vector.broadcast %cst_15 : f32 to vector<2x45x128xf32>
    %89 = arith.addf %87, %88 : vector<2x45x128xf32>
    %90 = arith.mulf %89, %89 : vector<2x45x128xf32>
    %cst_16 = arith.constant dense<0.000000e+00> : vector<2x45xf32>
    %91 = vector.multi_reduction <add>, %90, %cst_16 [2] : vector<2x45x128xf32> to vector<2x45xf32>
    %92 = vector.shape_cast %91 : vector<2x45xf32> to vector<2x45x1xf32>
    %cst_17 = arith.constant 9.99999968E-21 : f32
    %93 = vector.broadcast %cst_17 : f32 to vector<2x45x1xf32>
    %94 = arith.maximumf %92, %93 : vector<2x45x1xf32>
    %95 = math.rsqrt %94 : vector<2x45x1xf32>
    %96 = vector.broadcast %95 : vector<2x45x1xf32> to vector<2x45x128xf32>
    %97 = arith.mulf %89, %96 : vector<2x45x128xf32>
    "tpu.trace_start"() <{level = 10 : i32, message = "bqc,bkc->bqk"}> : () -> ()
    %cst_18 = arith.constant dense<0.000000e+00> : vector<2x24x45xf32>
    %98 = tpu.matmul %82, %97, %cst_18 {dimension_numbers = #tpu.dot_dimension_numbers<[2], [2], [1], [1], [0, 0, 0, 1, 1, 1], [0], [0]>, precision = #tpu.contract_precision<fp32>} : vector<2x24x128xf32>, vector<2x45x128xf32>, vector<2x24x45xf32> -> vector<2x24x45xf32>
    "tpu.trace_stop"() : () -> ()
    %99 = tpu.concatenate %98, %98, %98, %98, %98, %98, %98, %98, %98, %98, %98 in 2 : vector<2x24x45xf32>, vector<2x24x45xf32>, vector<2x24x45xf32>, vector<2x24x45xf32>, vector<2x24x45xf32>, vector<2x24x45xf32>, vector<2x24x45xf32>, vector<2x24x45xf32>, vector<2x24x45xf32>, vector<2x24x45xf32>, vector<2x24x45xf32> -> vector<2x24x495xf32>
    %c0_19 = arith.constant 0 : index
    %c0_20 = arith.constant 0 : index
    %c0_21 = arith.constant 0 : index
    %100 = vector.load %arg7[%c0_19, %c0_20, %c0_21] : memref<1x1x495xf32, #tpu.memory_space<vmem>>, vector<1x1x495xf32>
    %101 = vector.broadcast %100 : vector<1x1x495xf32> to vector<2x24x495xf32>
    %102 = arith.subf %99, %101 : vector<2x24x495xf32>
    %103 = arith.mulf %102, %102 : vector<2x24x495xf32>
    %c0_22 = arith.constant 0 : index
    %c0_23 = arith.constant 0 : index
    %c0_24 = arith.constant 0 : index
    %104 = vector.load %arg8[%c0_22, %c0_23, %c0_24] : memref<1x1x495xf32, #tpu.memory_space<vmem>>, vector<1x1x495xf32>
    %105 = vector.broadcast %104 : vector<1x1x495xf32> to vector<2x24x495xf32>
    %106 = arith.mulf %103, %105 : vector<2x24x495xf32>
    %107 = math.exp %106 : vector<2x24x495xf32>
    %c0_25 = arith.constant 0 : index
    %c0_26 = arith.constant 0 : index
    %c0_27 = arith.constant 0 : index
    %108 = vector.load %arg6[%c0_25, %c0_26, %c0_27] : memref<1x1x495xi32, #tpu.memory_space<vmem>>, vector<1x1x495xi32>
    %c0_28 = arith.constant 0 : index
    %c0_29 = arith.constant 0 : index
    %c0_30 = arith.constant 0 : index
    %109 = vector.load %arg4[%c0_28, %c0_29, %c0_30] : memref<2x1x1xi32, #tpu.memory_space<vmem>>, vector<2x1x1xi32>
    %110 = vector.broadcast %108 : vector<1x1x495xi32> to vector<2x1x495xi32>
    %111 = vector.broadcast %109 : vector<2x1x1xi32> to vector<2x1x495xi32>
    %112 = arith.cmpi slt, %110, %111 : vector<2x1x495xi32>
    %113 = arith.extui %112 : vector<2x1x495xi1> to vector<2x1x495xi32>
    %114 = arith.sitofp %113 : vector<2x1x495xi32> to vector<2x1x495xf32>
    %115 = vector.broadcast %114 : vector<2x1x495xf32> to vector<2x24x495xf32>
    %116 = arith.mulf %107, %115 : vector<2x24x495xf32>
    %117 = vector.shape_cast %116 : vector<2x24x495xf32> to vector<48x495xf32>
    %c0_31 = arith.constant 0 : index
    %c0_32 = arith.constant 0 : index
    %118 = vector.load %arg11[%c0_31, %c0_32] : memref<495x33xf32, #tpu.memory_space<vmem>>, vector<495x33xf32>
    %cst_33 = arith.constant dense<0.000000e+00> : vector<48x33xf32>
    %119 = tpu.matmul %117, %118, %cst_33 {dimension_numbers = #tpu.dot_dimension_numbers<[1], [0], [0], [1], [0, 0, 1, 1], [], []>, precision = #tpu.contract_precision<fp32>} : vector<48x495xf32>, vector<495x33xf32>, vector<48x33xf32> -> vector<48x33xf32>
    %cst_34 = arith.constant 1.000000e-10 : f32
    %120 = vector.broadcast %cst_34 : f32 to vector<48x33xf32>
    %121 = arith.maximumf %119, %120 : vector<48x33xf32>
    %122 = math.log %121 : vector<48x33xf32>
    %123 = vector.shape_cast %122 : vector<48x33xf32> to vector<2x24x33xf32>
    %c0_35 = arith.constant 0 : index
    %c0_36 = arith.constant 0 : index
    %c0_37 = arith.constant 0 : index
    %124 = vector.load %arg5[%c0_35, %c0_36, %c0_37] : memref<1x24x1xi32, #tpu.memory_space<vmem>>, vector<1x24x1xi32>
    %c0_38 = arith.constant 0 : index
    %c0_39 = arith.constant 0 : index
    %c0_40 = arith.constant 0 : index
    %125 = vector.load %arg3[%c0_38, %c0_39, %c0_40] : memref<2x1x1xi32, #tpu.memory_space<vmem>>, vector<2x1x1xi32>
    %126 = vector.broadcast %124 : vector<1x24x1xi32> to vector<2x24x1xi32>
    %127 = vector.broadcast %125 : vector<2x1x1xi32> to vector<2x24x1xi32>
    %128 = arith.cmpi slt, %126, %127 : vector<2x24x1xi32>
    %129 = arith.extui %128 : vector<2x24x1xi1> to vector<2x24x1xi32>
    %130 = arith.sitofp %129 : vector<2x24x1xi32> to vector<2x24x1xf32>
    %131 = vector.broadcast %130 : vector<2x24x1xf32> to vector<2x24x33xf32>
    %132 = arith.mulf %123, %131 : vector<2x24x33xf32>
    %133 = vector.extract_strided_slice %132 {offsets = [0, 0, 0], sizes = [2, 8, 33], strides = [1, 1, 1]} : vector<2x24x33xf32> to vector<2x8x33xf32>
    %cst_41 = arith.constant dense<0.000000e+00> : vector<2x33xf32>
    %134 = vector.multi_reduction <add>, %133, %cst_41 [1] : vector<2x8x33xf32> to vector<2x33xf32>
    %135 = vector.shape_cast %134 : vector<2x33xf32> to vector<2x1x33xf32>
    %136 = vector.extract_strided_slice %132 {offsets = [0, 8, 0], sizes = [2, 8, 33], strides = [1, 1, 1]} : vector<2x24x33xf32> to vector<2x8x33xf32>
    %cst_42 = arith.constant dense<0.000000e+00> : vector<2x33xf32>
    %137 = vector.multi_reduction <add>, %136, %cst_42 [1] : vector<2x8x33xf32> to vector<2x33xf32>
    %138 = vector.shape_cast %137 : vector<2x33xf32> to vector<2x1x33xf32>
    %139 = vector.extract_strided_slice %132 {offsets = [0, 16, 0], sizes = [2, 8, 33], strides = [1, 1, 1]} : vector<2x24x33xf32> to vector<2x8x33xf32>
    %cst_43 = arith.constant dense<0.000000e+00> : vector<2x33xf32>
    %140 = vector.multi_reduction <add>, %139, %cst_43 [1] : vector<2x8x33xf32> to vector<2x33xf32>
    %141 = vector.shape_cast %140 : vector<2x33xf32> to vector<2x1x33xf32>
    %142 = tpu.concatenate %135, %138, %141 in 1 : vector<2x1x33xf32>, vector<2x1x33xf32>, vector<2x1x33xf32> -> vector<2x3x33xf32>
    %c0_44 = arith.constant 0 : index
    %c0_45 = arith.constant 0 : index
    %143 = vector.load %arg12[%c0_44, %c0_45] : memref<3x33xf32, #tpu.memory_space<vmem>>, vector<3x33xf32>
    %144 = vector.shape_cast %143 : vector<3x33xf32> to vector<1x3x33xf32>
    %145 = vector.broadcast %144 : vector<1x3x33xf32> to vector<2x3x33xf32>
    %146 = arith.mulf %142, %145 : vector<2x3x33xf32>
    %cst_46 = arith.constant dense<0.000000e+00> : vector<2x3xf32>
    %147 = vector.multi_reduction <add>, %146, %cst_46 [2] : vector<2x3x33xf32> to vector<2x3xf32>
    %148 = vector.shape_cast %147 : vector<2x3xf32> to vector<2x3x1xf32>
    %149 = vector.extract_strided_slice %148 {offsets = [0, 0, 0], sizes = [2, 1, 1], strides = [1, 1, 1]} : vector<2x3x1xf32> to vector<2x1x1xf32>
    %150 = vector.extract_strided_slice %148 {offsets = [0, 1, 0], sizes = [2, 1, 1], strides = [1, 1, 1]} : vector<2x3x1xf32> to vector<2x1x1xf32>
    %151 = arith.addf %149, %150 : vector<2x1x1xf32>
    %152 = vector.extract_strided_slice %148 {offsets = [0, 2, 0], sizes = [2, 1, 1], strides = [1, 1, 1]} : vector<2x3x1xf32> to vector<2x1x1xf32>
    %153 = arith.addf %151, %152 : vector<2x1x1xf32>
    %c0_47 = arith.constant 0 : index
    %c0_48 = arith.constant 0 : index
    %154 = vector.load %arg13[%c0_47, %c0_48] : memref<1x1xf32, #tpu.memory_space<vmem>>, vector<1x1xf32>
    %155 = vector.shape_cast %154 : vector<1x1xf32> to vector<1x1x1xf32>
    %156 = vector.broadcast %155 : vector<1x1x1xf32> to vector<2x1x1xf32>
    %157 = arith.addf %153, %156 : vector<2x1x1xf32>
    %c0_49 = arith.constant 0 : index
    %c0_50 = arith.constant 0 : index
    %c0_51 = arith.constant 0 : index
    %158 = vector.load %arg14[%c0_49, %c0_50, %c0_51] : memref<2x3x33xf32, #tpu.memory_space<vmem>>, vector<2x3x33xf32>
    tpu.vector_store %arg14[%c0_49, %c0_50, %c0_51], %142 {strides = array<i32>} : memref<2x3x33xf32, #tpu.memory_space<vmem>>, vector<2x3x33xf32>,
    %c0_52 = arith.constant 0 : index
    %c0_53 = arith.constant 0 : index
    %c0_54 = arith.constant 0 : index
    %159 = vector.load %arg15[%c0_52, %c0_53, %c0_54] : memref<2x1x1xf32, #tpu.memory_space<vmem>>, vector<2x1x1xf32>
    tpu.vector_store %arg15[%c0_52, %c0_53, %c0_54], %157 {strides = array<i32>} : memref<2x1x1xf32, #tpu.memory_space<vmem>>, vector<2x1x1xf32>,
    return
  }
  func.func @transform_0(%arg0: i32) -> (i32, i32, i32) {
    %c0_i32 = arith.constant 0 : i32
    %c0_i32_0 = arith.constant 0 : i32
    %c0_i32_1 = arith.constant 0 : i32
    return %arg0, %c0_i32, %c0_i32_0 : i32, i32, i32
  }
  func.func @transform_1(%arg0: i32) -> (i32, i32, i32) {
    %c0_i32 = arith.constant 0 : i32
    %c0_i32_0 = arith.constant 0 : i32
    %c0_i32_1 = arith.constant 0 : i32
    return %arg0, %c0_i32, %c0_i32_0 : i32, i32, i32
  }
  func.func @transform_2(%arg0: i32) -> (i32, i32, i32) {
    %c0_i32 = arith.constant 0 : i32
    %c0_i32_0 = arith.constant 0 : i32
    %c0_i32_1 = arith.constant 0 : i32
    return %arg0, %c0_i32, %c0_i32_0 : i32, i32, i32
  }
  func.func @transform_3(%arg0: i32) -> (i32, i32, i32) {
    %c0_i32 = arith.constant 0 : i32
    %c0_i32_0 = arith.constant 0 : i32
    %c0_i32_1 = arith.constant 0 : i32
    return %arg0, %c0_i32, %c0_i32_0 : i32, i32, i32
  }
  func.func @transform_4(%arg0: i32) -> (i32, i32, i32) {
    %c0_i32 = arith.constant 0 : i32
    %c0_i32_0 = arith.constant 0 : i32
    %c0_i32_1 = arith.constant 0 : i32
    %c0_i32_2 = arith.constant 0 : i32
    return %c0_i32, %c0_i32_0, %c0_i32_1 : i32, i32, i32
  }
  func.func @transform_5(%arg0: i32) -> (i32, i32, i32) {
    %c0_i32 = arith.constant 0 : i32
    %c0_i32_0 = arith.constant 0 : i32
    %c0_i32_1 = arith.constant 0 : i32
    %c0_i32_2 = arith.constant 0 : i32
    return %c0_i32, %c0_i32_0, %c0_i32_1 : i32, i32, i32
  }
  func.func @transform_6(%arg0: i32) -> (i32, i32, i32) {
    %c0_i32 = arith.constant 0 : i32
    %c0_i32_0 = arith.constant 0 : i32
    %c0_i32_1 = arith.constant 0 : i32
    %c0_i32_2 = arith.constant 0 : i32
    return %c0_i32, %c0_i32_0, %c0_i32_1 : i32, i32, i32
  }
  func.func @transform_7(%arg0: i32) -> (i32, i32, i32) {
    %c0_i32 = arith.constant 0 : i32
    %c0_i32_0 = arith.constant 0 : i32
    %c0_i32_1 = arith.constant 0 : i32
    %c0_i32_2 = arith.constant 0 : i32
    return %c0_i32, %c0_i32_0, %c0_i32_1 : i32, i32, i32
  }
  func.func @transform_8(%arg0: i32) -> (i32, i32) {
    %c0_i32 = arith.constant 0 : i32
    %c0_i32_0 = arith.constant 0 : i32
    %c0_i32_1 = arith.constant 0 : i32
    return %c0_i32, %c0_i32_0 : i32, i32
  }
  func.func @transform_9(%arg0: i32) -> (i32, i32) {
    %c0_i32 = arith.constant 0 : i32
    %c0_i32_0 = arith.constant 0 : i32
    %c0_i32_1 = arith.constant 0 : i32
    return %c0_i32, %c0_i32_0 : i32, i32
  }
  func.func @transform_10(%arg0: i32) -> (i32, i32) {
    %c0_i32 = arith.constant 0 : i32
    %c0_i32_0 = arith.constant 0 : i32
    %c0_i32_1 = arith.constant 0 : i32
    return %c0_i32, %c0_i32_0 : i32, i32
  }
  func.func @transform_11(%arg0: i32) -> (i32, i32) {
    %c0_i32 = arith.constant 0 : i32
    %c0_i32_0 = arith.constant 0 : i32
    %c0_i32_1 = arith.constant 0 : i32
    return %c0_i32, %c0_i32_0 : i32, i32
  }
  func.func @transform_12(%arg0: i32) -> (i32, i32) {
    %c0_i32 = arith.constant 0 : i32
    %c0_i32_0 = arith.constant 0 : i32
    %c0_i32_1 = arith.constant 0 : i32
    return %c0_i32, %c0_i32_0 : i32, i32
  }
  func.func @transform_13(%arg0: i32) -> (i32, i32, i32) {
    %c0_i32 = arith.constant 0 : i32
    %c0_i32_0 = arith.constant 0 : i32
    %c0_i32_1 = arith.constant 0 : i32
    return %arg0, %c0_i32, %c0_i32_0 : i32, i32, i32
  }
  func.func @transform_14(%arg0: i32) -> (i32, i32, i32) {
    %c0_i32 = arith.constant 0 : i32
    %c0_i32_0 = arith.constant 0 : i32
    %c0_i32_1 = arith.constant 0 : i32
    return %arg0, %c0_i32, %c0_i32_0 : i32, i32, i32
  }
}

</mosaic_0001>

<llo_original>
// kernel: tpu_custom_call.1
$region0: #{tpu_custom_call.1}
  #allocation0 [shape = 'u32[]', space=smem, size = 0x4, offset = 0x4, fixed_abs, tag = 'smem constant byte address 0x4 - core index']
  #allocation1 [shape = 'u32[144,128]{1,0:T(1,128)}', space=vmem, size = 0x12000, scoped, tag = 'internal scratch']
  #allocation2 [shape = 'f32[1,1]{1,0:T(1,128)S(1)}', space=vmem, size = 0x200, scoped, tag = 'scoped memory for tpu_custom_call.1']
  %s0 = inlined_call_operand.vmem [shape: f32[4,8,32], index: 0, kind: input, shape index: {}]
  %s1 = inlined_call_operand.vmem [shape: f32[4,16,32], index: 1, kind: input, shape index: {}]
  %s2 = inlined_call_operand.vmem [shape: s32[4,1,1], index: 2, kind: input, shape index: {}]
  %s3 = inlined_call_operand.vmem [shape: s32[4,1,1], index: 3, kind: input, shape index: {}]
  %s4 = inlined_call_operand.vmem [shape: s32[1,24,1], index: 4, kind: input, shape index: {}]
  %s5 = inlined_call_operand.vmem [shape: s32[1,1,495], index: 5, kind: input, shape index: {}]
  %s6 = inlined_call_operand.vmem [shape: f32[1,1,495], index: 6, kind: input, shape index: {}]
  %s7 = inlined_call_operand.vmem [shape: f32[1,1,495], index: 7, kind: input, shape index: {}]
  %s8 = inlined_call_operand.vmem [shape: f32[32,768], index: 8, kind: input, shape index: {}]
  %s9 = inlined_call_operand.vmem [shape: f32[1,384], index: 9, kind: input, shape index: {}]
  %s10 = inlined_call_operand.vmem [shape: f32[495,33], index: 10, kind: input, shape index: {}]
  %s11 = inlined_call_operand.vmem [shape: f32[3,33], index: 11, kind: input, shape index: {}]
  %s12 = inlined_call_operand.<no memory space> [shape: f32[1,1], index: 12, kind: input, shape index: {}]
  %s13 = inlined_call_operand.vmem [shape: f32[4,3,33], index: 13, kind: output, shape index: {0}]
  %s14 = inlined_call_operand.vmem [shape: f32[4,1,1], index: 14, kind: output, shape index: {1}]
  %15 = xla_tuple %s13, %s14
  %s16 = sld [smem:[#allocation0]]
  $region93: #{tpu_custom_call.1} parent=0
    _
  %s18 = ssub.s32 1, %s16
  %s19 = scalar_select 0, %s18, %s16
  %v20 = vstv %s12
  %21 = vst [vmem:[#allocation2] sm:$0x1] %v20
  loop: start=0, step=1, limit=4
  $region2: #{tpu_custom_call.1} parent=0 // loop_pre_header
    _
  $region3: #{tpu_custom_call.1} parent=0 // loop_header
    %s23 = sphi 0, %s27
    %p24 = scmp.ge.s32.totalorder %s23, 4
    %s33 = sphi 0, %s35
    %s36 = sphi 0, %s33
    %s37 = sphi 0, %s36
    %s53 = sphi 0, %s37
    %s59 = sphi 0, %s61
    %s62 = sphi 0, %s59
    %s63 = sphi 0, %s62
    %s79 = sphi 0, %s63
    %s85 = sphi 0, %s87
    %s88 = sphi 0, %s85
    %s89 = sphi 0, %s88
    %s105 = sphi 0, %s89
    %s111 = sphi 0, %s113
    %s114 = sphi 0, %s111
    %s115 = sphi 0, %s114
    %s131 = sphi 0, %s115
    %s135 = sphi 0, %s135
    %s137 = sphi 0, %s135
    %s138 = sphi 0, %s137
    %s152 = sphi 0, %s138
    %s156 = sphi 0, %s156
    %s158 = sphi 0, %s156
    %s159 = sphi 0, %s158
    %s173 = sphi 0, %s159
    %s177 = sphi 0, %s177
    %s179 = sphi 0, %s177
    %s180 = sphi 0, %s179
    %s194 = sphi 0, %s180
    %s198 = sphi 0, %s198
    %s200 = sphi 0, %s198
    %s201 = sphi 0, %s200
    %s215 = sphi 0, %s201
    %s219 = sphi 0, %s219
    %s221 = sphi 0, %s219
    %s222 = sphi 0, %s221
    %s236 = sphi 0, %s222
    %s240 = sphi 0, %s240
    %s242 = sphi 0, %s240
    %s243 = sphi 0, %s242
    %s257 = sphi 0, %s243
    %s261 = sphi 0, %s261
    %s263 = sphi 0, %s261
    %s264 = sphi 0, %s263
    %s278 = sphi 0, %s264
    %s282 = sphi 0, %s282
    %s284 = sphi 0, %s282
    %s285 = sphi 0, %s284
    %s299 = sphi 0, %s285
    %s303 = sphi 0, %s303
    %s305 = sphi 0, %s303
    %s306 = sphi 0, %s305
    %s320 = sphi 0, %s306
    %s326 = sphi 0, %s328
    %s329 = sphi 0, %s326
    %s330 = sphi 0, %s329
    %s346 = sphi 0, %s330
    %s352 = sphi 0, %s354
    %s355 = sphi 0, %s352
    %s356 = sphi 0, %s355
    %s372 = sphi 0, %s356
  $region4: #{tpu_custom_call.1} parent=0 // loop_header_branch
    %26 = sbr.rel (%p24) target = $region8
  $region5: #{tpu_custom_call.1} parent=0 // loop_body
    %s28 = ssub.s32 %s23, 1
    %s29 = ssub.s32 %s23, 2
    %s30 = sadd.s32 %s23, 1
    %s31 = ssub.s32 %s23, %s30
    %p32 = scmp.eq.s32.totalorder %s31, 0
    %s34 = sadd.s32 %s33, 1
    %s35 = scalar_select %p32, %s33, %s34
    %p38 = pneg %p32
    %p39 = scmp.eq.s32.totalorder %s23, 1
    %p40 = por %p38, %p39
    %p41 = scmp.ne.s32.totalorder %s33, %s36
    %p42 = scmp.eq.s32.totalorder %s23, 0
    %p43 = por %p41, %p42
    %p44 = scmp.ne.s32.totalorder %s33, %s36
    %p45 = scmp.eq.s32.totalorder %s28, 1
    %p46 = por %p44, %p45
    %p47 = scmp.ne.s32.totalorder %s36, %s37
    %p48 = scmp.eq.s32.totalorder %s28, 0
    %p49 = por %p47, %p48
    %p50 = scmp.ne.s32.totalorder %s36, %s37
    %p51 = scmp.eq.s32.totalorder %s29, 1
    %p52 = por %p50, %p51
    %p54 = scmp.ne.s32.totalorder %s37, %s53
    %p55 = scmp.eq.s32.totalorder %s29, 0
    %p56 = por %p54, %p55
    %s57 = ssub.s32 %s23, %s30
    %p58 = scmp.eq.s32.totalorder %s57, 0
    %s60 = sadd.s32 %s59, 1
    %s61 = scalar_select %p58, %s59, %s60
    %p64 = pneg %p58
    %p65 = scmp.eq.s32.totalorder %s23, 1
    %p66 = por %p64, %p65
    %p67 = scmp.ne.s32.totalorder %s59, %s62
    %p68 = scmp.eq.s32.totalorder %s23, 0
    %p69 = por %p67, %p68
    %p70 = scmp.ne.s32.totalorder %s59, %s62
    %p71 = scmp.eq.s32.totalorder %s28, 1
    %p72 = por %p70, %p71
    %p73 = scmp.ne.s32.totalorder %s62, %s63
    %p74 = scmp.eq.s32.totalorder %s28, 0
    %p75 = por %p73, %p74
    %p76 = scmp.ne.s32.totalorder %s62, %s63
    %p77 = scmp.eq.s32.totalorder %s29, 1
    %p78 = por %p76, %p77
    %p80 = scmp.ne.s32.totalorder %s63, %s79
    %p81 = scmp.eq.s32.totalorder %s29, 0
    %p82 = por %p80, %p81
    %s83 = ssub.s32 %s23, %s30
    %p84 = scmp.eq.s32.totalorder %s83, 0
    %s86 = sadd.s32 %s85, 1
    %s87 = scalar_select %p84, %s85, %s86
    %p90 = pneg %p84
    %p91 = scmp.eq.s32.totalorder %s23, 1
    %p92 = por %p90, %p91
    %p93 = scmp.ne.s32.totalorder %s85, %s88
    %p94 = scmp.eq.s32.totalorder %s23, 0
    %p95 = por %p93, %p94
    %p96 = scmp.ne.s32.totalorder %s85, %s88
    %p97 = scmp.eq.s32.totalorder %s28, 1
    %p98 = por %p96, %p97
    %p99 = scmp.ne.s32.totalorder %s88, %s89
    %p100 = scmp.eq.s32.totalorder %s28, 0
    %p101 = por %p99, %p100
    %p102 = scmp.ne.s32.totalorder %s88, %s89
    %p103 = scmp.eq.s32.totalorder %s29, 1
    %p104 = por %p102, %p103
    %p106 = scmp.ne.s32.totalorder %s89, %s105
    %p107 = scmp.eq.s32.totalorder %s29, 0
    %p108 = por %p106, %p107
    %s109 = ssub.s32 %s23, %s30
    %p110 = scmp.eq.s32.totalorder %s109, 0
    %s112 = sadd.s32 %s111, 1
    %s113 = scalar_select %p110, %s111, %s112
    %p116 = pneg %p110
    %p117 = scmp.eq.s32.totalorder %s23, 1
    %p118 = por %p116, %p117
    %p119 = scmp.ne.s32.totalorder %s111, %s114
    %p120 = scmp.eq.s32.totalorder %s23, 0
    %p121 = por %p119, %p120
    %p122 = scmp.ne.s32.totalorder %s111, %s114
    %p123 = scmp.eq.s32.totalorder %s28, 1
    %p124 = por %p122, %p123
    %p125 = scmp.ne.s32.totalorder %s114, %s115
    %p126 = scmp.eq.s32.totalorder %s28, 0
    %p127 = por %p125, %p126
    %p128 = scmp.ne.s32.totalorder %s114, %s115
    %p129 = scmp.eq.s32.totalorder %s29, 1
    %p130 = por %p128, %p129
    %p132 = scmp.ne.s32.totalorder %s115, %s131
    %p133 = scmp.eq.s32.totalorder %s29, 0
    %p134 = por %p132, %p133
    %s136 = sadd.s32 %s135, 1
    %p139 = scmp.eq.s32.totalorder %s23, 1
    %p140 = scmp.ne.s32.totalorder %s135, %s137
    %p141 = scmp.eq.s32.totalorder %s23, 0
    %p142 = por %p140, %p141
    %p143 = scmp.ne.s32.totalorder %s135, %s137
    %p144 = scmp.eq.s32.totalorder %s28, 1
    %p145 = por %p143, %p144
    %p146 = scmp.ne.s32.totalorder %s137, %s138
    %p147 = scmp.eq.s32.totalorder %s28, 0
    %p148 = por %p146, %p147
    %p149 = scmp.ne.s32.totalorder %s137, %s138
    %p150 = scmp.eq.s32.totalorder %s29, 1
    %p151 = por %p149, %p150
    %p153 = scmp.ne.s32.totalorder %s138, %s152
    %p154 = scmp.eq.s32.totalorder %s29, 0
    %p155 = por %p153, %p154
    %s157 = sadd.s32 %s156, 1
    %p160 = scmp.eq.s32.totalorder %s23, 1
    %p161 = scmp.ne.s32.totalorder %s156, %s158
    %p162 = scmp.eq.s32.totalorder %s23, 0
    %p163 = por %p161, %p162
    %p164 = scmp.ne.s32.totalorder %s156, %s158
    %p165 = scmp.eq.s32.totalorder %s28, 1
    %p166 = por %p164, %p165
    %p167 = scmp.ne.s32.totalorder %s158, %s159
    %p168 = scmp.eq.s32.totalorder %s28, 0
    %p169 = por %p167, %p168
    %p170 = scmp.ne.s32.totalorder %s158, %s159
    %p171 = scmp.eq.s32.totalorder %s29, 1
    %p172 = por %p170, %p171
    %p174 = scmp.ne.s32.totalorder %s159, %s173
    %p175 = scmp.eq.s32.totalorder %s29, 0
    %p176 = por %p174, %p175
    %s178 = sadd.s32 %s177, 1
    %p181 = scmp.eq.s32.totalorder %s23, 1
    %p182 = scmp.ne.s32.totalorder %s177, %s179
    %p183 = scmp.eq.s32.totalorder %s23, 0
    %p184 = por %p182, %p183
    %p185 = scmp.ne.s32.totalorder %s177, %s179
    %p186 = scmp.eq.s32.totalorder %s28, 1
    %p187 = por %p185, %p186
    %p188 = scmp.ne.s32.totalorder %s179, %s180
    %p189 = scmp.eq.s32.totalorder %s28, 0
    %p190 = por %p188, %p189
    %p191 = scmp.ne.s32.totalorder %s179, %s180
    %p192 = scmp.eq.s32.totalorder %s29, 1
    %p193 = por %p191, %p192
    %p195 = scmp.ne.s32.totalorder %s180, %s194
    %p196 = scmp.eq.s32.totalorder %s29, 0
    %p197 = por %p195, %p196
    %s199 = sadd.s32 %s198, 1
    %p202 = scmp.eq.s32.totalorder %s23, 1
    %p203 = scmp.ne.s32.totalorder %s198, %s200
    %p204 = scmp.eq.s32.totalorder %s23, 0
    %p205 = por %p203, %p204
    %p206 = scmp.ne.s32.totalorder %s198, %s200
    %p207 = scmp.eq.s32.totalorder %s28, 1
    %p208 = por %p206, %p207
    %p209 = scmp.ne.s32.totalorder %s200, %s201
    %p210 = scmp.eq.s32.totalorder %s28, 0
    %p211 = por %p209, %p210
    %p212 = scmp.ne.s32.totalorder %s200, %s201
    %p213 = scmp.eq.s32.totalorder %s29, 1
    %p214 = por %p212, %p213
    %p216 = scmp.ne.s32.totalorder %s201, %s215
    %p217 = scmp.eq.s32.totalorder %s29, 0
    %p218 = por %p216, %p217
    %s220 = sadd.s32 %s219, 1
    %p223 = scmp.eq.s32.totalorder %s23, 1
    %p224 = scmp.ne.s32.totalorder %s219, %s221
    %p225 = scmp.eq.s32.totalorder %s23, 0
    %p226 = por %p224, %p225
    %p227 = scmp.ne.s32.totalorder %s219, %s221
    %p228 = scmp.eq.s32.totalorder %s28, 1
    %p229 = por %p227, %p228
    %p230 = scmp.ne.s32.totalorder %s221, %s222
    %p231 = scmp.eq.s32.totalorder %s28, 0
    %p232 = por %p230, %p231
    %p233 = scmp.ne.s32.totalorder %s221, %s222
    %p234 = scmp.eq.s32.totalorder %s29, 1
    %p235 = por %p233, %p234
    %p237 = scmp.ne.s32.totalorder %s222, %s236
    %p238 = scmp.eq.s32.totalorder %s29, 0
    %p239 = por %p237, %p238
    %s241 = sadd.s32 %s240, 1
    %p244 = scmp.eq.s32.totalorder %s23, 1
    %p245 = scmp.ne.s32.totalorder %s240, %s242
    %p246 = scmp.eq.s32.totalorder %s23, 0
    %p247 = por %p245, %p246
    %p248 = scmp.ne.s32.totalorder %s240, %s242
    %p249 = scmp.eq.s32.totalorder %s28, 1
    %p250 = por %p248, %p249
    %p251 = scmp.ne.s32.totalorder %s242, %s243
    %p252 = scmp.eq.s32.totalorder %s28, 0
    %p253 = por %p251, %p252
    %p254 = scmp.ne.s32.totalorder %s242, %s243
    %p255 = scmp.eq.s32.totalorder %s29, 1
    %p256 = por %p254, %p255
    %p258 = scmp.ne.s32.totalorder %s243, %s257
    %p259 = scmp.eq.s32.totalorder %s29, 0
    %p260 = por %p258, %p259
    %s262 = sadd.s32 %s261, 1
    %p265 = scmp.eq.s32.totalorder %s23, 1
    %p266 = scmp.ne.s32.totalorder %s261, %s263
    %p267 = scmp.eq.s32.totalorder %s23, 0
    %p268 = por %p266, %p267
    %p269 = scmp.ne.s32.totalorder %s261, %s263
    %p270 = scmp.eq.s32.totalorder %s28, 1
    %p271 = por %p269, %p270
    %p272 = scmp.ne.s32.totalorder %s263, %s264
    %p273 = scmp.eq.s32.totalorder %s28, 0
    %p274 = por %p272, %p273
    %p275 = scmp.ne.s32.totalorder %s263, %s264
    %p276 = scmp.eq.s32.totalorder %s29, 1
    %p277 = por %p275, %p276
    %p279 = scmp.ne.s32.totalorder %s264, %s278
    %p280 = scmp.eq.s32.totalorder %s29, 0
    %p281 = por %p279, %p280
    %s283 = sadd.s32 %s282, 1
    %p286 = scmp.eq.s32.totalorder %s23, 1
    %p287 = scmp.ne.s32.totalorder %s282, %s284
    %p288 = scmp.eq.s32.totalorder %s23, 0
    %p289 = por %p287, %p288
    %p290 = scmp.ne.s32.totalorder %s282, %s284
    %p291 = scmp.eq.s32.totalorder %s28, 1
    %p292 = por %p290, %p291
    %p293 = scmp.ne.s32.totalorder %s284, %s285
    %p294 = scmp.eq.s32.totalorder %s28, 0
    %p295 = por %p293, %p294
    %p296 = scmp.ne.s32.totalorder %s284, %s285
    %p297 = scmp.eq.s32.totalorder %s29, 1
    %p298 = por %p296, %p297
    %p300 = scmp.ne.s32.totalorder %s285, %s299
    %p301 = scmp.eq.s32.totalorder %s29, 0
    %p302 = por %p300, %p301
    %s304 = sadd.s32 %s303, 1
    %p307 = scmp.eq.s32.totalorder %s23, 1
    %p308 = scmp.ne.s32.totalorder %s303, %s305
    %p309 = scmp.eq.s32.totalorder %s23, 0
    %p310 = por %p308, %p309
    %p311 = scmp.ne.s32.totalorder %s303, %s305
    %p312 = scmp.eq.s32.totalorder %s28, 1
    %p313 = por %p311, %p312
    %p314 = scmp.ne.s32.totalorder %s305, %s306
    %p315 = scmp.eq.s32.totalorder %s28, 0
    %p316 = por %p314, %p315
    %p317 = scmp.ne.s32.totalorder %s305, %s306
    %p318 = scmp.eq.s32.totalorder %s29, 1
    %p319 = por %p317, %p318
    %p321 = scmp.ne.s32.totalorder %s306, %s320
    %p322 = scmp.eq.s32.totalorder %s29, 0
    %p323 = por %p321, %p322
    %s324 = ssub.s32 %s23, %s30
    %p325 = scmp.eq.s32.totalorder %s324, 0
    %s327 = sadd.s32 %s326, 1
    %s328 = scalar_select %p325, %s326, %s327
    %p331 = pneg %p325
    %p332 = scmp.eq.s32.totalorder %s23, 1
    %p333 = por %p331, %p332
    %p334 = scmp.ne.s32.totalorder %s326, %s329
    %p335 = scmp.eq.s32.totalorder %s23, 0
    %p336 = por %p334, %p335
    %p337 = scmp.ne.s32.totalorder %s326, %s329
    %p338 = scmp.eq.s32.totalorder %s28, 1
    %p339 = por %p337, %p338
    %p340 = scmp.ne.s32.totalorder %s329, %s330
    %p341 = scmp.eq.s32.totalorder %s28, 0
    %p342 = por %p340, %p341
    %p343 = scmp.ne.s32.totalorder %s329, %s330
    %p344 = scmp.eq.s32.totalorder %s29, 1
    %p345 = por %p343, %p344
    %p347 = scmp.ne.s32.totalorder %s330, %s346
    %p348 = scmp.eq.s32.totalorder %s29, 0
    %p349 = por %p347, %p348
    %s350 = ssub.s32 %s23, %s30
    %p351 = scmp.eq.s32.totalorder %s350, 0
    %s353 = sadd.s32 %s352, 1
    %s354 = scalar_select %p351, %s352, %s353
    %p357 = pneg %p351
    %p358 = scmp.eq.s32.totalorder %s23, 1
    %p359 = por %p357, %p358
    %p360 = scmp.ne.s32.totalorder %s352, %s355
    %p361 = scmp.eq.s32.totalorder %s23, 0
    %p362 = por %p360, %p361
    %p363 = scmp.ne.s32.totalorder %s352, %s355
    %p364 = scmp.eq.s32.totalorder %s28, 1
    %p365 = por %p363, %p364
    %p366 = scmp.ne.s32.totalorder %s355, %s356
    %p367 = scmp.eq.s32.totalorder %s28, 0
    %p368 = por %p366, %p367
    %p369 = scmp.ne.s32.totalorder %s355, %s356
    %p370 = scmp.eq.s32.totalorder %s29, 1
    %p371 = por %p369, %p370
    %p373 = scmp.ne.s32.totalorder %s356, %s372
    %p374 = scmp.eq.s32.totalorder %s29, 0
    %p375 = por %p373, %p374
    %p376 = scmp.le.s32.totalorder 1, %s23
    %p377 = scmp.lt.s32.totalorder %s23, 3
    %p378 = pnand %p376, %p377
    %p379 = pneg %p378
    // Predicated region
    $region9: #{tpu_custom_call.1} parent=5 // pred_check
      _
    $region10: #{tpu_custom_call.1} parent=5 // pred_check_branch
      %381 = sbr.rel (%p378) target = $region12
    $region11: #{tpu_custom_call.1} parent=5 // pred_region
      %s382 = ssub.s32 %s23, 1
      // Predicated region
      $region13: #{tpu_custom_call.1} parent=11 // pred_check
        %p383 = pneg %p148
      $region14: #{tpu_custom_call.1} parent=11 // pred_check_branch
        %385 = sbr.rel (%p383) target = $region16
      $region15: #{tpu_custom_call.1} parent=11 // pred_region
        _
      $region16: #{tpu_custom_call.1} parent=11 // pred_fallthru
        _
      // Predicated region
      $region17: #{tpu_custom_call.1} parent=11 // pred_check
        %p386 = pneg %p169
      $region18: #{tpu_custom_call.1} parent=11 // pred_check_branch
        %388 = sbr.rel (%p386) target = $region20
      $region19: #{tpu_custom_call.1} parent=11 // pred_region
        _
      $region20: #{tpu_custom_call.1} parent=11 // pred_fallthru
        _
      // Predicated region
      $region21: #{tpu_custom_call.1} parent=11 // pred_check
        %p389 = pneg %p190
      $region22: #{tpu_custom_call.1} parent=11 // pred_check_branch
        %391 = sbr.rel (%p389) target = $region24
      $region23: #{tpu_custom_call.1} parent=11 // pred_region
        _
      $region24: #{tpu_custom_call.1} parent=11 // pred_fallthru
        _
      // Predicated region
      $region25: #{tpu_custom_call.1} parent=11 // pred_check
        %p392 = pneg %p211
      $region26: #{tpu_custom_call.1} parent=11 // pred_check_branch
        %394 = sbr.rel (%p392) target = $region28
      $region27: #{tpu_custom_call.1} parent=11 // pred_region
        _
      $region28: #{tpu_custom_call.1} parent=11 // pred_fallthru
        _
      // Predicated region
      $region29: #{tpu_custom_call.1} parent=11 // pred_check
        %p395 = pneg %p232
      $region30: #{tpu_custom_call.1} parent=11 // pred_check_branch
        %397 = sbr.rel (%p395) target = $region32
      $region31: #{tpu_custom_call.1} parent=11 // pred_region
        _
      $region32: #{tpu_custom_call.1} parent=11 // pred_fallthru
        _
      // Predicated region
      $region33: #{tpu_custom_call.1} parent=11 // pred_check
        %p398 = pneg %p253
      $region34: #{tpu_custom_call.1} parent=11 // pred_check_branch
        %400 = sbr.rel (%p398) target = $region36
      $region35: #{tpu_custom_call.1} parent=11 // pred_region
        _
      $region36: #{tpu_custom_call.1} parent=11 // pred_fallthru
        _
      // Predicated region
      $region37: #{tpu_custom_call.1} parent=11 // pred_check
        %p401 = pneg %p274
      $region38: #{tpu_custom_call.1} parent=11 // pred_check_branch
        %403 = sbr.rel (%p401) target = $region40
      $region39: #{tpu_custom_call.1} parent=11 // pred_region
        _
      $region40: #{tpu_custom_call.1} parent=11 // pred_fallthru
        _
      // Predicated region
      $region41: #{tpu_custom_call.1} parent=11 // pred_check
        %p404 = pneg %p295
      $region42: #{tpu_custom_call.1} parent=11 // pred_check_branch
        %406 = sbr.rel (%p404) target = $region44
      $region43: #{tpu_custom_call.1} parent=11 // pred_region
        _
      $region44: #{tpu_custom_call.1} parent=11 // pred_fallthru
        _
      // Predicated region
      $region45: #{tpu_custom_call.1} parent=11 // pred_check
        %p407 = pneg %p316
      $region46: #{tpu_custom_call.1} parent=11 // pred_check_branch
        %409 = sbr.rel (%p407) target = $region48
      $region47: #{tpu_custom_call.1} parent=11 // pred_region
        _
      $region48: #{tpu_custom_call.1} parent=11 // pred_fallthru
        _
    $region12: #{tpu_custom_call.1} parent=5 // pred_fallthru
      _
    %p410 = scmp.lt.s32.totalorder %s23, 2
    // Predicated region
    $region49: #{tpu_custom_call.1} parent=5 // pred_check
      %p411 = pneg %p410
    $region50: #{tpu_custom_call.1} parent=5 // pred_check_branch
      %413 = sbr.rel (%p411) target = $region52
    $region51: #{tpu_custom_call.1} parent=5 // pred_region
      // Predicated region
      $region53: #{tpu_custom_call.1} parent=51 // pred_check
        %p414 = pneg %p43
      $region54: #{tpu_custom_call.1} parent=51 // pred_check_branch
        %416 = sbr.rel (%p414) target = $region56
      $region55: #{tpu_custom_call.1} parent=51 // pred_region
        %s417 = smul.u32 2, %s23
        %p418 = scmp.lt.s32.totalorder %s417, 3
        %s419 = scalar_select %p418, %s417, 3
        %s420 = smul.addr %s419, 8
        %s421 = scalar_lea.vmem %s0, %s420
        %s422 = smul.u32 2, %s23
      $region56: #{tpu_custom_call.1} parent=51 // pred_fallthru
        _
      // Predicated region
      $region57: #{tpu_custom_call.1} parent=51 // pred_check
        %p423 = pneg %p69
      $region58: #{tpu_custom_call.1} parent=51 // pred_check_branch
        %425 = sbr.rel (%p423) target = $region60
      $region59: #{tpu_custom_call.1} parent=51 // pred_region
        %s426 = smul.u32 2, %s23
        %p427 = scmp.lt.s32.totalorder %s426, 3
        %s428 = scalar_select %p427, %s426, 3
        %s429 = smul.addr %s428, 2
        %s430 = smul.addr %s429, 8
        %s431 = scalar_lea.vmem %s1, %s430
        %s432 = smul.u32 2, %s23
      $region60: #{tpu_custom_call.1} parent=51 // pred_fallthru
        _
      // Predicated region
      $region61: #{tpu_custom_call.1} parent=51 // pred_check
        %p433 = pneg %p95
      $region62: #{tpu_custom_call.1} parent=51 // pred_check_branch
        %435 = sbr.rel (%p433) target = $region64
      $region63: #{tpu_custom_call.1} parent=51 // pred_region
        %s436 = smul.u32 2, %s23
        %p437 = scmp.lt.s32.totalorder %s436, 3
        %s438 = scalar_select %p437, %s436, 3
        %s439 = scalar_lea.vmem %s2, %s438
        %s440 = smul.u32 2, %s23
      $region64: #{tpu_custom_call.1} parent=51 // pred_fallthru
        _
      // Predicated region
      $region65: #{tpu_custom_call.1} parent=51 // pred_check
        %p441 = pneg %p121
      $region66: #{tpu_custom_call.1} parent=51 // pred_check_branch
        %443 = sbr.rel (%p441) target = $region68
      $region67: #{tpu_custom_call.1} parent=51 // pred_region
        %s444 = smul.u32 2, %s23
        %p445 = scmp.lt.s32.totalorder %s444, 3
        %s446 = scalar_select %p445, %s444, 3
        %s447 = scalar_lea.vmem %s3, %s446
        %s448 = smul.u32 2, %s23
      $region68: #{tpu_custom_call.1} parent=51 // pred_fallthru
        _
    $region52: #{tpu_custom_call.1} parent=5 // pred_fallthru
      _
    %p449 = scmp.le.s32.totalorder 1, %s23
    %p450 = scmp.lt.s32.totalorder %s23, 3
    %p451 = pnand %p449, %p450
    %p452 = pneg %p451
    // Predicated region
    $region69: #{tpu_custom_call.1} parent=5 // pred_check
      _
    $region70: #{tpu_custom_call.1} parent=5 // pred_check_branch
      %454 = sbr.rel (%p451) target = $region72
    $region71: #{tpu_custom_call.1} parent=5 // pred_region
      %s455 = ssub.s32 %s23, 1
      %s456 = smul.u32 2, %s28
      %p457 = scmp.lt.s32.totalorder %s456, 3
      %s458 = scalar_select %p457, %s456, 3
      %s459 = smul.addr %s458, 8
      %s460 = scalar_lea.vmem %s0, %s459
      %p461 = pneg %p49
      %p462 = pneg %p46
      %s463 = smul.u32 2, %s28
      %p464 = scmp.lt.s32.totalorder %s463, 3
      %s465 = scalar_select %p464, %s463, 3
      %s466 = smul.addr %s465, 2
      %s467 = smul.addr %s466, 8
      %s468 = scalar_lea.vmem %s1, %s467
      %p469 = pneg %p75
      %p470 = pneg %p72
      %s471 = smul.u32 2, %s28
      %p472 = scmp.lt.s32.totalorder %s471, 3
      %s473 = scalar_select %p472, %s471, 3
      %s474 = scalar_lea.vmem %s2, %s473
      %p475 = pneg %p101
      %p476 = pneg %p98
      %s477 = smul.u32 2, %s28
      %p478 = scmp.lt.s32.totalorder %s477, 3
      %s479 = scalar_select %p478, %s477, 3
      %s480 = scalar_lea.vmem %s3, %s479
      %p481 = pneg %p127
      %p482 = pneg %p124
      %p483 = pneg %p148
      %p484 = pneg %p145
      %p485 = pneg %p169
      %p486 = pneg %p166
      %p487 = pneg %p190
      %p488 = pneg %p187
      %p489 = pneg %p211
      %p490 = pneg %p208
      %p491 = pneg %p232
      %p492 = pneg %p229
      %p493 = pneg %p253
      %p494 = pneg %p250
      %p495 = pneg %p274
      %p496 = pneg %p271
      %p497 = pneg %p295
      %p498 = pneg %p292
      %p499 = pneg %p316
      %p500 = pneg %p313
      %p501 = pneg %p342
      %p502 = pneg %p339
      %s503 = smul.u32 2, %s28
      %p504 = scmp.lt.s32.totalorder %s503, 3
      %s505 = scalar_select %p504, %s503, 3
      %s506 = smul.addr %s505, 4
      %s507 = scalar_lea.vmem %s13, %s506
      %p508 = pneg %p368
      %p509 = pneg %p365
      %s510 = smul.u32 2, %s28
      %p511 = scmp.lt.s32.totalorder %s510, 3
      %s512 = scalar_select %p511, %s510, 3
      %s513 = scalar_lea.vmem %s14, %s512
      %s514 = smul.u32 2, %s28
      %p515 = scmp.lt.s32.totalorder %s514, 3
      %s516 = scalar_select %p515, %s514, 3
      %s517 = smul.addr %s516, 8
      %s518 = scalar_lea.vmem %s0, %s517
      %s519 = smul.u32 2, %s28
      %s520 = smul.u32 2, %s28
      %p521 = scmp.lt.s32.totalorder %s520, 3
      %s522 = scalar_select %p521, %s520, 3
      %s523 = smul.addr %s522, 2
      %s524 = smul.addr %s523, 8
      %s525 = scalar_lea.vmem %s1, %s524
      %s526 = smul.u32 2, %s28
      %s527 = smul.u32 2, %s28
      %p528 = scmp.lt.s32.totalorder %s527, 3
      %s529 = scalar_select %p528, %s527, 3
      %s530 = scalar_lea.vmem %s2, %s529
      %s531 = smul.u32 2, %s28
      %s532 = smul.u32 2, %s28
      %p533 = scmp.lt.s32.totalorder %s532, 3
      %s534 = scalar_select %p533, %s532, 3
      %s535 = scalar_lea.vmem %s3, %s534
      %s536 = smul.u32 2, %s28
      %s537 = smul.u32 2, %s28
      %p538 = scmp.lt.s32.totalorder %s537, 3
      %s539 = scalar_select %p538, %s537, 3
      %s540 = smul.addr %s539, 4
      %s541 = scalar_lea.vmem %s13, %s540
      %s542 = smul.u32 2, %s28
      %s543 = smul.u32 2, %s28
      %p544 = scmp.lt.s32.totalorder %s543, 3
      %s545 = scalar_select %p544, %s543, 3
      %s546 = scalar_lea.vmem %s14, %s545
      %s547 = smul.u32 2, %s28
      %v548 = vld [vmem:[%s8] sm:$0xff]
      %v549 = vld [vmem:[%s8 + $0x8] sm:$0xff]
      %v550 = vld [vmem:[%s8 + $0x10] sm:$0xff]
      %v551 = vld [vmem:[%s8 + $0x18] sm:$0xff]
      %v552 = vld [vmem:[%s8 + $0x20] sm:$0xff]
      %v553 = vld [vmem:[%s8 + $0x28] sm:$0xff]
      %v554 = vld [vmem:[%s8 + $0x30] sm:$0xff]
      %v555 = vld [vmem:[%s8 + $0x38] sm:$0xff]
      %v556 = vld [vmem:[%s8 + $0x40] sm:$0xff]
      %v557 = vld [vmem:[%s8 + $0x48] sm:$0xff]
      %v558 = vld [vmem:[%s8 + $0x50] sm:$0xff]
      %v559 = vld [vmem:[%s8 + $0x58] sm:$0xff]
      %v560 = vld [vmem:[%s8 + $0x60] sm:$0xff]
      %v561 = vld [vmem:[%s8 + $0x68] sm:$0xff]
      %v562 = vld [vmem:[%s8 + $0x70] sm:$0xff]
      %v563 = vld [vmem:[%s8 + $0x78] sm:$0xff]
      %v564 = vld [vmem:[%s8 + $0x80] sm:$0xff]
      %v565 = vld [vmem:[%s8 + $0x88] sm:$0xff]
      %v566 = vld [vmem:[%s8 + $0x90] sm:$0xff]
      %v567 = vld [vmem:[%s8 + $0x98] sm:$0xff]
      %v568 = vld [vmem:[%s8 + $0xa0] sm:$0xff]
      %v569 = vld [vmem:[%s8 + $0xa8] sm:$0xff]
      %v570 = vld [vmem:[%s8 + $0xb0] sm:$0xff]
      %v571 = vld [vmem:[%s8 + $0xb8] sm:$0xff]
      %v572 = vld [vmem:[%s9] sm:$0x7]
      %v573 = vld [vmem:[%s518] sm:$0xff]
      %v574 = vld [vmem:[%s518 + $0x8] sm:$0xff]
      %vm575 = vcmask 261120
      %v577 = vsel %vm575, %v573, 0
      %v580 = vsel %vm575, %v574, 0
      %582 = vmatprep.subr.mxu0 0.0
      %583 = vmatpush1.msra.mxu0 0.0
      %584 = vmatprep.subr.mxu0 0.0
      %585 = vmatpush1.msra.mxu0 0.0
      %586 = vmatprep.subr.mxu0 0.0
      %587 = vmatpush1.msra.mxu0 0.0
      %588 = vmatprep.subr.mxu0 0.0
      %589 = vmatpush1.msra.mxu0 0.0
      %590 = vmatprep.subr.mxu0 0.0
      %591 = vmatpush1.msra.mxu0 0.0
      %592 = vmatprep.subr.mxu0 0.0
      %593 = vmatpush1.msra.mxu0 0.0
      %594 = vmatprep.subr.mxu0 0.0
      %595 = vmatpush1.msra.mxu0 0.0
      %596 = vmatprep.subr.mxu0 0.0
      %597 = vmatpush1.msra.mxu0 0.0
      %598 = vmatprep.subr.mxu0 0.0
      %599 = vmatpush1.msra.mxu0 0.0
      %600 = vmatprep.subr.mxu0 0.0
      %601 = vmatpush1.msra.mxu0 0.0
      %602 = vmatprep.subr.mxu0 0.0
      %603 = vmatpush1.msra.mxu0 0.0
      %604 = vmatprep.subr.mxu0 0.0
      %605 = vmatpush1.msra.mxu0 0.0
      %v606 = vand.u32 %v567, 4294901760
      %607 = vmatprep.subr.mxu0 %v606
      %v608 = vand.u32 %v566, 4294901760
      %609 = vmatpush1.msra.mxu0 %v608
      %v610 = vand.u32 %v561, 4294901760
      %611 = vmatprep.subr.mxu0 %v610
      %v612 = vand.u32 %v560, 4294901760
      %613 = vmatpush1.msra.mxu0 %v612
      %v614 = vand.u32 %v555, 4294901760
      %615 = vmatprep.subr.mxu0 %v614
      %v616 = vand.u32 %v554, 4294901760
      %617 = vmatpush1.msra.mxu0 %v616
      %v618 = vand.u32 %v549, 4294901760
      %619 = vmatprep.subr.mxu0 %v618
      %v620 = vand.u32 %v548, 4294901760
      %621 = vmatpush1.msra.mxu0 %v620
      %622 = vmatprep.subr.mxu0 0.0
      %623 = vmatpush2.msra.mxu0 0.0
      %624 = vmatprep.subr.mxu0 0.0
      %625 = vmatpush2.msra.mxu0 0.0
      %626 = vmatprep.subr.mxu0 0.0
      %627 = vmatpush2.msra.mxu0 0.0
      %628 = vmatprep.subr.mxu0 0.0
      %629 = vmatpush2.msra.mxu0 0.0
      %630 = vmatprep.subr.mxu0 0.0
      %631 = vmatpush2.msra.mxu0 0.0
      %632 = vmatprep.subr.mxu0 0.0
      %633 = vmatpush2.msra.mxu0 0.0
      %634 = vmatprep.subr.mxu0 0.0
      %635 = vmatpush2.msra.mxu0 0.0
      %636 = vmatprep.subr.mxu0 0.0
      %637 = vmatpush2.msra.mxu0 0.0
      %638 = vmatprep.subr.mxu0 0.0
      %639 = vmatpush2.msra.mxu0 0.0
      %640 = vmatprep.subr.mxu0 0.0
      %641 = vmatpush2.msra.mxu0 0.0
      %642 = vmatprep.subr.mxu0 0.0
      %643 = vmatpush2.msra.mxu0 0.0
      %644 = vmatprep.subr.mxu0 0.0
      %645 = vmatpush2.msra.mxu0 0.0
      %646 = vmatprep.subr.mxu0 0.0
      %647 = vmatpush2.msra.mxu0 0.0
      %648 = vmatprep.subr.mxu0 0.0
      %649 = vmatpush2.msra.mxu0 0.0
      %650 = vmatprep.subr.mxu0 0.0
      %651 = vmatpush2.msra.mxu0 0.0
      %652 = vmatprep.subr.mxu0 0.0
      %653 = vmatpush2.msra.mxu0 0.0
      %654 = vmatprep.mubr.f32.mxu0 0.0
      %v655 = vand.u32 %v577, 4294901760
      %v656 = vsub.f32 %v577, %v655
      %v657 = vand.u32 %v656, 4294901760
      %v658 = vsub.f32 %v656, %v657
      %v659 = vand.u32 %v658, 4294901760
      %660 = vmatmul.mubr.f32.gmra.mxu0 %v659
      %v661 = vpop.f32.mrf.mxu0
      %v662 = vadd.f32 0.0, %v661
      %v663 = vpop.f32.mrf.mxu0
      %v664 = vadd.f32 0.0, %v663
      %665 = vmatprep.mubr.f32.mxu0 0.0
      %v666 = vand.u32 %v580, 4294901760
      %v667 = vsub.f32 %v580, %v666
      %v668 = vand.u32 %v667, 4294901760
      %v669 = vsub.f32 %v667, %v668
      %v670 = vand.u32 %v669, 4294901760
      %671 = vmatmul.mubr.f32.gmra.mxu0 %v670
      %v672 = vpop.f32.mrf.mxu0
      %v673 = vadd.f32 0.0, %v672
      %v674 = vpop.f32.mrf.mxu0
      %v675 = vadd.f32 0.0, %v674
      %676 = vdwg.mxu0
      %677 = vmatprep.subr.mxu0 0.0
      %678 = vmatpush1.msra.mxu0 0.0
      %679 = vmatprep.subr.mxu0 0.0
      %680 = vmatpush1.msra.mxu0 0.0
      %681 = vmatprep.subr.mxu0 0.0
      %682 = vmatpush1.msra.mxu0 0.0
      %683 = vmatprep.subr.mxu0 0.0
      %684 = vmatpush1.msra.mxu0 0.0
      %685 = vmatprep.subr.mxu0 0.0
      %686 = vmatpush1.msra.mxu0 0.0
      %687 = vmatprep.subr.mxu0 0.0
      %688 = vmatpush1.msra.mxu0 0.0
      %689 = vmatprep.subr.mxu0 0.0
      %690 = vmatpush1.msra.mxu0 0.0
      %691 = vmatprep.subr.mxu0 0.0
      %692 = vmatpush1.msra.mxu0 0.0
      %693 = vmatprep.subr.mxu0 0.0
      %694 = vmatpush1.msra.mxu0 0.0
      %695 = vmatprep.subr.mxu0 0.0
      %696 = vmatpush1.msra.mxu0 0.0
      %697 = vmatprep.subr.mxu0 0.0
      %698 = vmatpush1.msra.mxu0 0.0
      %699 = vmatprep.subr.mxu0 0.0
      %700 = vmatpush1.msra.mxu0 0.0
      %v701 = vand.u32 %v567, 4294901760
      %v702 = vsub.f32 %v567, %v701
      %v703 = vand.u32 %v702, 4294901760
      %v704 = vsub.f32 %v702, %v703
      %v705 = vand.u32 %v704, 4294901760
      %706 = vmatprep.subr.mxu0 %v705
      %v707 = vand.u32 %v566, 4294901760
      %v708 = vsub.f32 %v566, %v707
      %v709 = vand.u32 %v708, 4294901760
      %v710 = vsub.f32 %v708, %v709
      %v711 = vand.u32 %v710, 4294901760
      %712 = vmatpush1.msra.mxu0 %v711
      %v713 = vand.u32 %v561, 4294901760
      %v714 = vsub.f32 %v561, %v713
      %v715 = vand.u32 %v714, 4294901760
      %v716 = vsub.f32 %v714, %v715
      %v717 = vand.u32 %v716, 4294901760
      %718 = vmatprep.subr.mxu0 %v717
      %v719 = vand.u32 %v560, 4294901760
      %v720 = vsub.f32 %v560, %v719
      %v721 = vand.u32 %v720, 4294901760
      %v722 = vsub.f32 %v720, %v721
      %v723 = vand.u32 %v722, 4294901760
      %724 = vmatpush1.msra.mxu0 %v723
      %v725 = vand.u32 %v555, 4294901760
      %v726 = vsub.f32 %v555, %v725
      %v727 = vand.u32 %v726, 4294901760
      %v728 = vsub.f32 %v726, %v727
      %v729 = vand.u32 %v728, 4294901760
      %730 = vmatprep.subr.mxu0 %v729
      %v731 = vand.u32 %v554, 4294901760
      %v732 = vsub.f32 %v554, %v731
      %v733 = vand.u32 %v732, 4294901760
      %v734 = vsub.f32 %v732, %v733
      %v735 = vand.u32 %v734, 4294901760
      %736 = vmatpush1.msra.mxu0 %v735
      %v737 = vand.u32 %v549, 4294901760
      %v738 = vsub.f32 %v549, %v737
      %v739 = vand.u32 %v738, 4294901760
      %v740 = vsub.f32 %v738, %v739
      %v741 = vand.u32 %v740, 4294901760
      %742 = vmatprep.subr.mxu0 %v741
      %v743 = vand.u32 %v548, 4294901760
      %v744 = vsub.f32 %v548, %v743
      %v745 = vand.u32 %v744, 4294901760
      %v746 = vsub.f32 %v744, %v745
      %v747 = vand.u32 %v746, 4294901760
      %748 = vmatpush1.msra.mxu0 %v747
      %749 = vmatprep.subr.mxu0 0.0
      %750 = vmatpush2.msra.mxu0 0.0
      %751 = vmatprep.subr.mxu0 0.0
      %752 = vmatpush2.msra.mxu0 0.0
      %753 = vmatprep.subr.mxu0 0.0
      %754 = vmatpush2.msra.mxu0 0.0
      %755 = vmatprep.subr.mxu0 0.0
      %756 = vmatpush2.msra.mxu0 0.0
      %757 = vmatprep.subr.mxu0 0.0
      %758 = vmatpush2.msra.mxu0 0.0
      %759 = vmatprep.subr.mxu0 0.0
      %760 = vmatpush2.msra.mxu0 0.0
      %761 = vmatprep.subr.mxu0 0.0
      %762 = vmatpush2.msra.mxu0 0.0
      %763 = vmatprep.subr.mxu0 0.0
      %764 = vmatpush2.msra.mxu0 0.0
      %765 = vmatprep.subr.mxu0 0.0
      %766 = vmatpush2.msra.mxu0 0.0
      %767 = vmatprep.subr.mxu0 0.0
      %768 = vmatpush2.msra.mxu0 0.0
      %769 = vmatprep.subr.mxu0 0.0
      %770 = vmatpush2.msra.mxu0 0.0
      %771 = vmatprep.subr.mxu0 0.0
      %772 = vmatpush2.msra.mxu0 0.0
      %773 = vmatprep.subr.mxu0 0.0
      %774 = vmatpush2.msra.mxu0 0.0
      %775 = vmatprep.subr.mxu0 0.0
      %776 = vmatpush2.msra.mxu0 0.0
      %777 = vmatprep.subr.mxu0 0.0
      %778 = vmatpush2.msra.mxu0 0.0
      %779 = vmatprep.subr.mxu0 0.0
      %780 = vmatpush2.msra.mxu0 0.0
      %781 = vmatprep.mubr.f32.mxu0 0.0
      %v782 = vand.u32 %v577, 4294901760
      %783 = vmatmul.mubr.f32.gmra.mxu0 %v782
      %v784 = vpop.f32.mrf.mxu0
      %v785 = vadd.f32 %v662, %v784
      %v786 = vpop.f32.mrf.mxu0
      %v787 = vadd.f32 %v664, %v786
      %788 = vmatprep.mubr.f32.mxu0 0.0
      %v789 = vand.u32 %v580, 4294901760
      %790 = vmatmul.mubr.f32.gmra.mxu0 %v789
      %v791 = vpop.f32.mrf.mxu0
      %v792 = vadd.f32 %v673, %v791
      %v793 = vpop.f32.mrf.mxu0
      %v794 = vadd.f32 %v675, %v793
      %795 = vdwg.mxu0
      %796 = vmatprep.subr.mxu0 0.0
      %797 = vmatpush1.msra.mxu0 0.0
      %798 = vmatprep.subr.mxu0 0.0
      %799 = vmatpush1.msra.mxu0 0.0
      %800 = vmatprep.subr.mxu0 0.0
      %801 = vmatpush1.msra.mxu0 0.0
      %802 = vmatprep.subr.mxu0 0.0
      %803 = vmatpush1.msra.mxu0 0.0
      %804 = vmatprep.subr.mxu0 0.0
      %805 = vmatpush1.msra.mxu0 0.0
      %806 = vmatprep.subr.mxu0 0.0
      %807 = vmatpush1.msra.mxu0 0.0
      %808 = vmatprep.subr.mxu0 0.0
      %809 = vmatpush1.msra.mxu0 0.0
      %810 = vmatprep.subr.mxu0 0.0
      %811 = vmatpush1.msra.mxu0 0.0
      %812 = vmatprep.subr.mxu0 0.0
      %813 = vmatpush1.msra.mxu0 0.0
      %814 = vmatprep.subr.mxu0 0.0
      %815 = vmatpush1.msra.mxu0 0.0
      %816 = vmatprep.subr.mxu0 0.0
      %817 = vmatpush1.msra.mxu0 0.0
      %818 = vmatprep.subr.mxu0 0.0
      %819 = vmatpush1.msra.mxu0 0.0
      %v820 = vand.u32 %v567, 4294901760
      %v821 = vsub.f32 %v567, %v820
      %822 = vmatprep.subr.mxu0 %v821
      %v823 = vand.u32 %v566, 4294901760
      %v824 = vsub.f32 %v566, %v823
      %825 = vmatpush1.msra.mxu0 %v824
      %v826 = vand.u32 %v561, 4294901760
      %v827 = vsub.f32 %v561, %v826
      %828 = vmatprep.subr.mxu0 %v827
      %v829 = vand.u32 %v560, 4294901760
      %v830 = vsub.f32 %v560, %v829
      %831 = vmatpush1.msra.mxu0 %v830
      %v832 = vand.u32 %v555, 4294901760
      %v833 = vsub.f32 %v555, %v832
      %834 = vmatprep.subr.mxu0 %v833
      %v835 = vand.u32 %v554, 4294901760
      %v836 = vsub.f32 %v554, %v835
      %837 = vmatpush1.msra.mxu0 %v836
      %v838 = vand.u32 %v549, 4294901760
      %v839 = vsub.f32 %v549, %v838
      %840 = vmatprep.subr.mxu0 %v839
      %v841 = vand.u32 %v548, 4294901760
      %v842 = vsub.f32 %v548, %v841
      %843 = vmatpush1.msra.mxu0 %v842
      %844 = vmatprep.subr.mxu0 0.0
      %845 = vmatpush2.msra.mxu0 0.0
      %846 = vmatprep.subr.mxu0 0.0
      %847 = vmatpush2.msra.mxu0 0.0
      %848 = vmatprep.subr.mxu0 0.0
      %849 = vmatpush2.msra.mxu0 0.0
      %850 = vmatprep.subr.mxu0 0.0
      %851 = vmatpush2.msra.mxu0 0.0
      %852 = vmatprep.subr.mxu0 0.0
      %853 = vmatpush2.msra.mxu0 0.0
      %854 = vmatprep.subr.mxu0 0.0
      %855 = vmatpush2.msra.mxu0 0.0
      %856 = vmatprep.subr.mxu0 0.0
      %857 = vmatpush2.msra.mxu0 0.0
      %858 = vmatprep.subr.mxu0 0.0
      %859 = vmatpush2.msra.mxu0 0.0
      %860 = vmatprep.subr.mxu0 0.0
      %861 = vmatpush2.msra.mxu0 0.0
      %862 = vmatprep.subr.mxu0 0.0
      %863 = vmatpush2.msra.mxu0 0.0
      %864 = vmatprep.subr.mxu0 0.0
      %865 = vmatpush2.msra.mxu0 0.0
      %866 = vmatprep.subr.mxu0 0.0
      %867 = vmatpush2.msra.mxu0 0.0
      %868 = vmatprep.subr.mxu0 0.0
      %869 = vmatpush2.msra.mxu0 0.0
      %870 = vmatprep.subr.mxu0 0.0
      %871 = vmatpush2.msra.mxu0 0.0
      %872 = vmatprep.subr.mxu0 0.0
      %873 = vmatpush2.msra.mxu0 0.0
      %874 = vmatprep.subr.mxu0 0.0
      %875 = vmatpush2.msra.mxu0 0.0
      %876 = vmatprep.mubr.f32.mxu0 0.0
      %v877 = vand.u32 %v577, 4294901760
      %v878 = vsub.f32 %v577, %v877
      %879 = vmatmul.mubr.f32.gmra.mxu0 %v878
      %v880 = vpop.f32.mrf.mxu0
      %v881 = vadd.f32 %v785, %v880
      %v882 = vpop.f32.mrf.mxu0
      %v883 = vadd.f32 %v787, %v882
      %884 = vmatprep.mubr.f32.mxu0 0.0
      %v885 = vand.u32 %v580, 4294901760
      %v886 = vsub.f32 %v580, %v885
      %887 = vmatmul.mubr.f32.gmra.mxu0 %v886
      %v888 = vpop.f32.mrf.mxu0
      %v889 = vadd.f32 %v792, %v888
      %v890 = vpop.f32.mrf.mxu0
      %v891 = vadd.f32 %v794, %v890
      %892 = vdwg.mxu0
      %893 = vmatprep.subr.mxu0 0.0
      %894 = vmatpush1.msra.mxu0 0.0
      %895 = vmatprep.subr.mxu0 0.0
      %896 = vmatpush1.msra.mxu0 0.0
      %897 = vmatprep.subr.mxu0 0.0
      %898 = vmatpush1.msra.mxu0 0.0
      %899 = vmatprep.subr.mxu0 0.0
      %900 = vmatpush1.msra.mxu0 0.0
      %901 = vmatprep.subr.mxu0 0.0
      %902 = vmatpush1.msra.mxu0 0.0
      %903 = vmatprep.subr.mxu0 0.0
      %904 = vmatpush1.msra.mxu0 0.0
      %905 = vmatprep.subr.mxu0 0.0
      %906 = vmatpush1.msra.mxu0 0.0
      %907 = vmatprep.subr.mxu0 0.0
      %908 = vmatpush1.msra.mxu0 0.0
      %909 = vmatprep.subr.mxu0 0.0
      %910 = vmatpush1.msra.mxu0 0.0
      %911 = vmatprep.subr.mxu0 0.0
      %912 = vmatpush1.msra.mxu0 0.0
      %913 = vmatprep.subr.mxu0 0.0
      %914 = vmatpush1.msra.mxu0 0.0
      %915 = vmatprep.subr.mxu0 0.0
      %916 = vmatpush1.msra.mxu0 0.0
      %v917 = vand.u32 %v567, 4294901760
      %918 = vmatprep.subr.mxu0 %v917
      %v919 = vand.u32 %v566, 4294901760
      %920 = vmatpush1.msra.mxu0 %v919
      %v921 = vand.u32 %v561, 4294901760
      %922 = vmatprep.subr.mxu0 %v921
      %v923 = vand.u32 %v560, 4294901760
      %924 = vmatpush1.msra.mxu0 %v923
      %v925 = vand.u32 %v555, 4294901760
      %926 = vmatprep.subr.mxu0 %v925
      %v927 = vand.u32 %v554, 4294901760
      %928 = vmatpush1.msra.mxu0 %v927
      %v929 = vand.u32 %v549, 4294901760
      %930 = vmatprep.subr.mxu0 %v929
      %v931 = vand.u32 %v548, 4294901760
      %932 = vmatpush1.msra.mxu0 %v931
      %933 = vmatprep.subr.mxu0 0.0
      %934 = vmatpush2.msra.mxu0 0.0
      %935 = vmatprep.subr.mxu0 0.0
      %936 = vmatpush2.msra.mxu0 0.0
      %937 = vmatprep.subr.mxu0 0.0
      %938 = vmatpush2.msra.mxu0 0.0
      %939 = vmatprep.subr.mxu0 0.0
      %940 = vmatpush2.msra.mxu0 0.0
      %941 = vmatprep.subr.mxu0 0.0
      %942 = vmatpush2.msra.mxu0 0.0
      %943 = vmatprep.subr.mxu0 0.0
      %944 = vmatpush2.msra.mxu0 0.0
      %945 = vmatprep.subr.mxu0 0.0
      %946 = vmatpush2.msra.mxu0 0.0
      %947 = vmatprep.subr.mxu0 0.0
      %948 = vmatpush2.msra.mxu0 0.0
      %949 = vmatprep.subr.mxu0 0.0
      %950 = vmatpush2.msra.mxu0 0.0
      %951 = vmatprep.subr.mxu0 0.0
      %952 = vmatpush2.msra.mxu0 0.0
      %953 = vmatprep.subr.mxu0 0.0
      %954 = vmatpush2.msra.mxu0 0.0
      %955 = vmatprep.subr.mxu0 0.0
      %956 = vmatpush2.msra.mxu0 0.0
      %957 = vmatprep.subr.mxu0 0.0
      %958 = vmatpush2.msra.mxu0 0.0
      %959 = vmatprep.subr.mxu0 0.0
      %960 = vmatpush2.msra.mxu0 0.0
      %961 = vmatprep.subr.mxu0 0.0
      %962 = vmatpush2.msra.mxu0 0.0
      %963 = vmatprep.subr.mxu0 0.0
      %964 = vmatpush2.msra.mxu0 0.0
      %965 = vmatprep.mubr.f32.mxu0 0.0
      %v966 = vand.u32 %v577, 4294901760
      %v967 = vsub.f32 %v577, %v966
      %v968 = vand.u32 %v967, 4294901760
      %969 = vmatmul.mubr.f32.gmra.mxu0 %v968
      %v970 = vpop.f32.mrf.mxu0
      %v971 = vadd.f32 %v881, %v970
      %v972 = vpop.f32.mrf.mxu0
      %v973 = vadd.f32 %v883, %v972
      %974 = vmatprep.mubr.f32.mxu0 0.0
      %v975 = vand.u32 %v580, 4294901760
      %v976 = vsub.f32 %v580, %v975
      %v977 = vand.u32 %v976, 4294901760
      %978 = vmatmul.mubr.f32.gmra.mxu0 %v977
      %v979 = vpop.f32.mrf.mxu0
      %v980 = vadd.f32 %v889, %v979
      %v981 = vpop.f32.mrf.mxu0
      %v982 = vadd.f32 %v891, %v981
      %983 = vdwg.mxu0
      %984 = vmatprep.subr.mxu0 0.0
      %985 = vmatpush1.msra.mxu0 0.0
      %986 = vmatprep.subr.mxu0 0.0
      %987 = vmatpush1.msra.mxu0 0.0
      %988 = vmatprep.subr.mxu0 0.0
      %989 = vmatpush1.msra.mxu0 0.0
      %990 = vmatprep.subr.mxu0 0.0
      %991 = vmatpush1.msra.mxu0 0.0
      %992 = vmatprep.subr.mxu0 0.0
      %993 = vmatpush1.msra.mxu0 0.0
      %994 = vmatprep.subr.mxu0 0.0
      %995 = vmatpush1.msra.mxu0 0.0
      %996 = vmatprep.subr.mxu0 0.0
      %997 = vmatpush1.msra.mxu0 0.0
      %998 = vmatprep.subr.mxu0 0.0
      %999 = vmatpush1.msra.mxu0 0.0
      %1000 = vmatprep.subr.mxu0 0.0
      %1001 = vmatpush1.msra.mxu0 0.0
      %1002 = vmatprep.subr.mxu0 0.0
      %1003 = vmatpush1.msra.mxu0 0.0
      %1004 = vmatprep.subr.mxu0 0.0
      %1005 = vmatpush1.msra.mxu0 0.0
      %1006 = vmatprep.subr.mxu0 0.0
      %1007 = vmatpush1.msra.mxu0 0.0
      %v1008 = vand.u32 %v567, 4294901760
      %v1009 = vsub.f32 %v567, %v1008
      %v1010 = vand.u32 %v1009, 4294901760
      %1011 = vmatprep.subr.mxu0 %v1010
      %v1012 = vand.u32 %v566, 4294901760
      %v1013 = vsub.f32 %v566, %v1012
      %v1014 = vand.u32 %v1013, 4294901760
      %1015 = vmatpush1.msra.mxu0 %v1014
      %v1016 = vand.u32 %v561, 4294901760
      %v1017 = vsub.f32 %v561, %v1016
      %v1018 = vand.u32 %v1017, 4294901760
      %1019 = vmatprep.subr.mxu0 %v1018
      %v1020 = vand.u32 %v560, 4294901760
      %v1021 = vsub.f32 %v560, %v1020
      %v1022 = vand.u32 %v1021, 4294901760
      %1023 = vmatpush1.msra.mxu0 %v1022
      %v1024 = vand.u32 %v555, 4294901760
      %v1025 = vsub.f32 %v555, %v1024
      %v1026 = vand.u32 %v1025, 4294901760
      %1027 = vmatprep.subr.mxu0 %v1026
      %v1028 = vand.u32 %v554, 4294901760
      %v1029 = vsub.f32 %v554, %v1028
      %v1030 = vand.u32 %v1029, 4294901760
      %1031 = vmatpush1.msra.mxu0 %v1030
      %v1032 = vand.u32 %v549, 4294901760
      %v1033 = vsub.f32 %v549, %v1032
      %v1034 = vand.u32 %v1033, 4294901760
      %1035 = vmatprep.subr.mxu0 %v1034
      %v1036 = vand.u32 %v548, 4294901760
      %v1037 = vsub.f32 %v548, %v1036
      %v1038 = vand.u32 %v1037, 4294901760
      %1039 = vmatpush1.msra.mxu0 %v1038
      %1040 = vmatprep.subr.mxu0 0.0
      %1041 = vmatpush2.msra.mxu0 0.0
      %1042 = vmatprep.subr.mxu0 0.0
      %1043 = vmatpush2.msra.mxu0 0.0
      %1044 = vmatprep.subr.mxu0 0.0
      %1045 = vmatpush2.msra.mxu0 0.0
      %1046 = vmatprep.subr.mxu0 0.0
      %1047 = vmatpush2.msra.mxu0 0.0
      %1048 = vmatprep.subr.mxu0 0.0
      %1049 = vmatpush2.msra.mxu0 0.0
      %1050 = vmatprep.subr.mxu0 0.0
      %1051 = vmatpush2.msra.mxu0 0.0
      %1052 = vmatprep.subr.mxu0 0.0
      %1053 = vmatpush2.msra.mxu0 0.0
      %1054 = vmatprep.subr.mxu0 0.0
      %1055 = vmatpush2.msra.mxu0 0.0
      %1056 = vmatprep.subr.mxu0 0.0
      %1057 = vmatpush2.msra.mxu0 0.0
      %1058 = vmatprep.subr.mxu0 0.0
      %1059 = vmatpush2.msra.mxu0 0.0
      %1060 = vmatprep.subr.mxu0 0.0
      %1061 = vmatpush2.msra.mxu0 0.0
      %1062 = vmatprep.subr.mxu0 0.0
      %1063 = vmatpush2.msra.mxu0 0.0
      %1064 = vmatprep.subr.mxu0 0.0
      %1065 = vmatpush2.msra.mxu0 0.0
      %1066 = vmatprep.subr.mxu0 0.0
      %1067 = vmatpush2.msra.mxu0 0.0
      %1068 = vmatprep.subr.mxu0 0.0
      %1069 = vmatpush2.msra.mxu0 0.0
      %1070 = vmatprep.subr.mxu0 0.0
      %1071 = vmatpush2.msra.mxu0 0.0
      %1072 = vmatprep.mubr.f32.mxu0 0.0
      %v1073 = vand.u32 %v577, 4294901760
      %1074 = vmatmul.mubr.f32.gmra.mxu0 %v1073
      %v1075 = vpop.f32.mrf.mxu0
      %v1076 = vadd.f32 %v971, %v1075
      %v1077 = vpop.f32.mrf.mxu0
      %v1078 = vadd.f32 %v973, %v1077
      %1079 = vmatprep.mubr.f32.mxu0 0.0
      %v1080 = vand.u32 %v580, 4294901760
      %1081 = vmatmul.mubr.f32.gmra.mxu0 %v1080
      %v1082 = vpop.f32.mrf.mxu0
      %v1083 = vadd.f32 %v980, %v1082
      %v1084 = vpop.f32.mrf.mxu0
      %v1085 = vadd.f32 %v982, %v1084
      %1086 = vdwg.mxu0
      %1087 = vmatprep.subr.mxu0 0.0
      %1088 = vmatpush1.msra.mxu0 0.0
      %1089 = vmatprep.subr.mxu0 0.0
      %1090 = vmatpush1.msra.mxu0 0.0
      %1091 = vmatprep.subr.mxu0 0.0
      %1092 = vmatpush1.msra.mxu0 0.0
      %1093 = vmatprep.subr.mxu0 0.0
      %1094 = vmatpush1.msra.mxu0 0.0
      %1095 = vmatprep.subr.mxu0 0.0
      %1096 = vmatpush1.msra.mxu0 0.0
      %1097 = vmatprep.subr.mxu0 0.0
      %1098 = vmatpush1.msra.mxu0 0.0
      %1099 = vmatprep.subr.mxu0 0.0
      %1100 = vmatpush1.msra.mxu0 0.0
      %1101 = vmatprep.subr.mxu0 0.0
      %1102 = vmatpush1.msra.mxu0 0.0
      %1103 = vmatprep.subr.mxu0 0.0
      %1104 = vmatpush1.msra.mxu0 0.0
      %1105 = vmatprep.subr.mxu0 0.0
      %1106 = vmatpush1.msra.mxu0 0.0
      %1107 = vmatprep.subr.mxu0 0.0
      %1108 = vmatpush1.msra.mxu0 0.0
      %1109 = vmatprep.subr.mxu0 0.0
      %1110 = vmatpush1.msra.mxu0 0.0
      %v1111 = vand.u32 %v567, 4294901760
      %1112 = vmatprep.subr.mxu0 %v1111
      %v1113 = vand.u32 %v566, 4294901760
      %1114 = vmatpush1.msra.mxu0 %v1113
      %v1115 = vand.u32 %v561, 4294901760
      %1116 = vmatprep.subr.mxu0 %v1115
      %v1117 = vand.u32 %v560, 4294901760
      %1118 = vmatpush1.msra.mxu0 %v1117
      %v1119 = vand.u32 %v555, 4294901760
      %1120 = vmatprep.subr.mxu0 %v1119
      %v1121 = vand.u32 %v554, 4294901760
      %1122 = vmatpush1.msra.mxu0 %v1121
      %v1123 = vand.u32 %v549, 4294901760
      %1124 = vmatprep.subr.mxu0 %v1123
      %v1125 = vand.u32 %v548, 4294901760
      %1126 = vmatpush1.msra.mxu0 %v1125
      %1127 = vmatprep.subr.mxu0 0.0
      %1128 = vmatpush2.msra.mxu0 0.0
      %1129 = vmatprep.subr.mxu0 0.0
      %1130 = vmatpush2.msra.mxu0 0.0
      %1131 = vmatprep.subr.mxu0 0.0
      %1132 = vmatpush2.msra.mxu0 0.0
      %1133 = vmatprep.subr.mxu0 0.0
      %1134 = vmatpush2.msra.mxu0 0.0
      %1135 = vmatprep.subr.mxu0 0.0
      %1136 = vmatpush2.msra.mxu0 0.0
      %1137 = vmatprep.subr.mxu0 0.0
      %1138 = vmatpush2.msra.mxu0 0.0
      %1139 = vmatprep.subr.mxu0 0.0
      %1140 = vmatpush2.msra.mxu0 0.0
      %1141 = vmatprep.subr.mxu0 0.0
      %1142 = vmatpush2.msra.mxu0 0.0
      %1143 = vmatprep.subr.mxu0 0.0
      %1144 = vmatpush2.msra.mxu0 0.0
      %1145 = vmatprep.subr.mxu0 0.0
      %1146 = vmatpush2.msra.mxu0 0.0
      %1147 = vmatprep.subr.mxu0 0.0
      %1148 = vmatpush2.msra.mxu0 0.0
      %1149 = vmatprep.subr.mxu0 0.0
      %1150 = vmatpush2.msra.mxu0 0.0
      %1151 = vmatprep.subr.mxu0 0.0
      %1152 = vmatpush2.msra.mxu0 0.0
      %1153 = vmatprep.subr.mxu0 0.0
      %1154 = vmatpush2.msra.mxu0 0.0
      %1155 = vmatprep.subr.mxu0 0.0
      %1156 = vmatpush2.msra.mxu0 0.0
      %1157 = vmatprep.subr.mxu0 0.0
      %1158 = vmatpush2.msra.mxu0 0.0
      %1159 = vmatprep.mubr.f32.mxu0 0.0
      %v1160 = vand.u32 %v577, 4294901760
      %1161 = vmatmul.mubr.f32.gmra.mxu0 %v1160
      %v1162 = vpop.f32.mrf.mxu0
      %v1163 = vadd.f32 %v1076, %v1162
      %v1164 = vpop.f32.mrf.mxu0
      %v1165 = vadd.f32 %v1078, %v1164
      %1166 = vmatprep.mubr.f32.mxu0 0.0
      %v1167 = vand.u32 %v580, 4294901760
      %1168 = vmatmul.mubr.f32.gmra.mxu0 %v1167
      %v1169 = vpop.f32.mrf.mxu0
      %v1170 = vadd.f32 %v1083, %v1169
      %v1171 = vpop.f32.mrf.mxu0
      %v1172 = vadd.f32 %v1085, %v1171
      %1173 = vdwg.mxu0
      %1174 = vmatprep.subr.mxu0 0.0
      %1175 = vmatpush1.msra.mxu0 0.0
      %1176 = vmatprep.subr.mxu0 0.0
      %1177 = vmatpush1.msra.mxu0 0.0
      %1178 = vmatprep.subr.mxu0 0.0
      %1179 = vmatpush1.msra.mxu0 0.0
      %1180 = vmatprep.subr.mxu0 0.0
      %1181 = vmatpush1.msra.mxu0 0.0
      %1182 = vmatprep.subr.mxu0 0.0
      %1183 = vmatpush1.msra.mxu0 0.0
      %1184 = vmatprep.subr.mxu0 0.0
      %1185 = vmatpush1.msra.mxu0 0.0
      %1186 = vmatprep.subr.mxu0 0.0
      %1187 = vmatpush1.msra.mxu0 0.0
      %1188 = vmatprep.subr.mxu0 0.0
      %1189 = vmatpush1.msra.mxu0 0.0
      %1190 = vmatprep.subr.mxu0 0.0
      %1191 = vmatpush1.msra.mxu0 0.0
      %1192 = vmatprep.subr.mxu0 0.0
      %1193 = vmatpush1.msra.mxu0 0.0
      %1194 = vmatprep.subr.mxu0 0.0
      %1195 = vmatpush1.msra.mxu0 0.0
      %1196 = vmatprep.subr.mxu0 0.0
      %1197 = vmatpush1.msra.mxu0 0.0
      %v1198 = vand.u32 %v569, 4294901760
      %1199 = vmatprep.subr.mxu0 %v1198
      %v1200 = vand.u32 %v568, 4294901760
      %1201 = vmatpush1.msra.mxu0 %v1200
      %v1202 = vand.u32 %v563, 4294901760
      %1203 = vmatprep.subr.mxu0 %v1202
      %v1204 = vand.u32 %v562, 4294901760
      %1205 = vmatpush1.msra.mxu0 %v1204
      %v1206 = vand.u32 %v557, 4294901760
      %1207 = vmatprep.subr.mxu0 %v1206
      %v1208 = vand.u32 %v556, 4294901760
      %1209 = vmatpush1.msra.mxu0 %v1208
      %v1210 = vand.u32 %v551, 4294901760
      %1211 = vmatprep.subr.mxu0 %v1210
      %v1212 = vand.u32 %v550, 4294901760
      %1213 = vmatpush1.msra.mxu0 %v1212
      %1214 = vmatprep.subr.mxu0 0.0
      %1215 = vmatpush2.msra.mxu0 0.0
      %1216 = vmatprep.subr.mxu0 0.0
      %1217 = vmatpush2.msra.mxu0 0.0
      %1218 = vmatprep.subr.mxu0 0.0
      %1219 = vmatpush2.msra.mxu0 0.0
      %1220 = vmatprep.subr.mxu0 0.0
      %1221 = vmatpush2.msra.mxu0 0.0
      %1222 = vmatprep.subr.mxu0 0.0
      %1223 = vmatpush2.msra.mxu0 0.0
      %1224 = vmatprep.subr.mxu0 0.0
      %1225 = vmatpush2.msra.mxu0 0.0
      %1226 = vmatprep.subr.mxu0 0.0
      %1227 = vmatpush2.msra.mxu0 0.0
      %1228 = vmatprep.subr.mxu0 0.0
      %1229 = vmatpush2.msra.mxu0 0.0
      %1230 = vmatprep.subr.mxu0 0.0
      %1231 = vmatpush2.msra.mxu0 0.0
      %1232 = vmatprep.subr.mxu0 0.0
      %1233 = vmatpush2.msra.mxu0 0.0
      %1234 = vmatprep.subr.mxu0 0.0
      %1235 = vmatpush2.msra.mxu0 0.0
      %1236 = vmatprep.subr.mxu0 0.0
      %1237 = vmatpush2.msra.mxu0 0.0
      %1238 = vmatprep.subr.mxu0 0.0
      %1239 = vmatpush2.msra.mxu0 0.0
      %1240 = vmatprep.subr.mxu0 0.0
      %1241 = vmatpush2.msra.mxu0 0.0
      %1242 = vmatprep.subr.mxu0 0.0
      %1243 = vmatpush2.msra.mxu0 0.0
      %1244 = vmatprep.subr.mxu0 0.0
      %1245 = vmatpush2.msra.mxu0 0.0
      %1246 = vmatprep.mubr.f32.mxu0 0.0
      %v1247 = vand.u32 %v577, 4294901760
      %v1248 = vsub.f32 %v577, %v1247
      %v1249 = vand.u32 %v1248, 4294901760
      %v1250 = vsub.f32 %v1248, %v1249
      %v1251 = vand.u32 %v1250, 4294901760
      %1252 = vmatmul.mubr.f32.gmra.mxu0 %v1251
      %v1253 = vpop.f32.mrf.mxu0
      %v1254 = vadd.f32 0.0, %v1253
      %v1255 = vpop.f32.mrf.mxu0
      %v1256 = vadd.f32 0.0, %v1255
      %1257 = vmatprep.mubr.f32.mxu0 0.0
      %v1258 = vand.u32 %v580, 4294901760
      %v1259 = vsub.f32 %v580, %v1258
      %v1260 = vand.u32 %v1259, 4294901760
      %v1261 = vsub.f32 %v1259, %v1260
      %v1262 = vand.u32 %v1261, 4294901760
      %1263 = vmatmul.mubr.f32.gmra.mxu0 %v1262
      %v1264 = vpop.f32.mrf.mxu0
      %v1265 = vadd.f32 0.0, %v1264
      %v1266 = vpop.f32.mrf.mxu0
      %v1267 = vadd.f32 0.0, %v1266
      %1268 = vdwg.mxu0
      %1269 = vmatprep.subr.mxu0 0.0
      %1270 = vmatpush1.msra.mxu0 0.0
      %1271 = vmatprep.subr.mxu0 0.0
      %1272 = vmatpush1.msra.mxu0 0.0
      %1273 = vmatprep.subr.mxu0 0.0
      %1274 = vmatpush1.msra.mxu0 0.0
      %1275 = vmatprep.subr.mxu0 0.0
      %1276 = vmatpush1.msra.mxu0 0.0
      %1277 = vmatprep.subr.mxu0 0.0
      %1278 = vmatpush1.msra.mxu0 0.0
      %1279 = vmatprep.subr.mxu0 0.0
      %1280 = vmatpush1.msra.mxu0 0.0
      %1281 = vmatprep.subr.mxu0 0.0
      %1282 = vmatpush1.msra.mxu0 0.0
      %1283 = vmatprep.subr.mxu0 0.0
      %1284 = vmatpush1.msra.mxu0 0.0
      %1285 = vmatprep.subr.mxu0 0.0
      %1286 = vmatpush1.msra.mxu0 0.0
      %1287 = vmatprep.subr.mxu0 0.0
      %1288 = vmatpush1.msra.mxu0 0.0
      %1289 = vmatprep.subr.mxu0 0.0
      %1290 = vmatpush1.msra.mxu0 0.0
      %1291 = vmatprep.subr.mxu0 0.0
      %1292 = vmatpush1.msra.mxu0 0.0
      %v1293 = vand.u32 %v569, 4294901760
      %v1294 = vsub.f32 %v569, %v1293
      %v1295 = vand.u32 %v1294, 4294901760
      %v1296 = vsub.f32 %v1294, %v1295
      %v1297 = vand.u32 %v1296, 4294901760
      %1298 = vmatprep.subr.mxu0 %v1297
      %v1299 = vand.u32 %v568, 4294901760
      %v1300 = vsub.f32 %v568, %v1299
      %v1301 = vand.u32 %v1300, 4294901760
      %v1302 = vsub.f32 %v1300, %v1301
      %v1303 = vand.u32 %v1302, 4294901760
      %1304 = vmatpush1.msra.mxu0 %v1303
      %v1305 = vand.u32 %v563, 4294901760
      %v1306 = vsub.f32 %v563, %v1305
      %v1307 = vand.u32 %v1306, 4294901760
      %v1308 = vsub.f32 %v1306, %v1307
      %v1309 = vand.u32 %v1308, 4294901760
      %1310 = vmatprep.subr.mxu0 %v1309
      %v1311 = vand.u32 %v562, 4294901760
      %v1312 = vsub.f32 %v562, %v1311
      %v1313 = vand.u32 %v1312, 4294901760
      %v1314 = vsub.f32 %v1312, %v1313
      %v1315 = vand.u32 %v1314, 4294901760
      %1316 = vmatpush1.msra.mxu0 %v1315
      %v1317 = vand.u32 %v557, 4294901760
      %v1318 = vsub.f32 %v557, %v1317
      %v1319 = vand.u32 %v1318, 4294901760
      %v1320 = vsub.f32 %v1318, %v1319
      %v1321 = vand.u32 %v1320, 4294901760
      %1322 = vmatprep.subr.mxu0 %v1321
      %v1323 = vand.u32 %v556, 4294901760
      %v1324 = vsub.f32 %v556, %v1323
      %v1325 = vand.u32 %v1324, 4294901760
      %v1326 = vsub.f32 %v1324, %v1325
      %v1327 = vand.u32 %v1326, 4294901760
      %1328 = vmatpush1.msra.mxu0 %v1327
      %v1329 = vand.u32 %v551, 4294901760
      %v1330 = vsub.f32 %v551, %v1329
      %v1331 = vand.u32 %v1330, 4294901760
      %v1332 = vsub.f32 %v1330, %v1331
      %v1333 = vand.u32 %v1332, 4294901760
      %1334 = vmatprep.subr.mxu0 %v1333
      %v1335 = vand.u32 %v550, 4294901760
      %v1336 = vsub.f32 %v550, %v1335
      %v1337 = vand.u32 %v1336, 4294901760
      %v1338 = vsub.f32 %v1336, %v1337
      %v1339 = vand.u32 %v1338, 4294901760
      %1340 = vmatpush1.msra.mxu0 %v1339
      %1341 = vmatprep.subr.mxu0 0.0
      %1342 = vmatpush2.msra.mxu0 0.0
      %1343 = vmatprep.subr.mxu0 0.0
      %1344 = vmatpush2.msra.mxu0 0.0
      %1345 = vmatprep.subr.mxu0 0.0
      %1346 = vmatpush2.msra.mxu0 0.0
      %1347 = vmatprep.subr.mxu0 0.0
      %1348 = vmatpush2.msra.mxu0 0.0
      %1349 = vmatprep.subr.mxu0 0.0
      %1350 = vmatpush2.msra.mxu0 0.0
      %1351 = vmatprep.subr.mxu0 0.0
      %1352 = vmatpush2.msra.mxu0 0.0
      %1353 = vmatprep.subr.mxu0 0.0
      %1354 = vmatpush2.msra.mxu0 0.0
      %1355 = vmatprep.subr.mxu0 0.0
      %1356 = vmatpush2.msra.mxu0 0.0
      %1357 = vmatprep.subr.mxu0 0.0
      %1358 = vmatpush2.msra.mxu0 0.0
      %1359 = vmatprep.subr.mxu0 0.0
      %1360 = vmatpush2.msra.mxu0 0.0
      %1361 = vmatprep.subr.mxu0 0.0
      %1362 = vmatpush2.msra.mxu0 0.0
      %1363 = vmatprep.subr.mxu0 0.0
      %1364 = vmatpush2.msra.mxu0 0.0
      %1365 = vmatprep.subr.mxu0 0.0
      %1366 = vmatpush2.msra.mxu0 0.0
      %1367 = vmatprep.subr.mxu0 0.0
      %1368 = vmatpush2.msra.mxu0 0.0
      %1369 = vmatprep.subr.mxu0 0.0
      %1370 = vmatpush2.msra.mxu0 0.0
      %1371 = vmatprep.subr.mxu0 0.0
      %1372 = vmatpush2.msra.mxu0 0.0
      %1373 = vmatprep.mubr.f32.mxu0 0.0
      %v1374 = vand.u32 %v577, 4294901760
      %1375 = vmatmul.mubr.f32.gmra.mxu0 %v1374
      %v1376 = vpop.f32.mrf.mxu0
      %v1377 = vadd.f32 %v1254, %v1376
      %v1378 = vpop.f32.mrf.mxu0
      %v1379 = vadd.f32 %v1256, %v1378
      %1380 = vmatprep.mubr.f32.mxu0 0.0
      %v1381 = vand.u32 %v580, 4294901760
      %1382 = vmatmul.mubr.f32.gmra.mxu0 %v1381
      %v1383 = vpop.f32.mrf.mxu0
      %v1384 = vadd.f32 %v1265, %v1383
      %v1385 = vpop.f32.mrf.mxu0
      %v1386 = vadd.f32 %v1267, %v1385
      %1387 = vdwg.mxu0
      %1388 = vmatprep.subr.mxu0 0.0
      %1389 = vmatpush1.msra.mxu0 0.0
      %1390 = vmatprep.subr.mxu0 0.0
      %1391 = vmatpush1.msra.mxu0 0.0
      %1392 = vmatprep.subr.mxu0 0.0
      %1393 = vmatpush1.msra.mxu0 0.0
      %1394 = vmatprep.subr.mxu0 0.0
      %1395 = vmatpush1.msra.mxu0 0.0
      %1396 = vmatprep.subr.mxu0 0.0
      %1397 = vmatpush1.msra.mxu0 0.0
      %1398 = vmatprep.subr.mxu0 0.0
      %1399 = vmatpush1.msra.mxu0 0.0
      %1400 = vmatprep.subr.mxu0 0.0
      %1401 = vmatpush1.msra.mxu0 0.0
      %1402 = vmatprep.subr.mxu0 0.0
      %1403 = vmatpush1.msra.mxu0 0.0
      %1404 = vmatprep.subr.mxu0 0.0
      %1405 = vmatpush1.msra.mxu0 0.0
      %1406 = vmatprep.subr.mxu0 0.0
      %1407 = vmatpush1.msra.mxu0 0.0
      %1408 = vmatprep.subr.mxu0 0.0
      %1409 = vmatpush1.msra.mxu0 0.0
      %1410 = vmatprep.subr.mxu0 0.0
      %1411 = vmatpush1.msra.mxu0 0.0
      %v1412 = vand.u32 %v569, 4294901760
      %v1413 = vsub.f32 %v569, %v1412
      %1414 = vmatprep.subr.mxu0 %v1413
      %v1415 = vand.u32 %v568, 4294901760
      %v1416 = vsub.f32 %v568, %v1415
      %1417 = vmatpush1.msra.mxu0 %v1416
      %v1418 = vand.u32 %v563, 4294901760
      %v1419 = vsub.f32 %v563, %v1418
      %1420 = vmatprep.subr.mxu0 %v1419
      %v1421 = vand.u32 %v562, 4294901760
      %v1422 = vsub.f32 %v562, %v1421
      %1423 = vmatpush1.msra.mxu0 %v1422
      %v1424 = vand.u32 %v557, 4294901760
      %v1425 = vsub.f32 %v557, %v1424
      %1426 = vmatprep.subr.mxu0 %v1425
      %v1427 = vand.u32 %v556, 4294901760
      %v1428 = vsub.f32 %v556, %v1427
      %1429 = vmatpush1.msra.mxu0 %v1428
      %v1430 = vand.u32 %v551, 4294901760
      %v1431 = vsub.f32 %v551, %v1430
      %1432 = vmatprep.subr.mxu0 %v1431
      %v1433 = vand.u32 %v550, 4294901760
      %v1434 = vsub.f32 %v550, %v1433
      %1435 = vmatpush1.msra.mxu0 %v1434
      %1436 = vmatprep.subr.mxu0 0.0
      %1437 = vmatpush2.msra.mxu0 0.0
      %1438 = vmatprep.subr.mxu0 0.0
      %1439 = vmatpush2.msra.mxu0 0.0
      %1440 = vmatprep.subr.mxu0 0.0
      %1441 = vmatpush2.msra.mxu0 0.0
      %1442 = vmatprep.subr.mxu0 0.0
      %1443 = vmatpush2.msra.mxu0 0.0
      %1444 = vmatprep.subr.mxu0 0.0
      %1445 = vmatpush2.msra.mxu0 0.0
      %1446 = vmatprep.subr.mxu0 0.0
      %1447 = vmatpush2.msra.mxu0 0.0
      %1448 = vmatprep.subr.mxu0 0.0
      %1449 = vmatpush2.msra.mxu0 0.0
      %1450 = vmatprep.subr.mxu0 0.0
      %1451 = vmatpush2.msra.mxu0 0.0
      %1452 = vmatprep.subr.mxu0 0.0
      %1453 = vmatpush2.msra.mxu0 0.0
      %1454 = vmatprep.subr.mxu0 0.0
      %1455 = vmatpush2.msra.mxu0 0.0
      %1456 = vmatprep.subr.mxu0 0.0
      %1457 = vmatpush2.msra.mxu0 0.0
      %1458 = vmatprep.subr.mxu0 0.0
      %1459 = vmatpush2.msra.mxu0 0.0
      %1460 = vmatprep.subr.mxu0 0.0
      %1461 = vmatpush2.msra.mxu0 0.0
      %1462 = vmatprep.subr.mxu0 0.0
      %1463 = vmatpush2.msra.mxu0 0.0
      %1464 = vmatprep.subr.mxu0 0.0
      %1465 = vmatpush2.msra.mxu0 0.0
      %1466 = vmatprep.subr.mxu0 0.0
      %1467 = vmatpush2.msra.mxu0 0.0
      %1468 = vmatprep.mubr.f32.mxu0 0.0
      %v1469 = vand.u32 %v577, 4294901760
      %v1470 = vsub.f32 %v577, %v1469
      %1471 = vmatmul.mubr.f32.gmra.mxu0 %v1470
      %v1472 = vpop.f32.mrf.mxu0
      %v1473 = vadd.f32 %v1377, %v1472
      %v1474 = vpop.f32.mrf.mxu0
      %v1475 = vadd.f32 %v1379, %v1474
      %1476 = vmatprep.mubr.f32.mxu0 0.0
      %v1477 = vand.u32 %v580, 4294901760
      %v1478 = vsub.f32 %v580, %v1477
      %1479 = vmatmul.mubr.f32.gmra.mxu0 %v1478
      %v1480 = vpop.f32.mrf.mxu0
      %v1481 = vadd.f32 %v1384, %v1480
      %v1482 = vpop.f32.mrf.mxu0
      %v1483 = vadd.f32 %v1386, %v1482
      %1484 = vdwg.mxu0
      %1485 = vmatprep.subr.mxu0 0.0
      %1486 = vmatpush1.msra.mxu0 0.0
      %1487 = vmatprep.subr.mxu0 0.0
      %1488 = vmatpush1.msra.mxu0 0.0
      %1489 = vmatprep.subr.mxu0 0.0
      %1490 = vmatpush1.msra.mxu0 0.0
      %1491 = vmatprep.subr.mxu0 0.0
      %1492 = vmatpush1.msra.mxu0 0.0
      %1493 = vmatprep.subr.mxu0 0.0
      %1494 = vmatpush1.msra.mxu0 0.0
      %1495 = vmatprep.subr.mxu0 0.0
      %1496 = vmatpush1.msra.mxu0 0.0
      %1497 = vmatprep.subr.mxu0 0.0
      %1498 = vmatpush1.msra.mxu0 0.0
      %1499 = vmatprep.subr.mxu0 0.0
      %1500 = vmatpush1.msra.mxu0 0.0
      %1501 = vmatprep.subr.mxu0 0.0
      %1502 = vmatpush1.msra.mxu0 0.0
      %1503 = vmatprep.subr.mxu0 0.0
      %1504 = vmatpush1.msra.mxu0 0.0
      %1505 = vmatprep.subr.mxu0 0.0
      %1506 = vmatpush1.msra.mxu0 0.0
      %1507 = vmatprep.subr.mxu0 0.0
      %1508 = vmatpush1.msra.mxu0 0.0
      %v1509 = vand.u32 %v569, 4294901760
      %1510 = vmatprep.subr.mxu0 %v1509
      %v1511 = vand.u32 %v568, 4294901760
      %1512 = vmatpush1.msra.mxu0 %v1511
      %v1513 = vand.u32 %v563, 4294901760
      %1514 = vmatprep.subr.mxu0 %v1513
      %v1515 = vand.u32 %v562, 4294901760
      %1516 = vmatpush1.msra.mxu0 %v1515
      %v1517 = vand.u32 %v557, 4294901760
      %1518 = vmatprep.subr.mxu0 %v1517
      %v1519 = vand.u32 %v556, 4294901760
      %1520 = vmatpush1.msra.mxu0 %v1519
      %v1521 = vand.u32 %v551, 4294901760
      %1522 = vmatprep.subr.mxu0 %v1521
      %v1523 = vand.u32 %v550, 4294901760
      %1524 = vmatpush1.msra.mxu0 %v1523
      %1525 = vmatprep.subr.mxu0 0.0
      %1526 = vmatpush2.msra.mxu0 0.0
      %1527 = vmatprep.subr.mxu0 0.0
      %1528 = vmatpush2.msra.mxu0 0.0
      %1529 = vmatprep.subr.mxu0 0.0
      %1530 = vmatpush2.msra.mxu0 0.0
      %1531 = vmatprep.subr.mxu0 0.0
      %1532 = vmatpush2.msra.mxu0 0.0
      %1533 = vmatprep.subr.mxu0 0.0
      %1534 = vmatpush2.msra.mxu0 0.0
      %1535 = vmatprep.subr.mxu0 0.0
      %1536 = vmatpush2.msra.mxu0 0.0
      %1537 = vmatprep.subr.mxu0 0.0
      %1538 = vmatpush2.msra.mxu0 0.0
      %1539 = vmatprep.subr.mxu0 0.0
      %1540 = vmatpush2.msra.mxu0 0.0
      %1541 = vmatprep.subr.mxu0 0.0
      %1542 = vmatpush2.msra.mxu0 0.0
      %1543 = vmatprep.subr.mxu0 0.0
      %1544 = vmatpush2.msra.mxu0 0.0
      %1545 = vmatprep.subr.mxu0 0.0
      %1546 = vmatpush2.msra.mxu0 0.0
      %1547 = vmatprep.subr.mxu0 0.0
      %1548 = vmatpush2.msra.mxu0 0.0
      %1549 = vmatprep.subr.mxu0 0.0
      %1550 = vmatpush2.msra.mxu0 0.0
      %1551 = vmatprep.subr.mxu0 0.0
      %1552 = vmatpush2.msra.mxu0 0.0
      %1553 = vmatprep.subr.mxu0 0.0
      %1554 = vmatpush2.msra.mxu0 0.0
      %1555 = vmatprep.subr.mxu0 0.0
      %1556 = vmatpush2.msra.mxu0 0.0
      %1557 = vmatprep.mubr.f32.mxu0 0.0
      %v1558 = vand.u32 %v577, 4294901760
      %v1559 = vsub.f32 %v577, %v1558
      %v1560 = vand.u32 %v1559, 4294901760
      %1561 = vmatmul.mubr.f32.gmra.mxu0 %v1560
      %v1562 = vpop.f32.mrf.mxu0
      %v1563 = vadd.f32 %v1473, %v1562
      %v1564 = vpop.f32.mrf.mxu0
      %v1565 = vadd.f32 %v1475, %v1564
      %1566 = vmatprep.mubr.f32.mxu0 0.0
      %v1567 = vand.u32 %v580, 4294901760
      %v1568 = vsub.f32 %v580, %v1567
      %v1569 = vand.u32 %v1568, 4294901760
      %1570 = vmatmul.mubr.f32.gmra.mxu0 %v1569
      %v1571 = vpop.f32.mrf.mxu0
      %v1572 = vadd.f32 %v1481, %v1571
      %v1573 = vpop.f32.mrf.mxu0
      %v1574 = vadd.f32 %v1483, %v1573
      %1575 = vdwg.mxu0
      %1576 = vmatprep.subr.mxu0 0.0
      %1577 = vmatpush1.msra.mxu0 0.0
      %1578 = vmatprep.subr.mxu0 0.0
      %1579 = vmatpush1.msra.mxu0 0.0
      %1580 = vmatprep.subr.mxu0 0.0
      %1581 = vmatpush1.msra.mxu0 0.0
      %1582 = vmatprep.subr.mxu0 0.0
      %1583 = vmatpush1.msra.mxu0 0.0
      %1584 = vmatprep.subr.mxu0 0.0
      %1585 = vmatpush1.msra.mxu0 0.0
      %1586 = vmatprep.subr.mxu0 0.0
      %1587 = vmatpush1.msra.mxu0 0.0
      %1588 = vmatprep.subr.mxu0 0.0
      %1589 = vmatpush1.msra.mxu0 0.0
      %1590 = vmatprep.subr.mxu0 0.0
      %1591 = vmatpush1.msra.mxu0 0.0
      %1592 = vmatprep.subr.mxu0 0.0
      %1593 = vmatpush1.msra.mxu0 0.0
      %1594 = vmatprep.subr.mxu0 0.0
      %1595 = vmatpush1.msra.mxu0 0.0
      %1596 = vmatprep.subr.mxu0 0.0
      %1597 = vmatpush1.msra.mxu0 0.0
      %1598 = vmatprep.subr.mxu0 0.0
      %1599 = vmatpush1.msra.mxu0 0.0
      %v1600 = vand.u32 %v569, 4294901760
      %v1601 = vsub.f32 %v569, %v1600
      %v1602 = vand.u32 %v1601, 4294901760
      %1603 = vmatprep.subr.mxu0 %v1602
      %v1604 = vand.u32 %v568, 4294901760
      %v1605 = vsub.f32 %v568, %v1604
      %v1606 = vand.u32 %v1605, 4294901760
      %1607 = vmatpush1.msra.mxu0 %v1606
      %v1608 = vand.u32 %v563, 4294901760
      %v1609 = vsub.f32 %v563, %v1608
      %v1610 = vand.u32 %v1609, 4294901760
      %1611 = vmatprep.subr.mxu0 %v1610
      %v1612 = vand.u32 %v562, 4294901760
      %v1613 = vsub.f32 %v562, %v1612
      %v1614 = vand.u32 %v1613, 4294901760
      %1615 = vmatpush1.msra.mxu0 %v1614
      %v1616 = vand.u32 %v557, 4294901760
      %v1617 = vsub.f32 %v557, %v1616
      %v1618 = vand.u32 %v1617, 4294901760
      %1619 = vmatprep.subr.mxu0 %v1618
      %v1620 = vand.u32 %v556, 4294901760
      %v1621 = vsub.f32 %v556, %v1620
      %v1622 = vand.u32 %v1621, 4294901760
      %1623 = vmatpush1.msra.mxu0 %v1622
      %v1624 = vand.u32 %v551, 4294901760
      %v1625 = vsub.f32 %v551, %v1624
      %v1626 = vand.u32 %v1625, 4294901760
      %1627 = vmatprep.subr.mxu0 %v1626
      %v1628 = vand.u32 %v550, 4294901760
      %v1629 = vsub.f32 %v550, %v1628
      %v1630 = vand.u32 %v1629, 4294901760
      %1631 = vmatpush1.msra.mxu0 %v1630
      %1632 = vmatprep.subr.mxu0 0.0
      %1633 = vmatpush2.msra.mxu0 0.0
      %1634 = vmatprep.subr.mxu0 0.0
      %1635 = vmatpush2.msra.mxu0 0.0
      %1636 = vmatprep.subr.mxu0 0.0
      %1637 = vmatpush2.msra.mxu0 0.0
      %1638 = vmatprep.subr.mxu0 0.0
      %1639 = vmatpush2.msra.mxu0 0.0
      %1640 = vmatprep.subr.mxu0 0.0
      %1641 = vmatpush2.msra.mxu0 0.0
      %1642 = vmatprep.subr.mxu0 0.0
      %1643 = vmatpush2.msra.mxu0 0.0
      %1644 = vmatprep.subr.mxu0 0.0
      %1645 = vmatpush2.msra.mxu0 0.0
      %1646 = vmatprep.subr.mxu0 0.0
      %1647 = vmatpush2.msra.mxu0 0.0
      %1648 = vmatprep.subr.mxu0 0.0
      %1649 = vmatpush2.msra.mxu0 0.0
      %1650 = vmatprep.subr.mxu0 0.0
      %1651 = vmatpush2.msra.mxu0 0.0
      %1652 = vmatprep.subr.mxu0 0.0
      %1653 = vmatpush2.msra.mxu0 0.0
      %1654 = vmatprep.subr.mxu0 0.0
      %1655 = vmatpush2.msra.mxu0 0.0
      %1656 = vmatprep.subr.mxu0 0.0
      %1657 = vmatpush2.msra.mxu0 0.0
      %1658 = vmatprep.subr.mxu0 0.0
      %1659 = vmatpush2.msra.mxu0 0.0
      %1660 = vmatprep.subr.mxu0 0.0
      %1661 = vmatpush2.msra.mxu0 0.0
      %1662 = vmatprep.subr.mxu0 0.0
      %1663 = vmatpush2.msra.mxu0 0.0
      %1664 = vmatprep.mubr.f32.mxu0 0.0
      %v1665 = vand.u32 %v577, 4294901760
      %1666 = vmatmul.mubr.f32.gmra.mxu0 %v1665
      %v1667 = vpop.f32.mrf.mxu0
      %v1668 = vadd.f32 %v1563, %v1667
      %v1669 = vpop.f32.mrf.mxu0
      %v1670 = vadd.f32 %v1565, %v1669
      %1671 = vmatprep.mubr.f32.mxu0 0.0
      %v1672 = vand.u32 %v580, 4294901760
      %1673 = vmatmul.mubr.f32.gmra.mxu0 %v1672
      %v1674 = vpop.f32.mrf.mxu0
      %v1675 = vadd.f32 %v1572, %v1674
      %v1676 = vpop.f32.mrf.mxu0
      %v1677 = vadd.f32 %v1574, %v1676
      %1678 = vdwg.mxu0
      %1679 = vmatprep.subr.mxu0 0.0
      %1680 = vmatpush1.msra.mxu0 0.0
      %1681 = vmatprep.subr.mxu0 0.0
      %1682 = vmatpush1.msra.mxu0 0.0
      %1683 = vmatprep.subr.mxu0 0.0
      %1684 = vmatpush1.msra.mxu0 0.0
      %1685 = vmatprep.subr.mxu0 0.0
      %1686 = vmatpush1.msra.mxu0 0.0
      %1687 = vmatprep.subr.mxu0 0.0
      %1688 = vmatpush1.msra.mxu0 0.0
      %1689 = vmatprep.subr.mxu0 0.0
      %1690 = vmatpush1.msra.mxu0 0.0
      %1691 = vmatprep.subr.mxu0 0.0
      %1692 = vmatpush1.msra.mxu0 0.0
      %1693 = vmatprep.subr.mxu0 0.0
      %1694 = vmatpush1.msra.mxu0 0.0
      %1695 = vmatprep.subr.mxu0 0.0
      %1696 = vmatpush1.msra.mxu0 0.0
      %1697 = vmatprep.subr.mxu0 0.0
      %1698 = vmatpush1.msra.mxu0 0.0
      %1699 = vmatprep.subr.mxu0 0.0
      %1700 = vmatpush1.msra.mxu0 0.0
      %1701 = vmatprep.subr.mxu0 0.0
      %1702 = vmatpush1.msra.mxu0 0.0
      %v1703 = vand.u32 %v569, 4294901760
      %1704 = vmatprep.subr.mxu0 %v1703
      %v1705 = vand.u32 %v568, 4294901760
      %1706 = vmatpush1.msra.mxu0 %v1705
      %v1707 = vand.u32 %v563, 4294901760
      %1708 = vmatprep.subr.mxu0 %v1707
      %v1709 = vand.u32 %v562, 4294901760
      %1710 = vmatpush1.msra.mxu0 %v1709
      %v1711 = vand.u32 %v557, 4294901760
      %1712 = vmatprep.subr.mxu0 %v1711
      %v1713 = vand.u32 %v556, 4294901760
      %1714 = vmatpush1.msra.mxu0 %v1713
      %v1715 = vand.u32 %v551, 4294901760
      %1716 = vmatprep.subr.mxu0 %v1715
      %v1717 = vand.u32 %v550, 4294901760
      %1718 = vmatpush1.msra.mxu0 %v1717
      %1719 = vmatprep.subr.mxu0 0.0
      %1720 = vmatpush2.msra.mxu0 0.0
      %1721 = vmatprep.subr.mxu0 0.0
      %1722 = vmatpush2.msra.mxu0 0.0
      %1723 = vmatprep.subr.mxu0 0.0
      %1724 = vmatpush2.msra.mxu0 0.0
      %1725 = vmatprep.subr.mxu0 0.0
      %1726 = vmatpush2.msra.mxu0 0.0
      %1727 = vmatprep.subr.mxu0 0.0
      %1728 = vmatpush2.msra.mxu0 0.0
      %1729 = vmatprep.subr.mxu0 0.0
      %1730 = vmatpush2.msra.mxu0 0.0
      %1731 = vmatprep.subr.mxu0 0.0
      %1732 = vmatpush2.msra.mxu0 0.0
      %1733 = vmatprep.subr.mxu0 0.0
      %1734 = vmatpush2.msra.mxu0 0.0
      %1735 = vmatprep.subr.mxu0 0.0
      %1736 = vmatpush2.msra.mxu0 0.0
      %1737 = vmatprep.subr.mxu0 0.0
      %1738 = vmatpush2.msra.mxu0 0.0
      %1739 = vmatprep.subr.mxu0 0.0
      %1740 = vmatpush2.msra.mxu0 0.0
      %1741 = vmatprep.subr.mxu0 0.0
      %1742 = vmatpush2.msra.mxu0 0.0
      %1743 = vmatprep.subr.mxu0 0.0
      %1744 = vmatpush2.msra.mxu0 0.0
      %1745 = vmatprep.subr.mxu0 0.0
      %1746 = vmatpush2.msra.mxu0 0.0
      %1747 = vmatprep.subr.mxu0 0.0
      %1748 = vmatpush2.msra.mxu0 0.0
      %1749 = vmatprep.subr.mxu0 0.0
      %1750 = vmatpush2.msra.mxu0 0.0
      %1751 = vmatprep.mubr.f32.mxu0 0.0
      %v1752 = vand.u32 %v577, 4294901760
      %1753 = vmatmul.mubr.f32.gmra.mxu0 %v1752
      %v1754 = vpop.f32.mrf.mxu0
      %v1755 = vadd.f32 %v1668, %v1754
      %v1756 = vpop.f32.mrf.mxu0
      %v1757 = vadd.f32 %v1670, %v1756
      %1758 = vmatprep.mubr.f32.mxu0 0.0
      %v1759 = vand.u32 %v580, 4294901760
      %1760 = vmatmul.mubr.f32.gmra.mxu0 %v1759
      %v1761 = vpop.f32.mrf.mxu0
      %v1762 = vadd.f32 %v1675, %v1761
      %v1763 = vpop.f32.mrf.mxu0
      %v1764 = vadd.f32 %v1677, %v1763
      %1765 = vdwg.mxu0
      %1766 = vmatprep.subr.mxu0 0.0
      %1767 = vmatpush1.msra.mxu0 0.0
      %1768 = vmatprep.subr.mxu0 0.0
      %1769 = vmatpush1.msra.mxu0 0.0
      %1770 = vmatprep.subr.mxu0 0.0
      %1771 = vmatpush1.msra.mxu0 0.0
      %1772 = vmatprep.subr.mxu0 0.0
      %1773 = vmatpush1.msra.mxu0 0.0
      %1774 = vmatprep.subr.mxu0 0.0
      %1775 = vmatpush1.msra.mxu0 0.0
      %1776 = vmatprep.subr.mxu0 0.0
      %1777 = vmatpush1.msra.mxu0 0.0
      %1778 = vmatprep.subr.mxu0 0.0
      %1779 = vmatpush1.msra.mxu0 0.0
      %1780 = vmatprep.subr.mxu0 0.0
      %1781 = vmatpush1.msra.mxu0 0.0
      %1782 = vmatprep.subr.mxu0 0.0
      %1783 = vmatpush1.msra.mxu0 0.0
      %1784 = vmatprep.subr.mxu0 0.0
      %1785 = vmatpush1.msra.mxu0 0.0
      %1786 = vmatprep.subr.mxu0 0.0
      %1787 = vmatpush1.msra.mxu0 0.0
      %1788 = vmatprep.subr.mxu0 0.0
      %1789 = vmatpush1.msra.mxu0 0.0
      %v1790 = vand.u32 %v571, 4294901760
      %1791 = vmatprep.subr.mxu0 %v1790
      %v1792 = vand.u32 %v570, 4294901760
      %1793 = vmatpush1.msra.mxu0 %v1792
      %v1794 = vand.u32 %v565, 4294901760
      %1795 = vmatprep.subr.mxu0 %v1794
      %v1796 = vand.u32 %v564, 4294901760
      %1797 = vmatpush1.msra.mxu0 %v1796
      %v1798 = vand.u32 %v559, 4294901760
      %1799 = vmatprep.subr.mxu0 %v1798
      %v1800 = vand.u32 %v558, 4294901760
      %1801 = vmatpush1.msra.mxu0 %v1800
      %v1802 = vand.u32 %v553, 4294901760
      %1803 = vmatprep.subr.mxu0 %v1802
      %v1804 = vand.u32 %v552, 4294901760
      %1805 = vmatpush1.msra.mxu0 %v1804
      %1806 = vmatprep.subr.mxu0 0.0
      %1807 = vmatpush2.msra.mxu0 0.0
      %1808 = vmatprep.subr.mxu0 0.0
      %1809 = vmatpush2.msra.mxu0 0.0
      %1810 = vmatprep.subr.mxu0 0.0
      %1811 = vmatpush2.msra.mxu0 0.0
      %1812 = vmatprep.subr.mxu0 0.0
      %1813 = vmatpush2.msra.mxu0 0.0
      %1814 = vmatprep.subr.mxu0 0.0
      %1815 = vmatpush2.msra.mxu0 0.0
      %1816 = vmatprep.subr.mxu0 0.0
      %1817 = vmatpush2.msra.mxu0 0.0
      %1818 = vmatprep.subr.mxu0 0.0
      %1819 = vmatpush2.msra.mxu0 0.0
      %1820 = vmatprep.subr.mxu0 0.0
      %1821 = vmatpush2.msra.mxu0 0.0
      %1822 = vmatprep.subr.mxu0 0.0
      %1823 = vmatpush2.msra.mxu0 0.0
      %1824 = vmatprep.subr.mxu0 0.0
      %1825 = vmatpush2.msra.mxu0 0.0
      %1826 = vmatprep.subr.mxu0 0.0
      %1827 = vmatpush2.msra.mxu0 0.0
      %1828 = vmatprep.subr.mxu0 0.0
      %1829 = vmatpush2.msra.mxu0 0.0
      %1830 = vmatprep.subr.mxu0 0.0
      %1831 = vmatpush2.msra.mxu0 0.0
      %1832 = vmatprep.subr.mxu0 0.0
      %1833 = vmatpush2.msra.mxu0 0.0
      %1834 = vmatprep.subr.mxu0 0.0
      %1835 = vmatpush2.msra.mxu0 0.0
      %1836 = vmatprep.subr.mxu0 0.0
      %1837 = vmatpush2.msra.mxu0 0.0
      %1838 = vmatprep.mubr.f32.mxu0 0.0
      %v1839 = vand.u32 %v577, 4294901760
      %v1840 = vsub.f32 %v577, %v1839
      %v1841 = vand.u32 %v1840, 4294901760
      %v1842 = vsub.f32 %v1840, %v1841
      %v1843 = vand.u32 %v1842, 4294901760
      %1844 = vmatmul.mubr.f32.gmra.mxu0 %v1843
      %v1845 = vpop.f32.mrf.mxu0
      %v1846 = vadd.f32 0.0, %v1845
      %v1847 = vpop.f32.mrf.mxu0
      %v1848 = vadd.f32 0.0, %v1847
      %1849 = vmatprep.mubr.f32.mxu0 0.0
      %v1850 = vand.u32 %v580, 4294901760
      %v1851 = vsub.f32 %v580, %v1850
      %v1852 = vand.u32 %v1851, 4294901760
      %v1853 = vsub.f32 %v1851, %v1852
      %v1854 = vand.u32 %v1853, 4294901760
      %1855 = vmatmul.mubr.f32.gmra.mxu0 %v1854
      %v1856 = vpop.f32.mrf.mxu0
      %v1857 = vadd.f32 0.0, %v1856
      %v1858 = vpop.f32.mrf.mxu0
      %v1859 = vadd.f32 0.0, %v1858
      %1860 = vdwg.mxu0
      %1861 = vmatprep.subr.mxu0 0.0
      %1862 = vmatpush1.msra.mxu0 0.0
      %1863 = vmatprep.subr.mxu0 0.0
      %1864 = vmatpush1.msra.mxu0 0.0
      %1865 = vmatprep.subr.mxu0 0.0
      %1866 = vmatpush1.msra.mxu0 0.0
      %1867 = vmatprep.subr.mxu0 0.0
      %1868 = vmatpush1.msra.mxu0 0.0
      %1869 = vmatprep.subr.mxu0 0.0
      %1870 = vmatpush1.msra.mxu0 0.0
      %1871 = vmatprep.subr.mxu0 0.0
      %1872 = vmatpush1.msra.mxu0 0.0
      %1873 = vmatprep.subr.mxu0 0.0
      %1874 = vmatpush1.msra.mxu0 0.0
      %1875 = vmatprep.subr.mxu0 0.0
      %1876 = vmatpush1.msra.mxu0 0.0
      %1877 = vmatprep.subr.mxu0 0.0
      %1878 = vmatpush1.msra.mxu0 0.0
      %1879 = vmatprep.subr.mxu0 0.0
      %1880 = vmatpush1.msra.mxu0 0.0
      %1881 = vmatprep.subr.mxu0 0.0
      %1882 = vmatpush1.msra.mxu0 0.0
      %1883 = vmatprep.subr.mxu0 0.0
      %1884 = vmatpush1.msra.mxu0 0.0
      %v1885 = vand.u32 %v571, 4294901760
      %v1886 = vsub.f32 %v571, %v1885
      %v1887 = vand.u32 %v1886, 4294901760
      %v1888 = vsub.f32 %v1886, %v1887
      %v1889 = vand.u32 %v1888, 4294901760
      %1890 = vmatprep.subr.mxu0 %v1889
      %v1891 = vand.u32 %v570, 4294901760
      %v1892 = vsub.f32 %v570, %v1891
      %v1893 = vand.u32 %v1892, 4294901760
      %v1894 = vsub.f32 %v1892, %v1893
      %v1895 = vand.u32 %v1894, 4294901760
      %1896 = vmatpush1.msra.mxu0 %v1895
      %v1897 = vand.u32 %v565, 4294901760
      %v1898 = vsub.f32 %v565, %v1897
      %v1899 = vand.u32 %v1898, 4294901760
      %v1900 = vsub.f32 %v1898, %v1899
      %v1901 = vand.u32 %v1900, 4294901760
      %1902 = vmatprep.subr.mxu0 %v1901
      %v1903 = vand.u32 %v564, 4294901760
      %v1904 = vsub.f32 %v564, %v1903
      %v1905 = vand.u32 %v1904, 4294901760
      %v1906 = vsub.f32 %v1904, %v1905
      %v1907 = vand.u32 %v1906, 4294901760
      %1908 = vmatpush1.msra.mxu0 %v1907
      %v1909 = vand.u32 %v559, 4294901760
      %v1910 = vsub.f32 %v559, %v1909
      %v1911 = vand.u32 %v1910, 4294901760
      %v1912 = vsub.f32 %v1910, %v1911
      %v1913 = vand.u32 %v1912, 4294901760
      %1914 = vmatprep.subr.mxu0 %v1913
      %v1915 = vand.u32 %v558, 4294901760
      %v1916 = vsub.f32 %v558, %v1915
      %v1917 = vand.u32 %v1916, 4294901760
      %v1918 = vsub.f32 %v1916, %v1917
      %v1919 = vand.u32 %v1918, 4294901760
      %1920 = vmatpush1.msra.mxu0 %v1919
      %v1921 = vand.u32 %v553, 4294901760
      %v1922 = vsub.f32 %v553, %v1921
      %v1923 = vand.u32 %v1922, 4294901760
      %v1924 = vsub.f32 %v1922, %v1923
      %v1925 = vand.u32 %v1924, 4294901760
      %1926 = vmatprep.subr.mxu0 %v1925
      %v1927 = vand.u32 %v552, 4294901760
      %v1928 = vsub.f32 %v552, %v1927
      %v1929 = vand.u32 %v1928, 4294901760
      %v1930 = vsub.f32 %v1928, %v1929
      %v1931 = vand.u32 %v1930, 4294901760
      %1932 = vmatpush1.msra.mxu0 %v1931
      %1933 = vmatprep.subr.mxu0 0.0
      %1934 = vmatpush2.msra.mxu0 0.0
      %1935 = vmatprep.subr.mxu0 0.0
      %1936 = vmatpush2.msra.mxu0 0.0
      %1937 = vmatprep.subr.mxu0 0.0
      %1938 = vmatpush2.msra.mxu0 0.0
      %1939 = vmatprep.subr.mxu0 0.0
      %1940 = vmatpush2.msra.mxu0 0.0
      %1941 = vmatprep.subr.mxu0 0.0
      %1942 = vmatpush2.msra.mxu0 0.0
      %1943 = vmatprep.subr.mxu0 0.0
      %1944 = vmatpush2.msra.mxu0 0.0
      %1945 = vmatprep.subr.mxu0 0.0
      %1946 = vmatpush2.msra.mxu0 0.0
      %1947 = vmatprep.subr.mxu0 0.0
      %1948 = vmatpush2.msra.mxu0 0.0
      %1949 = vmatprep.subr.mxu0 0.0
      %1950 = vmatpush2.msra.mxu0 0.0
      %1951 = vmatprep.subr.mxu0 0.0
      %1952 = vmatpush2.msra.mxu0 0.0
      %1953 = vmatprep.subr.mxu0 0.0
      %1954 = vmatpush2.msra.mxu0 0.0
      %1955 = vmatprep.subr.mxu0 0.0
      %1956 = vmatpush2.msra.mxu0 0.0
      %1957 = vmatprep.subr.mxu0 0.0
      %1958 = vmatpush2.msra.mxu0 0.0
      %1959 = vmatprep.subr.mxu0 0.0
      %1960 = vmatpush2.msra.mxu0 0.0
      %1961 = vmatprep.subr.mxu0 0.0
      %1962 = vmatpush2.msra.mxu0 0.0
      %1963 = vmatprep.subr.mxu0 0.0
      %1964 = vmatpush2.msra.mxu0 0.0
      %1965 = vmatprep.mubr.f32.mxu0 0.0
      %v1966 = vand.u32 %v577, 4294901760
      %1967 = vmatmul.mubr.f32.gmra.mxu0 %v1966
      %v1968 = vpop.f32.mrf.mxu0
      %v1969 = vadd.f32 %v1846, %v1968
      %v1970 = vpop.f32.mrf.mxu0
      %v1971 = vadd.f32 %v1848, %v1970
      %1972 = vmatprep.mubr.f32.mxu0 0.0
      %v1973 = vand.u32 %v580, 4294901760
      %1974 = vmatmul.mubr.f32.gmra.mxu0 %v1973
      %v1975 = vpop.f32.mrf.mxu0
      %v1976 = vadd.f32 %v1857, %v1975
      %v1977 = vpop.f32.mrf.mxu0
      %v1978 = vadd.f32 %v1859, %v1977
      %1979 = vdwg.mxu0
      %1980 = vmatprep.subr.mxu0 0.0
      %1981 = vmatpush1.msra.mxu0 0.0
      %1982 = vmatprep.subr.mxu0 0.0
      %1983 = vmatpush1.msra.mxu0 0.0
      %1984 = vmatprep.subr.mxu0 0.0
      %1985 = vmatpush1.msra.mxu0 0.0
      %1986 = vmatprep.subr.mxu0 0.0
      %1987 = vmatpush1.msra.mxu0 0.0
      %1988 = vmatprep.subr.mxu0 0.0
      %1989 = vmatpush1.msra.mxu0 0.0
      %1990 = vmatprep.subr.mxu0 0.0
      %1991 = vmatpush1.msra.mxu0 0.0
      %1992 = vmatprep.subr.mxu0 0.0
      %1993 = vmatpush1.msra.mxu0 0.0
      %1994 = vmatprep.subr.mxu0 0.0
      %1995 = vmatpush1.msra.mxu0 0.0
      %1996 = vmatprep.subr.mxu0 0.0
      %1997 = vmatpush1.msra.mxu0 0.0
      %1998 = vmatprep.subr.mxu0 0.0
      %1999 = vmatpush1.msra.mxu0 0.0
      %2000 = vmatprep.subr.mxu0 0.0
      %2001 = vmatpush1.msra.mxu0 0.0
      %2002 = vmatprep.subr.mxu0 0.0
      %2003 = vmatpush1.msra.mxu0 0.0
      %v2004 = vand.u32 %v571, 4294901760
      %v2005 = vsub.f32 %v571, %v2004
      %2006 = vmatprep.subr.mxu0 %v2005
      %v2007 = vand.u32 %v570, 4294901760
      %v2008 = vsub.f32 %v570, %v2007
      %2009 = vmatpush1.msra.mxu0 %v2008
      %v2010 = vand.u32 %v565, 4294901760
      %v2011 = vsub.f32 %v565, %v2010
      %2012 = vmatprep.subr.mxu0 %v2011
      %v2013 = vand.u32 %v564, 4294901760
      %v2014 = vsub.f32 %v564, %v2013
      %2015 = vmatpush1.msra.mxu0 %v2014
      %v2016 = vand.u32 %v559, 4294901760
      %v2017 = vsub.f32 %v559, %v2016
      %2018 = vmatprep.subr.mxu0 %v2017
      %v2019 = vand.u32 %v558, 4294901760
      %v2020 = vsub.f32 %v558, %v2019
      %2021 = vmatpush1.msra.mxu0 %v2020
      %v2022 = vand.u32 %v553, 4294901760
      %v2023 = vsub.f32 %v553, %v2022
      %2024 = vmatprep.subr.mxu0 %v2023
      %v2025 = vand.u32 %v552, 4294901760
      %v2026 = vsub.f32 %v552, %v2025
      %2027 = vmatpush1.msra.mxu0 %v2026
      %2028 = vmatprep.subr.mxu0 0.0
      %2029 = vmatpush2.msra.mxu0 0.0
      %2030 = vmatprep.subr.mxu0 0.0
      %2031 = vmatpush2.msra.mxu0 0.0
      %2032 = vmatprep.subr.mxu0 0.0
      %2033 = vmatpush2.msra.mxu0 0.0
      %2034 = vmatprep.subr.mxu0 0.0
      %2035 = vmatpush2.msra.mxu0 0.0
      %2036 = vmatprep.subr.mxu0 0.0
      %2037 = vmatpush2.msra.mxu0 0.0
      %2038 = vmatprep.subr.mxu0 0.0
      %2039 = vmatpush2.msra.mxu0 0.0
      %2040 = vmatprep.subr.mxu0 0.0
      %2041 = vmatpush2.msra.mxu0 0.0
      %2042 = vmatprep.subr.mxu0 0.0
      %2043 = vmatpush2.msra.mxu0 0.0
      %2044 = vmatprep.subr.mxu0 0.0
      %2045 = vmatpush2.msra.mxu0 0.0
      %2046 = vmatprep.subr.mxu0 0.0
      %2047 = vmatpush2.msra.mxu0 0.0
      %2048 = vmatprep.subr.mxu0 0.0
      %2049 = vmatpush2.msra.mxu0 0.0
      %2050 = vmatprep.subr.mxu0 0.0
      %2051 = vmatpush2.msra.mxu0 0.0
      %2052 = vmatprep.subr.mxu0 0.0
      %2053 = vmatpush2.msra.mxu0 0.0
      %2054 = vmatprep.subr.mxu0 0.0
      %2055 = vmatpush2.msra.mxu0 0.0
      %2056 = vmatprep.subr.mxu0 0.0
      %2057 = vmatpush2.msra.mxu0 0.0
      %2058 = vmatprep.subr.mxu0 0.0
      %2059 = vmatpush2.msra.mxu0 0.0
      %2060 = vmatprep.mubr.f32.mxu0 0.0
      %v2061 = vand.u32 %v577, 4294901760
      %v2062 = vsub.f32 %v577, %v2061
      %2063 = vmatmul.mubr.f32.gmra.mxu0 %v2062
      %v2064 = vpop.f32.mrf.mxu0
      %v2065 = vadd.f32 %v1969, %v2064
      %v2066 = vpop.f32.mrf.mxu0
      %v2067 = vadd.f32 %v1971, %v2066
      %2068 = vmatprep.mubr.f32.mxu0 0.0
      %v2069 = vand.u32 %v580, 4294901760
      %v2070 = vsub.f32 %v580, %v2069
      %2071 = vmatmul.mubr.f32.gmra.mxu0 %v2070
      %v2072 = vpop.f32.mrf.mxu0
      %v2073 = vadd.f32 %v1976, %v2072
      %v2074 = vpop.f32.mrf.mxu0
      %v2075 = vadd.f32 %v1978, %v2074
      %2076 = vdwg.mxu0
      %2077 = vmatprep.subr.mxu0 0.0
      %2078 = vmatpush1.msra.mxu0 0.0
      %2079 = vmatprep.subr.mxu0 0.0
      %2080 = vmatpush1.msra.mxu0 0.0
      %2081 = vmatprep.subr.mxu0 0.0
      %2082 = vmatpush1.msra.mxu0 0.0
      %2083 = vmatprep.subr.mxu0 0.0
      %2084 = vmatpush1.msra.mxu0 0.0
      %2085 = vmatprep.subr.mxu0 0.0
      %2086 = vmatpush1.msra.mxu0 0.0
      %2087 = vmatprep.subr.mxu0 0.0
      %2088 = vmatpush1.msra.mxu0 0.0
      %2089 = vmatprep.subr.mxu0 0.0
      %2090 = vmatpush1.msra.mxu0 0.0
      %2091 = vmatprep.subr.mxu0 0.0
      %2092 = vmatpush1.msra.mxu0 0.0
      %2093 = vmatprep.subr.mxu0 0.0
      %2094 = vmatpush1.msra.mxu0 0.0
      %2095 = vmatprep.subr.mxu0 0.0
      %2096 = vmatpush1.msra.mxu0 0.0
      %2097 = vmatprep.subr.mxu0 0.0
      %2098 = vmatpush1.msra.mxu0 0.0
      %2099 = vmatprep.subr.mxu0 0.0
      %2100 = vmatpush1.msra.mxu0 0.0
      %v2101 = vand.u32 %v571, 4294901760
      %2102 = vmatprep.subr.mxu0 %v2101
      %v2103 = vand.u32 %v570, 4294901760
      %2104 = vmatpush1.msra.mxu0 %v2103
      %v2105 = vand.u32 %v565, 4294901760
      %2106 = vmatprep.subr.mxu0 %v2105
      %v2107 = vand.u32 %v564, 4294901760
      %2108 = vmatpush1.msra.mxu0 %v2107
      %v2109 = vand.u32 %v559, 4294901760
      %2110 = vmatprep.subr.mxu0 %v2109
      %v2111 = vand.u32 %v558, 4294901760
      %2112 = vmatpush1.msra.mxu0 %v2111
      %v2113 = vand.u32 %v553, 4294901760
      %2114 = vmatprep.subr.mxu0 %v2113
      %v2115 = vand.u32 %v552, 4294901760
      %2116 = vmatpush1.msra.mxu0 %v2115
      %2117 = vmatprep.subr.mxu0 0.0
      %2118 = vmatpush2.msra.mxu0 0.0
      %2119 = vmatprep.subr.mxu0 0.0
      %2120 = vmatpush2.msra.mxu0 0.0
      %2121 = vmatprep.subr.mxu0 0.0
      %2122 = vmatpush2.msra.mxu0 0.0
      %2123 = vmatprep.subr.mxu0 0.0
      %2124 = vmatpush2.msra.mxu0 0.0
      %2125 = vmatprep.subr.mxu0 0.0
      %2126 = vmatpush2.msra.mxu0 0.0
      %2127 = vmatprep.subr.mxu0 0.0
      %2128 = vmatpush2.msra.mxu0 0.0
      %2129 = vmatprep.subr.mxu0 0.0
      %2130 = vmatpush2.msra.mxu0 0.0
      %2131 = vmatprep.subr.mxu0 0.0
      %2132 = vmatpush2.msra.mxu0 0.0
      %2133 = vmatprep.subr.mxu0 0.0
      %2134 = vmatpush2.msra.mxu0 0.0
      %2135 = vmatprep.subr.mxu0 0.0
      %2136 = vmatpush2.msra.mxu0 0.0
      %2137 = vmatprep.subr.mxu0 0.0
      %2138 = vmatpush2.msra.mxu0 0.0
      %2139 = vmatprep.subr.mxu0 0.0
      %2140 = vmatpush2.msra.mxu0 0.0
      %2141 = vmatprep.subr.mxu0 0.0
      %2142 = vmatpush2.msra.mxu0 0.0
      %2143 = vmatprep.subr.mxu0 0.0
      %2144 = vmatpush2.msra.mxu0 0.0
      %2145 = vmatprep.subr.mxu0 0.0
      %2146 = vmatpush2.msra.mxu0 0.0
      %2147 = vmatprep.subr.mxu0 0.0
      %2148 = vmatpush2.msra.mxu0 0.0
      %2149 = vmatprep.mubr.f32.mxu0 0.0
      %v2150 = vand.u32 %v577, 4294901760
      %v2151 = vsub.f32 %v577, %v2150
      %v2152 = vand.u32 %v2151, 4294901760
      %2153 = vmatmul.mubr.f32.gmra.mxu0 %v2152
      %v2154 = vpop.f32.mrf.mxu0
      %v2155 = vadd.f32 %v2065, %v2154
      %v2156 = vpop.f32.mrf.mxu0
      %v2157 = vadd.f32 %v2067, %v2156
      %2158 = vmatprep.mubr.f32.mxu0 0.0
      %v2159 = vand.u32 %v580, 4294901760
      %v2160 = vsub.f32 %v580, %v2159
      %v2161 = vand.u32 %v2160, 4294901760
      %2162 = vmatmul.mubr.f32.gmra.mxu0 %v2161
      %v2163 = vpop.f32.mrf.mxu0
      %v2164 = vadd.f32 %v2073, %v2163
      %v2165 = vpop.f32.mrf.mxu0
      %v2166 = vadd.f32 %v2075, %v2165
      %2167 = vdwg.mxu0
      %2168 = vmatprep.subr.mxu0 0.0
      %2169 = vmatpush1.msra.mxu0 0.0
      %2170 = vmatprep.subr.mxu0 0.0
      %2171 = vmatpush1.msra.mxu0 0.0
      %2172 = vmatprep.subr.mxu0 0.0
      %2173 = vmatpush1.msra.mxu0 0.0
      %2174 = vmatprep.subr.mxu0 0.0
      %2175 = vmatpush1.msra.mxu0 0.0
      %2176 = vmatprep.subr.mxu0 0.0
      %2177 = vmatpush1.msra.mxu0 0.0
      %2178 = vmatprep.subr.mxu0 0.0
      %2179 = vmatpush1.msra.mxu0 0.0
      %2180 = vmatprep.subr.mxu0 0.0
      %2181 = vmatpush1.msra.mxu0 0.0
      %2182 = vmatprep.subr.mxu0 0.0
      %2183 = vmatpush1.msra.mxu0 0.0
      %2184 = vmatprep.subr.mxu0 0.0
      %2185 = vmatpush1.msra.mxu0 0.0
      %2186 = vmatprep.subr.mxu0 0.0
      %2187 = vmatpush1.msra.mxu0 0.0
      %2188 = vmatprep.subr.mxu0 0.0
      %2189 = vmatpush1.msra.mxu0 0.0
      %2190 = vmatprep.subr.mxu0 0.0
      %2191 = vmatpush1.msra.mxu0 0.0
      %v2192 = vand.u32 %v571, 4294901760
      %v2193 = vsub.f32 %v571, %v2192
      %v2194 = vand.u32 %v2193, 4294901760
      %2195 = vmatprep.subr.mxu0 %v2194
      %v2196 = vand.u32 %v570, 4294901760
      %v2197 = vsub.f32 %v570, %v2196
      %v2198 = vand.u32 %v2197, 4294901760
      %2199 = vmatpush1.msra.mxu0 %v2198
      %v2200 = vand.u32 %v565, 4294901760
      %v2201 = vsub.f32 %v565, %v2200
      %v2202 = vand.u32 %v2201, 4294901760
      %2203 = vmatprep.subr.mxu0 %v2202
      %v2204 = vand.u32 %v564, 4294901760
      %v2205 = vsub.f32 %v564, %v2204
      %v2206 = vand.u32 %v2205, 4294901760
      %2207 = vmatpush1.msra.mxu0 %v2206
      %v2208 = vand.u32 %v559, 4294901760
      %v2209 = vsub.f32 %v559, %v2208
      %v2210 = vand.u32 %v2209, 4294901760
      %2211 = vmatprep.subr.mxu0 %v2210
      %v2212 = vand.u32 %v558, 4294901760
      %v2213 = vsub.f32 %v558, %v2212
      %v2214 = vand.u32 %v2213, 4294901760
      %2215 = vmatpush1.msra.mxu0 %v2214
      %v2216 = vand.u32 %v553, 4294901760
      %v2217 = vsub.f32 %v553, %v2216
      %v2218 = vand.u32 %v2217, 4294901760
      %2219 = vmatprep.subr.mxu0 %v2218
      %v2220 = vand.u32 %v552, 4294901760
      %v2221 = vsub.f32 %v552, %v2220
      %v2222 = vand.u32 %v2221, 4294901760
      %2223 = vmatpush1.msra.mxu0 %v2222
      %2224 = vmatprep.subr.mxu0 0.0
      %2225 = vmatpush2.msra.mxu0 0.0
      %2226 = vmatprep.subr.mxu0 0.0
      %2227 = vmatpush2.msra.mxu0 0.0
      %2228 = vmatprep.subr.mxu0 0.0
      %2229 = vmatpush2.msra.mxu0 0.0
      %2230 = vmatprep.subr.mxu0 0.0
      %2231 = vmatpush2.msra.mxu0 0.0
      %2232 = vmatprep.subr.mxu0 0.0
      %2233 = vmatpush2.msra.mxu0 0.0
      %2234 = vmatprep.subr.mxu0 0.0
      %2235 = vmatpush2.msra.mxu0 0.0
      %2236 = vmatprep.subr.mxu0 0.0
      %2237 = vmatpush2.msra.mxu0 0.0
      %2238 = vmatprep.subr.mxu0 0.0
      %2239 = vmatpush2.msra.mxu0 0.0
      %2240 = vmatprep.subr.mxu0 0.0
      %2241 = vmatpush2.msra.mxu0 0.0
      %2242 = vmatprep.subr.mxu0 0.0
      %2243 = vmatpush2.msra.mxu0 0.0
      %2244 = vmatprep.subr.mxu0 0.0
      %2245 = vmatpush2.msra.mxu0 0.0
      %2246 = vmatprep.subr.mxu0 0.0
      %2247 = vmatpush2.msra.mxu0 0.0
      %2248 = vmatprep.subr.mxu0 0.0
      %2249 = vmatpush2.msra.mxu0 0.0
      %2250 = vmatprep.subr.mxu0 0.0
      %2251 = vmatpush2.msra.mxu0 0.0
      %2252 = vmatprep.subr.mxu0 0.0
      %2253 = vmatpush2.msra.mxu0 0.0
      %2254 = vmatprep.subr.mxu0 0.0
      %2255 = vmatpush2.msra.mxu0 0.0
      %2256 = vmatprep.mubr.f32.mxu0 0.0
      %v2257 = vand.u32 %v577, 4294901760
      %2258 = vmatmul.mubr.f32.gmra.mxu0 %v2257
      %v2259 = vpop.f32.mrf.mxu0
      %v2260 = vadd.f32 %v2155, %v2259
      %v2261 = vpop.f32.mrf.mxu0
      %v2262 = vadd.f32 %v2157, %v2261
      %2263 = vmatprep.mubr.f32.mxu0 0.0
      %v2264 = vand.u32 %v580, 4294901760
      %2265 = vmatmul.mubr.f32.gmra.mxu0 %v2264
      %v2266 = vpop.f32.mrf.mxu0
      %v2267 = vadd.f32 %v2164, %v2266
      %v2268 = vpop.f32.mrf.mxu0
      %v2269 = vadd.f32 %v2166, %v2268
      %2270 = vdwg.mxu0
      %2271 = vmatprep.subr.mxu0 0.0
      %2272 = vmatpush1.msra.mxu0 0.0
      %2273 = vmatprep.subr.mxu0 0.0
      %2274 = vmatpush1.msra.mxu0 0.0
      %2275 = vmatprep.subr.mxu0 0.0
      %2276 = vmatpush1.msra.mxu0 0.0
      %2277 = vmatprep.subr.mxu0 0.0
      %2278 = vmatpush1.msra.mxu0 0.0
      %2279 = vmatprep.subr.mxu0 0.0
      %2280 = vmatpush1.msra.mxu0 0.0
      %2281 = vmatprep.subr.mxu0 0.0
      %2282 = vmatpush1.msra.mxu0 0.0
      %2283 = vmatprep.subr.mxu0 0.0
      %2284 = vmatpush1.msra.mxu0 0.0
      %2285 = vmatprep.subr.mxu0 0.0
      %2286 = vmatpush1.msra.mxu0 0.0
      %2287 = vmatprep.subr.mxu0 0.0
      %2288 = vmatpush1.msra.mxu0 0.0
      %2289 = vmatprep.subr.mxu0 0.0
      %2290 = vmatpush1.msra.mxu0 0.0
      %2291 = vmatprep.subr.mxu0 0.0
      %2292 = vmatpush1.msra.mxu0 0.0
      %2293 = vmatprep.subr.mxu0 0.0
      %2294 = vmatpush1.msra.mxu0 0.0
      %v2295 = vand.u32 %v571, 4294901760
      %2296 = vmatprep.subr.mxu0 %v2295
      %v2297 = vand.u32 %v570, 4294901760
      %2298 = vmatpush1.msra.mxu0 %v2297
      %v2299 = vand.u32 %v565, 4294901760
      %2300 = vmatprep.subr.mxu0 %v2299
      %v2301 = vand.u32 %v564, 4294901760
      %2302 = vmatpush1.msra.mxu0 %v2301
      %v2303 = vand.u32 %v559, 4294901760
      %2304 = vmatprep.subr.mxu0 %v2303
      %v2305 = vand.u32 %v558, 4294901760
      %2306 = vmatpush1.msra.mxu0 %v2305
      %v2307 = vand.u32 %v553, 4294901760
      %2308 = vmatprep.subr.mxu0 %v2307
      %v2309 = vand.u32 %v552, 4294901760
      %2310 = vmatpush1.msra.mxu0 %v2309
      %2311 = vmatprep.subr.mxu0 0.0
      %2312 = vmatpush2.msra.mxu0 0.0
      %2313 = vmatprep.subr.mxu0 0.0
      %2314 = vmatpush2.msra.mxu0 0.0
      %2315 = vmatprep.subr.mxu0 0.0
      %2316 = vmatpush2.msra.mxu0 0.0
      %2317 = vmatprep.subr.mxu0 0.0
      %2318 = vmatpush2.msra.mxu0 0.0
      %2319 = vmatprep.subr.mxu0 0.0
      %2320 = vmatpush2.msra.mxu0 0.0
      %2321 = vmatprep.subr.mxu0 0.0
      %2322 = vmatpush2.msra.mxu0 0.0
      %2323 = vmatprep.subr.mxu0 0.0
      %2324 = vmatpush2.msra.mxu0 0.0
      %2325 = vmatprep.subr.mxu0 0.0
      %2326 = vmatpush2.msra.mxu0 0.0
      %2327 = vmatprep.subr.mxu0 0.0
      %2328 = vmatpush2.msra.mxu0 0.0
      %2329 = vmatprep.subr.mxu0 0.0
      %2330 = vmatpush2.msra.mxu0 0.0
      %2331 = vmatprep.subr.mxu0 0.0
      %2332 = vmatpush2.msra.mxu0 0.0
      %2333 = vmatprep.subr.mxu0 0.0
      %2334 = vmatpush2.msra.mxu0 0.0
      %2335 = vmatprep.subr.mxu0 0.0
      %2336 = vmatpush2.msra.mxu0 0.0
      %2337 = vmatprep.subr.mxu0 0.0
      %2338 = vmatpush2.msra.mxu0 0.0
      %2339 = vmatprep.subr.mxu0 0.0
      %2340 = vmatpush2.msra.mxu0 0.0
      %2341 = vmatprep.subr.mxu0 0.0
      %2342 = vmatpush2.msra.mxu0 0.0
      %2343 = vmatprep.mubr.f32.mxu0 0.0
      %v2344 = vand.u32 %v577, 4294901760
      %2345 = vmatmul.mubr.f32.gmra.mxu0 %v2344
      %v2346 = vpop.f32.mrf.mxu0
      %v2347 = vadd.f32 %v2260, %v2346
      %v2348 = vpop.f32.mrf.mxu0
      %v2349 = vadd.f32 %v2262, %v2348
      %2350 = vmatprep.mubr.f32.mxu0 0.0
      %v2351 = vand.u32 %v580, 4294901760
      %2352 = vmatmul.mubr.f32.gmra.mxu0 %v2351
      %v2353 = vpop.f32.mrf.mxu0
      %v2354 = vadd.f32 %v2267, %v2353
      %v2355 = vpop.f32.mrf.mxu0
      %v2356 = vadd.f32 %v2269, %v2355
      %2357 = vdwg.mxu0
      %v2358 = vld [vmem:[%s525] sm:$0xff]
      %v2359 = vld [vmem:[%s525 + $0x8] sm:$0xff]
      %v2360 = vld [vmem:[%s525 + $0x10] sm:$0xff]
      %v2361 = vld [vmem:[%s525 + $0x18] sm:$0xff]
      %v2363 = vsel %vm575, %v2358, 0
      %v2366 = vsel %vm575, %v2359, 0
      %v2369 = vsel %vm575, %v2360, 0
      %v2372 = vsel %vm575, %v2361, 0
      %2374 = vmatprep.subr.mxu0 0.0
      %2375 = vmatpush1.msra.mxu0 0.0
      %2376 = vmatprep.subr.mxu0 0.0
      %2377 = vmatpush1.msra.mxu0 0.0
      %2378 = vmatprep.subr.mxu0 0.0
      %2379 = vmatpush1.msra.mxu0 0.0
      %2380 = vmatprep.subr.mxu0 0.0
      %2381 = vmatpush1.msra.mxu0 0.0
      %2382 = vmatprep.subr.mxu0 0.0
      %2383 = vmatpush1.msra.mxu0 0.0
      %2384 = vmatprep.subr.mxu0 0.0
      %2385 = vmatpush1.msra.mxu0 0.0
      %2386 = vmatprep.subr.mxu0 0.0
      %2387 = vmatpush1.msra.mxu0 0.0
      %2388 = vmatprep.subr.mxu0 0.0
      %2389 = vmatpush1.msra.mxu0 0.0
      %2390 = vmatprep.subr.mxu0 0.0
      %2391 = vmatpush1.msra.mxu0 0.0
      %2392 = vmatprep.subr.mxu0 0.0
      %2393 = vmatpush1.msra.mxu0 0.0
      %2394 = vmatprep.subr.mxu0 0.0
      %2395 = vmatpush1.msra.mxu0 0.0
      %2396 = vmatprep.subr.mxu0 0.0
      %2397 = vmatpush1.msra.mxu0 0.0
      %v2398 = vand.u32 %v567, 4294901760
      %2399 = vmatprep.subr.mxu0 %v2398
      %v2400 = vand.u32 %v566, 4294901760
      %2401 = vmatpush1.msra.mxu0 %v2400
      %v2402 = vand.u32 %v561, 4294901760
      %2403 = vmatprep.subr.mxu0 %v2402
      %v2404 = vand.u32 %v560, 4294901760
      %2405 = vmatpush1.msra.mxu0 %v2404
      %v2406 = vand.u32 %v555, 4294901760
      %2407 = vmatprep.subr.mxu0 %v2406
      %v2408 = vand.u32 %v554, 4294901760
      %2409 = vmatpush1.msra.mxu0 %v2408
      %v2410 = vand.u32 %v549, 4294901760
      %2411 = vmatprep.subr.mxu0 %v2410
      %v2412 = vand.u32 %v548, 4294901760
      %2413 = vmatpush1.msra.mxu0 %v2412
      %2414 = vmatprep.subr.mxu0 0.0
      %2415 = vmatpush2.msra.mxu0 0.0
      %2416 = vmatprep.subr.mxu0 0.0
      %2417 = vmatpush2.msra.mxu0 0.0
      %2418 = vmatprep.subr.mxu0 0.0
      %2419 = vmatpush2.msra.mxu0 0.0
      %2420 = vmatprep.subr.mxu0 0.0
      %2421 = vmatpush2.msra.mxu0 0.0
      %2422 = vmatprep.subr.mxu0 0.0
      %2423 = vmatpush2.msra.mxu0 0.0
      %2424 = vmatprep.subr.mxu0 0.0
      %2425 = vmatpush2.msra.mxu0 0.0
      %2426 = vmatprep.subr.mxu0 0.0
      %2427 = vmatpush2.msra.mxu0 0.0
      %2428 = vmatprep.subr.mxu0 0.0
      %2429 = vmatpush2.msra.mxu0 0.0
      %2430 = vmatprep.subr.mxu0 0.0
      %2431 = vmatpush2.msra.mxu0 0.0
      %2432 = vmatprep.subr.mxu0 0.0
      %2433 = vmatpush2.msra.mxu0 0.0
      %2434 = vmatprep.subr.mxu0 0.0
      %2435 = vmatpush2.msra.mxu0 0.0
      %2436 = vmatprep.subr.mxu0 0.0
      %2437 = vmatpush2.msra.mxu0 0.0
      %2438 = vmatprep.subr.mxu0 0.0
      %2439 = vmatpush2.msra.mxu0 0.0
      %2440 = vmatprep.subr.mxu0 0.0
      %2441 = vmatpush2.msra.mxu0 0.0
      %2442 = vmatprep.subr.mxu0 0.0
      %2443 = vmatpush2.msra.mxu0 0.0
      %2444 = vmatprep.subr.mxu0 0.0
      %2445 = vmatpush2.msra.mxu0 0.0
      %2446 = vmatprep.mubr.f32.mxu0 0.0
      %v2447 = vand.u32 %v2363, 4294901760
      %v2448 = vsub.f32 %v2363, %v2447
      %v2449 = vand.u32 %v2448, 4294901760
      %v2450 = vsub.f32 %v2448, %v2449
      %v2451 = vand.u32 %v2450, 4294901760
      %2452 = vmatmul.mubr.f32.gmra.mxu0 %v2451
      %v2453 = vpop.f32.mrf.mxu0
      %v2454 = vadd.f32 0.0, %v2453
      %v2455 = vpop.f32.mrf.mxu0
      %v2456 = vadd.f32 0.0, %v2455
      %2457 = vmatprep.mubr.f32.mxu0 0.0
      %v2458 = vand.u32 %v2366, 4294901760
      %v2459 = vsub.f32 %v2366, %v2458
      %v2460 = vand.u32 %v2459, 4294901760
      %v2461 = vsub.f32 %v2459, %v2460
      %v2462 = vand.u32 %v2461, 4294901760
      %2463 = vmatmul.mubr.f32.gmra.mxu0 %v2462
      %v2464 = vpop.f32.mrf.mxu0
      %v2465 = vadd.f32 0.0, %v2464
      %v2466 = vpop.f32.mrf.mxu0
      %v2467 = vadd.f32 0.0, %v2466
      %2468 = vmatprep.mubr.f32.mxu0 0.0
      %v2469 = vand.u32 %v2369, 4294901760
      %v2470 = vsub.f32 %v2369, %v2469
      %v2471 = vand.u32 %v2470, 4294901760
      %v2472 = vsub.f32 %v2470, %v2471
      %v2473 = vand.u32 %v2472, 4294901760
      %2474 = vmatmul.mubr.f32.gmra.mxu0 %v2473
      %v2475 = vpop.f32.mrf.mxu0
      %v2476 = vadd.f32 0.0, %v2475
      %v2477 = vpop.f32.mrf.mxu0
      %v2478 = vadd.f32 0.0, %v2477
      %2479 = vmatprep.mubr.f32.mxu0 0.0
      %v2480 = vand.u32 %v2372, 4294901760
      %v2481 = vsub.f32 %v2372, %v2480
      %v2482 = vand.u32 %v2481, 4294901760
      %v2483 = vsub.f32 %v2481, %v2482
      %v2484 = vand.u32 %v2483, 4294901760
      %2485 = vmatmul.mubr.f32.gmra.mxu0 %v2484
      %v2486 = vpop.f32.mrf.mxu0
      %v2487 = vadd.f32 0.0, %v2486
      %v2488 = vpop.f32.mrf.mxu0
      %v2489 = vadd.f32 0.0, %v2488
      %2490 = vdwg.mxu0
      %2491 = vmatprep.subr.mxu0 0.0
      %2492 = vmatpush1.msra.mxu0 0.0
      %2493 = vmatprep.subr.mxu0 0.0
      %2494 = vmatpush1.msra.mxu0 0.0
      %2495 = vmatprep.subr.mxu0 0.0
      %2496 = vmatpush1.msra.mxu0 0.0
      %2497 = vmatprep.subr.mxu0 0.0
      %2498 = vmatpush1.msra.mxu0 0.0
      %2499 = vmatprep.subr.mxu0 0.0
      %2500 = vmatpush1.msra.mxu0 0.0
      %2501 = vmatprep.subr.mxu0 0.0
      %2502 = vmatpush1.msra.mxu0 0.0
      %2503 = vmatprep.subr.mxu0 0.0
      %2504 = vmatpush1.msra.mxu0 0.0
      %2505 = vmatprep.subr.mxu0 0.0
      %2506 = vmatpush1.msra.mxu0 0.0
      %2507 = vmatprep.subr.mxu0 0.0
      %2508 = vmatpush1.msra.mxu0 0.0
      %2509 = vmatprep.subr.mxu0 0.0
      %2510 = vmatpush1.msra.mxu0 0.0
      %2511 = vmatprep.subr.mxu0 0.0
      %2512 = vmatpush1.msra.mxu0 0.0
      %2513 = vmatprep.subr.mxu0 0.0
      %2514 = vmatpush1.msra.mxu0 0.0
      %v2515 = vand.u32 %v567, 4294901760
      %v2516 = vsub.f32 %v567, %v2515
      %v2517 = vand.u32 %v2516, 4294901760
      %v2518 = vsub.f32 %v2516, %v2517
      %v2519 = vand.u32 %v2518, 4294901760
      %2520 = vmatprep.subr.mxu0 %v2519
      %v2521 = vand.u32 %v566, 4294901760
      %v2522 = vsub.f32 %v566, %v2521
      %v2523 = vand.u32 %v2522, 4294901760
      %v2524 = vsub.f32 %v2522, %v2523
      %v2525 = vand.u32 %v2524, 4294901760
      %2526 = vmatpush1.msra.mxu0 %v2525
      %v2527 = vand.u32 %v561, 4294901760
      %v2528 = vsub.f32 %v561, %v2527
      %v2529 = vand.u32 %v2528, 4294901760
      %v2530 = vsub.f32 %v2528, %v2529
      %v2531 = vand.u32 %v2530, 4294901760
      %2532 = vmatprep.subr.mxu0 %v2531
      %v2533 = vand.u32 %v560, 4294901760
      %v2534 = vsub.f32 %v560, %v2533
      %v2535 = vand.u32 %v2534, 4294901760
      %v2536 = vsub.f32 %v2534, %v2535
      %v2537 = vand.u32 %v2536, 4294901760
      %2538 = vmatpush1.msra.mxu0 %v2537
      %v2539 = vand.u32 %v555, 4294901760
      %v2540 = vsub.f32 %v555, %v2539
      %v2541 = vand.u32 %v2540, 4294901760
      %v2542 = vsub.f32 %v2540, %v2541
      %v2543 = vand.u32 %v2542, 4294901760
      %2544 = vmatprep.subr.mxu0 %v2543
      %v2545 = vand.u32 %v554, 4294901760
      %v2546 = vsub.f32 %v554, %v2545
      %v2547 = vand.u32 %v2546, 4294901760
      %v2548 = vsub.f32 %v2546, %v2547
      %v2549 = vand.u32 %v2548, 4294901760
      %2550 = vmatpush1.msra.mxu0 %v2549
      %v2551 = vand.u32 %v549, 4294901760
      %v2552 = vsub.f32 %v549, %v2551
      %v2553 = vand.u32 %v2552, 4294901760
      %v2554 = vsub.f32 %v2552, %v2553
      %v2555 = vand.u32 %v2554, 4294901760
      %2556 = vmatprep.subr.mxu0 %v2555
      %v2557 = vand.u32 %v548, 4294901760
      %v2558 = vsub.f32 %v548, %v2557
      %v2559 = vand.u32 %v2558, 4294901760
      %v2560 = vsub.f32 %v2558, %v2559
      %v2561 = vand.u32 %v2560, 4294901760
      %2562 = vmatpush1.msra.mxu0 %v2561
      %2563 = vmatprep.subr.mxu0 0.0
      %2564 = vmatpush2.msra.mxu0 0.0
      %2565 = vmatprep.subr.mxu0 0.0
      %2566 = vmatpush2.msra.mxu0 0.0
      %2567 = vmatprep.subr.mxu0 0.0
      %2568 = vmatpush2.msra.mxu0 0.0
      %2569 = vmatprep.subr.mxu0 0.0
      %2570 = vmatpush2.msra.mxu0 0.0
      %2571 = vmatprep.subr.mxu0 0.0
      %2572 = vmatpush2.msra.mxu0 0.0
      %2573 = vmatprep.subr.mxu0 0.0
      %2574 = vmatpush2.msra.mxu0 0.0
      %2575 = vmatprep.subr.mxu0 0.0
      %2576 = vmatpush2.msra.mxu0 0.0
      %2577 = vmatprep.subr.mxu0 0.0
      %2578 = vmatpush2.msra.mxu0 0.0
      %2579 = vmatprep.subr.mxu0 0.0
      %2580 = vmatpush2.msra.mxu0 0.0
      %2581 = vmatprep.subr.mxu0 0.0
      %2582 = vmatpush2.msra.mxu0 0.0
      %2583 = vmatprep.subr.mxu0 0.0
      %2584 = vmatpush2.msra.mxu0 0.0
      %2585 = vmatprep.subr.mxu0 0.0
      %2586 = vmatpush2.msra.mxu0 0.0
      %2587 = vmatprep.subr.mxu0 0.0
      %2588 = vmatpush2.msra.mxu0 0.0
      %2589 = vmatprep.subr.mxu0 0.0
      %2590 = vmatpush2.msra.mxu0 0.0
      %2591 = vmatprep.subr.mxu0 0.0
      %2592 = vmatpush2.msra.mxu0 0.0
      %2593 = vmatprep.subr.mxu0 0.0
      %2594 = vmatpush2.msra.mxu0 0.0
      %2595 = vmatprep.mubr.f32.mxu0 0.0
      %v2596 = vand.u32 %v2363, 4294901760
      %2597 = vmatmul.mubr.f32.gmra.mxu0 %v2596
      %v2598 = vpop.f32.mrf.mxu0
      %v2599 = vadd.f32 %v2454, %v2598
      %v2600 = vpop.f32.mrf.mxu0
      %v2601 = vadd.f32 %v2456, %v2600
      %2602 = vmatprep.mubr.f32.mxu0 0.0
      %v2603 = vand.u32 %v2366, 4294901760
      %2604 = vmatmul.mubr.f32.gmra.mxu0 %v2603
      %v2605 = vpop.f32.mrf.mxu0
      %v2606 = vadd.f32 %v2465, %v2605
      %v2607 = vpop.f32.mrf.mxu0
      %v2608 = vadd.f32 %v2467, %v2607
      %2609 = vmatprep.mubr.f32.mxu0 0.0
      %v2610 = vand.u32 %v2369, 4294901760
      %2611 = vmatmul.mubr.f32.gmra.mxu0 %v2610
      %v2612 = vpop.f32.mrf.mxu0
      %v2613 = vadd.f32 %v2476, %v2612
      %v2614 = vpop.f32.mrf.mxu0
      %v2615 = vadd.f32 %v2478, %v2614
      %2616 = vmatprep.mubr.f32.mxu0 0.0
      %v2617 = vand.u32 %v2372, 4294901760
      %2618 = vmatmul.mubr.f32.gmra.mxu0 %v2617
      %v2619 = vpop.f32.mrf.mxu0
      %v2620 = vadd.f32 %v2487, %v2619
      %v2621 = vpop.f32.mrf.mxu0
      %v2622 = vadd.f32 %v2489, %v2621
      %2623 = vdwg.mxu0
      %2624 = vmatprep.subr.mxu0 0.0
      %2625 = vmatpush1.msra.mxu0 0.0
      %2626 = vmatprep.subr.mxu0 0.0
      %2627 = vmatpush1.msra.mxu0 0.0
      %2628 = vmatprep.subr.mxu0 0.0
      %2629 = vmatpush1.msra.mxu0 0.0
      %2630 = vmatprep.subr.mxu0 0.0
      %2631 = vmatpush1.msra.mxu0 0.0
      %2632 = vmatprep.subr.mxu0 0.0
      %2633 = vmatpush1.msra.mxu0 0.0
      %2634 = vmatprep.subr.mxu0 0.0
      %2635 = vmatpush1.msra.mxu0 0.0
      %2636 = vmatprep.subr.mxu0 0.0
      %2637 = vmatpush1.msra.mxu0 0.0
      %2638 = vmatprep.subr.mxu0 0.0
      %2639 = vmatpush1.msra.mxu0 0.0
      %2640 = vmatprep.subr.mxu0 0.0
      %2641 = vmatpush1.msra.mxu0 0.0
      %2642 = vmatprep.subr.mxu0 0.0
      %2643 = vmatpush1.msra.mxu0 0.0
      %2644 = vmatprep.subr.mxu0 0.0
      %2645 = vmatpush1.msra.mxu0 0.0
      %2646 = vmatprep.subr.mxu0 0.0
      %2647 = vmatpush1.msra.mxu0 0.0
      %v2648 = vand.u32 %v567, 4294901760
      %v2649 = vsub.f32 %v567, %v2648
      %2650 = vmatprep.subr.mxu0 %v2649
      %v2651 = vand.u32 %v566, 4294901760
      %v2652 = vsub.f32 %v566, %v2651
      %2653 = vmatpush1.msra.mxu0 %v2652
      %v2654 = vand.u32 %v561, 4294901760
      %v2655 = vsub.f32 %v561, %v2654
      %2656 = vmatprep.subr.mxu0 %v2655
      %v2657 = vand.u32 %v560, 4294901760
      %v2658 = vsub.f32 %v560, %v2657
      %2659 = vmatpush1.msra.mxu0 %v2658
      %v2660 = vand.u32 %v555, 4294901760
      %v2661 = vsub.f32 %v555, %v2660
      %2662 = vmatprep.subr.mxu0 %v2661
      %v2663 = vand.u32 %v554, 4294901760
      %v2664 = vsub.f32 %v554, %v2663
      %2665 = vmatpush1.msra.mxu0 %v2664
      %v2666 = vand.u32 %v549, 4294901760
      %v2667 = vsub.f32 %v549, %v2666
      %2668 = vmatprep.subr.mxu0 %v2667
      %v2669 = vand.u32 %v548, 4294901760
      %v2670 = vsub.f32 %v548, %v2669
      %2671 = vmatpush1.msra.mxu0 %v2670
      %2672 = vmatprep.subr.mxu0 0.0
      %2673 = vmatpush2.msra.mxu0 0.0
      %2674 = vmatprep.subr.mxu0 0.0
      %2675 = vmatpush2.msra.mxu0 0.0
      %2676 = vmatprep.subr.mxu0 0.0
      %2677 = vmatpush2.msra.mxu0 0.0
      %2678 = vmatprep.subr.mxu0 0.0
      %2679 = vmatpush2.msra.mxu0 0.0
      %2680 = vmatprep.subr.mxu0 0.0
      %2681 = vmatpush2.msra.mxu0 0.0
      %2682 = vmatprep.subr.mxu0 0.0
      %2683 = vmatpush2.msra.mxu0 0.0
      %2684 = vmatprep.subr.mxu0 0.0
      %2685 = vmatpush2.msra.mxu0 0.0
      %2686 = vmatprep.subr.mxu0 0.0
      %2687 = vmatpush2.msra.mxu0 0.0
      %2688 = vmatprep.subr.mxu0 0.0
      %2689 = vmatpush2.msra.mxu0 0.0
      %2690 = vmatprep.subr.mxu0 0.0
      %2691 = vmatpush2.msra.mxu0 0.0
      %2692 = vmatprep.subr.mxu0 0.0
      %2693 = vmatpush2.msra.mxu0 0.0
      %2694 = vmatprep.subr.mxu0 0.0
      %2695 = vmatpush2.msra.mxu0 0.0
      %2696 = vmatprep.subr.mxu0 0.0
      %2697 = vmatpush2.msra.mxu0 0.0
      %2698 = vmatprep.subr.mxu0 0.0
      %2699 = vmatpush2.msra.mxu0 0.0
      %2700 = vmatprep.subr.mxu0 0.0
      %2701 = vmatpush2.msra.mxu0 0.0
      %2702 = vmatprep.subr.mxu0 0.0
      %2703 = vmatpush2.msra.mxu0 0.0
      %2704 = vmatprep.mubr.f32.mxu0 0.0
      %v2705 = vand.u32 %v2363, 4294901760
      %v2706 = vsub.f32 %v2363, %v2705
      %2707 = vmatmul.mubr.f32.gmra.mxu0 %v2706
      %v2708 = vpop.f32.mrf.mxu0
      %v2709 = vadd.f32 %v2599, %v2708
      %v2710 = vpop.f32.mrf.mxu0
      %v2711 = vadd.f32 %v2601, %v2710
      %2712 = vmatprep.mubr.f32.mxu0 0.0
      %v2713 = vand.u32 %v2366, 4294901760
      %v2714 = vsub.f32 %v2366, %v2713
      %2715 = vmatmul.mubr.f32.gmra.mxu0 %v2714
      %v2716 = vpop.f32.mrf.mxu0
      %v2717 = vadd.f32 %v2606, %v2716
      %v2718 = vpop.f32.mrf.mxu0
      %v2719 = vadd.f32 %v2608, %v2718
      %2720 = vmatprep.mubr.f32.mxu0 0.0
      %v2721 = vand.u32 %v2369, 4294901760
      %v2722 = vsub.f32 %v2369, %v2721
      %2723 = vmatmul.mubr.f32.gmra.mxu0 %v2722
      %v2724 = vpop.f32.mrf.mxu0
      %v2725 = vadd.f32 %v2613, %v2724
      %v2726 = vpop.f32.mrf.mxu0
      %v2727 = vadd.f32 %v2615, %v2726
      %2728 = vmatprep.mubr.f32.mxu0 0.0
      %v2729 = vand.u32 %v2372, 4294901760
      %v2730 = vsub.f32 %v2372, %v2729
      %2731 = vmatmul.mubr.f32.gmra.mxu0 %v2730
      %v2732 = vpop.f32.mrf.mxu0
      %v2733 = vadd.f32 %v2620, %v2732
      %v2734 = vpop.f32.mrf.mxu0
      %v2735 = vadd.f32 %v2622, %v2734
      %2736 = vdwg.mxu0
      %2737 = vmatprep.subr.mxu0 0.0
      %2738 = vmatpush1.msra.mxu0 0.0
      %2739 = vmatprep.subr.mxu0 0.0
      %2740 = vmatpush1.msra.mxu0 0.0
      %2741 = vmatprep.subr.mxu0 0.0
      %2742 = vmatpush1.msra.mxu0 0.0
      %2743 = vmatprep.subr.mxu0 0.0
      %2744 = vmatpush1.msra.mxu0 0.0
      %2745 = vmatprep.subr.mxu0 0.0
      %2746 = vmatpush1.msra.mxu0 0.0
      %2747 = vmatprep.subr.mxu0 0.0
      %2748 = vmatpush1.msra.mxu0 0.0
      %2749 = vmatprep.subr.mxu0 0.0
      %2750 = vmatpush1.msra.mxu0 0.0
      %2751 = vmatprep.subr.mxu0 0.0
      %2752 = vmatpush1.msra.mxu0 0.0
      %2753 = vmatprep.subr.mxu0 0.0
      %2754 = vmatpush1.msra.mxu0 0.0
      %2755 = vmatprep.subr.mxu0 0.0
      %2756 = vmatpush1.msra.mxu0 0.0
      %2757 = vmatprep.subr.mxu0 0.0
      %2758 = vmatpush1.msra.mxu0 0.0
      %2759 = vmatprep.subr.mxu0 0.0
      %2760 = vmatpush1.msra.mxu0 0.0
      %v2761 = vand.u32 %v567, 4294901760
      %2762 = vmatprep.subr.mxu0 %v2761
      %v2763 = vand.u32 %v566, 4294901760
      %2764 = vmatpush1.msra.mxu0 %v2763
      %v2765 = vand.u32 %v561, 4294901760
      %2766 = vmatprep.subr.mxu0 %v2765
      %v2767 = vand.u32 %v560, 4294901760
      %2768 = vmatpush1.msra.mxu0 %v2767
      %v2769 = vand.u32 %v555, 4294901760
      %2770 = vmatprep.subr.mxu0 %v2769
      %v2771 = vand.u32 %v554, 4294901760
      %2772 = vmatpush1.msra.mxu0 %v2771
      %v2773 = vand.u32 %v549, 4294901760
      %2774 = vmatprep.subr.mxu0 %v2773
      %v2775 = vand.u32 %v548, 4294901760
      %2776 = vmatpush1.msra.mxu0 %v2775
      %2777 = vmatprep.subr.mxu0 0.0
      %2778 = vmatpush2.msra.mxu0 0.0
      %2779 = vmatprep.subr.mxu0 0.0
      %2780 = vmatpush2.msra.mxu0 0.0
      %2781 = vmatprep.subr.mxu0 0.0
      %2782 = vmatpush2.msra.mxu0 0.0
      %2783 = vmatprep.subr.mxu0 0.0
      %2784 = vmatpush2.msra.mxu0 0.0
      %2785 = vmatprep.subr.mxu0 0.0
      %2786 = vmatpush2.msra.mxu0 0.0
      %2787 = vmatprep.subr.mxu0 0.0
      %2788 = vmatpush2.msra.mxu0 0.0
      %2789 = vmatprep.subr.mxu0 0.0
      %2790 = vmatpush2.msra.mxu0 0.0
      %2791 = vmatprep.subr.mxu0 0.0
      %2792 = vmatpush2.msra.mxu0 0.0
      %2793 = vmatprep.subr.mxu0 0.0
      %2794 = vmatpush2.msra.mxu0 0.0
      %2795 = vmatprep.subr.mxu0 0.0
      %2796 = vmatpush2.msra.mxu0 0.0
      %2797 = vmatprep.subr.mxu0 0.0
      %2798 = vmatpush2.msra.mxu0 0.0
      %2799 = vmatprep.subr.mxu0 0.0
      %2800 = vmatpush2.msra.mxu0 0.0
      %2801 = vmatprep.subr.mxu0 0.0
      %2802 = vmatpush2.msra.mxu0 0.0
      %2803 = vmatprep.subr.mxu0 0.0
      %2804 = vmatpush2.msra.mxu0 0.0
      %2805 = vmatprep.subr.mxu0 0.0
      %2806 = vmatpush2.msra.mxu0 0.0
      %2807 = vmatprep.subr.mxu0 0.0
      %2808 = vmatpush2.msra.mxu0 0.0
      %2809 = vmatprep.mubr.f32.mxu0 0.0
      %v2810 = vand.u32 %v2363, 4294901760
      %v2811 = vsub.f32 %v2363, %v2810
      %v2812 = vand.u32 %v2811, 4294901760
      %2813 = vmatmul.mubr.f32.gmra.mxu0 %v2812
      %v2814 = vpop.f32.mrf.mxu0
      %v2815 = vadd.f32 %v2709, %v2814
      %v2816 = vpop.f32.mrf.mxu0
      %v2817 = vadd.f32 %v2711, %v2816
      %2818 = vmatprep.mubr.f32.mxu0 0.0
      %v2819 = vand.u32 %v2366, 4294901760
      %v2820 = vsub.f32 %v2366, %v2819
      %v2821 = vand.u32 %v2820, 4294901760
      %2822 = vmatmul.mubr.f32.gmra.mxu0 %v2821
      %v2823 = vpop.f32.mrf.mxu0
      %v2824 = vadd.f32 %v2717, %v2823
      %v2825 = vpop.f32.mrf.mxu0
      %v2826 = vadd.f32 %v2719, %v2825
      %2827 = vmatprep.mubr.f32.mxu0 0.0
      %v2828 = vand.u32 %v2369, 4294901760
      %v2829 = vsub.f32 %v2369, %v2828
      %v2830 = vand.u32 %v2829, 4294901760
      %2831 = vmatmul.mubr.f32.gmra.mxu0 %v2830
      %v2832 = vpop.f32.mrf.mxu0
      %v2833 = vadd.f32 %v2725, %v2832
      %v2834 = vpop.f32.mrf.mxu0
      %v2835 = vadd.f32 %v2727, %v2834
      %2836 = vmatprep.mubr.f32.mxu0 0.0
      %v2837 = vand.u32 %v2372, 4294901760
      %v2838 = vsub.f32 %v2372, %v2837
      %v2839 = vand.u32 %v2838, 4294901760
      %2840 = vmatmul.mubr.f32.gmra.mxu0 %v2839
      %v2841 = vpop.f32.mrf.mxu0
      %v2842 = vadd.f32 %v2733, %v2841
      %v2843 = vpop.f32.mrf.mxu0
      %v2844 = vadd.f32 %v2735, %v2843
      %2845 = vdwg.mxu0
      %2846 = vmatprep.subr.mxu0 0.0
      %2847 = vmatpush1.msra.mxu0 0.0
      %2848 = vmatprep.subr.mxu0 0.0
      %2849 = vmatpush1.msra.mxu0 0.0
      %2850 = vmatprep.subr.mxu0 0.0
      %2851 = vmatpush1.msra.mxu0 0.0
      %2852 = vmatprep.subr.mxu0 0.0
      %2853 = vmatpush1.msra.mxu0 0.0
      %2854 = vmatprep.subr.mxu0 0.0
      %2855 = vmatpush1.msra.mxu0 0.0
      %2856 = vmatprep.subr.mxu0 0.0
      %2857 = vmatpush1.msra.mxu0 0.0
      %2858 = vmatprep.subr.mxu0 0.0
      %2859 = vmatpush1.msra.mxu0 0.0
      %2860 = vmatprep.subr.mxu0 0.0
      %2861 = vmatpush1.msra.mxu0 0.0
      %2862 = vmatprep.subr.mxu0 0.0
      %2863 = vmatpush1.msra.mxu0 0.0
      %2864 = vmatprep.subr.mxu0 0.0
      %2865 = vmatpush1.msra.mxu0 0.0
      %2866 = vmatprep.subr.mxu0 0.0
      %2867 = vmatpush1.msra.mxu0 0.0
      %2868 = vmatprep.subr.mxu0 0.0
      %2869 = vmatpush1.msra.mxu0 0.0
      %v2870 = vand.u32 %v567, 4294901760
      %v2871 = vsub.f32 %v567, %v2870
      %v2872 = vand.u32 %v2871, 4294901760
      %2873 = vmatprep.subr.mxu0 %v2872
      %v2874 = vand.u32 %v566, 4294901760
      %v2875 = vsub.f32 %v566, %v2874
      %v2876 = vand.u32 %v2875, 4294901760
      %2877 = vmatpush1.msra.mxu0 %v2876
      %v2878 = vand.u32 %v561, 4294901760
      %v2879 = vsub.f32 %v561, %v2878
      %v2880 = vand.u32 %v2879, 4294901760
      %2881 = vmatprep.subr.mxu0 %v2880
      %v2882 = vand.u32 %v560, 4294901760
      %v2883 = vsub.f32 %v560, %v2882
      %v2884 = vand.u32 %v2883, 4294901760
      %2885 = vmatpush1.msra.mxu0 %v2884
      %v2886 = vand.u32 %v555, 4294901760
      %v2887 = vsub.f32 %v555, %v2886
      %v2888 = vand.u32 %v2887, 4294901760
      %2889 = vmatprep.subr.mxu0 %v2888
      %v2890 = vand.u32 %v554, 4294901760
      %v2891 = vsub.f32 %v554, %v2890
      %v2892 = vand.u32 %v2891, 4294901760
      %2893 = vmatpush1.msra.mxu0 %v2892
      %v2894 = vand.u32 %v549, 4294901760
      %v2895 = vsub.f32 %v549, %v2894
      %v2896 = vand.u32 %v2895, 4294901760
      %2897 = vmatprep.subr.mxu0 %v2896
      %v2898 = vand.u32 %v548, 4294901760
      %v2899 = vsub.f32 %v548, %v2898
      %v2900 = vand.u32 %v2899, 4294901760
      %2901 = vmatpush1.msra.mxu0 %v2900
      %2902 = vmatprep.subr.mxu0 0.0
      %2903 = vmatpush2.msra.mxu0 0.0
      %2904 = vmatprep.subr.mxu0 0.0
      %2905 = vmatpush2.msra.mxu0 0.0
      %2906 = vmatprep.subr.mxu0 0.0
      %2907 = vmatpush2.msra.mxu0 0.0
      %2908 = vmatprep.subr.mxu0 0.0
      %2909 = vmatpush2.msra.mxu0 0.0
      %2910 = vmatprep.subr.mxu0 0.0
      %2911 = vmatpush2.msra.mxu0 0.0
      %2912 = vmatprep.subr.mxu0 0.0
      %2913 = vmatpush2.msra.mxu0 0.0
      %2914 = vmatprep.subr.mxu0 0.0
      %2915 = vmatpush2.msra.mxu0 0.0
      %2916 = vmatprep.subr.mxu0 0.0
      %2917 = vmatpush2.msra.mxu0 0.0
      %2918 = vmatprep.subr.mxu0 0.0
      %2919 = vmatpush2.msra.mxu0 0.0
      %2920 = vmatprep.subr.mxu0 0.0
      %2921 = vmatpush2.msra.mxu0 0.0
      %2922 = vmatprep.subr.mxu0 0.0
      %2923 = vmatpush2.msra.mxu0 0.0
      %2924 = vmatprep.subr.mxu0 0.0
      %2925 = vmatpush2.msra.mxu0 0.0
      %2926 = vmatprep.subr.mxu0 0.0
      %2927 = vmatpush2.msra.mxu0 0.0
      %2928 = vmatprep.subr.mxu0 0.0
      %2929 = vmatpush2.msra.mxu0 0.0
      %2930 = vmatprep.subr.mxu0 0.0
      %2931 = vmatpush2.msra.mxu0 0.0
      %2932 = vmatprep.subr.mxu0 0.0
      %2933 = vmatpush2.msra.mxu0 0.0
      %2934 = vmatprep.mubr.f32.mxu0 0.0
      %v2935 = vand.u32 %v2363, 4294901760
      %2936 = vmatmul.mubr.f32.gmra.mxu0 %v2935
      %v2937 = vpop.f32.mrf.mxu0
      %v2938 = vadd.f32 %v2815, %v2937
      %v2939 = vpop.f32.mrf.mxu0
      %v2940 = vadd.f32 %v2817, %v2939
      %2941 = vmatprep.mubr.f32.mxu0 0.0
      %v2942 = vand.u32 %v2366, 4294901760
      %2943 = vmatmul.mubr.f32.gmra.mxu0 %v2942
      %v2944 = vpop.f32.mrf.mxu0
      %v2945 = vadd.f32 %v2824, %v2944
      %v2946 = vpop.f32.mrf.mxu0
      %v2947 = vadd.f32 %v2826, %v2946
      %2948 = vmatprep.mubr.f32.mxu0 0.0
      %v2949 = vand.u32 %v2369, 4294901760
      %2950 = vmatmul.mubr.f32.gmra.mxu0 %v2949
      %v2951 = vpop.f32.mrf.mxu0
      %v2952 = vadd.f32 %v2833, %v2951
      %v2953 = vpop.f32.mrf.mxu0
      %v2954 = vadd.f32 %v2835, %v2953
      %2955 = vmatprep.mubr.f32.mxu0 0.0
      %v2956 = vand.u32 %v2372, 4294901760
      %2957 = vmatmul.mubr.f32.gmra.mxu0 %v2956
      %v2958 = vpop.f32.mrf.mxu0
      %v2959 = vadd.f32 %v2842, %v2958
      %v2960 = vpop.f32.mrf.mxu0
      %v2961 = vadd.f32 %v2844, %v2960
      %2962 = vdwg.mxu0
      %2963 = vmatprep.subr.mxu0 0.0
      %2964 = vmatpush1.msra.mxu0 0.0
      %2965 = vmatprep.subr.mxu0 0.0
      %2966 = vmatpush1.msra.mxu0 0.0
      %2967 = vmatprep.subr.mxu0 0.0
      %2968 = vmatpush1.msra.mxu0 0.0
      %2969 = vmatprep.subr.mxu0 0.0
      %2970 = vmatpush1.msra.mxu0 0.0
      %2971 = vmatprep.subr.mxu0 0.0
      %2972 = vmatpush1.msra.mxu0 0.0
      %2973 = vmatprep.subr.mxu0 0.0
      %2974 = vmatpush1.msra.mxu0 0.0
      %2975 = vmatprep.subr.mxu0 0.0
      %2976 = vmatpush1.msra.mxu0 0.0
      %2977 = vmatprep.subr.mxu0 0.0
      %2978 = vmatpush1.msra.mxu0 0.0
      %2979 = vmatprep.subr.mxu0 0.0
      %2980 = vmatpush1.msra.mxu0 0.0
      %2981 = vmatprep.subr.mxu0 0.0
      %2982 = vmatpush1.msra.mxu0 0.0
      %2983 = vmatprep.subr.mxu0 0.0
      %2984 = vmatpush1.msra.mxu0 0.0
      %2985 = vmatprep.subr.mxu0 0.0
      %2986 = vmatpush1.msra.mxu0 0.0
      %v2987 = vand.u32 %v567, 4294901760
      %2988 = vmatprep.subr.mxu0 %v2987
      %v2989 = vand.u32 %v566, 4294901760
      %2990 = vmatpush1.msra.mxu0 %v2989
      %v2991 = vand.u32 %v561, 4294901760
      %2992 = vmatprep.subr.mxu0 %v2991
      %v2993 = vand.u32 %v560, 4294901760
      %2994 = vmatpush1.msra.mxu0 %v2993
      %v2995 = vand.u32 %v555, 4294901760
      %2996 = vmatprep.subr.mxu0 %v2995
      %v2997 = vand.u32 %v554, 4294901760
      %2998 = vmatpush1.msra.mxu0 %v2997
      %v2999 = vand.u32 %v549, 4294901760
      %3000 = vmatprep.subr.mxu0 %v2999
      %v3001 = vand.u32 %v548, 4294901760
      %3002 = vmatpush1.msra.mxu0 %v3001
      %3003 = vmatprep.subr.mxu0 0.0
      %3004 = vmatpush2.msra.mxu0 0.0
      %3005 = vmatprep.subr.mxu0 0.0
      %3006 = vmatpush2.msra.mxu0 0.0
      %3007 = vmatprep.subr.mxu0 0.0
      %3008 = vmatpush2.msra.mxu0 0.0
      %3009 = vmatprep.subr.mxu0 0.0
      %3010 = vmatpush2.msra.mxu0 0.0
      %3011 = vmatprep.subr.mxu0 0.0
      %3012 = vmatpush2.msra.mxu0 0.0
      %3013 = vmatprep.subr.mxu0 0.0
      %3014 = vmatpush2.msra.mxu0 0.0
      %3015 = vmatprep.subr.mxu0 0.0
      %3016 = vmatpush2.msra.mxu0 0.0
      %3017 = vmatprep.subr.mxu0 0.0
      %3018 = vmatpush2.msra.mxu0 0.0
      %3019 = vmatprep.subr.mxu0 0.0
      %3020 = vmatpush2.msra.mxu0 0.0
      %3021 = vmatprep.subr.mxu0 0.0
      %3022 = vmatpush2.msra.mxu0 0.0
      %3023 = vmatprep.subr.mxu0 0.0
      %3024 = vmatpush2.msra.mxu0 0.0
      %3025 = vmatprep.subr.mxu0 0.0
      %3026 = vmatpush2.msra.mxu0 0.0
      %3027 = vmatprep.subr.mxu0 0.0
      %3028 = vmatpush2.msra.mxu0 0.0
      %3029 = vmatprep.subr.mxu0 0.0
      %3030 = vmatpush2.msra.mxu0 0.0
      %3031 = vmatprep.subr.mxu0 0.0
      %3032 = vmatpush2.msra.mxu0 0.0
      %3033 = vmatprep.subr.mxu0 0.0
      %3034 = vmatpush2.msra.mxu0 0.0
      %3035 = vmatprep.mubr.f32.mxu0 0.0
      %v3036 = vand.u32 %v2363, 4294901760
      %3037 = vmatmul.mubr.f32.gmra.mxu0 %v3036
      %v3038 = vpop.f32.mrf.mxu0
      %v3039 = vadd.f32 %v2938, %v3038
      %v3040 = vpop.f32.mrf.mxu0
      %v3041 = vadd.f32 %v2940, %v3040
      %3042 = vmatprep.mubr.f32.mxu0 0.0
      %v3043 = vand.u32 %v2366, 4294901760
      %3044 = vmatmul.mubr.f32.gmra.mxu0 %v3043
      %v3045 = vpop.f32.mrf.mxu0
      %v3046 = vadd.f32 %v2945, %v3045
      %v3047 = vpop.f32.mrf.mxu0
      %v3048 = vadd.f32 %v2947, %v3047
      %3049 = vmatprep.mubr.f32.mxu0 0.0
      %v3050 = vand.u32 %v2369, 4294901760
      %3051 = vmatmul.mubr.f32.gmra.mxu0 %v3050
      %v3052 = vpop.f32.mrf.mxu0
      %v3053 = vadd.f32 %v2952, %v3052
      %v3054 = vpop.f32.mrf.mxu0
      %v3055 = vadd.f32 %v2954, %v3054
      %3056 = vmatprep.mubr.f32.mxu0 0.0
      %v3057 = vand.u32 %v2372, 4294901760
      %3058 = vmatmul.mubr.f32.gmra.mxu0 %v3057
      %v3059 = vpop.f32.mrf.mxu0
      %v3060 = vadd.f32 %v2959, %v3059
      %v3061 = vpop.f32.mrf.mxu0
      %v3062 = vadd.f32 %v2961, %v3061
      %3063 = vdwg.mxu0
      %3064 = vmatprep.subr.mxu0 0.0
      %3065 = vmatpush1.msra.mxu0 0.0
      %3066 = vmatprep.subr.mxu0 0.0
      %3067 = vmatpush1.msra.mxu0 0.0
      %3068 = vmatprep.subr.mxu0 0.0
      %3069 = vmatpush1.msra.mxu0 0.0
      %3070 = vmatprep.subr.mxu0 0.0
      %3071 = vmatpush1.msra.mxu0 0.0
      %3072 = vmatprep.subr.mxu0 0.0
      %3073 = vmatpush1.msra.mxu0 0.0
      %3074 = vmatprep.subr.mxu0 0.0
      %3075 = vmatpush1.msra.mxu0 0.0
      %3076 = vmatprep.subr.mxu0 0.0
      %3077 = vmatpush1.msra.mxu0 0.0
      %3078 = vmatprep.subr.mxu0 0.0
      %3079 = vmatpush1.msra.mxu0 0.0
      %3080 = vmatprep.subr.mxu0 0.0
      %3081 = vmatpush1.msra.mxu0 0.0
      %3082 = vmatprep.subr.mxu0 0.0
      %3083 = vmatpush1.msra.mxu0 0.0
      %3084 = vmatprep.subr.mxu0 0.0
      %3085 = vmatpush1.msra.mxu0 0.0
      %3086 = vmatprep.subr.mxu0 0.0
      %3087 = vmatpush1.msra.mxu0 0.0
      %v3088 = vand.u32 %v569, 4294901760
      %3089 = vmatprep.subr.mxu0 %v3088
      %v3090 = vand.u32 %v568, 4294901760
      %3091 = vmatpush1.msra.mxu0 %v3090
      %v3092 = vand.u32 %v563, 4294901760
      %3093 = vmatprep.subr.mxu0 %v3092
      %v3094 = vand.u32 %v562, 4294901760
      %3095 = vmatpush1.msra.mxu0 %v3094
      %v3096 = vand.u32 %v557, 4294901760
      %3097 = vmatprep.subr.mxu0 %v3096
      %v3098 = vand.u32 %v556, 4294901760
      %3099 = vmatpush1.msra.mxu0 %v3098
      %v3100 = vand.u32 %v551, 4294901760
      %3101 = vmatprep.subr.mxu0 %v3100
      %v3102 = vand.u32 %v550, 4294901760
      %3103 = vmatpush1.msra.mxu0 %v3102
      %3104 = vmatprep.subr.mxu0 0.0
      %3105 = vmatpush2.msra.mxu0 0.0
      %3106 = vmatprep.subr.mxu0 0.0
      %3107 = vmatpush2.msra.mxu0 0.0
      %3108 = vmatprep.subr.mxu0 0.0
      %3109 = vmatpush2.msra.mxu0 0.0
      %3110 = vmatprep.subr.mxu0 0.0
      %3111 = vmatpush2.msra.mxu0 0.0
      %3112 = vmatprep.subr.mxu0 0.0
      %3113 = vmatpush2.msra.mxu0 0.0
      %3114 = vmatprep.subr.mxu0 0.0
      %3115 = vmatpush2.msra.mxu0 0.0
      %3116 = vmatprep.subr.mxu0 0.0
      %3117 = vmatpush2.msra.mxu0 0.0
      %3118 = vmatprep.subr.mxu0 0.0
      %3119 = vmatpush2.msra.mxu0 0.0
      %3120 = vmatprep.subr.mxu0 0.0
      %3121 = vmatpush2.msra.mxu0 0.0
      %3122 = vmatprep.subr.mxu0 0.0
      %3123 = vmatpush2.msra.mxu0 0.0
      %3124 = vmatprep.subr.mxu0 0.0
      %3125 = vmatpush2.msra.mxu0 0.0
      %3126 = vmatprep.subr.mxu0 0.0
      %3127 = vmatpush2.msra.mxu0 0.0
      %3128 = vmatprep.subr.mxu0 0.0
      %3129 = vmatpush2.msra.mxu0 0.0
      %3130 = vmatprep.subr.mxu0 0.0
      %3131 = vmatpush2.msra.mxu0 0.0
      %3132 = vmatprep.subr.mxu0 0.0
      %3133 = vmatpush2.msra.mxu0 0.0
      %3134 = vmatprep.subr.mxu0 0.0
      %3135 = vmatpush2.msra.mxu0 0.0
      %3136 = vmatprep.mubr.f32.mxu0 0.0
      %v3137 = vand.u32 %v2363, 4294901760
      %v3138 = vsub.f32 %v2363, %v3137
      %v3139 = vand.u32 %v3138, 4294901760
      %v3140 = vsub.f32 %v3138, %v3139
      %v3141 = vand.u32 %v3140, 4294901760
      %3142 = vmatmul.mubr.f32.gmra.mxu0 %v3141
      %v3143 = vpop.f32.mrf.mxu0
      %v3144 = vadd.f32 0.0, %v3143
      %v3145 = vpop.f32.mrf.mxu0
      %v3146 = vadd.f32 0.0, %v3145
      %3147 = vmatprep.mubr.f32.mxu0 0.0
      %v3148 = vand.u32 %v2366, 4294901760
      %v3149 = vsub.f32 %v2366, %v3148
      %v3150 = vand.u32 %v3149, 4294901760
      %v3151 = vsub.f32 %v3149, %v3150
      %v3152 = vand.u32 %v3151, 4294901760
      %3153 = vmatmul.mubr.f32.gmra.mxu0 %v3152
      %v3154 = vpop.f32.mrf.mxu0
      %v3155 = vadd.f32 0.0, %v3154
      %v3156 = vpop.f32.mrf.mxu0
      %v3157 = vadd.f32 0.0, %v3156
      %3158 = vmatprep.mubr.f32.mxu0 0.0
      %v3159 = vand.u32 %v2369, 4294901760
      %v3160 = vsub.f32 %v2369, %v3159
      %v3161 = vand.u32 %v3160, 4294901760
      %v3162 = vsub.f32 %v3160, %v3161
      %v3163 = vand.u32 %v3162, 4294901760
      %3164 = vmatmul.mubr.f32.gmra.mxu0 %v3163
      %v3165 = vpop.f32.mrf.mxu0
      %v3166 = vadd.f32 0.0, %v3165
      %v3167 = vpop.f32.mrf.mxu0
      %v3168 = vadd.f32 0.0, %v3167
      %3169 = vmatprep.mubr.f32.mxu0 0.0
      %v3170 = vand.u32 %v2372, 4294901760
      %v3171 = vsub.f32 %v2372, %v3170
      %v3172 = vand.u32 %v3171, 4294901760
      %v3173 = vsub.f32 %v3171, %v3172
      %v3174 = vand.u32 %v3173, 4294901760
      %3175 = vmatmul.mubr.f32.gmra.mxu0 %v3174
      %v3176 = vpop.f32.mrf.mxu0
      %v3177 = vadd.f32 0.0, %v3176
      %v3178 = vpop.f32.mrf.mxu0
      %v3179 = vadd.f32 0.0, %v3178
      %3180 = vdwg.mxu0
      %3181 = vmatprep.subr.mxu0 0.0
      %3182 = vmatpush1.msra.mxu0 0.0
      %3183 = vmatprep.subr.mxu0 0.0
      %3184 = vmatpush1.msra.mxu0 0.0
      %3185 = vmatprep.subr.mxu0 0.0
      %3186 = vmatpush1.msra.mxu0 0.0
      %3187 = vmatprep.subr.mxu0 0.0
      %3188 = vmatpush1.msra.mxu0 0.0
      %3189 = vmatprep.subr.mxu0 0.0
      %3190 = vmatpush1.msra.mxu0 0.0
      %3191 = vmatprep.subr.mxu0 0.0
      %3192 = vmatpush1.msra.mxu0 0.0
      %3193 = vmatprep.subr.mxu0 0.0
      %3194 = vmatpush1.msra.mxu0 0.0
      %3195 = vmatprep.subr.mxu0 0.0
      %3196 = vmatpush1.msra.mxu0 0.0
      %3197 = vmatprep.subr.mxu0 0.0
      %3198 = vmatpush1.msra.mxu0 0.0
      %3199 = vmatprep.subr.mxu0 0.0
      %3200 = vmatpush1.msra.mxu0 0.0
      %3201 = vmatprep.subr.mxu0 0.0
      %3202 = vmatpush1.msra.mxu0 0.0
      %3203 = vmatprep.subr.mxu0 0.0
      %3204 = vmatpush1.msra.mxu0 0.0
      %v3205 = vand.u32 %v569, 4294901760
      %v3206 = vsub.f32 %v569, %v3205
      %v3207 = vand.u32 %v3206, 4294901760
      %v3208 = vsub.f32 %v3206, %v3207
      %v3209 = vand.u32 %v3208, 4294901760
      %3210 = vmatprep.subr.mxu0 %v3209
      %v3211 = vand.u32 %v568, 4294901760
      %v3212 = vsub.f32 %v568, %v3211
      %v3213 = vand.u32 %v3212, 4294901760
      %v3214 = vsub.f32 %v3212, %v3213
      %v3215 = vand.u32 %v3214, 4294901760
      %3216 = vmatpush1.msra.mxu0 %v3215
      %v3217 = vand.u32 %v563, 4294901760
      %v3218 = vsub.f32 %v563, %v3217
      %v3219 = vand.u32 %v3218, 4294901760
      %v3220 = vsub.f32 %v3218, %v3219
      %v3221 = vand.u32 %v3220, 4294901760
      %3222 = vmatprep.subr.mxu0 %v3221
      %v3223 = vand.u32 %v562, 4294901760
      %v3224 = vsub.f32 %v562, %v3223
      %v3225 = vand.u32 %v3224, 4294901760
      %v3226 = vsub.f32 %v3224, %v3225
      %v3227 = vand.u32 %v3226, 4294901760
      %3228 = vmatpush1.msra.mxu0 %v3227
      %v3229 = vand.u32 %v557, 4294901760
      %v3230 = vsub.f32 %v557, %v3229
      %v3231 = vand.u32 %v3230, 4294901760
      %v3232 = vsub.f32 %v3230, %v3231
      %v3233 = vand.u32 %v3232, 4294901760
      %3234 = vmatprep.subr.mxu0 %v3233
      %v3235 = vand.u32 %v556, 4294901760
      %v3236 = vsub.f32 %v556, %v3235
      %v3237 = vand.u32 %v3236, 4294901760
      %v3238 = vsub.f32 %v3236, %v3237
      %v3239 = vand.u32 %v3238, 4294901760
      %3240 = vmatpush1.msra.mxu0 %v3239
      %v3241 = vand.u32 %v551, 4294901760
      %v3242 = vsub.f32 %v551, %v3241
      %v3243 = vand.u32 %v3242, 4294901760
      %v3244 = vsub.f32 %v3242, %v3243
      %v3245 = vand.u32 %v3244, 4294901760
      %3246 = vmatprep.subr.mxu0 %v3245
      %v3247 = vand.u32 %v550, 4294901760
      %v3248 = vsub.f32 %v550, %v3247
      %v3249 = vand.u32 %v3248, 4294901760
      %v3250 = vsub.f32 %v3248, %v3249
      %v3251 = vand.u32 %v3250, 4294901760
      %3252 = vmatpush1.msra.mxu0 %v3251
      %3253 = vmatprep.subr.mxu0 0.0
      %3254 = vmatpush2.msra.mxu0 0.0
      %3255 = vmatprep.subr.mxu0 0.0
      %3256 = vmatpush2.msra.mxu0 0.0
      %3257 = vmatprep.subr.mxu0 0.0
      %3258 = vmatpush2.msra.mxu0 0.0
      %3259 = vmatprep.subr.mxu0 0.0
      %3260 = vmatpush2.msra.mxu0 0.0
      %3261 = vmatprep.subr.mxu0 0.0
      %3262 = vmatpush2.msra.mxu0 0.0
      %3263 = vmatprep.subr.mxu0 0.0
      %3264 = vmatpush2.msra.mxu0 0.0
      %3265 = vmatprep.subr.mxu0 0.0
      %3266 = vmatpush2.msra.mxu0 0.0
      %3267 = vmatprep.subr.mxu0 0.0
      %3268 = vmatpush2.msra.mxu0 0.0
      %3269 = vmatprep.subr.mxu0 0.0
      %3270 = vmatpush2.msra.mxu0 0.0
      %3271 = vmatprep.subr.mxu0 0.0
      %3272 = vmatpush2.msra.mxu0 0.0
      %3273 = vmatprep.subr.mxu0 0.0
      %3274 = vmatpush2.msra.mxu0 0.0
      %3275 = vmatprep.subr.mxu0 0.0
      %3276 = vmatpush2.msra.mxu0 0.0
      %3277 = vmatprep.subr.mxu0 0.0
      %3278 = vmatpush2.msra.mxu0 0.0
      %3279 = vmatprep.subr.mxu0 0.0
      %3280 = vmatpush2.msra.mxu0 0.0
      %3281 = vmatprep.subr.mxu0 0.0
      %3282 = vmatpush2.msra.mxu0 0.0
      %3283 = vmatprep.subr.mxu0 0.0
      %3284 = vmatpush2.msra.mxu0 0.0
      %3285 = vmatprep.mubr.f32.mxu0 0.0
      %v3286 = vand.u32 %v2363, 4294901760
      %3287 = vmatmul.mubr.f32.gmra.mxu0 %v3286
      %v3288 = vpop.f32.mrf.mxu0
      %v3289 = vadd.f32 %v3144, %v3288
      %v3290 = vpop.f32.mrf.mxu0
      %v3291 = vadd.f32 %v3146, %v3290
      %3292 = vmatprep.mubr.f32.mxu0 0.0
      %v3293 = vand.u32 %v2366, 4294901760
      %3294 = vmatmul.mubr.f32.gmra.mxu0 %v3293
      %v3295 = vpop.f32.mrf.mxu0
      %v3296 = vadd.f32 %v3155, %v3295
      %v3297 = vpop.f32.mrf.mxu0
      %v3298 = vadd.f32 %v3157, %v3297
      %3299 = vmatprep.mubr.f32.mxu0 0.0
      %v3300 = vand.u32 %v2369, 4294901760
      %3301 = vmatmul.mubr.f32.gmra.mxu0 %v3300
      %v3302 = vpop.f32.mrf.mxu0
      %v3303 = vadd.f32 %v3166, %v3302
      %v3304 = vpop.f32.mrf.mxu0
      %v3305 = vadd.f32 %v3168, %v3304
      %3306 = vmatprep.mubr.f32.mxu0 0.0
      %v3307 = vand.u32 %v2372, 4294901760
      %3308 = vmatmul.mubr.f32.gmra.mxu0 %v3307
      %v3309 = vpop.f32.mrf.mxu0
      %v3310 = vadd.f32 %v3177, %v3309
      %v3311 = vpop.f32.mrf.mxu0
      %v3312 = vadd.f32 %v3179, %v3311
      %3313 = vdwg.mxu0
      %3314 = vmatprep.subr.mxu0 0.0
      %3315 = vmatpush1.msra.mxu0 0.0
      %3316 = vmatprep.subr.mxu0 0.0
      %3317 = vmatpush1.msra.mxu0 0.0
      %3318 = vmatprep.subr.mxu0 0.0
      %3319 = vmatpush1.msra.mxu0 0.0
      %3320 = vmatprep.subr.mxu0 0.0
      %3321 = vmatpush1.msra.mxu0 0.0
      %3322 = vmatprep.subr.mxu0 0.0
      %3323 = vmatpush1.msra.mxu0 0.0
      %3324 = vmatprep.subr.mxu0 0.0
      %3325 = vmatpush1.msra.mxu0 0.0
      %3326 = vmatprep.subr.mxu0 0.0
      %3327 = vmatpush1.msra.mxu0 0.0
      %3328 = vmatprep.subr.mxu0 0.0
      %3329 = vmatpush1.msra.mxu0 0.0
      %3330 = vmatprep.subr.mxu0 0.0
      %3331 = vmatpush1.msra.mxu0 0.0
      %3332 = vmatprep.subr.mxu0 0.0
      %3333 = vmatpush1.msra.mxu0 0.0
      %3334 = vmatprep.subr.mxu0 0.0
      %3335 = vmatpush1.msra.mxu0 0.0
      %3336 = vmatprep.subr.mxu0 0.0
      %3337 = vmatpush1.msra.mxu0 0.0
      %v3338 = vand.u32 %v569, 4294901760
      %v3339 = vsub.f32 %v569, %v3338
      %3340 = vmatprep.subr.mxu0 %v3339
      %v3341 = vand.u32 %v568, 4294901760
      %v3342 = vsub.f32 %v568, %v3341
      %3343 = vmatpush1.msra.mxu0 %v3342
      %v3344 = vand.u32 %v563, 4294901760
      %v3345 = vsub.f32 %v563, %v3344
      %3346 = vmatprep.subr.mxu0 %v3345
      %v3347 = vand.u32 %v562, 4294901760
      %v3348 = vsub.f32 %v562, %v3347
      %3349 = vmatpush1.msra.mxu0 %v3348
      %v3350 = vand.u32 %v557, 4294901760
      %v3351 = vsub.f32 %v557, %v3350
      %3352 = vmatprep.subr.mxu0 %v3351
      %v3353 = vand.u32 %v556, 4294901760
      %v3354 = vsub.f32 %v556, %v3353
      %3355 = vmatpush1.msra.mxu0 %v3354
      %v3356 = vand.u32 %v551, 4294901760
      %v3357 = vsub.f32 %v551, %v3356
      %3358 = vmatprep.subr.mxu0 %v3357
      %v3359 = vand.u32 %v550, 4294901760
      %v3360 = vsub.f32 %v550, %v3359
      %3361 = vmatpush1.msra.mxu0 %v3360
      %3362 = vmatprep.subr.mxu0 0.0
      %3363 = vmatpush2.msra.mxu0 0.0
      %3364 = vmatprep.subr.mxu0 0.0
      %3365 = vmatpush2.msra.mxu0 0.0
      %3366 = vmatprep.subr.mxu0 0.0
      %3367 = vmatpush2.msra.mxu0 0.0
      %3368 = vmatprep.subr.mxu0 0.0
      %3369 = vmatpush2.msra.mxu0 0.0
      %3370 = vmatprep.subr.mxu0 0.0
      %3371 = vmatpush2.msra.mxu0 0.0
      %3372 = vmatprep.subr.mxu0 0.0
      %3373 = vmatpush2.msra.mxu0 0.0
      %3374 = vmatprep.subr.mxu0 0.0
      %3375 = vmatpush2.msra.mxu0 0.0
      %3376 = vmatprep.subr.mxu0 0.0
      %3377 = vmatpush2.msra.mxu0 0.0
      %3378 = vmatprep.subr.mxu0 0.0
      %3379 = vmatpush2.msra.mxu0 0.0
      %3380 = vmatprep.subr.mxu0 0.0
      %3381 = vmatpush2.msra.mxu0 0.0
      %3382 = vmatprep.subr.mxu0 0.0
      %3383 = vmatpush2.msra.mxu0 0.0
      %3384 = vmatprep.subr.mxu0 0.0
      %3385 = vmatpush2.msra.mxu0 0.0
      %3386 = vmatprep.subr.mxu0 0.0
      %3387 = vmatpush2.msra.mxu0 0.0
      %3388 = vmatprep.subr.mxu0 0.0
      %3389 = vmatpush2.msra.mxu0 0.0
      %3390 = vmatprep.subr.mxu0 0.0
      %3391 = vmatpush2.msra.mxu0 0.0
      %3392 = vmatprep.subr.mxu0 0.0
      %3393 = vmatpush2.msra.mxu0 0.0
      %3394 = vmatprep.mubr.f32.mxu0 0.0
      %v3395 = vand.u32 %v2363, 4294901760
      %v3396 = vsub.f32 %v2363, %v3395
      %3397 = vmatmul.mubr.f32.gmra.mxu0 %v3396
      %v3398 = vpop.f32.mrf.mxu0
      %v3399 = vadd.f32 %v3289, %v3398
      %v3400 = vpop.f32.mrf.mxu0
      %v3401 = vadd.f32 %v3291, %v3400
      %3402 = vmatprep.mubr.f32.mxu0 0.0
      %v3403 = vand.u32 %v2366, 4294901760
      %v3404 = vsub.f32 %v2366, %v3403
      %3405 = vmatmul.mubr.f32.gmra.mxu0 %v3404
      %v3406 = vpop.f32.mrf.mxu0
      %v3407 = vadd.f32 %v3296, %v3406
      %v3408 = vpop.f32.mrf.mxu0
      %v3409 = vadd.f32 %v3298, %v3408
      %3410 = vmatprep.mubr.f32.mxu0 0.0
      %v3411 = vand.u32 %v2369, 4294901760
      %v3412 = vsub.f32 %v2369, %v3411
      %3413 = vmatmul.mubr.f32.gmra.mxu0 %v3412
      %v3414 = vpop.f32.mrf.mxu0
      %v3415 = vadd.f32 %v3303, %v3414
      %v3416 = vpop.f32.mrf.mxu0
      %v3417 = vadd.f32 %v3305, %v3416
      %3418 = vmatprep.mubr.f32.mxu0 0.0
      %v3419 = vand.u32 %v2372, 4294901760
      %v3420 = vsub.f32 %v2372, %v3419
      %3421 = vmatmul.mubr.f32.gmra.mxu0 %v3420
      %v3422 = vpop.f32.mrf.mxu0
      %v3423 = vadd.f32 %v3310, %v3422
      %v3424 = vpop.f32.mrf.mxu0
      %v3425 = vadd.f32 %v3312, %v3424
      %3426 = vdwg.mxu0
      %3427 = vmatprep.subr.mxu0 0.0
      %3428 = vmatpush1.msra.mxu0 0.0
      %3429 = vmatprep.subr.mxu0 0.0
      %3430 = vmatpush1.msra.mxu0 0.0
      %3431 = vmatprep.subr.mxu0 0.0
      %3432 = vmatpush1.msra.mxu0 0.0
      %3433 = vmatprep.subr.mxu0 0.0
      %3434 = vmatpush1.msra.mxu0 0.0
      %3435 = vmatprep.subr.mxu0 0.0
      %3436 = vmatpush1.msra.mxu0 0.0
      %3437 = vmatprep.subr.mxu0 0.0
      %3438 = vmatpush1.msra.mxu0 0.0
      %3439 = vmatprep.subr.mxu0 0.0
      %3440 = vmatpush1.msra.mxu0 0.0
      %3441 = vmatprep.subr.mxu0 0.0
      %3442 = vmatpush1.msra.mxu0 0.0
      %3443 = vmatprep.subr.mxu0 0.0
      %3444 = vmatpush1.msra.mxu0 0.0
      %3445 = vmatprep.subr.mxu0 0.0
      %3446 = vmatpush1.msra.mxu0 0.0
      %3447 = vmatprep.subr.mxu0 0.0
      %3448 = vmatpush1.msra.mxu0 0.0
      %3449 = vmatprep.subr.mxu0 0.0
      %3450 = vmatpush1.msra.mxu0 0.0
      %v3451 = vand.u32 %v569, 4294901760
      %3452 = vmatprep.subr.mxu0 %v3451
      %v3453 = vand.u32 %v568, 4294901760
      %3454 = vmatpush1.msra.mxu0 %v3453
      %v3455 = vand.u32 %v563, 4294901760
      %3456 = vmatprep.subr.mxu0 %v3455
      %v3457 = vand.u32 %v562, 4294901760
      %3458 = vmatpush1.msra.mxu0 %v3457
      %v3459 = vand.u32 %v557, 4294901760
      %3460 = vmatprep.subr.mxu0 %v3459
      %v3461 = vand.u32 %v556, 4294901760
      %3462 = vmatpush1.msra.mxu0 %v3461
      %v3463 = vand.u32 %v551, 4294901760
      %3464 = vmatprep.subr.mxu0 %v3463
      %v3465 = vand.u32 %v550, 4294901760
      %3466 = vmatpush1.msra.mxu0 %v3465
      %3467 = vmatprep.subr.mxu0 0.0
      %3468 = vmatpush2.msra.mxu0 0.0
      %3469 = vmatprep.subr.mxu0 0.0
      %3470 = vmatpush2.msra.mxu0 0.0
      %3471 = vmatprep.subr.mxu0 0.0
      %3472 = vmatpush2.msra.mxu0 0.0
      %3473 = vmatprep.subr.mxu0 0.0
      %3474 = vmatpush2.msra.mxu0 0.0
      %3475 = vmatprep.subr.mxu0 0.0
      %3476 = vmatpush2.msra.mxu0 0.0
      %3477 = vmatprep.subr.mxu0 0.0
      %3478 = vmatpush2.msra.mxu0 0.0
      %3479 = vmatprep.subr.mxu0 0.0
      %3480 = vmatpush2.msra.mxu0 0.0
      %3481 = vmatprep.subr.mxu0 0.0
      %3482 = vmatpush2.msra.mxu0 0.0
      %3483 = vmatprep.subr.mxu0 0.0
      %3484 = vmatpush2.msra.mxu0 0.0
      %3485 = vmatprep.subr.mxu0 0.0
      %3486 = vmatpush2.msra.mxu0 0.0
      %3487 = vmatprep.subr.mxu0 0.0
      %3488 = vmatpush2.msra.mxu0 0.0
      %3489 = vmatprep.subr.mxu0 0.0
      %3490 = vmatpush2.msra.mxu0 0.0
      %3491 = vmatprep.subr.mxu0 0.0
      %3492 = vmatpush2.msra.mxu0 0.0
      %3493 = vmatprep.subr.mxu0 0.0
      %3494 = vmatpush2.msra.mxu0 0.0
      %3495 = vmatprep.subr.mxu0 0.0
      %3496 = vmatpush2.msra.mxu0 0.0
      %3497 = vmatprep.subr.mxu0 0.0
      %3498 = vmatpush2.msra.mxu0 0.0
      %3499 = vmatprep.mubr.f32.mxu0 0.0
      %v3500 = vand.u32 %v2363, 4294901760
      %v3501 = vsub.f32 %v2363, %v3500
      %v3502 = vand.u32 %v3501, 4294901760
      %3503 = vmatmul.mubr.f32.gmra.mxu0 %v3502
      %v3504 = vpop.f32.mrf.mxu0
      %v3505 = vadd.f32 %v3399, %v3504
      %v3506 = vpop.f32.mrf.mxu0
      %v3507 = vadd.f32 %v3401, %v3506
      %3508 = vmatprep.mubr.f32.mxu0 0.0
      %v3509 = vand.u32 %v2366, 4294901760
      %v3510 = vsub.f32 %v2366, %v3509
      %v3511 = vand.u32 %v3510, 4294901760
      %3512 = vmatmul.mubr.f32.gmra.mxu0 %v3511
      %v3513 = vpop.f32.mrf.mxu0
      %v3514 = vadd.f32 %v3407, %v3513
      %v3515 = vpop.f32.mrf.mxu0
      %v3516 = vadd.f32 %v3409, %v3515
      %3517 = vmatprep.mubr.f32.mxu0 0.0
      %v3518 = vand.u32 %v2369, 4294901760
      %v3519 = vsub.f32 %v2369, %v3518
      %v3520 = vand.u32 %v3519, 4294901760
      %3521 = vmatmul.mubr.f32.gmra.mxu0 %v3520
      %v3522 = vpop.f32.mrf.mxu0
      %v3523 = vadd.f32 %v3415, %v3522
      %v3524 = vpop.f32.mrf.mxu0
      %v3525 = vadd.f32 %v3417, %v3524
      %3526 = vmatprep.mubr.f32.mxu0 0.0
      %v3527 = vand.u32 %v2372, 4294901760
      %v3528 = vsub.f32 %v2372, %v3527
      %v3529 = vand.u32 %v3528, 4294901760
      %3530 = vmatmul.mubr.f32.gmra.mxu0 %v3529
      %v3531 = vpop.f32.mrf.mxu0
      %v3532 = vadd.f32 %v3423, %v3531
      %v3533 = vpop.f32.mrf.mxu0
      %v3534 = vadd.f32 %v3425, %v3533
      %3535 = vdwg.mxu0
      %3536 = vmatprep.subr.mxu0 0.0
      %3537 = vmatpush1.msra.mxu0 0.0
      %3538 = vmatprep.subr.mxu0 0.0
      %3539 = vmatpush1.msra.mxu0 0.0
      %3540 = vmatprep.subr.mxu0 0.0
      %3541 = vmatpush1.msra.mxu0 0.0
      %3542 = vmatprep.subr.mxu0 0.0
      %3543 = vmatpush1.msra.mxu0 0.0
      %3544 = vmatprep.subr.mxu0 0.0
      %3545 = vmatpush1.msra.mxu0 0.0
      %3546 = vmatprep.subr.mxu0 0.0
      %3547 = vmatpush1.msra.mxu0 0.0
      %3548 = vmatprep.subr.mxu0 0.0
      %3549 = vmatpush1.msra.mxu0 0.0
      %3550 = vmatprep.subr.mxu0 0.0
      %3551 = vmatpush1.msra.mxu0 0.0
      %3552 = vmatprep.subr.mxu0 0.0
      %3553 = vmatpush1.msra.mxu0 0.0
      %3554 = vmatprep.subr.mxu0 0.0
      %3555 = vmatpush1.msra.mxu0 0.0
      %3556 = vmatprep.subr.mxu0 0.0
      %3557 = vmatpush1.msra.mxu0 0.0
      %3558 = vmatprep.subr.mxu0 0.0
      %3559 = vmatpush1.msra.mxu0 0.0
      %v3560 = vand.u32 %v569, 4294901760
      %v3561 = vsub.f32 %v569, %v3560
      %v3562 = vand.u32 %v3561, 4294901760
      %3563 = vmatprep.subr.mxu0 %v3562
      %v3564 = vand.u32 %v568, 4294901760
      %v3565 = vsub.f32 %v568, %v3564
      %v3566 = vand.u32 %v3565, 4294901760
      %3567 = vmatpush1.msra.mxu0 %v3566
      %v3568 = vand.u32 %v563, 4294901760
      %v3569 = vsub.f32 %v563, %v3568
      %v3570 = vand.u32 %v3569, 4294901760
      %3571 = vmatprep.subr.mxu0 %v3570
      %v3572 = vand.u32 %v562, 4294901760
      %v3573 = vsub.f32 %v562, %v3572
      %v3574 = vand.u32 %v3573, 4294901760
      %3575 = vmatpush1.msra.mxu0 %v3574
      %v3576 = vand.u32 %v557, 4294901760
      %v3577 = vsub.f32 %v557, %v3576
      %v3578 = vand.u32 %v3577, 4294901760
      %3579 = vmatprep.subr.mxu0 %v3578
      %v3580 = vand.u32 %v556, 4294901760
      %v3581 = vsub.f32 %v556, %v3580
      %v3582 = vand.u32 %v3581, 4294901760
      %3583 = vmatpush1.msra.mxu0 %v3582
      %v3584 = vand.u32 %v551, 4294901760
      %v3585 = vsub.f32 %v551, %v3584
      %v3586 = vand.u32 %v3585, 4294901760
      %3587 = vmatprep.subr.mxu0 %v3586
      %v3588 = vand.u32 %v550, 4294901760
      %v3589 = vsub.f32 %v550, %v3588
      %v3590 = vand.u32 %v3589, 4294901760
      %3591 = vmatpush1.msra.mxu0 %v3590
      %3592 = vmatprep.subr.mxu0 0.0
      %3593 = vmatpush2.msra.mxu0 0.0
      %3594 = vmatprep.subr.mxu0 0.0
      %3595 = vmatpush2.msra.mxu0 0.0
      %3596 = vmatprep.subr.mxu0 0.0
      %3597 = vmatpush2.msra.mxu0 0.0
      %3598 = vmatprep.subr.mxu0 0.0
      %3599 = vmatpush2.msra.mxu0 0.0
      %3600 = vmatprep.subr.mxu0 0.0
      %3601 = vmatpush2.msra.mxu0 0.0
      %3602 = vmatprep.subr.mxu0 0.0
      %3603 = vmatpush2.msra.mxu0 0.0
      %3604 = vmatprep.subr.mxu0 0.0
      %3605 = vmatpush2.msra.mxu0 0.0
      %3606 = vmatprep.subr.mxu0 0.0
      %3607 = vmatpush2.msra.mxu0 0.0
      %3608 = vmatprep.subr.mxu0 0.0
      %3609 = vmatpush2.msra.mxu0 0.0
      %3610 = vmatprep.subr.mxu0 0.0
      %3611 = vmatpush2.msra.mxu0 0.0
      %3612 = vmatprep.subr.mxu0 0.0
      %3613 = vmatpush2.msra.mxu0 0.0
      %3614 = vmatprep.subr.mxu0 0.0
      %3615 = vmatpush2.msra.mxu0 0.0
      %3616 = vmatprep.subr.mxu0 0.0
      %3617 = vmatpush2.msra.mxu0 0.0
      %3618 = vmatprep.subr.mxu0 0.0
      %3619 = vmatpush2.msra.mxu0 0.0
      %3620 = vmatprep.subr.mxu0 0.0
      %3621 = vmatpush2.msra.mxu0 0.0
      %3622 = vmatprep.subr.mxu0 0.0
      %3623 = vmatpush2.msra.mxu0 0.0
      %3624 = vmatprep.mubr.f32.mxu0 0.0
      %v3625 = vand.u32 %v2363, 4294901760
      %3626 = vmatmul.mubr.f32.gmra.mxu0 %v3625
      %v3627 = vpop.f32.mrf.mxu0
      %v3628 = vadd.f32 %v3505, %v3627
      %v3629 = vpop.f32.mrf.mxu0
      %v3630 = vadd.f32 %v3507, %v3629
      %3631 = vmatprep.mubr.f32.mxu0 0.0
      %v3632 = vand.u32 %v2366, 4294901760
      %3633 = vmatmul.mubr.f32.gmra.mxu0 %v3632
      %v3634 = vpop.f32.mrf.mxu0
      %v3635 = vadd.f32 %v3514, %v3634
      %v3636 = vpop.f32.mrf.mxu0
      %v3637 = vadd.f32 %v3516, %v3636
      %3638 = vmatprep.mubr.f32.mxu0 0.0
      %v3639 = vand.u32 %v2369, 4294901760
      %3640 = vmatmul.mubr.f32.gmra.mxu0 %v3639
      %v3641 = vpop.f32.mrf.mxu0
      %v3642 = vadd.f32 %v3523, %v3641
      %v3643 = vpop.f32.mrf.mxu0
      %v3644 = vadd.f32 %v3525, %v3643
      %3645 = vmatprep.mubr.f32.mxu0 0.0
      %v3646 = vand.u32 %v2372, 4294901760
      %3647 = vmatmul.mubr.f32.gmra.mxu0 %v3646
      %v3648 = vpop.f32.mrf.mxu0
      %v3649 = vadd.f32 %v3532, %v3648
      %v3650 = vpop.f32.mrf.mxu0
      %v3651 = vadd.f32 %v3534, %v3650
      %3652 = vdwg.mxu0
      %3653 = vmatprep.subr.mxu0 0.0
      %3654 = vmatpush1.msra.mxu0 0.0
      %3655 = vmatprep.subr.mxu0 0.0
      %3656 = vmatpush1.msra.mxu0 0.0
      %3657 = vmatprep.subr.mxu0 0.0
      %3658 = vmatpush1.msra.mxu0 0.0
      %3659 = vmatprep.subr.mxu0 0.0
      %3660 = vmatpush1.msra.mxu0 0.0
      %3661 = vmatprep.subr.mxu0 0.0
      %3662 = vmatpush1.msra.mxu0 0.0
      %3663 = vmatprep.subr.mxu0 0.0
      %3664 = vmatpush1.msra.mxu0 0.0
      %3665 = vmatprep.subr.mxu0 0.0
      %3666 = vmatpush1.msra.mxu0 0.0
      %3667 = vmatprep.subr.mxu0 0.0
      %3668 = vmatpush1.msra.mxu0 0.0
      %3669 = vmatprep.subr.mxu0 0.0
      %3670 = vmatpush1.msra.mxu0 0.0
      %3671 = vmatprep.subr.mxu0 0.0
      %3672 = vmatpush1.msra.mxu0 0.0
      %3673 = vmatprep.subr.mxu0 0.0
      %3674 = vmatpush1.msra.mxu0 0.0
      %3675 = vmatprep.subr.mxu0 0.0
      %3676 = vmatpush1.msra.mxu0 0.0
      %v3677 = vand.u32 %v569, 4294901760
      %3678 = vmatprep.subr.mxu0 %v3677
      %v3679 = vand.u32 %v568, 4294901760
      %3680 = vmatpush1.msra.mxu0 %v3679
      %v3681 = vand.u32 %v563, 4294901760
      %3682 = vmatprep.subr.mxu0 %v3681
      %v3683 = vand.u32 %v562, 4294901760
      %3684 = vmatpush1.msra.mxu0 %v3683
      %v3685 = vand.u32 %v557, 4294901760
      %3686 = vmatprep.subr.mxu0 %v3685
      %v3687 = vand.u32 %v556, 4294901760
      %3688 = vmatpush1.msra.mxu0 %v3687
      %v3689 = vand.u32 %v551, 4294901760
      %3690 = vmatprep.subr.mxu0 %v3689
      %v3691 = vand.u32 %v550, 4294901760
      %3692 = vmatpush1.msra.mxu0 %v3691
      %3693 = vmatprep.subr.mxu0 0.0
      %3694 = vmatpush2.msra.mxu0 0.0
      %3695 = vmatprep.subr.mxu0 0.0
      %3696 = vmatpush2.msra.mxu0 0.0
      %3697 = vmatprep.subr.mxu0 0.0
      %3698 = vmatpush2.msra.mxu0 0.0
      %3699 = vmatprep.subr.mxu0 0.0
      %3700 = vmatpush2.msra.mxu0 0.0
      %3701 = vmatprep.subr.mxu0 0.0
      %3702 = vmatpush2.msra.mxu0 0.0
      %3703 = vmatprep.subr.mxu0 0.0
      %3704 = vmatpush2.msra.mxu0 0.0
      %3705 = vmatprep.subr.mxu0 0.0
      %3706 = vmatpush2.msra.mxu0 0.0
      %3707 = vmatprep.subr.mxu0 0.0
      %3708 = vmatpush2.msra.mxu0 0.0
      %3709 = vmatprep.subr.mxu0 0.0
      %3710 = vmatpush2.msra.mxu0 0.0
      %3711 = vmatprep.subr.mxu0 0.0
      %3712 = vmatpush2.msra.mxu0 0.0
      %3713 = vmatprep.subr.mxu0 0.0
      %3714 = vmatpush2.msra.mxu0 0.0
      %3715 = vmatprep.subr.mxu0 0.0
      %3716 = vmatpush2.msra.mxu0 0.0
      %3717 = vmatprep.subr.mxu0 0.0
      %3718 = vmatpush2.msra.mxu0 0.0
      %3719 = vmatprep.subr.mxu0 0.0
      %3720 = vmatpush2.msra.mxu0 0.0
      %3721 = vmatprep.subr.mxu0 0.0
      %3722 = vmatpush2.msra.mxu0 0.0
      %3723 = vmatprep.subr.mxu0 0.0
      %3724 = vmatpush2.msra.mxu0 0.0
      %3725 = vmatprep.mubr.f32.mxu0 0.0
      %v3726 = vand.u32 %v2363, 4294901760
      %3727 = vmatmul.mubr.f32.gmra.mxu0 %v3726
      %v3728 = vpop.f32.mrf.mxu0
      %v3729 = vadd.f32 %v3628, %v3728
      %v3730 = vpop.f32.mrf.mxu0
      %v3731 = vadd.f32 %v3630, %v3730
      %3732 = vmatprep.mubr.f32.mxu0 0.0
      %v3733 = vand.u32 %v2366, 4294901760
      %3734 = vmatmul.mubr.f32.gmra.mxu0 %v3733
      %v3735 = vpop.f32.mrf.mxu0
      %v3736 = vadd.f32 %v3635, %v3735
      %v3737 = vpop.f32.mrf.mxu0
      %v3738 = vadd.f32 %v3637, %v3737
      %3739 = vmatprep.mubr.f32.mxu0 0.0
      %v3740 = vand.u32 %v2369, 4294901760
      %3741 = vmatmul.mubr.f32.gmra.mxu0 %v3740
      %v3742 = vpop.f32.mrf.mxu0
      %v3743 = vadd.f32 %v3642, %v3742
      %v3744 = vpop.f32.mrf.mxu0
      %v3745 = vadd.f32 %v3644, %v3744
      %3746 = vmatprep.mubr.f32.mxu0 0.0
      %v3747 = vand.u32 %v2372, 4294901760
      %3748 = vmatmul.mubr.f32.gmra.mxu0 %v3747
      %v3749 = vpop.f32.mrf.mxu0
      %v3750 = vadd.f32 %v3649, %v3749
      %v3751 = vpop.f32.mrf.mxu0
      %v3752 = vadd.f32 %v3651, %v3751
      %3753 = vdwg.mxu0
      %3754 = vmatprep.subr.mxu0 0.0
      %3755 = vmatpush1.msra.mxu0 0.0
      %3756 = vmatprep.subr.mxu0 0.0
      %3757 = vmatpush1.msra.mxu0 0.0
      %3758 = vmatprep.subr.mxu0 0.0
      %3759 = vmatpush1.msra.mxu0 0.0
      %3760 = vmatprep.subr.mxu0 0.0
      %3761 = vmatpush1.msra.mxu0 0.0
      %3762 = vmatprep.subr.mxu0 0.0
      %3763 = vmatpush1.msra.mxu0 0.0
      %3764 = vmatprep.subr.mxu0 0.0
      %3765 = vmatpush1.msra.mxu0 0.0
      %3766 = vmatprep.subr.mxu0 0.0
      %3767 = vmatpush1.msra.mxu0 0.0
      %3768 = vmatprep.subr.mxu0 0.0
      %3769 = vmatpush1.msra.mxu0 0.0
      %3770 = vmatprep.subr.mxu0 0.0
      %3771 = vmatpush1.msra.mxu0 0.0
      %3772 = vmatprep.subr.mxu0 0.0
      %3773 = vmatpush1.msra.mxu0 0.0
      %3774 = vmatprep.subr.mxu0 0.0
      %3775 = vmatpush1.msra.mxu0 0.0
      %3776 = vmatprep.subr.mxu0 0.0
      %3777 = vmatpush1.msra.mxu0 0.0
      %v3778 = vand.u32 %v571, 4294901760
      %3779 = vmatprep.subr.mxu0 %v3778
      %v3780 = vand.u32 %v570, 4294901760
      %3781 = vmatpush1.msra.mxu0 %v3780
      %v3782 = vand.u32 %v565, 4294901760
      %3783 = vmatprep.subr.mxu0 %v3782
      %v3784 = vand.u32 %v564, 4294901760
      %3785 = vmatpush1.msra.mxu0 %v3784
      %v3786 = vand.u32 %v559, 4294901760
      %3787 = vmatprep.subr.mxu0 %v3786
      %v3788 = vand.u32 %v558, 4294901760
      %3789 = vmatpush1.msra.mxu0 %v3788
      %v3790 = vand.u32 %v553, 4294901760
      %3791 = vmatprep.subr.mxu0 %v3790
      %v3792 = vand.u32 %v552, 4294901760
      %3793 = vmatpush1.msra.mxu0 %v3792
      %3794 = vmatprep.subr.mxu0 0.0
      %3795 = vmatpush2.msra.mxu0 0.0
      %3796 = vmatprep.subr.mxu0 0.0
      %3797 = vmatpush2.msra.mxu0 0.0
      %3798 = vmatprep.subr.mxu0 0.0
      %3799 = vmatpush2.msra.mxu0 0.0
      %3800 = vmatprep.subr.mxu0 0.0
      %3801 = vmatpush2.msra.mxu0 0.0
      %3802 = vmatprep.subr.mxu0 0.0
      %3803 = vmatpush2.msra.mxu0 0.0
      %3804 = vmatprep.subr.mxu0 0.0
      %3805 = vmatpush2.msra.mxu0 0.0
      %3806 = vmatprep.subr.mxu0 0.0
      %3807 = vmatpush2.msra.mxu0 0.0
      %3808 = vmatprep.subr.mxu0 0.0
      %3809 = vmatpush2.msra.mxu0 0.0
      %3810 = vmatprep.subr.mxu0 0.0
      %3811 = vmatpush2.msra.mxu0 0.0
      %3812 = vmatprep.subr.mxu0 0.0
      %3813 = vmatpush2.msra.mxu0 0.0
      %3814 = vmatprep.subr.mxu0 0.0
      %3815 = vmatpush2.msra.mxu0 0.0
      %3816 = vmatprep.subr.mxu0 0.0
      %3817 = vmatpush2.msra.mxu0 0.0
      %3818 = vmatprep.subr.mxu0 0.0
      %3819 = vmatpush2.msra.mxu0 0.0
      %3820 = vmatprep.subr.mxu0 0.0
      %3821 = vmatpush2.msra.mxu0 0.0
      %3822 = vmatprep.subr.mxu0 0.0
      %3823 = vmatpush2.msra.mxu0 0.0
      %3824 = vmatprep.subr.mxu0 0.0
      %3825 = vmatpush2.msra.mxu0 0.0
      %3826 = vmatprep.mubr.f32.mxu0 0.0
      %v3827 = vand.u32 %v2363, 4294901760
      %v3828 = vsub.f32 %v2363, %v3827
      %v3829 = vand.u32 %v3828, 4294901760
      %v3830 = vsub.f32 %v3828, %v3829
      %v3831 = vand.u32 %v3830, 4294901760
      %3832 = vmatmul.mubr.f32.gmra.mxu0 %v3831
      %v3833 = vpop.f32.mrf.mxu0
      %v3834 = vadd.f32 0.0, %v3833
      %v3835 = vpop.f32.mrf.mxu0
      %v3836 = vadd.f32 0.0, %v3835
      %3837 = vmatprep.mubr.f32.mxu0 0.0
      %v3838 = vand.u32 %v2366, 4294901760
      %v3839 = vsub.f32 %v2366, %v3838
      %v3840 = vand.u32 %v3839, 4294901760
      %v3841 = vsub.f32 %v3839, %v3840
      %v3842 = vand.u32 %v3841, 4294901760
      %3843 = vmatmul.mubr.f32.gmra.mxu0 %v3842
      %v3844 = vpop.f32.mrf.mxu0
      %v3845 = vadd.f32 0.0, %v3844
      %v3846 = vpop.f32.mrf.mxu0
      %v3847 = vadd.f32 0.0, %v3846
      %3848 = vmatprep.mubr.f32.mxu0 0.0
      %v3849 = vand.u32 %v2369, 4294901760
      %v3850 = vsub.f32 %v2369, %v3849
      %v3851 = vand.u32 %v3850, 4294901760
      %v3852 = vsub.f32 %v3850, %v3851
      %v3853 = vand.u32 %v3852, 4294901760
      %3854 = vmatmul.mubr.f32.gmra.mxu0 %v3853
      %v3855 = vpop.f32.mrf.mxu0
      %v3856 = vadd.f32 0.0, %v3855
      %v3857 = vpop.f32.mrf.mxu0
      %v3858 = vadd.f32 0.0, %v3857
      %3859 = vmatprep.mubr.f32.mxu0 0.0
      %v3860 = vand.u32 %v2372, 4294901760
      %v3861 = vsub.f32 %v2372, %v3860
      %v3862 = vand.u32 %v3861, 4294901760
      %v3863 = vsub.f32 %v3861, %v3862
      %v3864 = vand.u32 %v3863, 4294901760
      %3865 = vmatmul.mubr.f32.gmra.mxu0 %v3864
      %v3866 = vpop.f32.mrf.mxu0
      %v3867 = vadd.f32 0.0, %v3866
      %v3868 = vpop.f32.mrf.mxu0
      %v3869 = vadd.f32 0.0, %v3868
      %3870 = vdwg.mxu0
      %3871 = vmatprep.subr.mxu0 0.0
      %3872 = vmatpush1.msra.mxu0 0.0
      %3873 = vmatprep.subr.mxu0 0.0
      %3874 = vmatpush1.msra.mxu0 0.0
      %3875 = vmatprep.subr.mxu0 0.0
      %3876 = vmatpush1.msra.mxu0 0.0
      %3877 = vmatprep.subr.mxu0 0.0
      %3878 = vmatpush1.msra.mxu0 0.0
      %3879 = vmatprep.subr.mxu0 0.0
      %3880 = vmatpush1.msra.mxu0 0.0
      %3881 = vmatprep.subr.mxu0 0.0
      %3882 = vmatpush1.msra.mxu0 0.0
      %3883 = vmatprep.subr.mxu0 0.0
      %3884 = vmatpush1.msra.mxu0 0.0
      %3885 = vmatprep.subr.mxu0 0.0
      %3886 = vmatpush1.msra.mxu0 0.0
      %3887 = vmatprep.subr.mxu0 0.0
      %3888 = vmatpush1.msra.mxu0 0.0
      %3889 = vmatprep.subr.mxu0 0.0
      %3890 = vmatpush1.msra.mxu0 0.0
      %3891 = vmatprep.subr.mxu0 0.0
      %3892 = vmatpush1.msra.mxu0 0.0
      %3893 = vmatprep.subr.mxu0 0.0
      %3894 = vmatpush1.msra.mxu0 0.0
      %v3895 = vand.u32 %v571, 4294901760
      %v3896 = vsub.f32 %v571, %v3895
      %v3897 = vand.u32 %v3896, 4294901760
      %v3898 = vsub.f32 %v3896, %v3897
      %v3899 = vand.u32 %v3898, 4294901760
      %3900 = vmatprep.subr.mxu0 %v3899
      %v3901 = vand.u32 %v570, 4294901760
      %v3902 = vsub.f32 %v570, %v3901
      %v3903 = vand.u32 %v3902, 4294901760
      %v3904 = vsub.f32 %v3902, %v3903
      %v3905 = vand.u32 %v3904, 4294901760
      %3906 = vmatpush1.msra.mxu0 %v3905
      %v3907 = vand.u32 %v565, 4294901760
      %v3908 = vsub.f32 %v565, %v3907
      %v3909 = vand.u32 %v3908, 4294901760
      %v3910 = vsub.f32 %v3908, %v3909
      %v3911 = vand.u32 %v3910, 4294901760
      %3912 = vmatprep.subr.mxu0 %v3911
      %v3913 = vand.u32 %v564, 4294901760
      %v3914 = vsub.f32 %v564, %v3913
      %v3915 = vand.u32 %v3914, 4294901760
      %v3916 = vsub.f32 %v3914, %v3915
      %v3917 = vand.u32 %v3916, 4294901760
      %3918 = vmatpush1.msra.mxu0 %v3917
      %v3919 = vand.u32 %v559, 4294901760
      %v3920 = vsub.f32 %v559, %v3919
      %v3921 = vand.u32 %v3920, 4294901760
      %v3922 = vsub.f32 %v3920, %v3921
      %v3923 = vand.u32 %v3922, 4294901760
      %3924 = vmatprep.subr.mxu0 %v3923
      %v3925 = vand.u32 %v558, 4294901760
      %v3926 = vsub.f32 %v558, %v3925
      %v3927 = vand.u32 %v3926, 4294901760
      %v3928 = vsub.f32 %v3926, %v3927
      %v3929 = vand.u32 %v3928, 4294901760
      %3930 = vmatpush1.msra.mxu0 %v3929
      %v3931 = vand.u32 %v553, 4294901760
      %v3932 = vsub.f32 %v553, %v3931
      %v3933 = vand.u32 %v3932, 4294901760
      %v3934 = vsub.f32 %v3932, %v3933
      %v3935 = vand.u32 %v3934, 4294901760
      %3936 = vmatprep.subr.mxu0 %v3935
      %v3937 = vand.u32 %v552, 4294901760
      %v3938 = vsub.f32 %v552, %v3937
      %v3939 = vand.u32 %v3938, 4294901760
      %v3940 = vsub.f32 %v3938, %v3939
      %v3941 = vand.u32 %v3940, 4294901760
      %3942 = vmatpush1.msra.mxu0 %v3941
      %3943 = vmatprep.subr.mxu0 0.0
      %3944 = vmatpush2.msra.mxu0 0.0
      %3945 = vmatprep.subr.mxu0 0.0
      %3946 = vmatpush2.msra.mxu0 0.0
      %3947 = vmatprep.subr.mxu0 0.0
      %3948 = vmatpush2.msra.mxu0 0.0
      %3949 = vmatprep.subr.mxu0 0.0
      %3950 = vmatpush2.msra.mxu0 0.0
      %3951 = vmatprep.subr.mxu0 0.0
      %3952 = vmatpush2.msra.mxu0 0.0
      %3953 = vmatprep.subr.mxu0 0.0
      %3954 = vmatpush2.msra.mxu0 0.0
      %3955 = vmatprep.subr.mxu0 0.0
      %3956 = vmatpush2.msra.mxu0 0.0
      %3957 = vmatprep.subr.mxu0 0.0
      %3958 = vmatpush2.msra.mxu0 0.0
      %3959 = vmatprep.subr.mxu0 0.0
      %3960 = vmatpush2.msra.mxu0 0.0
      %3961 = vmatprep.subr.mxu0 0.0
      %3962 = vmatpush2.msra.mxu0 0.0
      %3963 = vmatprep.subr.mxu0 0.0
      %3964 = vmatpush2.msra.mxu0 0.0
      %3965 = vmatprep.subr.mxu0 0.0
      %3966 = vmatpush2.msra.mxu0 0.0
      %3967 = vmatprep.subr.mxu0 0.0
      %3968 = vmatpush2.msra.mxu0 0.0
      %3969 = vmatprep.subr.mxu0 0.0
      %3970 = vmatpush2.msra.mxu0 0.0
      %3971 = vmatprep.subr.mxu0 0.0
      %3972 = vmatpush2.msra.mxu0 0.0
      %3973 = vmatprep.subr.mxu0 0.0
      %3974 = vmatpush2.msra.mxu0 0.0
      %3975 = vmatprep.mubr.f32.mxu0 0.0
      %v3976 = vand.u32 %v2363, 4294901760
      %3977 = vmatmul.mubr.f32.gmra.mxu0 %v3976
      %v3978 = vpop.f32.mrf.mxu0
      %v3979 = vadd.f32 %v3834, %v3978
      %v3980 = vpop.f32.mrf.mxu0
      %v3981 = vadd.f32 %v3836, %v3980
      %3982 = vmatprep.mubr.f32.mxu0 0.0
      %v3983 = vand.u32 %v2366, 4294901760
      %3984 = vmatmul.mubr.f32.gmra.mxu0 %v3983
      %v3985 = vpop.f32.mrf.mxu0
      %v3986 = vadd.f32 %v3845, %v3985
      %v3987 = vpop.f32.mrf.mxu0
      %v3988 = vadd.f32 %v3847, %v3987
      %3989 = vmatprep.mubr.f32.mxu0 0.0
      %v3990 = vand.u32 %v2369, 4294901760
      %3991 = vmatmul.mubr.f32.gmra.mxu0 %v3990
      %v3992 = vpop.f32.mrf.mxu0
      %v3993 = vadd.f32 %v3856, %v3992
      %v3994 = vpop.f32.mrf.mxu0
      %v3995 = vadd.f32 %v3858, %v3994
      %3996 = vmatprep.mubr.f32.mxu0 0.0
      %v3997 = vand.u32 %v2372, 4294901760
      %3998 = vmatmul.mubr.f32.gmra.mxu0 %v3997
      %v3999 = vpop.f32.mrf.mxu0
      %v4000 = vadd.f32 %v3867, %v3999
      %v4001 = vpop.f32.mrf.mxu0
      %v4002 = vadd.f32 %v3869, %v4001
      %4003 = vdwg.mxu0
      %4004 = vmatprep.subr.mxu0 0.0
      %4005 = vmatpush1.msra.mxu0 0.0
      %4006 = vmatprep.subr.mxu0 0.0
      %4007 = vmatpush1.msra.mxu0 0.0
      %4008 = vmatprep.subr.mxu0 0.0
      %4009 = vmatpush1.msra.mxu0 0.0
      %4010 = vmatprep.subr.mxu0 0.0
      %4011 = vmatpush1.msra.mxu0 0.0
      %4012 = vmatprep.subr.mxu0 0.0
      %4013 = vmatpush1.msra.mxu0 0.0
      %4014 = vmatprep.subr.mxu0 0.0
      %4015 = vmatpush1.msra.mxu0 0.0
      %4016 = vmatprep.subr.mxu0 0.0
      %4017 = vmatpush1.msra.mxu0 0.0
      %4018 = vmatprep.subr.mxu0 0.0
      %4019 = vmatpush1.msra.mxu0 0.0
      %4020 = vmatprep.subr.mxu0 0.0
      %4021 = vmatpush1.msra.mxu0 0.0
      %4022 = vmatprep.subr.mxu0 0.0
      %4023 = vmatpush1.msra.mxu0 0.0
      %4024 = vmatprep.subr.mxu0 0.0
      %4025 = vmatpush1.msra.mxu0 0.0
      %4026 = vmatprep.subr.mxu0 0.0
      %4027 = vmatpush1.msra.mxu0 0.0
      %v4028 = vand.u32 %v571, 4294901760
      %v4029 = vsub.f32 %v571, %v4028
      %4030 = vmatprep.subr.mxu0 %v4029
      %v4031 = vand.u32 %v570, 4294901760
      %v4032 = vsub.f32 %v570, %v4031
      %4033 = vmatpush1.msra.mxu0 %v4032
      %v4034 = vand.u32 %v565, 4294901760
      %v4035 = vsub.f32 %v565, %v4034
      %4036 = vmatprep.subr.mxu0 %v4035
      %v4037 = vand.u32 %v564, 4294901760
      %v4038 = vsub.f32 %v564, %v4037
      %4039 = vmatpush1.msra.mxu0 %v4038
      %v4040 = vand.u32 %v559, 4294901760
      %v4041 = vsub.f32 %v559, %v4040
      %4042 = vmatprep.subr.mxu0 %v4041
      %v4043 = vand.u32 %v558, 4294901760
      %v4044 = vsub.f32 %v558, %v4043
      %4045 = vmatpush1.msra.mxu0 %v4044
      %v4046 = vand.u32 %v553, 4294901760
      %v4047 = vsub.f32 %v553, %v4046
      %4048 = vmatprep.subr.mxu0 %v4047
      %v4049 = vand.u32 %v552, 4294901760
      %v4050 = vsub.f32 %v552, %v4049
      %4051 = vmatpush1.msra.mxu0 %v4050
      %4052 = vmatprep.subr.mxu0 0.0
      %4053 = vmatpush2.msra.mxu0 0.0
      %4054 = vmatprep.subr.mxu0 0.0
      %4055 = vmatpush2.msra.mxu0 0.0
      %4056 = vmatprep.subr.mxu0 0.0
      %4057 = vmatpush2.msra.mxu0 0.0
      %4058 = vmatprep.subr.mxu0 0.0
      %4059 = vmatpush2.msra.mxu0 0.0
      %4060 = vmatprep.subr.mxu0 0.0
      %4061 = vmatpush2.msra.mxu0 0.0
      %4062 = vmatprep.subr.mxu0 0.0
      %4063 = vmatpush2.msra.mxu0 0.0
      %4064 = vmatprep.subr.mxu0 0.0
      %4065 = vmatpush2.msra.mxu0 0.0
      %4066 = vmatprep.subr.mxu0 0.0
      %4067 = vmatpush2.msra.mxu0 0.0
      %4068 = vmatprep.subr.mxu0 0.0
      %4069 = vmatpush2.msra.mxu0 0.0
      %4070 = vmatprep.subr.mxu0 0.0
      %4071 = vmatpush2.msra.mxu0 0.0
      %4072 = vmatprep.subr.mxu0 0.0
      %4073 = vmatpush2.msra.mxu0 0.0
      %4074 = vmatprep.subr.mxu0 0.0
      %4075 = vmatpush2.msra.mxu0 0.0
      %4076 = vmatprep.subr.mxu0 0.0
      %4077 = vmatpush2.msra.mxu0 0.0
      %4078 = vmatprep.subr.mxu0 0.0
      %4079 = vmatpush2.msra.mxu0 0.0
      %4080 = vmatprep.subr.mxu0 0.0
      %4081 = vmatpush2.msra.mxu0 0.0
      %4082 = vmatprep.subr.mxu0 0.0
      %4083 = vmatpush2.msra.mxu0 0.0
      %4084 = vmatprep.mubr.f32.mxu0 0.0
      %v4085 = vand.u32 %v2363, 4294901760
      %v4086 = vsub.f32 %v2363, %v4085
      %4087 = vmatmul.mubr.f32.gmra.mxu0 %v4086
      %v4088 = vpop.f32.mrf.mxu0
      %v4089 = vadd.f32 %v3979, %v4088
      %v4090 = vpop.f32.mrf.mxu0
      %v4091 = vadd.f32 %v3981, %v4090
      %4092 = vmatprep.mubr.f32.mxu0 0.0
      %v4093 = vand.u32 %v2366, 4294901760
      %v4094 = vsub.f32 %v2366, %v4093
      %4095 = vmatmul.mubr.f32.gmra.mxu0 %v4094
      %v4096 = vpop.f32.mrf.mxu0
      %v4097 = vadd.f32 %v3986, %v4096
      %v4098 = vpop.f32.mrf.mxu0
      %v4099 = vadd.f32 %v3988, %v4098
      %4100 = vmatprep.mubr.f32.mxu0 0.0
      %v4101 = vand.u32 %v2369, 4294901760
      %v4102 = vsub.f32 %v2369, %v4101
      %4103 = vmatmul.mubr.f32.gmra.mxu0 %v4102
      %v4104 = vpop.f32.mrf.mxu0
      %v4105 = vadd.f32 %v3993, %v4104
      %v4106 = vpop.f32.mrf.mxu0
      %v4107 = vadd.f32 %v3995, %v4106
      %4108 = vmatprep.mubr.f32.mxu0 0.0
      %v4109 = vand.u32 %v2372, 4294901760
      %v4110 = vsub.f32 %v2372, %v4109
      %4111 = vmatmul.mubr.f32.gmra.mxu0 %v4110
      %v4112 = vpop.f32.mrf.mxu0
      %v4113 = vadd.f32 %v4000, %v4112
      %v4114 = vpop.f32.mrf.mxu0
      %v4115 = vadd.f32 %v4002, %v4114
      %4116 = vdwg.mxu0
      %4117 = vmatprep.subr.mxu0 0.0
      %4118 = vmatpush1.msra.mxu0 0.0
      %4119 = vmatprep.subr.mxu0 0.0
      %4120 = vmatpush1.msra.mxu0 0.0
      %4121 = vmatprep.subr.mxu0 0.0
      %4122 = vmatpush1.msra.mxu0 0.0
      %4123 = vmatprep.subr.mxu0 0.0
      %4124 = vmatpush1.msra.mxu0 0.0
      %4125 = vmatprep.subr.mxu0 0.0
      %4126 = vmatpush1.msra.mxu0 0.0
      %4127 = vmatprep.subr.mxu0 0.0
      %4128 = vmatpush1.msra.mxu0 0.0
      %4129 = vmatprep.subr.mxu0 0.0
      %4130 = vmatpush1.msra.mxu0 0.0
      %4131 = vmatprep.subr.mxu0 0.0
      %4132 = vmatpush1.msra.mxu0 0.0
      %4133 = vmatprep.subr.mxu0 0.0
      %4134 = vmatpush1.msra.mxu0 0.0
      %4135 = vmatprep.subr.mxu0 0.0
      %4136 = vmatpush1.msra.mxu0 0.0
      %4137 = vmatprep.subr.mxu0 0.0
      %4138 = vmatpush1.msra.mxu0 0.0
      %4139 = vmatprep.subr.mxu0 0.0
      %4140 = vmatpush1.msra.mxu0 0.0
      %v4141 = vand.u32 %v571, 4294901760
      %4142 = vmatprep.subr.mxu0 %v4141
      %v4143 = vand.u32 %v570, 4294901760
      %4144 = vmatpush1.msra.mxu0 %v4143
      %v4145 = vand.u32 %v565, 4294901760
      %4146 = vmatprep.subr.mxu0 %v4145
      %v4147 = vand.u32 %v564, 4294901760
      %4148 = vmatpush1.msra.mxu0 %v4147
      %v4149 = vand.u32 %v559, 4294901760
      %4150 = vmatprep.subr.mxu0 %v4149
      %v4151 = vand.u32 %v558, 4294901760
      %4152 = vmatpush1.msra.mxu0 %v4151
      %v4153 = vand.u32 %v553, 4294901760
      %4154 = vmatprep.subr.mxu0 %v4153
      %v4155 = vand.u32 %v552, 4294901760
      %4156 = vmatpush1.msra.mxu0 %v4155
      %4157 = vmatprep.subr.mxu0 0.0
      %4158 = vmatpush2.msra.mxu0 0.0
      %4159 = vmatprep.subr.mxu0 0.0
      %4160 = vmatpush2.msra.mxu0 0.0
      %4161 = vmatprep.subr.mxu0 0.0
      %4162 = vmatpush2.msra.mxu0 0.0
      %4163 = vmatprep.subr.mxu0 0.0
      %4164 = vmatpush2.msra.mxu0 0.0
      %4165 = vmatprep.subr.mxu0 0.0
      %4166 = vmatpush2.msra.mxu0 0.0
      %4167 = vmatprep.subr.mxu0 0.0
      %4168 = vmatpush2.msra.mxu0 0.0
      %4169 = vmatprep.subr.mxu0 0.0
      %4170 = vmatpush2.msra.mxu0 0.0
      %4171 = vmatprep.subr.mxu0 0.0
      %4172 = vmatpush2.msra.mxu0 0.0
      %4173 = vmatprep.subr.mxu0 0.0
      %4174 = vmatpush2.msra.mxu0 0.0
      %4175 = vmatprep.subr.mxu0 0.0
      %4176 = vmatpush2.msra.mxu0 0.0
      %4177 = vmatprep.subr.mxu0 0.0
      %4178 = vmatpush2.msra.mxu0 0.0
      %4179 = vmatprep.subr.mxu0 0.0
      %4180 = vmatpush2.msra.mxu0 0.0
      %4181 = vmatprep.subr.mxu0 0.0
      %4182 = vmatpush2.msra.mxu0 0.0
      %4183 = vmatprep.subr.mxu0 0.0
      %4184 = vmatpush2.msra.mxu0 0.0
      %4185 = vmatprep.subr.mxu0 0.0
      %4186 = vmatpush2.msra.mxu0 0.0
      %4187 = vmatprep.subr.mxu0 0.0
      %4188 = vmatpush2.msra.mxu0 0.0
      %4189 = vmatprep.mubr.f32.mxu0 0.0
      %v4190 = vand.u32 %v2363, 4294901760
      %v4191 = vsub.f32 %v2363, %v4190
      %v4192 = vand.u32 %v4191, 4294901760
      %4193 = vmatmul.mubr.f32.gmra.mxu0 %v4192
      %v4194 = vpop.f32.mrf.mxu0
      %v4195 = vadd.f32 %v4089, %v4194
      %v4196 = vpop.f32.mrf.mxu0
      %v4197 = vadd.f32 %v4091, %v4196
      %4198 = vmatprep.mubr.f32.mxu0 0.0
      %v4199 = vand.u32 %v2366, 4294901760
      %v4200 = vsub.f32 %v2366, %v4199
      %v4201 = vand.u32 %v4200, 4294901760
      %4202 = vmatmul.mubr.f32.gmra.mxu0 %v4201
      %v4203 = vpop.f32.mrf.mxu0
      %v4204 = vadd.f32 %v4097, %v4203
      %v4205 = vpop.f32.mrf.mxu0
      %v4206 = vadd.f32 %v4099, %v4205
      %4207 = vmatprep.mubr.f32.mxu0 0.0
      %v4208 = vand.u32 %v2369, 4294901760
      %v4209 = vsub.f32 %v2369, %v4208
      %v4210 = vand.u32 %v4209, 4294901760
      %4211 = vmatmul.mubr.f32.gmra.mxu0 %v4210
      %v4212 = vpop.f32.mrf.mxu0
      %v4213 = vadd.f32 %v4105, %v4212
      %v4214 = vpop.f32.mrf.mxu0
      %v4215 = vadd.f32 %v4107, %v4214
      %4216 = vmatprep.mubr.f32.mxu0 0.0
      %v4217 = vand.u32 %v2372, 4294901760
      %v4218 = vsub.f32 %v2372, %v4217
      %v4219 = vand.u32 %v4218, 4294901760
      %4220 = vmatmul.mubr.f32.gmra.mxu0 %v4219
      %v4221 = vpop.f32.mrf.mxu0
      %v4222 = vadd.f32 %v4113, %v4221
      %v4223 = vpop.f32.mrf.mxu0
      %v4224 = vadd.f32 %v4115, %v4223
      %4225 = vdwg.mxu0
      %4226 = vmatprep.subr.mxu0 0.0
      %4227 = vmatpush1.msra.mxu0 0.0
      %4228 = vmatprep.subr.mxu0 0.0
      %4229 = vmatpush1.msra.mxu0 0.0
      %4230 = vmatprep.subr.mxu0 0.0
      %4231 = vmatpush1.msra.mxu0 0.0
      %4232 = vmatprep.subr.mxu0 0.0
      %4233 = vmatpush1.msra.mxu0 0.0
      %4234 = vmatprep.subr.mxu0 0.0
      %4235 = vmatpush1.msra.mxu0 0.0
      %4236 = vmatprep.subr.mxu0 0.0
      %4237 = vmatpush1.msra.mxu0 0.0
      %4238 = vmatprep.subr.mxu0 0.0
      %4239 = vmatpush1.msra.mxu0 0.0
      %4240 = vmatprep.subr.mxu0 0.0
      %4241 = vmatpush1.msra.mxu0 0.0
      %4242 = vmatprep.subr.mxu0 0.0
      %4243 = vmatpush1.msra.mxu0 0.0
      %4244 = vmatprep.subr.mxu0 0.0
      %4245 = vmatpush1.msra.mxu0 0.0
      %4246 = vmatprep.subr.mxu0 0.0
      %4247 = vmatpush1.msra.mxu0 0.0
      %4248 = vmatprep.subr.mxu0 0.0
      %4249 = vmatpush1.msra.mxu0 0.0
      %v4250 = vand.u32 %v571, 4294901760
      %v4251 = vsub.f32 %v571, %v4250
      %v4252 = vand.u32 %v4251, 4294901760
      %4253 = vmatprep.subr.mxu0 %v4252
      %v4254 = vand.u32 %v570, 4294901760
      %v4255 = vsub.f32 %v570, %v4254
      %v4256 = vand.u32 %v4255, 4294901760
      %4257 = vmatpush1.msra.mxu0 %v4256
      %v4258 = vand.u32 %v565, 4294901760
      %v4259 = vsub.f32 %v565, %v4258
      %v4260 = vand.u32 %v4259, 4294901760
      %4261 = vmatprep.subr.mxu0 %v4260
      %v4262 = vand.u32 %v564, 4294901760
      %v4263 = vsub.f32 %v564, %v4262
      %v4264 = vand.u32 %v4263, 4294901760
      %4265 = vmatpush1.msra.mxu0 %v4264
      %v4266 = vand.u32 %v559, 4294901760
      %v4267 = vsub.f32 %v559, %v4266
      %v4268 = vand.u32 %v4267, 4294901760
      %4269 = vmatprep.subr.mxu0 %v4268
      %v4270 = vand.u32 %v558, 4294901760
      %v4271 = vsub.f32 %v558, %v4270
      %v4272 = vand.u32 %v4271, 4294901760
      %4273 = vmatpush1.msra.mxu0 %v4272
      %v4274 = vand.u32 %v553, 4294901760
      %v4275 = vsub.f32 %v553, %v4274
      %v4276 = vand.u32 %v4275, 4294901760
      %4277 = vmatprep.subr.mxu0 %v4276
      %v4278 = vand.u32 %v552, 4294901760
      %v4279 = vsub.f32 %v552, %v4278
      %v4280 = vand.u32 %v4279, 4294901760
      %4281 = vmatpush1.msra.mxu0 %v4280
      %4282 = vmatprep.subr.mxu0 0.0
      %4283 = vmatpush2.msra.mxu0 0.0
      %4284 = vmatprep.subr.mxu0 0.0
      %4285 = vmatpush2.msra.mxu0 0.0
      %4286 = vmatprep.subr.mxu0 0.0
      %4287 = vmatpush2.msra.mxu0 0.0
      %4288 = vmatprep.subr.mxu0 0.0
      %4289 = vmatpush2.msra.mxu0 0.0
      %4290 = vmatprep.subr.mxu0 0.0
      %4291 = vmatpush2.msra.mxu0 0.0
      %4292 = vmatprep.subr.mxu0 0.0
      %4293 = vmatpush2.msra.mxu0 0.0
      %4294 = vmatprep.subr.mxu0 0.0
      %4295 = vmatpush2.msra.mxu0 0.0
      %4296 = vmatprep.subr.mxu0 0.0
      %4297 = vmatpush2.msra.mxu0 0.0
      %4298 = vmatprep.subr.mxu0 0.0
      %4299 = vmatpush2.msra.mxu0 0.0
      %4300 = vmatprep.subr.mxu0 0.0
      %4301 = vmatpush2.msra.mxu0 0.0
      %4302 = vmatprep.subr.mxu0 0.0
      %4303 = vmatpush2.msra.mxu0 0.0
      %4304 = vmatprep.subr.mxu0 0.0
      %4305 = vmatpush2.msra.mxu0 0.0
      %4306 = vmatprep.subr.mxu0 0.0
      %4307 = vmatpush2.msra.mxu0 0.0
      %4308 = vmatprep.subr.mxu0 0.0
      %4309 = vmatpush2.msra.mxu0 0.0
      %4310 = vmatprep.subr.mxu0 0.0
      %4311 = vmatpush2.msra.mxu0 0.0
      %4312 = vmatprep.subr.mxu0 0.0
      %4313 = vmatpush2.msra.mxu0 0.0
      %4314 = vmatprep.mubr.f32.mxu0 0.0
      %v4315 = vand.u32 %v2363, 4294901760
      %4316 = vmatmul.mubr.f32.gmra.mxu0 %v4315
      %v4317 = vpop.f32.mrf.mxu0
      %v4318 = vadd.f32 %v4195, %v4317
      %v4319 = vpop.f32.mrf.mxu0
      %v4320 = vadd.f32 %v4197, %v4319
      %4321 = vmatprep.mubr.f32.mxu0 0.0
      %v4322 = vand.u32 %v2366, 4294901760
      %4323 = vmatmul.mubr.f32.gmra.mxu0 %v4322
      %v4324 = vpop.f32.mrf.mxu0
      %v4325 = vadd.f32 %v4204, %v4324
      %v4326 = vpop.f32.mrf.mxu0
      %v4327 = vadd.f32 %v4206, %v4326
      %4328 = vmatprep.mubr.f32.mxu0 0.0
      %v4329 = vand.u32 %v2369, 4294901760
      %4330 = vmatmul.mubr.f32.gmra.mxu0 %v4329
      %v4331 = vpop.f32.mrf.mxu0
      %v4332 = vadd.f32 %v4213, %v4331
      %v4333 = vpop.f32.mrf.mxu0
      %v4334 = vadd.f32 %v4215, %v4333
      %4335 = vmatprep.mubr.f32.mxu0 0.0
      %v4336 = vand.u32 %v2372, 4294901760
      %4337 = vmatmul.mubr.f32.gmra.mxu0 %v4336
      %v4338 = vpop.f32.mrf.mxu0
      %v4339 = vadd.f32 %v4222, %v4338
      %v4340 = vpop.f32.mrf.mxu0
      %v4341 = vadd.f32 %v4224, %v4340
      %4342 = vdwg.mxu0
      %4343 = vmatprep.subr.mxu0 0.0
      %4344 = vmatpush1.msra.mxu0 0.0
      %4345 = vmatprep.subr.mxu0 0.0
      %4346 = vmatpush1.msra.mxu0 0.0
      %4347 = vmatprep.subr.mxu0 0.0
      %4348 = vmatpush1.msra.mxu0 0.0
      %4349 = vmatprep.subr.mxu0 0.0
      %4350 = vmatpush1.msra.mxu0 0.0
      %4351 = vmatprep.subr.mxu0 0.0
      %4352 = vmatpush1.msra.mxu0 0.0
      %4353 = vmatprep.subr.mxu0 0.0
      %4354 = vmatpush1.msra.mxu0 0.0
      %4355 = vmatprep.subr.mxu0 0.0
      %4356 = vmatpush1.msra.mxu0 0.0
      %4357 = vmatprep.subr.mxu0 0.0
      %4358 = vmatpush1.msra.mxu0 0.0
      %4359 = vmatprep.subr.mxu0 0.0
      %4360 = vmatpush1.msra.mxu0 0.0
      %4361 = vmatprep.subr.mxu0 0.0
      %4362 = vmatpush1.msra.mxu0 0.0
      %4363 = vmatprep.subr.mxu0 0.0
      %4364 = vmatpush1.msra.mxu0 0.0
      %4365 = vmatprep.subr.mxu0 0.0
      %4366 = vmatpush1.msra.mxu0 0.0
      %v4367 = vand.u32 %v571, 4294901760
      %4368 = vmatprep.subr.mxu0 %v4367
      %v4369 = vand.u32 %v570, 4294901760
      %4370 = vmatpush1.msra.mxu0 %v4369
      %v4371 = vand.u32 %v565, 4294901760
      %4372 = vmatprep.subr.mxu0 %v4371
      %v4373 = vand.u32 %v564, 4294901760
      %4374 = vmatpush1.msra.mxu0 %v4373
      %v4375 = vand.u32 %v559, 4294901760
      %4376 = vmatprep.subr.mxu0 %v4375
      %v4377 = vand.u32 %v558, 4294901760
      %4378 = vmatpush1.msra.mxu0 %v4377
      %v4379 = vand.u32 %v553, 4294901760
      %4380 = vmatprep.subr.mxu0 %v4379
      %v4381 = vand.u32 %v552, 4294901760
      %4382 = vmatpush1.msra.mxu0 %v4381
      %4383 = vmatprep.subr.mxu0 0.0
      %4384 = vmatpush2.msra.mxu0 0.0
      %4385 = vmatprep.subr.mxu0 0.0
      %4386 = vmatpush2.msra.mxu0 0.0
      %4387 = vmatprep.subr.mxu0 0.0
      %4388 = vmatpush2.msra.mxu0 0.0
      %4389 = vmatprep.subr.mxu0 0.0
      %4390 = vmatpush2.msra.mxu0 0.0
      %4391 = vmatprep.subr.mxu0 0.0
      %4392 = vmatpush2.msra.mxu0 0.0
      %4393 = vmatprep.subr.mxu0 0.0
      %4394 = vmatpush2.msra.mxu0 0.0
      %4395 = vmatprep.subr.mxu0 0.0
      %4396 = vmatpush2.msra.mxu0 0.0
      %4397 = vmatprep.subr.mxu0 0.0
      %4398 = vmatpush2.msra.mxu0 0.0
      %4399 = vmatprep.subr.mxu0 0.0
      %4400 = vmatpush2.msra.mxu0 0.0
      %4401 = vmatprep.subr.mxu0 0.0
      %4402 = vmatpush2.msra.mxu0 0.0
      %4403 = vmatprep.subr.mxu0 0.0
      %4404 = vmatpush2.msra.mxu0 0.0
      %4405 = vmatprep.subr.mxu0 0.0
      %4406 = vmatpush2.msra.mxu0 0.0
      %4407 = vmatprep.subr.mxu0 0.0
      %4408 = vmatpush2.msra.mxu0 0.0
      %4409 = vmatprep.subr.mxu0 0.0
      %4410 = vmatpush2.msra.mxu0 0.0
      %4411 = vmatprep.subr.mxu0 0.0
      %4412 = vmatpush2.msra.mxu0 0.0
      %4413 = vmatprep.subr.mxu0 0.0
      %4414 = vmatpush2.msra.mxu0 0.0
      %4415 = vmatprep.mubr.f32.mxu0 0.0
      %v4416 = vand.u32 %v2363, 4294901760
      %4417 = vmatmul.mubr.f32.gmra.mxu0 %v4416
      %v4418 = vpop.f32.mrf.mxu0
      %v4419 = vadd.f32 %v4318, %v4418
      %v4420 = vpop.f32.mrf.mxu0
      %v4421 = vadd.f32 %v4320, %v4420
      %4422 = vmatprep.mubr.f32.mxu0 0.0
      %v4423 = vand.u32 %v2366, 4294901760
      %4424 = vmatmul.mubr.f32.gmra.mxu0 %v4423
      %v4425 = vpop.f32.mrf.mxu0
      %v4426 = vadd.f32 %v4325, %v4425
      %v4427 = vpop.f32.mrf.mxu0
      %v4428 = vadd.f32 %v4327, %v4427
      %4429 = vmatprep.mubr.f32.mxu0 0.0
      %v4430 = vand.u32 %v2369, 4294901760
      %4431 = vmatmul.mubr.f32.gmra.mxu0 %v4430
      %v4432 = vpop.f32.mrf.mxu0
      %v4433 = vadd.f32 %v4332, %v4432
      %v4434 = vpop.f32.mrf.mxu0
      %v4435 = vadd.f32 %v4334, %v4434
      %4436 = vmatprep.mubr.f32.mxu0 0.0
      %v4437 = vand.u32 %v2372, 4294901760
      %4438 = vmatmul.mubr.f32.gmra.mxu0 %v4437
      %v4439 = vpop.f32.mrf.mxu0
      %v4440 = vadd.f32 %v4339, %v4439
      %v4441 = vpop.f32.mrf.mxu0
      %v4442 = vadd.f32 %v4341, %v4441
      %4443 = vdwg.mxu0
      %v4445 = vlaneseq
      %v4446 = vshrl.u32 %v4445, 7
      %v4447 = vsub.s32 0, %v4446
      %v4448 = vrot.slane %v572, %v4447
      %v4450 = vadd.f32 %v1163, %v4448
      %v4451 = vadd.f32 %v1170, %v4448
      %v4454 = vrot.slane %v1755, 1
      %v4455 = vrot.slane %v1762, 1
      %vm4458 = vcmask 1046528
      %v4459 = vsel %vm4458, %v4454, %v4454
      %v4460 = vsel %vm4458, %v4455, %v4455
      %v4461 = vadd.f32 %v1165, %v4459
      %v4462 = vadd.f32 %v1172, %v4460
      %v4463 = vrot.slane %v572, 1
      %v4464 = vlaneseq
      %v4465 = vshrl.u32 %v4464, 7
      %v4466 = vsub.s32 0, %v4465
      %v4467 = vrot.slane %v4463, %v4466
      %v4469 = vadd.f32 %v4461, %v4467
      %v4470 = vadd.f32 %v4462, %v4467
      %v4473 = vrot.slane %v2347, 1
      %v4474 = vrot.slane %v2354, 1
      %v4477 = vsel %vm4458, %v4473, %v4473
      %v4478 = vsel %vm4458, %v4474, %v4474
      %v4479 = vadd.f32 %v1757, %v4477
      %v4480 = vadd.f32 %v1764, %v4478
      %v4483 = vrot.slane %v2349, 2
      %v4484 = vrot.slane %v2356, 2
      %vm4487 = vcmask 1045504
      %v4488 = vsel %vm4487, %v4483, %v4483
      %v4489 = vsel %vm4487, %v4484, %v4484
      %v4490 = vadd.f32 %v4479, %v4488
      %v4491 = vadd.f32 %v4480, %v4489
      %v4492 = vrot.slane %v572, 2
      %v4493 = vlaneseq
      %v4494 = vshrl.u32 %v4493, 7
      %v4495 = vsub.s32 0, %v4494
      %v4496 = vrot.slane %v4492, %v4495
      %v4498 = vadd.f32 %v4490, %v4496
      %v4499 = vadd.f32 %v4491, %v4496
      %v4500 = vadd.f32 %v3039, %v4448
      %v4501 = vadd.f32 %v3046, %v4448
      %v4502 = vadd.f32 %v3053, %v4448
      %v4503 = vadd.f32 %v3060, %v4448
      %v4508 = vrot.slane %v3729, 1
      %v4509 = vrot.slane %v3736, 1
      %v4510 = vsel %vm4458, %v4508, %v4509
      %v4511 = vrot.slane %v3743, 1
      %v4512 = vrot.slane %v3750, 1
      %v4513 = vsel %vm4458, %v4511, %v4512
      %v4520 = vsel %vm4458, %v4509, %v4508
      %v4521 = vsel %vm4458, %v4512, %v4511
      %v4522 = vadd.f32 %v3041, %v4510
      %v4523 = vadd.f32 %v3048, %v4520
      %v4524 = vadd.f32 %v3055, %v4513
      %v4525 = vadd.f32 %v3062, %v4521
      %v4526 = vadd.f32 %v4522, %v4467
      %v4527 = vadd.f32 %v4523, %v4467
      %v4528 = vadd.f32 %v4524, %v4467
      %v4529 = vadd.f32 %v4525, %v4467
      %v4534 = vrot.slane %v4419, 1
      %v4535 = vrot.slane %v4426, 1
      %v4536 = vsel %vm4458, %v4534, %v4535
      %v4537 = vrot.slane %v4433, 1
      %v4538 = vrot.slane %v4440, 1
      %v4539 = vsel %vm4458, %v4537, %v4538
      %v4546 = vsel %vm4458, %v4535, %v4534
      %v4547 = vsel %vm4458, %v4538, %v4537
      %v4548 = vadd.f32 %v3731, %v4536
      %v4549 = vadd.f32 %v3738, %v4546
      %v4550 = vadd.f32 %v3745, %v4539
      %v4551 = vadd.f32 %v3752, %v4547
      %v4556 = vrot.slane %v4421, 2
      %v4557 = vrot.slane %v4428, 2
      %v4558 = vsel %vm4487, %v4556, %v4557
      %v4559 = vrot.slane %v4435, 2
      %v4560 = vrot.slane %v4442, 2
      %v4561 = vsel %vm4487, %v4559, %v4560
      %v4568 = vsel %vm4487, %v4557, %v4556
      %v4569 = vsel %vm4487, %v4560, %v4559
      %v4570 = vadd.f32 %v4548, %v4558
      %v4571 = vadd.f32 %v4549, %v4568
      %v4572 = vadd.f32 %v4550, %v4561
      %v4573 = vadd.f32 %v4551, %v4569
      %v4574 = vadd.f32 %v4570, %v4496
      %v4575 = vadd.f32 %v4571, %v4496
      %v4576 = vadd.f32 %v4572, %v4496
      %v4577 = vadd.f32 %v4573, %v4496
      %v4578 = vmax.f32 %v4450, 0.0
      %v4579 = vmax.f32 %v4469, 0.0
      %v4580 = vmax.f32 %v4498, 0.0
      %v4581 = vmax.f32 %v4451, 0.0
      %v4582 = vmax.f32 %v4470, 0.0
      %v4583 = vmax.f32 %v4499, 0.0
      %v4584 = vadd.f32 %v4578, 1e-10
      %v4585 = vadd.f32 %v4579, 1e-10
      %v4586 = vadd.f32 %v4580, 1e-10
      %v4587 = vadd.f32 %v4581, 1e-10
      %v4588 = vadd.f32 %v4582, 1e-10
      %v4589 = vadd.f32 %v4583, 1e-10
      %v4590 = vmul.f32 %v4584, %v4584
      %v4591 = vmul.f32 %v4585, %v4585
      %v4592 = vmul.f32 %v4586, %v4586
      %v4593 = vmul.f32 %v4587, %v4587
      %v4594 = vmul.f32 %v4588, %v4588
      %v4595 = vmul.f32 %v4589, %v4589
      %4596 = vadd.xlane.f32.xlu0 %v4590
      %v4597 = vpop.xlane.xlu0 %4596
      %4598 = vadd.xlane.f32.xlu0 %v4591
      %v4599 = vpop.xlane.xlu0 %4598
      %4600 = vadd.xlane.f32.xlu0 %v4592
      %v4601 = vpop.xlane.xlu0 %4600
      %4602 = vadd.xlane.f32.xlu0 %v4593
      %v4603 = vpop.xlane.xlu0 %4602
      %4604 = vadd.xlane.f32.xlu0 %v4594
      %v4605 = vpop.xlane.xlu0 %4604
      %4606 = vadd.xlane.f32.xlu0 %v4595
      %v4607 = vpop.xlane.xlu0 %4606
      %v4608 = vmax.f32 %v4597, 1e-20
      %v4609 = vmax.f32 %v4599, 1e-20
      %v4610 = vmax.f32 %v4601, 1e-20
      %v4611 = vmax.f32 %v4603, 1e-20
      %v4612 = vmax.f32 %v4605, 1e-20
      %v4613 = vmax.f32 %v4607, 1e-20
      %v4614 = vrsqrt.pop %v4608
      %v4615 = vrsqrt.pop %v4609
      %v4616 = vrsqrt.pop %v4610
      %v4617 = vrsqrt.pop %v4611
      %v4618 = vrsqrt.pop %v4612
      %v4619 = vrsqrt.pop %v4613
      %v4620 = vmul.f32 %v4584, %v4614
      %v4621 = vmul.f32 %v4585, %v4615
      %v4622 = vmul.f32 %v4586, %v4616
      %v4623 = vmul.f32 %v4587, %v4617
      %v4624 = vmul.f32 %v4588, %v4618
      %v4625 = vmul.f32 %v4589, %v4619
      %v4630 = vrot.slane %v4574, 1
      %v4631 = vrot.slane %v4575, 1
      %v4632 = vsel %vm4458, %v4630, %v4631
      %v4633 = vrot.slane %v4576, 1
      %v4634 = vrot.slane %v4577, 1
      %v4635 = vsel %vm4458, %v4633, %v4634
      %v4642 = vsel %vm4458, %v4527, %v4630
      %v4643 = vsel %vm4458, %v4529, %v4633
      %v4644 = vmax.f32 %v4500, 0.0
      %v4645 = vmax.f32 %v4501, 0.0
      %v4646 = vmax.f32 %v4526, 0.0
      %v4647 = vmax.f32 %v4642, 0.0
      %v4648 = vmax.f32 %v4632, 0.0
      %v4649 = vmax.f32 %v4631, 0.0
      %v4650 = vmax.f32 %v4502, 0.0
      %v4651 = vmax.f32 %v4503, 0.0
      %v4652 = vmax.f32 %v4528, 0.0
      %v4653 = vmax.f32 %v4643, 0.0
      %v4654 = vmax.f32 %v4635, 0.0
      %v4655 = vmax.f32 %v4634, 0.0
      %v4656 = vadd.f32 %v4644, 1e-10
      %v4657 = vadd.f32 %v4645, 1e-10
      %v4658 = vadd.f32 %v4646, 1e-10
      %v4659 = vadd.f32 %v4647, 1e-10
      %v4660 = vadd.f32 %v4648, 1e-10
      %v4661 = vadd.f32 %v4649, 1e-10
      %v4662 = vadd.f32 %v4650, 1e-10
      %v4663 = vadd.f32 %v4651, 1e-10
      %v4664 = vadd.f32 %v4652, 1e-10
      %v4665 = vadd.f32 %v4653, 1e-10
      %v4666 = vadd.f32 %v4654, 1e-10
      %v4667 = vadd.f32 %v4655, 1e-10
      %v4668 = vmul.f32 %v4656, %v4656
      %v4669 = vmul.f32 %v4657, %v4657
      %v4670 = vmul.f32 %v4658, %v4658
      %v4671 = vmul.f32 %v4659, %v4659
      %v4672 = vmul.f32 %v4660, %v4660
      %v4673 = vmul.f32 %v4661, %v4661
      %v4674 = vmul.f32 %v4662, %v4662
      %v4675 = vmul.f32 %v4663, %v4663
      %v4676 = vmul.f32 %v4664, %v4664
      %v4677 = vmul.f32 %v4665, %v4665
      %v4678 = vmul.f32 %v4666, %v4666
      %v4679 = vmul.f32 %v4667, %v4667
      %4680 = vadd.xlane.f32.xlu0 %v4668
      %v4681 = vpop.xlane.xlu0 %4680
      %4682 = vadd.xlane.f32.xlu0 %v4669
      %v4683 = vpop.xlane.xlu0 %4682
      %4684 = vadd.xlane.f32.xlu0 %v4670
      %v4685 = vpop.xlane.xlu0 %4684
      %4686 = vadd.xlane.f32.xlu0 %v4671
      %v4687 = vpop.xlane.xlu0 %4686
      %4688 = vadd.xlane.f32.xlu0 %v4672
      %v4689 = vpop.xlane.xlu0 %4688
      %vm4690 = vcmask 1044480
      %v4691 = vsel %vm4690, %v4673, 0.0
      %4692 = vadd.xlane.f32.xlu0 %v4691
      %v4693 = vpop.xlane.xlu0 %4692
      %4694 = vadd.xlane.f32.xlu0 %v4674
      %v4695 = vpop.xlane.xlu0 %4694
      %4696 = vadd.xlane.f32.xlu0 %v4675
      %v4697 = vpop.xlane.xlu0 %4696
      %4698 = vadd.xlane.f32.xlu0 %v4676
      %v4699 = vpop.xlane.xlu0 %4698
      %4700 = vadd.xlane.f32.xlu0 %v4677
      %v4701 = vpop.xlane.xlu0 %4700
      %4702 = vadd.xlane.f32.xlu0 %v4678
      %v4703 = vpop.xlane.xlu0 %4702
      %v4704 = vsel %vm4690, %v4679, 0.0
      %4705 = vadd.xlane.f32.xlu0 %v4704
      %v4706 = vpop.xlane.xlu0 %4705
      %v4707 = vmax.f32 %v4681, 1e-20
      %v4708 = vmax.f32 %v4683, 1e-20
      %v4709 = vmax.f32 %v4685, 1e-20
      %v4710 = vmax.f32 %v4687, 1e-20
      %v4711 = vmax.f32 %v4689, 1e-20
      %v4712 = vmax.f32 %v4693, 1e-20
      %v4713 = vmax.f32 %v4695, 1e-20
      %v4714 = vmax.f32 %v4697, 1e-20
      %v4715 = vmax.f32 %v4699, 1e-20
      %v4716 = vmax.f32 %v4701, 1e-20
      %v4717 = vmax.f32 %v4703, 1e-20
      %v4718 = vmax.f32 %v4706, 1e-20
      %v4719 = vrsqrt.pop %v4707
      %v4720 = vrsqrt.pop %v4708
      %v4721 = vrsqrt.pop %v4709
      %v4722 = vrsqrt.pop %v4710
      %v4723 = vrsqrt.pop %v4711
      %v4724 = vrsqrt.pop %v4712
      %v4725 = vrsqrt.pop %v4713
      %v4726 = vrsqrt.pop %v4714
      %v4727 = vrsqrt.pop %v4715
      %v4728 = vrsqrt.pop %v4716
      %v4729 = vrsqrt.pop %v4717
      %v4730 = vrsqrt.pop %v4718
      %v4731 = vmul.f32 %v4656, %v4719
      %v4732 = vmul.f32 %v4657, %v4720
      %v4733 = vmul.f32 %v4658, %v4721
      %v4734 = vmul.f32 %v4659, %v4722
      %v4735 = vmul.f32 %v4660, %v4723
      %v4736 = vmul.f32 %v4661, %v4724
      %v4737 = vmul.f32 %v4662, %v4725
      %v4738 = vmul.f32 %v4663, %v4726
      %v4739 = vmul.f32 %v4664, %v4727
      %v4740 = vmul.f32 %v4665, %v4728
      %v4741 = vmul.f32 %v4666, %v4729
      %v4742 = vmul.f32 %v4667, %v4730
      %4743 = vmatprep.subr.mxu0 0.0
      %4744 = vmatpush1.xpose.msra.mxu0 0.0
      %4745 = vmatprep.subr.mxu0 0.0
      %4746 = vmatpush1.xpose.msra.mxu0 0.0
      %4747 = vmatprep.subr.mxu0 0.0
      %4748 = vmatpush1.xpose.msra.mxu0 0.0
      %4749 = vmatprep.subr.mxu0 0.0
      %4750 = vmatpush1.xpose.msra.mxu0 0.0
      %4751 = vmatprep.subr.mxu0 0.0
      %4752 = vmatpush1.xpose.msra.mxu0 0.0
      %4753 = vmatprep.subr.mxu0 0.0
      %4754 = vmatpush1.xpose.msra.mxu0 0.0
      %4755 = vmatprep.subr.mxu0 0.0
      %4756 = vmatpush1.xpose.msra.mxu0 0.0
      %4757 = vmatprep.subr.mxu0 0.0
      %4758 = vmatpush1.xpose.msra.mxu0 0.0
      %4759 = vmatprep.subr.mxu0 0.0
      %4760 = vmatpush1.xpose.msra.mxu0 0.0
      %4761 = vmatprep.subr.mxu0 0.0
      %4762 = vmatpush1.xpose.msra.mxu0 0.0
      %4763 = vmatprep.subr.mxu0 0.0
      %v4764 = vand.u32 %v4736, 4294901760
      %4765 = vmatpush1.xpose.msra.mxu0 %v4764
      %4766 = vmatprep.subr.mxu0 0.0
      %v4767 = vand.u32 %v4735, 4294901760
      %4768 = vmatpush1.xpose.msra.mxu0 %v4767
      %4769 = vmatprep.subr.mxu0 0.0
      %v4770 = vand.u32 %v4734, 4294901760
      %4771 = vmatpush1.xpose.msra.mxu0 %v4770
      %4772 = vmatprep.subr.mxu0 0.0
      %v4773 = vand.u32 %v4733, 4294901760
      %4774 = vmatpush1.xpose.msra.mxu0 %v4773
      %4775 = vmatprep.subr.mxu0 0.0
      %v4776 = vand.u32 %v4732, 4294901760
      %4777 = vmatpush1.xpose.msra.mxu0 %v4776
      %4778 = vmatprep.subr.mxu0 0.0
      %v4779 = vand.u32 %v4731, 4294901760
      %4780 = vmatpush1.xpose.msra.mxu0 %v4779
      %4781 = vmatprep.subr.mxu0 0.0
      %4782 = vmatpush2.xpose.msra.mxu0 0.0
      %4783 = vmatprep.subr.mxu0 0.0
      %4784 = vmatpush2.xpose.msra.mxu0 0.0
      %4785 = vmatprep.subr.mxu0 0.0
      %4786 = vmatpush2.xpose.msra.mxu0 0.0
      %4787 = vmatprep.subr.mxu0 0.0
      %4788 = vmatpush2.xpose.msra.mxu0 0.0
      %4789 = vmatprep.subr.mxu0 0.0
      %4790 = vmatpush2.xpose.msra.mxu0 0.0
      %4791 = vmatprep.subr.mxu0 0.0
      %4792 = vmatpush2.xpose.msra.mxu0 0.0
      %4793 = vmatprep.subr.mxu0 0.0
      %4794 = vmatpush2.xpose.msra.mxu0 0.0
      %4795 = vmatprep.subr.mxu0 0.0
      %4796 = vmatpush2.xpose.msra.mxu0 0.0
      %4797 = vmatprep.subr.mxu0 0.0
      %4798 = vmatpush2.xpose.msra.mxu0 0.0
      %4799 = vmatprep.subr.mxu0 0.0
      %4800 = vmatpush2.xpose.msra.mxu0 0.0
      %4801 = vmatprep.subr.mxu0 0.0
      %4802 = vmatpush2.xpose.msra.mxu0 0.0
      %4803 = vmatprep.subr.mxu0 0.0
      %4804 = vmatpush2.xpose.msra.mxu0 0.0
      %4805 = vmatprep.subr.mxu0 0.0
      %4806 = vmatpush2.xpose.msra.mxu0 0.0
      %4807 = vmatprep.subr.mxu0 0.0
      %4808 = vmatpush2.xpose.msra.mxu0 0.0
      %4809 = vmatprep.subr.mxu0 0.0
      %4810 = vmatpush2.xpose.msra.mxu0 0.0
      %4811 = vmatprep.subr.mxu0 0.0
      %4812 = vmatpush2.xpose.msra.mxu0 0.0
      %4813 = vmatprep.mubr.f32.mxu0 0.0
      %v4814 = vand.u32 %v4620, 4294901760
      %v4815 = vsub.f32 %v4620, %v4814
      %v4816 = vand.u32 %v4815, 4294901760
      %v4817 = vsub.f32 %v4815, %v4816
      %v4818 = vand.u32 %v4817, 4294901760
      %4819 = vmatmul.mubr.f32.gmra.mxu0 %v4818
      %v4820 = vpop.f32.mrf.mxu0
      %v4821 = vadd.f32 0.0, %v4820
      %v4822 = vpop.f32.mrf.mxu0
      %4823 = vmatprep.mubr.f32.mxu0 0.0
      %v4824 = vand.u32 %v4621, 4294901760
      %v4825 = vsub.f32 %v4621, %v4824
      %v4826 = vand.u32 %v4825, 4294901760
      %v4827 = vsub.f32 %v4825, %v4826
      %v4828 = vand.u32 %v4827, 4294901760
      %4829 = vmatmul.mubr.f32.gmra.mxu0 %v4828
      %v4830 = vpop.f32.mrf.mxu0
      %v4831 = vadd.f32 0.0, %v4830
      %v4832 = vpop.f32.mrf.mxu0
      %4833 = vmatprep.mubr.f32.mxu0 0.0
      %v4834 = vand.u32 %v4622, 4294901760
      %v4835 = vsub.f32 %v4622, %v4834
      %v4836 = vand.u32 %v4835, 4294901760
      %v4837 = vsub.f32 %v4835, %v4836
      %v4838 = vand.u32 %v4837, 4294901760
      %4839 = vmatmul.mubr.f32.gmra.mxu0 %v4838
      %v4840 = vpop.f32.mrf.mxu0
      %v4841 = vadd.f32 0.0, %v4840
      %v4842 = vpop.f32.mrf.mxu0
      %4843 = vdwg.mxu0
      %4844 = vmatprep.subr.mxu0 0.0
      %4845 = vmatpush1.xpose.msra.mxu0 0.0
      %4846 = vmatprep.subr.mxu0 0.0
      %4847 = vmatpush1.xpose.msra.mxu0 0.0
      %4848 = vmatprep.subr.mxu0 0.0
      %4849 = vmatpush1.xpose.msra.mxu0 0.0
      %4850 = vmatprep.subr.mxu0 0.0
      %4851 = vmatpush1.xpose.msra.mxu0 0.0
      %4852 = vmatprep.subr.mxu0 0.0
      %4853 = vmatpush1.xpose.msra.mxu0 0.0
      %4854 = vmatprep.subr.mxu0 0.0
      %4855 = vmatpush1.xpose.msra.mxu0 0.0
      %4856 = vmatprep.subr.mxu0 0.0
      %4857 = vmatpush1.xpose.msra.mxu0 0.0
      %4858 = vmatprep.subr.mxu0 0.0
      %4859 = vmatpush1.xpose.msra.mxu0 0.0
      %4860 = vmatprep.subr.mxu0 0.0
      %4861 = vmatpush1.xpose.msra.mxu0 0.0
      %4862 = vmatprep.subr.mxu0 0.0
      %4863 = vmatpush1.xpose.msra.mxu0 0.0
      %4864 = vmatprep.subr.mxu0 0.0
      %v4865 = vand.u32 %v4736, 4294901760
      %v4866 = vsub.f32 %v4736, %v4865
      %v4867 = vand.u32 %v4866, 4294901760
      %v4868 = vsub.f32 %v4866, %v4867
      %v4869 = vand.u32 %v4868, 4294901760
      %4870 = vmatpush1.xpose.msra.mxu0 %v4869
      %4871 = vmatprep.subr.mxu0 0.0
      %v4872 = vand.u32 %v4735, 4294901760
      %v4873 = vsub.f32 %v4735, %v4872
      %v4874 = vand.u32 %v4873, 4294901760
      %v4875 = vsub.f32 %v4873, %v4874
      %v4876 = vand.u32 %v4875, 4294901760
      %4877 = vmatpush1.xpose.msra.mxu0 %v4876
      %4878 = vmatprep.subr.mxu0 0.0
      %v4879 = vand.u32 %v4734, 4294901760
      %v4880 = vsub.f32 %v4734, %v4879
      %v4881 = vand.u32 %v4880, 4294901760
      %v4882 = vsub.f32 %v4880, %v4881
      %v4883 = vand.u32 %v4882, 4294901760
      %4884 = vmatpush1.xpose.msra.mxu0 %v4883
      %4885 = vmatprep.subr.mxu0 0.0
      %v4886 = vand.u32 %v4733, 4294901760
      %v4887 = vsub.f32 %v4733, %v4886
      %v4888 = vand.u32 %v4887, 4294901760
      %v4889 = vsub.f32 %v4887, %v4888
      %v4890 = vand.u32 %v4889, 4294901760
      %4891 = vmatpush1.xpose.msra.mxu0 %v4890
      %4892 = vmatprep.subr.mxu0 0.0
      %v4893 = vand.u32 %v4732, 4294901760
      %v4894 = vsub.f32 %v4732, %v4893
      %v4895 = vand.u32 %v4894, 4294901760
      %v4896 = vsub.f32 %v4894, %v4895
      %v4897 = vand.u32 %v4896, 4294901760
      %4898 = vmatpush1.xpose.msra.mxu0 %v4897
      %4899 = vmatprep.subr.mxu0 0.0
      %v4900 = vand.u32 %v4731, 4294901760
      %v4901 = vsub.f32 %v4731, %v4900
      %v4902 = vand.u32 %v4901, 4294901760
      %v4903 = vsub.f32 %v4901, %v4902
      %v4904 = vand.u32 %v4903, 4294901760
      %4905 = vmatpush1.xpose.msra.mxu0 %v4904
      %4906 = vmatprep.subr.mxu0 0.0
      %4907 = vmatpush2.xpose.msra.mxu0 0.0
      %4908 = vmatprep.subr.mxu0 0.0
      %4909 = vmatpush2.xpose.msra.mxu0 0.0
      %4910 = vmatprep.subr.mxu0 0.0
      %4911 = vmatpush2.xpose.msra.mxu0 0.0
      %4912 = vmatprep.subr.mxu0 0.0
      %4913 = vmatpush2.xpose.msra.mxu0 0.0
      %4914 = vmatprep.subr.mxu0 0.0
      %4915 = vmatpush2.xpose.msra.mxu0 0.0
      %4916 = vmatprep.subr.mxu0 0.0
      %4917 = vmatpush2.xpose.msra.mxu0 0.0
      %4918 = vmatprep.subr.mxu0 0.0
      %4919 = vmatpush2.xpose.msra.mxu0 0.0
      %4920 = vmatprep.subr.mxu0 0.0
      %4921 = vmatpush2.xpose.msra.mxu0 0.0
      %4922 = vmatprep.subr.mxu0 0.0
      %4923 = vmatpush2.xpose.msra.mxu0 0.0
      %4924 = vmatprep.subr.mxu0 0.0
      %4925 = vmatpush2.xpose.msra.mxu0 0.0
      %4926 = vmatprep.subr.mxu0 0.0
      %4927 = vmatpush2.xpose.msra.mxu0 0.0
      %4928 = vmatprep.subr.mxu0 0.0
      %4929 = vmatpush2.xpose.msra.mxu0 0.0
      %4930 = vmatprep.subr.mxu0 0.0
      %4931 = vmatpush2.xpose.msra.mxu0 0.0
      %4932 = vmatprep.subr.mxu0 0.0
      %4933 = vmatpush2.xpose.msra.mxu0 0.0
      %4934 = vmatprep.subr.mxu0 0.0
      %4935 = vmatpush2.xpose.msra.mxu0 0.0
      %4936 = vmatprep.subr.mxu0 0.0
      %4937 = vmatpush2.xpose.msra.mxu0 0.0
      %4938 = vmatprep.mubr.f32.mxu0 0.0
      %v4939 = vand.u32 %v4620, 4294901760
      %4940 = vmatmul.mubr.f32.gmra.mxu0 %v4939
      %v4941 = vpop.f32.mrf.mxu0
      %v4942 = vadd.f32 %v4821, %v4941
      %v4943 = vpop.f32.mrf.mxu0
      %4944 = vmatprep.mubr.f32.mxu0 0.0
      %v4945 = vand.u32 %v4621, 4294901760
      %4946 = vmatmul.mubr.f32.gmra.mxu0 %v4945
      %v4947 = vpop.f32.mrf.mxu0
      %v4948 = vadd.f32 %v4831, %v4947
      %v4949 = vpop.f32.mrf.mxu0
      %4950 = vmatprep.mubr.f32.mxu0 0.0
      %v4951 = vand.u32 %v4622, 4294901760
      %4952 = vmatmul.mubr.f32.gmra.mxu0 %v4951
      %v4953 = vpop.f32.mrf.mxu0
      %v4954 = vadd.f32 %v4841, %v4953
      %v4955 = vpop.f32.mrf.mxu0
      %4956 = vdwg.mxu0
      %4957 = vmatprep.subr.mxu0 0.0
      %4958 = vmatpush1.xpose.msra.mxu0 0.0
      %4959 = vmatprep.subr.mxu0 0.0
      %4960 = vmatpush1.xpose.msra.mxu0 0.0
      %4961 = vmatprep.subr.mxu0 0.0
      %4962 = vmatpush1.xpose.msra.mxu0 0.0
      %4963 = vmatprep.subr.mxu0 0.0
      %4964 = vmatpush1.xpose.msra.mxu0 0.0
      %4965 = vmatprep.subr.mxu0 0.0
      %4966 = vmatpush1.xpose.msra.mxu0 0.0
      %4967 = vmatprep.subr.mxu0 0.0
      %4968 = vmatpush1.xpose.msra.mxu0 0.0
      %4969 = vmatprep.subr.mxu0 0.0
      %4970 = vmatpush1.xpose.msra.mxu0 0.0
      %4971 = vmatprep.subr.mxu0 0.0
      %4972 = vmatpush1.xpose.msra.mxu0 0.0
      %4973 = vmatprep.subr.mxu0 0.0
      %4974 = vmatpush1.xpose.msra.mxu0 0.0
      %4975 = vmatprep.subr.mxu0 0.0
      %4976 = vmatpush1.xpose.msra.mxu0 0.0
      %4977 = vmatprep.subr.mxu0 0.0
      %v4978 = vand.u32 %v4736, 4294901760
      %v4979 = vsub.f32 %v4736, %v4978
      %4980 = vmatpush1.xpose.msra.mxu0 %v4979
      %4981 = vmatprep.subr.mxu0 0.0
      %v4982 = vand.u32 %v4735, 4294901760
      %v4983 = vsub.f32 %v4735, %v4982
      %4984 = vmatpush1.xpose.msra.mxu0 %v4983
      %4985 = vmatprep.subr.mxu0 0.0
      %v4986 = vand.u32 %v4734, 4294901760
      %v4987 = vsub.f32 %v4734, %v4986
      %4988 = vmatpush1.xpose.msra.mxu0 %v4987
      %4989 = vmatprep.subr.mxu0 0.0
      %v4990 = vand.u32 %v4733, 4294901760
      %v4991 = vsub.f32 %v4733, %v4990
      %4992 = vmatpush1.xpose.msra.mxu0 %v4991
      %4993 = vmatprep.subr.mxu0 0.0
      %v4994 = vand.u32 %v4732, 4294901760
      %v4995 = vsub.f32 %v4732, %v4994
      %4996 = vmatpush1.xpose.msra.mxu0 %v4995
      %4997 = vmatprep.subr.mxu0 0.0
      %v4998 = vand.u32 %v4731, 4294901760
      %v4999 = vsub.f32 %v4731, %v4998
      %5000 = vmatpush1.xpose.msra.mxu0 %v4999
      %5001 = vmatprep.subr.mxu0 0.0
      %5002 = vmatpush2.xpose.msra.mxu0 0.0
      %5003 = vmatprep.subr.mxu0 0.0
      %5004 = vmatpush2.xpose.msra.mxu0 0.0
      %5005 = vmatprep.subr.mxu0 0.0
      %5006 = vmatpush2.xpose.msra.mxu0 0.0
      %5007 = vmatprep.subr.mxu0 0.0
      %5008 = vmatpush2.xpose.msra.mxu0 0.0
      %5009 = vmatprep.subr.mxu0 0.0
      %5010 = vmatpush2.xpose.msra.mxu0 0.0
      %5011 = vmatprep.subr.mxu0 0.0
      %5012 = vmatpush2.xpose.msra.mxu0 0.0
      %5013 = vmatprep.subr.mxu0 0.0
      %5014 = vmatpush2.xpose.msra.mxu0 0.0
      %5015 = vmatprep.subr.mxu0 0.0
      %5016 = vmatpush2.xpose.msra.mxu0 0.0
      %5017 = vmatprep.subr.mxu0 0.0
      %5018 = vmatpush2.xpose.msra.mxu0 0.0
      %5019 = vmatprep.subr.mxu0 0.0
      %5020 = vmatpush2.xpose.msra.mxu0 0.0
      %5021 = vmatprep.subr.mxu0 0.0
      %5022 = vmatpush2.xpose.msra.mxu0 0.0
      %5023 = vmatprep.subr.mxu0 0.0
      %5024 = vmatpush2.xpose.msra.mxu0 0.0
      %5025 = vmatprep.subr.mxu0 0.0
      %5026 = vmatpush2.xpose.msra.mxu0 0.0
      %5027 = vmatprep.subr.mxu0 0.0
      %5028 = vmatpush2.xpose.msra.mxu0 0.0
      %5029 = vmatprep.subr.mxu0 0.0
      %5030 = vmatpush2.xpose.msra.mxu0 0.0
      %5031 = vmatprep.subr.mxu0 0.0
      %5032 = vmatpush2.xpose.msra.mxu0 0.0
      %5033 = vmatprep.mubr.f32.mxu0 0.0
      %v5034 = vand.u32 %v4620, 4294901760
      %v5035 = vsub.f32 %v4620, %v5034
      %5036 = vmatmul.mubr.f32.gmra.mxu0 %v5035
      %v5037 = vpop.f32.mrf.mxu0
      %v5038 = vadd.f32 %v4942, %v5037
      %v5039 = vpop.f32.mrf.mxu0
      %5040 = vmatprep.mubr.f32.mxu0 0.0
      %v5041 = vand.u32 %v4621, 4294901760
      %v5042 = vsub.f32 %v4621, %v5041
      %5043 = vmatmul.mubr.f32.gmra.mxu0 %v5042
      %v5044 = vpop.f32.mrf.mxu0
      %v5045 = vadd.f32 %v4948, %v5044
      %v5046 = vpop.f32.mrf.mxu0
      %5047 = vmatprep.mubr.f32.mxu0 0.0
      %v5048 = vand.u32 %v4622, 4294901760
      %v5049 = vsub.f32 %v4622, %v5048
      %5050 = vmatmul.mubr.f32.gmra.mxu0 %v5049
      %v5051 = vpop.f32.mrf.mxu0
      %v5052 = vadd.f32 %v4954, %v5051
      %v5053 = vpop.f32.mrf.mxu0
      %5054 = vdwg.mxu0
      %5055 = vmatprep.subr.mxu0 0.0
      %5056 = vmatpush1.xpose.msra.mxu0 0.0
      %5057 = vmatprep.subr.mxu0 0.0
      %5058 = vmatpush1.xpose.msra.mxu0 0.0
      %5059 = vmatprep.subr.mxu0 0.0
      %5060 = vmatpush1.xpose.msra.mxu0 0.0
      %5061 = vmatprep.subr.mxu0 0.0
      %5062 = vmatpush1.xpose.msra.mxu0 0.0
      %5063 = vmatprep.subr.mxu0 0.0
      %5064 = vmatpush1.xpose.msra.mxu0 0.0
      %5065 = vmatprep.subr.mxu0 0.0
      %5066 = vmatpush1.xpose.msra.mxu0 0.0
      %5067 = vmatprep.subr.mxu0 0.0
      %5068 = vmatpush1.xpose.msra.mxu0 0.0
      %5069 = vmatprep.subr.mxu0 0.0
      %5070 = vmatpush1.xpose.msra.mxu0 0.0
      %5071 = vmatprep.subr.mxu0 0.0
      %5072 = vmatpush1.xpose.msra.mxu0 0.0
      %5073 = vmatprep.subr.mxu0 0.0
      %5074 = vmatpush1.xpose.msra.mxu0 0.0
      %5075 = vmatprep.subr.mxu0 0.0
      %v5076 = vand.u32 %v4736, 4294901760
      %5077 = vmatpush1.xpose.msra.mxu0 %v5076
      %5078 = vmatprep.subr.mxu0 0.0
      %v5079 = vand.u32 %v4735, 4294901760
      %5080 = vmatpush1.xpose.msra.mxu0 %v5079
      %5081 = vmatprep.subr.mxu0 0.0
      %v5082 = vand.u32 %v4734, 4294901760
      %5083 = vmatpush1.xpose.msra.mxu0 %v5082
      %5084 = vmatprep.subr.mxu0 0.0
      %v5085 = vand.u32 %v4733, 4294901760
      %5086 = vmatpush1.xpose.msra.mxu0 %v5085
      %5087 = vmatprep.subr.mxu0 0.0
      %v5088 = vand.u32 %v4732, 4294901760
      %5089 = vmatpush1.xpose.msra.mxu0 %v5088
      %5090 = vmatprep.subr.mxu0 0.0
      %v5091 = vand.u32 %v4731, 4294901760
      %5092 = vmatpush1.xpose.msra.mxu0 %v5091
      %5093 = vmatprep.subr.mxu0 0.0
      %5094 = vmatpush2.xpose.msra.mxu0 0.0
      %5095 = vmatprep.subr.mxu0 0.0
      %5096 = vmatpush2.xpose.msra.mxu0 0.0
      %5097 = vmatprep.subr.mxu0 0.0
      %5098 = vmatpush2.xpose.msra.mxu0 0.0
      %5099 = vmatprep.subr.mxu0 0.0
      %5100 = vmatpush2.xpose.msra.mxu0 0.0
      %5101 = vmatprep.subr.mxu0 0.0
      %5102 = vmatpush2.xpose.msra.mxu0 0.0
      %5103 = vmatprep.subr.mxu0 0.0
      %5104 = vmatpush2.xpose.msra.mxu0 0.0
      %5105 = vmatprep.subr.mxu0 0.0
      %5106 = vmatpush2.xpose.msra.mxu0 0.0
      %5107 = vmatprep.subr.mxu0 0.0
      %5108 = vmatpush2.xpose.msra.mxu0 0.0
      %5109 = vmatprep.subr.mxu0 0.0
      %5110 = vmatpush2.xpose.msra.mxu0 0.0
      %5111 = vmatprep.subr.mxu0 0.0
      %5112 = vmatpush2.xpose.msra.mxu0 0.0
      %5113 = vmatprep.subr.mxu0 0.0
      %5114 = vmatpush2.xpose.msra.mxu0 0.0
      %5115 = vmatprep.subr.mxu0 0.0
      %5116 = vmatpush2.xpose.msra.mxu0 0.0
      %5117 = vmatprep.subr.mxu0 0.0
      %5118 = vmatpush2.xpose.msra.mxu0 0.0
      %5119 = vmatprep.subr.mxu0 0.0
      %5120 = vmatpush2.xpose.msra.mxu0 0.0
      %5121 = vmatprep.subr.mxu0 0.0
      %5122 = vmatpush2.xpose.msra.mxu0 0.0
      %5123 = vmatprep.subr.mxu0 0.0
      %5124 = vmatpush2.xpose.msra.mxu0 0.0
      %5125 = vmatprep.mubr.f32.mxu0 0.0
      %v5126 = vand.u32 %v4620, 4294901760
      %v5127 = vsub.f32 %v4620, %v5126
      %v5128 = vand.u32 %v5127, 4294901760
      %5129 = vmatmul.mubr.f32.gmra.mxu0 %v5128
      %v5130 = vpop.f32.mrf.mxu0
      %v5131 = vadd.f32 %v5038, %v5130
      %v5132 = vpop.f32.mrf.mxu0
      %5133 = vmatprep.mubr.f32.mxu0 0.0
      %v5134 = vand.u32 %v4621, 4294901760
      %v5135 = vsub.f32 %v4621, %v5134
      %v5136 = vand.u32 %v5135, 4294901760
      %5137 = vmatmul.mubr.f32.gmra.mxu0 %v5136
      %v5138 = vpop.f32.mrf.mxu0
      %v5139 = vadd.f32 %v5045, %v5138
      %v5140 = vpop.f32.mrf.mxu0
      %5141 = vmatprep.mubr.f32.mxu0 0.0
      %v5142 = vand.u32 %v4622, 4294901760
      %v5143 = vsub.f32 %v4622, %v5142
      %v5144 = vand.u32 %v5143, 4294901760
      %5145 = vmatmul.mubr.f32.gmra.mxu0 %v5144
      %v5146 = vpop.f32.mrf.mxu0
      %v5147 = vadd.f32 %v5052, %v5146
      %v5148 = vpop.f32.mrf.mxu0
      %5149 = vdwg.mxu0
      %5150 = vmatprep.subr.mxu0 0.0
      %5151 = vmatpush1.xpose.msra.mxu0 0.0
      %5152 = vmatprep.subr.mxu0 0.0
      %5153 = vmatpush1.xpose.msra.mxu0 0.0
      %5154 = vmatprep.subr.mxu0 0.0
      %5155 = vmatpush1.xpose.msra.mxu0 0.0
      %5156 = vmatprep.subr.mxu0 0.0
      %5157 = vmatpush1.xpose.msra.mxu0 0.0
      %5158 = vmatprep.subr.mxu0 0.0
      %5159 = vmatpush1.xpose.msra.mxu0 0.0
      %5160 = vmatprep.subr.mxu0 0.0
      %5161 = vmatpush1.xpose.msra.mxu0 0.0
      %5162 = vmatprep.subr.mxu0 0.0
      %5163 = vmatpush1.xpose.msra.mxu0 0.0
      %5164 = vmatprep.subr.mxu0 0.0
      %5165 = vmatpush1.xpose.msra.mxu0 0.0
      %5166 = vmatprep.subr.mxu0 0.0
      %5167 = vmatpush1.xpose.msra.mxu0 0.0
      %5168 = vmatprep.subr.mxu0 0.0
      %5169 = vmatpush1.xpose.msra.mxu0 0.0
      %5170 = vmatprep.subr.mxu0 0.0
      %v5171 = vand.u32 %v4736, 4294901760
      %v5172 = vsub.f32 %v4736, %v5171
      %v5173 = vand.u32 %v5172, 4294901760
      %5174 = vmatpush1.xpose.msra.mxu0 %v5173
      %5175 = vmatprep.subr.mxu0 0.0
      %v5176 = vand.u32 %v4735, 4294901760
      %v5177 = vsub.f32 %v4735, %v5176
      %v5178 = vand.u32 %v5177, 4294901760
      %5179 = vmatpush1.xpose.msra.mxu0 %v5178
      %5180 = vmatprep.subr.mxu0 0.0
      %v5181 = vand.u32 %v4734, 4294901760
      %v5182 = vsub.f32 %v4734, %v5181
      %v5183 = vand.u32 %v5182, 4294901760
      %5184 = vmatpush1.xpose.msra.mxu0 %v5183
      %5185 = vmatprep.subr.mxu0 0.0
      %v5186 = vand.u32 %v4733, 4294901760
      %v5187 = vsub.f32 %v4733, %v5186
      %v5188 = vand.u32 %v5187, 4294901760
      %5189 = vmatpush1.xpose.msra.mxu0 %v5188
      %5190 = vmatprep.subr.mxu0 0.0
      %v5191 = vand.u32 %v4732, 4294901760
      %v5192 = vsub.f32 %v4732, %v5191
      %v5193 = vand.u32 %v5192, 4294901760
      %5194 = vmatpush1.xpose.msra.mxu0 %v5193
      %5195 = vmatprep.subr.mxu0 0.0
      %v5196 = vand.u32 %v4731, 4294901760
      %v5197 = vsub.f32 %v4731, %v5196
      %v5198 = vand.u32 %v5197, 4294901760
      %5199 = vmatpush1.xpose.msra.mxu0 %v5198
      %5200 = vmatprep.subr.mxu0 0.0
      %5201 = vmatpush2.xpose.msra.mxu0 0.0
      %5202 = vmatprep.subr.mxu0 0.0
      %5203 = vmatpush2.xpose.msra.mxu0 0.0
      %5204 = vmatprep.subr.mxu0 0.0
      %5205 = vmatpush2.xpose.msra.mxu0 0.0
      %5206 = vmatprep.subr.mxu0 0.0
      %5207 = vmatpush2.xpose.msra.mxu0 0.0
      %5208 = vmatprep.subr.mxu0 0.0
      %5209 = vmatpush2.xpose.msra.mxu0 0.0
      %5210 = vmatprep.subr.mxu0 0.0
      %5211 = vmatpush2.xpose.msra.mxu0 0.0
      %5212 = vmatprep.subr.mxu0 0.0
      %5213 = vmatpush2.xpose.msra.mxu0 0.0
      %5214 = vmatprep.subr.mxu0 0.0
      %5215 = vmatpush2.xpose.msra.mxu0 0.0
      %5216 = vmatprep.subr.mxu0 0.0
      %5217 = vmatpush2.xpose.msra.mxu0 0.0
      %5218 = vmatprep.subr.mxu0 0.0
      %5219 = vmatpush2.xpose.msra.mxu0 0.0
      %5220 = vmatprep.subr.mxu0 0.0
      %5221 = vmatpush2.xpose.msra.mxu0 0.0
      %5222 = vmatprep.subr.mxu0 0.0
      %5223 = vmatpush2.xpose.msra.mxu0 0.0
      %5224 = vmatprep.subr.mxu0 0.0
      %5225 = vmatpush2.xpose.msra.mxu0 0.0
      %5226 = vmatprep.subr.mxu0 0.0
      %5227 = vmatpush2.xpose.msra.mxu0 0.0
      %5228 = vmatprep.subr.mxu0 0.0
      %5229 = vmatpush2.xpose.msra.mxu0 0.0
      %5230 = vmatprep.subr.mxu0 0.0
      %5231 = vmatpush2.xpose.msra.mxu0 0.0
      %5232 = vmatprep.mubr.f32.mxu0 0.0
      %v5233 = vand.u32 %v4620, 4294901760
      %5234 = vmatmul.mubr.f32.gmra.mxu0 %v5233
      %v5235 = vpop.f32.mrf.mxu0
      %v5236 = vadd.f32 %v5131, %v5235
      %v5237 = vpop.f32.mrf.mxu0
      %5238 = vmatprep.mubr.f32.mxu0 0.0
      %v5239 = vand.u32 %v4621, 4294901760
      %5240 = vmatmul.mubr.f32.gmra.mxu0 %v5239
      %v5241 = vpop.f32.mrf.mxu0
      %v5242 = vadd.f32 %v5139, %v5241
      %v5243 = vpop.f32.mrf.mxu0
      %5244 = vmatprep.mubr.f32.mxu0 0.0
      %v5245 = vand.u32 %v4622, 4294901760
      %5246 = vmatmul.mubr.f32.gmra.mxu0 %v5245
      %v5247 = vpop.f32.mrf.mxu0
      %v5248 = vadd.f32 %v5147, %v5247
      %v5249 = vpop.f32.mrf.mxu0
      %5250 = vdwg.mxu0
      %5251 = vmatprep.subr.mxu0 0.0
      %5252 = vmatpush1.xpose.msra.mxu0 0.0
      %5253 = vmatprep.subr.mxu0 0.0
      %5254 = vmatpush1.xpose.msra.mxu0 0.0
      %5255 = vmatprep.subr.mxu0 0.0
      %5256 = vmatpush1.xpose.msra.mxu0 0.0
      %5257 = vmatprep.subr.mxu0 0.0
      %5258 = vmatpush1.xpose.msra.mxu0 0.0
      %5259 = vmatprep.subr.mxu0 0.0
      %5260 = vmatpush1.xpose.msra.mxu0 0.0
      %5261 = vmatprep.subr.mxu0 0.0
      %5262 = vmatpush1.xpose.msra.mxu0 0.0
      %5263 = vmatprep.subr.mxu0 0.0
      %5264 = vmatpush1.xpose.msra.mxu0 0.0
      %5265 = vmatprep.subr.mxu0 0.0
      %5266 = vmatpush1.xpose.msra.mxu0 0.0
      %5267 = vmatprep.subr.mxu0 0.0
      %5268 = vmatpush1.xpose.msra.mxu0 0.0
      %5269 = vmatprep.subr.mxu0 0.0
      %5270 = vmatpush1.xpose.msra.mxu0 0.0
      %5271 = vmatprep.subr.mxu0 0.0
      %v5272 = vand.u32 %v4736, 4294901760
      %5273 = vmatpush1.xpose.msra.mxu0 %v5272
      %5274 = vmatprep.subr.mxu0 0.0
      %v5275 = vand.u32 %v4735, 4294901760
      %5276 = vmatpush1.xpose.msra.mxu0 %v5275
      %5277 = vmatprep.subr.mxu0 0.0
      %v5278 = vand.u32 %v4734, 4294901760
      %5279 = vmatpush1.xpose.msra.mxu0 %v5278
      %5280 = vmatprep.subr.mxu0 0.0
      %v5281 = vand.u32 %v4733, 4294901760
      %5282 = vmatpush1.xpose.msra.mxu0 %v5281
      %5283 = vmatprep.subr.mxu0 0.0
      %v5284 = vand.u32 %v4732, 4294901760
      %5285 = vmatpush1.xpose.msra.mxu0 %v5284
      %5286 = vmatprep.subr.mxu0 0.0
      %v5287 = vand.u32 %v4731, 4294901760
      %5288 = vmatpush1.xpose.msra.mxu0 %v5287
      %5289 = vmatprep.subr.mxu0 0.0
      %5290 = vmatpush2.xpose.msra.mxu0 0.0
      %5291 = vmatprep.subr.mxu0 0.0
      %5292 = vmatpush2.xpose.msra.mxu0 0.0
      %5293 = vmatprep.subr.mxu0 0.0
      %5294 = vmatpush2.xpose.msra.mxu0 0.0
      %5295 = vmatprep.subr.mxu0 0.0
      %5296 = vmatpush2.xpose.msra.mxu0 0.0
      %5297 = vmatprep.subr.mxu0 0.0
      %5298 = vmatpush2.xpose.msra.mxu0 0.0
      %5299 = vmatprep.subr.mxu0 0.0
      %5300 = vmatpush2.xpose.msra.mxu0 0.0
      %5301 = vmatprep.subr.mxu0 0.0
      %5302 = vmatpush2.xpose.msra.mxu0 0.0
      %5303 = vmatprep.subr.mxu0 0.0
      %5304 = vmatpush2.xpose.msra.mxu0 0.0
      %5305 = vmatprep.subr.mxu0 0.0
      %5306 = vmatpush2.xpose.msra.mxu0 0.0
      %5307 = vmatprep.subr.mxu0 0.0
      %5308 = vmatpush2.xpose.msra.mxu0 0.0
      %5309 = vmatprep.subr.mxu0 0.0
      %5310 = vmatpush2.xpose.msra.mxu0 0.0
      %5311 = vmatprep.subr.mxu0 0.0
      %5312 = vmatpush2.xpose.msra.mxu0 0.0
      %5313 = vmatprep.subr.mxu0 0.0
      %5314 = vmatpush2.xpose.msra.mxu0 0.0
      %5315 = vmatprep.subr.mxu0 0.0
      %5316 = vmatpush2.xpose.msra.mxu0 0.0
      %5317 = vmatprep.subr.mxu0 0.0
      %5318 = vmatpush2.xpose.msra.mxu0 0.0
      %5319 = vmatprep.subr.mxu0 0.0
      %5320 = vmatpush2.xpose.msra.mxu0 0.0
      %5321 = vmatprep.mubr.f32.mxu0 0.0
      %v5322 = vand.u32 %v4620, 4294901760
      %5323 = vmatmul.mubr.f32.gmra.mxu0 %v5322
      %v5324 = vpop.f32.mrf.mxu0
      %v5325 = vadd.f32 %v5236, %v5324
      %v5326 = vpop.f32.mrf.mxu0
      %5327 = vmatprep.mubr.f32.mxu0 0.0
      %v5328 = vand.u32 %v4621, 4294901760
      %5329 = vmatmul.mubr.f32.gmra.mxu0 %v5328
      %v5330 = vpop.f32.mrf.mxu0
      %v5331 = vadd.f32 %v5242, %v5330
      %v5332 = vpop.f32.mrf.mxu0
      %5333 = vmatprep.mubr.f32.mxu0 0.0
      %v5334 = vand.u32 %v4622, 4294901760
      %5335 = vmatmul.mubr.f32.gmra.mxu0 %v5334
      %v5336 = vpop.f32.mrf.mxu0
      %v5337 = vadd.f32 %v5248, %v5336
      %v5338 = vpop.f32.mrf.mxu0
      %5339 = vdwg.mxu0
      %5340 = vmatprep.subr.mxu0 0.0
      %5341 = vmatpush1.xpose.msra.mxu0 0.0
      %5342 = vmatprep.subr.mxu0 0.0
      %5343 = vmatpush1.xpose.msra.mxu0 0.0
      %5344 = vmatprep.subr.mxu0 0.0
      %5345 = vmatpush1.xpose.msra.mxu0 0.0
      %5346 = vmatprep.subr.mxu0 0.0
      %5347 = vmatpush1.xpose.msra.mxu0 0.0
      %5348 = vmatprep.subr.mxu0 0.0
      %5349 = vmatpush1.xpose.msra.mxu0 0.0
      %5350 = vmatprep.subr.mxu0 0.0
      %5351 = vmatpush1.xpose.msra.mxu0 0.0
      %5352 = vmatprep.subr.mxu0 0.0
      %5353 = vmatpush1.xpose.msra.mxu0 0.0
      %5354 = vmatprep.subr.mxu0 0.0
      %5355 = vmatpush1.xpose.msra.mxu0 0.0
      %5356 = vmatprep.subr.mxu0 0.0
      %5357 = vmatpush1.xpose.msra.mxu0 0.0
      %5358 = vmatprep.subr.mxu0 0.0
      %5359 = vmatpush1.xpose.msra.mxu0 0.0
      %5360 = vmatprep.subr.mxu0 0.0
      %v5361 = vand.u32 %v4742, 4294901760
      %5362 = vmatpush1.xpose.msra.mxu0 %v5361
      %5363 = vmatprep.subr.mxu0 0.0
      %v5364 = vand.u32 %v4741, 4294901760
      %5365 = vmatpush1.xpose.msra.mxu0 %v5364
      %5366 = vmatprep.subr.mxu0 0.0
      %v5367 = vand.u32 %v4740, 4294901760
      %5368 = vmatpush1.xpose.msra.mxu0 %v5367
      %5369 = vmatprep.subr.mxu0 0.0
      %v5370 = vand.u32 %v4739, 4294901760
      %5371 = vmatpush1.xpose.msra.mxu0 %v5370
      %5372 = vmatprep.subr.mxu0 0.0
      %v5373 = vand.u32 %v4738, 4294901760
      %5374 = vmatpush1.xpose.msra.mxu0 %v5373
      %5375 = vmatprep.subr.mxu0 0.0
      %v5376 = vand.u32 %v4737, 4294901760
      %5377 = vmatpush1.xpose.msra.mxu0 %v5376
      %5378 = vmatprep.subr.mxu0 0.0
      %5379 = vmatpush2.xpose.msra.mxu0 0.0
      %5380 = vmatprep.subr.mxu0 0.0
      %5381 = vmatpush2.xpose.msra.mxu0 0.0
      %5382 = vmatprep.subr.mxu0 0.0
      %5383 = vmatpush2.xpose.msra.mxu0 0.0
      %5384 = vmatprep.subr.mxu0 0.0
      %5385 = vmatpush2.xpose.msra.mxu0 0.0
      %5386 = vmatprep.subr.mxu0 0.0
      %5387 = vmatpush2.xpose.msra.mxu0 0.0
      %5388 = vmatprep.subr.mxu0 0.0
      %5389 = vmatpush2.xpose.msra.mxu0 0.0
      %5390 = vmatprep.subr.mxu0 0.0
      %5391 = vmatpush2.xpose.msra.mxu0 0.0
      %5392 = vmatprep.subr.mxu0 0.0
      %5393 = vmatpush2.xpose.msra.mxu0 0.0
      %5394 = vmatprep.subr.mxu0 0.0
      %5395 = vmatpush2.xpose.msra.mxu0 0.0
      %5396 = vmatprep.subr.mxu0 0.0
      %5397 = vmatpush2.xpose.msra.mxu0 0.0
      %5398 = vmatprep.subr.mxu0 0.0
      %5399 = vmatpush2.xpose.msra.mxu0 0.0
      %5400 = vmatprep.subr.mxu0 0.0
      %5401 = vmatpush2.xpose.msra.mxu0 0.0
      %5402 = vmatprep.subr.mxu0 0.0
      %5403 = vmatpush2.xpose.msra.mxu0 0.0
      %5404 = vmatprep.subr.mxu0 0.0
      %5405 = vmatpush2.xpose.msra.mxu0 0.0
      %5406 = vmatprep.subr.mxu0 0.0
      %5407 = vmatpush2.xpose.msra.mxu0 0.0
      %5408 = vmatprep.subr.mxu0 0.0
      %5409 = vmatpush2.xpose.msra.mxu0 0.0
      %5410 = vmatprep.mubr.f32.mxu0 0.0
      %v5411 = vand.u32 %v4623, 4294901760
      %v5412 = vsub.f32 %v4623, %v5411
      %v5413 = vand.u32 %v5412, 4294901760
      %v5414 = vsub.f32 %v5412, %v5413
      %v5415 = vand.u32 %v5414, 4294901760
      %5416 = vmatmul.mubr.f32.gmra.mxu0 %v5415
      %v5417 = vpop.f32.mrf.mxu0
      %v5418 = vadd.f32 0.0, %v5417
      %v5419 = vpop.f32.mrf.mxu0
      %5420 = vmatprep.mubr.f32.mxu0 0.0
      %v5421 = vand.u32 %v4624, 4294901760
      %v5422 = vsub.f32 %v4624, %v5421
      %v5423 = vand.u32 %v5422, 4294901760
      %v5424 = vsub.f32 %v5422, %v5423
      %v5425 = vand.u32 %v5424, 4294901760
      %5426 = vmatmul.mubr.f32.gmra.mxu0 %v5425
      %v5427 = vpop.f32.mrf.mxu0
      %v5428 = vadd.f32 0.0, %v5427
      %v5429 = vpop.f32.mrf.mxu0
      %5430 = vmatprep.mubr.f32.mxu0 0.0
      %v5431 = vand.u32 %v4625, 4294901760
      %v5432 = vsub.f32 %v4625, %v5431
      %v5433 = vand.u32 %v5432, 4294901760
      %v5434 = vsub.f32 %v5432, %v5433
      %v5435 = vand.u32 %v5434, 4294901760
      %5436 = vmatmul.mubr.f32.gmra.mxu0 %v5435
      %v5437 = vpop.f32.mrf.mxu0
      %v5438 = vadd.f32 0.0, %v5437
      %v5439 = vpop.f32.mrf.mxu0
      %5440 = vdwg.mxu0
      %5441 = vmatprep.subr.mxu0 0.0
      %5442 = vmatpush1.xpose.msra.mxu0 0.0
      %5443 = vmatprep.subr.mxu0 0.0
      %5444 = vmatpush1.xpose.msra.mxu0 0.0
      %5445 = vmatprep.subr.mxu0 0.0
      %5446 = vmatpush1.xpose.msra.mxu0 0.0
      %5447 = vmatprep.subr.mxu0 0.0
      %5448 = vmatpush1.xpose.msra.mxu0 0.0
      %5449 = vmatprep.subr.mxu0 0.0
      %5450 = vmatpush1.xpose.msra.mxu0 0.0
      %5451 = vmatprep.subr.mxu0 0.0
      %5452 = vmatpush1.xpose.msra.mxu0 0.0
      %5453 = vmatprep.subr.mxu0 0.0
      %5454 = vmatpush1.xpose.msra.mxu0 0.0
      %5455 = vmatprep.subr.mxu0 0.0
      %5456 = vmatpush1.xpose.msra.mxu0 0.0
      %5457 = vmatprep.subr.mxu0 0.0
      %5458 = vmatpush1.xpose.msra.mxu0 0.0
      %5459 = vmatprep.subr.mxu0 0.0
      %5460 = vmatpush1.xpose.msra.mxu0 0.0
      %5461 = vmatprep.subr.mxu0 0.0
      %v5462 = vand.u32 %v4742, 4294901760
      %v5463 = vsub.f32 %v4742, %v5462
      %v5464 = vand.u32 %v5463, 4294901760
      %v5465 = vsub.f32 %v5463, %v5464
      %v5466 = vand.u32 %v5465, 4294901760
      %5467 = vmatpush1.xpose.msra.mxu0 %v5466
      %5468 = vmatprep.subr.mxu0 0.0
      %v5469 = vand.u32 %v4741, 4294901760
      %v5470 = vsub.f32 %v4741, %v5469
      %v5471 = vand.u32 %v5470, 4294901760
      %v5472 = vsub.f32 %v5470, %v5471
      %v5473 = vand.u32 %v5472, 4294901760
      %5474 = vmatpush1.xpose.msra.mxu0 %v5473
      %5475 = vmatprep.subr.mxu0 0.0
      %v5476 = vand.u32 %v4740, 4294901760
      %v5477 = vsub.f32 %v4740, %v5476
      %v5478 = vand.u32 %v5477, 4294901760
      %v5479 = vsub.f32 %v5477, %v5478
      %v5480 = vand.u32 %v5479, 4294901760
      %5481 = vmatpush1.xpose.msra.mxu0 %v5480
      %5482 = vmatprep.subr.mxu0 0.0
      %v5483 = vand.u32 %v4739, 4294901760
      %v5484 = vsub.f32 %v4739, %v5483
      %v5485 = vand.u32 %v5484, 4294901760
      %v5486 = vsub.f32 %v5484, %v5485
      %v5487 = vand.u32 %v5486, 4294901760
      %5488 = vmatpush1.xpose.msra.mxu0 %v5487
      %5489 = vmatprep.subr.mxu0 0.0
      %v5490 = vand.u32 %v4738, 4294901760
      %v5491 = vsub.f32 %v4738, %v5490
      %v5492 = vand.u32 %v5491, 4294901760
      %v5493 = vsub.f32 %v5491, %v5492
      %v5494 = vand.u32 %v5493, 4294901760
      %5495 = vmatpush1.xpose.msra.mxu0 %v5494
      %5496 = vmatprep.subr.mxu0 0.0
      %v5497 = vand.u32 %v4737, 4294901760
      %v5498 = vsub.f32 %v4737, %v5497
      %v5499 = vand.u32 %v5498, 4294901760
      %v5500 = vsub.f32 %v5498, %v5499
      %v5501 = vand.u32 %v5500, 4294901760
      %5502 = vmatpush1.xpose.msra.mxu0 %v5501
      %5503 = vmatprep.subr.mxu0 0.0
      %5504 = vmatpush2.xpose.msra.mxu0 0.0
      %5505 = vmatprep.subr.mxu0 0.0
      %5506 = vmatpush2.xpose.msra.mxu0 0.0
      %5507 = vmatprep.subr.mxu0 0.0
      %5508 = vmatpush2.xpose.msra.mxu0 0.0
      %5509 = vmatprep.subr.mxu0 0.0
      %5510 = vmatpush2.xpose.msra.mxu0 0.0
      %5511 = vmatprep.subr.mxu0 0.0
      %5512 = vmatpush2.xpose.msra.mxu0 0.0
      %5513 = vmatprep.subr.mxu0 0.0
      %5514 = vmatpush2.xpose.msra.mxu0 0.0
      %5515 = vmatprep.subr.mxu0 0.0
      %5516 = vmatpush2.xpose.msra.mxu0 0.0
      %5517 = vmatprep.subr.mxu0 0.0
      %5518 = vmatpush2.xpose.msra.mxu0 0.0
      %5519 = vmatprep.subr.mxu0 0.0
      %5520 = vmatpush2.xpose.msra.mxu0 0.0
      %5521 = vmatprep.subr.mxu0 0.0
      %5522 = vmatpush2.xpose.msra.mxu0 0.0
      %5523 = vmatprep.subr.mxu0 0.0
      %5524 = vmatpush2.xpose.msra.mxu0 0.0
      %5525 = vmatprep.subr.mxu0 0.0
      %5526 = vmatpush2.xpose.msra.mxu0 0.0
      %5527 = vmatprep.subr.mxu0 0.0
      %5528 = vmatpush2.xpose.msra.mxu0 0.0
      %5529 = vmatprep.subr.mxu0 0.0
      %5530 = vmatpush2.xpose.msra.mxu0 0.0
      %5531 = vmatprep.subr.mxu0 0.0
      %5532 = vmatpush2.xpose.msra.mxu0 0.0
      %5533 = vmatprep.subr.mxu0 0.0
      %5534 = vmatpush2.xpose.msra.mxu0 0.0
      %5535 = vmatprep.mubr.f32.mxu0 0.0
      %v5536 = vand.u32 %v4623, 4294901760
      %5537 = vmatmul.mubr.f32.gmra.mxu0 %v5536
      %v5538 = vpop.f32.mrf.mxu0
      %v5539 = vadd.f32 %v5418, %v5538
      %v5540 = vpop.f32.mrf.mxu0
      %5541 = vmatprep.mubr.f32.mxu0 0.0
      %v5542 = vand.u32 %v4624, 4294901760
      %5543 = vmatmul.mubr.f32.gmra.mxu0 %v5542
      %v5544 = vpop.f32.mrf.mxu0
      %v5545 = vadd.f32 %v5428, %v5544
      %v5546 = vpop.f32.mrf.mxu0
      %5547 = vmatprep.mubr.f32.mxu0 0.0
      %v5548 = vand.u32 %v4625, 4294901760
      %5549 = vmatmul.mubr.f32.gmra.mxu0 %v5548
      %v5550 = vpop.f32.mrf.mxu0
      %v5551 = vadd.f32 %v5438, %v5550
      %v5552 = vpop.f32.mrf.mxu0
      %5553 = vdwg.mxu0
      %5554 = vmatprep.subr.mxu0 0.0
      %5555 = vmatpush1.xpose.msra.mxu0 0.0
      %5556 = vmatprep.subr.mxu0 0.0
      %5557 = vmatpush1.xpose.msra.mxu0 0.0
      %5558 = vmatprep.subr.mxu0 0.0
      %5559 = vmatpush1.xpose.msra.mxu0 0.0
      %5560 = vmatprep.subr.mxu0 0.0
      %5561 = vmatpush1.xpose.msra.mxu0 0.0
      %5562 = vmatprep.subr.mxu0 0.0
      %5563 = vmatpush1.xpose.msra.mxu0 0.0
      %5564 = vmatprep.subr.mxu0 0.0
      %5565 = vmatpush1.xpose.msra.mxu0 0.0
      %5566 = vmatprep.subr.mxu0 0.0
      %5567 = vmatpush1.xpose.msra.mxu0 0.0
      %5568 = vmatprep.subr.mxu0 0.0
      %5569 = vmatpush1.xpose.msra.mxu0 0.0
      %5570 = vmatprep.subr.mxu0 0.0
      %5571 = vmatpush1.xpose.msra.mxu0 0.0
      %5572 = vmatprep.subr.mxu0 0.0
      %5573 = vmatpush1.xpose.msra.mxu0 0.0
      %5574 = vmatprep.subr.mxu0 0.0
      %v5575 = vand.u32 %v4742, 4294901760
      %v5576 = vsub.f32 %v4742, %v5575
      %5577 = vmatpush1.xpose.msra.mxu0 %v5576
      %5578 = vmatprep.subr.mxu0 0.0
      %v5579 = vand.u32 %v4741, 4294901760
      %v5580 = vsub.f32 %v4741, %v5579
      %5581 = vmatpush1.xpose.msra.mxu0 %v5580
      %5582 = vmatprep.subr.mxu0 0.0
      %v5583 = vand.u32 %v4740, 4294901760
      %v5584 = vsub.f32 %v4740, %v5583
      %5585 = vmatpush1.xpose.msra.mxu0 %v5584
      %5586 = vmatprep.subr.mxu0 0.0
      %v5587 = vand.u32 %v4739, 4294901760
      %v5588 = vsub.f32 %v4739, %v5587
      %5589 = vmatpush1.xpose.msra.mxu0 %v5588
      %5590 = vmatprep.subr.mxu0 0.0
      %v5591 = vand.u32 %v4738, 4294901760
      %v5592 = vsub.f32 %v4738, %v5591
      %5593 = vmatpush1.xpose.msra.mxu0 %v5592
      %5594 = vmatprep.subr.mxu0 0.0
      %v5595 = vand.u32 %v4737, 4294901760
      %v5596 = vsub.f32 %v4737, %v5595
      %5597 = vmatpush1.xpose.msra.mxu0 %v5596
      %5598 = vmatprep.subr.mxu0 0.0
      %5599 = vmatpush2.xpose.msra.mxu0 0.0
      %5600 = vmatprep.subr.mxu0 0.0
      %5601 = vmatpush2.xpose.msra.mxu0 0.0
      %5602 = vmatprep.subr.mxu0 0.0
      %5603 = vmatpush2.xpose.msra.mxu0 0.0
      %5604 = vmatprep.subr.mxu0 0.0
      %5605 = vmatpush2.xpose.msra.mxu0 0.0
      %5606 = vmatprep.subr.mxu0 0.0
      %5607 = vmatpush2.xpose.msra.mxu0 0.0
      %5608 = vmatprep.subr.mxu0 0.0
      %5609 = vmatpush2.xpose.msra.mxu0 0.0
      %5610 = vmatprep.subr.mxu0 0.0
      %5611 = vmatpush2.xpose.msra.mxu0 0.0
      %5612 = vmatprep.subr.mxu0 0.0
      %5613 = vmatpush2.xpose.msra.mxu0 0.0
      %5614 = vmatprep.subr.mxu0 0.0
      %5615 = vmatpush2.xpose.msra.mxu0 0.0
      %5616 = vmatprep.subr.mxu0 0.0
      %5617 = vmatpush2.xpose.msra.mxu0 0.0
      %5618 = vmatprep.subr.mxu0 0.0
      %5619 = vmatpush2.xpose.msra.mxu0 0.0
      %5620 = vmatprep.subr.mxu0 0.0
      %5621 = vmatpush2.xpose.msra.mxu0 0.0
      %5622 = vmatprep.subr.mxu0 0.0
      %5623 = vmatpush2.xpose.msra.mxu0 0.0
      %5624 = vmatprep.subr.mxu0 0.0
      %5625 = vmatpush2.xpose.msra.mxu0 0.0
      %5626 = vmatprep.subr.mxu0 0.0
      %5627 = vmatpush2.xpose.msra.mxu0 0.0
      %5628 = vmatprep.subr.mxu0 0.0
      %5629 = vmatpush2.xpose.msra.mxu0 0.0
      %5630 = vmatprep.mubr.f32.mxu0 0.0
      %v5631 = vand.u32 %v4623, 4294901760
      %v5632 = vsub.f32 %v4623, %v5631
      %5633 = vmatmul.mubr.f32.gmra.mxu0 %v5632
      %v5634 = vpop.f32.mrf.mxu0
      %v5635 = vadd.f32 %v5539, %v5634
      %v5636 = vpop.f32.mrf.mxu0
      %5637 = vmatprep.mubr.f32.mxu0 0.0
      %v5638 = vand.u32 %v4624, 4294901760
      %v5639 = vsub.f32 %v4624, %v5638
      %5640 = vmatmul.mubr.f32.gmra.mxu0 %v5639
      %v5641 = vpop.f32.mrf.mxu0
      %v5642 = vadd.f32 %v5545, %v5641
      %v5643 = vpop.f32.mrf.mxu0
      %5644 = vmatprep.mubr.f32.mxu0 0.0
      %v5645 = vand.u32 %v4625, 4294901760
      %v5646 = vsub.f32 %v4625, %v5645
      %5647 = vmatmul.mubr.f32.gmra.mxu0 %v5646
      %v5648 = vpop.f32.mrf.mxu0
      %v5649 = vadd.f32 %v5551, %v5648
      %v5650 = vpop.f32.mrf.mxu0
      %5651 = vdwg.mxu0
      %5652 = vmatprep.subr.mxu0 0.0
      %5653 = vmatpush1.xpose.msra.mxu0 0.0
      %5654 = vmatprep.subr.mxu0 0.0
      %5655 = vmatpush1.xpose.msra.mxu0 0.0
      %5656 = vmatprep.subr.mxu0 0.0
      %5657 = vmatpush1.xpose.msra.mxu0 0.0
      %5658 = vmatprep.subr.mxu0 0.0
      %5659 = vmatpush1.xpose.msra.mxu0 0.0
      %5660 = vmatprep.subr.mxu0 0.0
      %5661 = vmatpush1.xpose.msra.mxu0 0.0
      %5662 = vmatprep.subr.mxu0 0.0
      %5663 = vmatpush1.xpose.msra.mxu0 0.0
      %5664 = vmatprep.subr.mxu0 0.0
      %5665 = vmatpush1.xpose.msra.mxu0 0.0
      %5666 = vmatprep.subr.mxu0 0.0
      %5667 = vmatpush1.xpose.msra.mxu0 0.0
      %5668 = vmatprep.subr.mxu0 0.0
      %5669 = vmatpush1.xpose.msra.mxu0 0.0
      %5670 = vmatprep.subr.mxu0 0.0
      %5671 = vmatpush1.xpose.msra.mxu0 0.0
      %5672 = vmatprep.subr.mxu0 0.0
      %v5673 = vand.u32 %v4742, 4294901760
      %5674 = vmatpush1.xpose.msra.mxu0 %v5673
      %5675 = vmatprep.subr.mxu0 0.0
      %v5676 = vand.u32 %v4741, 4294901760
      %5677 = vmatpush1.xpose.msra.mxu0 %v5676
      %5678 = vmatprep.subr.mxu0 0.0
      %v5679 = vand.u32 %v4740, 4294901760
      %5680 = vmatpush1.xpose.msra.mxu0 %v5679
      %5681 = vmatprep.subr.mxu0 0.0
      %v5682 = vand.u32 %v4739, 4294901760
      %5683 = vmatpush1.xpose.msra.mxu0 %v5682
      %5684 = vmatprep.subr.mxu0 0.0
      %v5685 = vand.u32 %v4738, 4294901760
      %5686 = vmatpush1.xpose.msra.mxu0 %v5685
      %5687 = vmatprep.subr.mxu0 0.0
      %v5688 = vand.u32 %v4737, 4294901760
      %5689 = vmatpush1.xpose.msra.mxu0 %v5688
      %5690 = vmatprep.subr.mxu0 0.0
      %5691 = vmatpush2.xpose.msra.mxu0 0.0
      %5692 = vmatprep.subr.mxu0 0.0
      %5693 = vmatpush2.xpose.msra.mxu0 0.0
      %5694 = vmatprep.subr.mxu0 0.0
      %5695 = vmatpush2.xpose.msra.mxu0 0.0
      %5696 = vmatprep.subr.mxu0 0.0
      %5697 = vmatpush2.xpose.msra.mxu0 0.0
      %5698 = vmatprep.subr.mxu0 0.0
      %5699 = vmatpush2.xpose.msra.mxu0 0.0
      %5700 = vmatprep.subr.mxu0 0.0
      %5701 = vmatpush2.xpose.msra.mxu0 0.0
      %5702 = vmatprep.subr.mxu0 0.0
      %5703 = vmatpush2.xpose.msra.mxu0 0.0
      %5704 = vmatprep.subr.mxu0 0.0
      %5705 = vmatpush2.xpose.msra.mxu0 0.0
      %5706 = vmatprep.subr.mxu0 0.0
      %5707 = vmatpush2.xpose.msra.mxu0 0.0
      %5708 = vmatprep.subr.mxu0 0.0
      %5709 = vmatpush2.xpose.msra.mxu0 0.0
      %5710 = vmatprep.subr.mxu0 0.0
      %5711 = vmatpush2.xpose.msra.mxu0 0.0
      %5712 = vmatprep.subr.mxu0 0.0
      %5713 = vmatpush2.xpose.msra.mxu0 0.0
      %5714 = vmatprep.subr.mxu0 0.0
      %5715 = vmatpush2.xpose.msra.mxu0 0.0
      %5716 = vmatprep.subr.mxu0 0.0
      %5717 = vmatpush2.xpose.msra.mxu0 0.0
      %5718 = vmatprep.subr.mxu0 0.0
      %5719 = vmatpush2.xpose.msra.mxu0 0.0
      %5720 = vmatprep.subr.mxu0 0.0
      %5721 = vmatpush2.xpose.msra.mxu0 0.0
      %5722 = vmatprep.mubr.f32.mxu0 0.0
      %v5723 = vand.u32 %v4623, 4294901760
      %v5724 = vsub.f32 %v4623, %v5723
      %v5725 = vand.u32 %v5724, 4294901760
      %5726 = vmatmul.mubr.f32.gmra.mxu0 %v5725
      %v5727 = vpop.f32.mrf.mxu0
      %v5728 = vadd.f32 %v5635, %v5727
      %v5729 = vpop.f32.mrf.mxu0
      %5730 = vmatprep.mubr.f32.mxu0 0.0
      %v5731 = vand.u32 %v4624, 4294901760
      %v5732 = vsub.f32 %v4624, %v5731
      %v5733 = vand.u32 %v5732, 4294901760
      %5734 = vmatmul.mubr.f32.gmra.mxu0 %v5733
      %v5735 = vpop.f32.mrf.mxu0
      %v5736 = vadd.f32 %v5642, %v5735
      %v5737 = vpop.f32.mrf.mxu0
      %5738 = vmatprep.mubr.f32.mxu0 0.0
      %v5739 = vand.u32 %v4625, 4294901760
      %v5740 = vsub.f32 %v4625, %v5739
      %v5741 = vand.u32 %v5740, 4294901760
      %5742 = vmatmul.mubr.f32.gmra.mxu0 %v5741
      %v5743 = vpop.f32.mrf.mxu0
      %v5744 = vadd.f32 %v5649, %v5743
      %v5745 = vpop.f32.mrf.mxu0
      %5746 = vdwg.mxu0
      %5747 = vmatprep.subr.mxu0 0.0
      %5748 = vmatpush1.xpose.msra.mxu0 0.0
      %5749 = vmatprep.subr.mxu0 0.0
      %5750 = vmatpush1.xpose.msra.mxu0 0.0
      %5751 = vmatprep.subr.mxu0 0.0
      %5752 = vmatpush1.xpose.msra.mxu0 0.0
      %5753 = vmatprep.subr.mxu0 0.0
      %5754 = vmatpush1.xpose.msra.mxu0 0.0
      %5755 = vmatprep.subr.mxu0 0.0
      %5756 = vmatpush1.xpose.msra.mxu0 0.0
      %5757 = vmatprep.subr.mxu0 0.0
      %5758 = vmatpush1.xpose.msra.mxu0 0.0
      %5759 = vmatprep.subr.mxu0 0.0
      %5760 = vmatpush1.xpose.msra.mxu0 0.0
      %5761 = vmatprep.subr.mxu0 0.0
      %5762 = vmatpush1.xpose.msra.mxu0 0.0
      %5763 = vmatprep.subr.mxu0 0.0
      %5764 = vmatpush1.xpose.msra.mxu0 0.0
      %5765 = vmatprep.subr.mxu0 0.0
      %5766 = vmatpush1.xpose.msra.mxu0 0.0
      %5767 = vmatprep.subr.mxu0 0.0
      %v5768 = vand.u32 %v4742, 4294901760
      %v5769 = vsub.f32 %v4742, %v5768
      %v5770 = vand.u32 %v5769, 4294901760
      %5771 = vmatpush1.xpose.msra.mxu0 %v5770
      %5772 = vmatprep.subr.mxu0 0.0
      %v5773 = vand.u32 %v4741, 4294901760
      %v5774 = vsub.f32 %v4741, %v5773
      %v5775 = vand.u32 %v5774, 4294901760
      %5776 = vmatpush1.xpose.msra.mxu0 %v5775
      %5777 = vmatprep.subr.mxu0 0.0
      %v5778 = vand.u32 %v4740, 4294901760
      %v5779 = vsub.f32 %v4740, %v5778
      %v5780 = vand.u32 %v5779, 4294901760
      %5781 = vmatpush1.xpose.msra.mxu0 %v5780
      %5782 = vmatprep.subr.mxu0 0.0
      %v5783 = vand.u32 %v4739, 4294901760
      %v5784 = vsub.f32 %v4739, %v5783
      %v5785 = vand.u32 %v5784, 4294901760
      %5786 = vmatpush1.xpose.msra.mxu0 %v5785
      %5787 = vmatprep.subr.mxu0 0.0
      %v5788 = vand.u32 %v4738, 4294901760
      %v5789 = vsub.f32 %v4738, %v5788
      %v5790 = vand.u32 %v5789, 4294901760
      %5791 = vmatpush1.xpose.msra.mxu0 %v5790
      %5792 = vmatprep.subr.mxu0 0.0
      %v5793 = vand.u32 %v4737, 4294901760
      %v5794 = vsub.f32 %v4737, %v5793
      %v5795 = vand.u32 %v5794, 4294901760
      %5796 = vmatpush1.xpose.msra.mxu0 %v5795
      %5797 = vmatprep.subr.mxu0 0.0
      %5798 = vmatpush2.xpose.msra.mxu0 0.0
      %5799 = vmatprep.subr.mxu0 0.0
      %5800 = vmatpush2.xpose.msra.mxu0 0.0
      %5801 = vmatprep.subr.mxu0 0.0
      %5802 = vmatpush2.xpose.msra.mxu0 0.0
      %5803 = vmatprep.subr.mxu0 0.0
      %5804 = vmatpush2.xpose.msra.mxu0 0.0
      %5805 = vmatprep.subr.mxu0 0.0
      %5806 = vmatpush2.xpose.msra.mxu0 0.0
      %5807 = vmatprep.subr.mxu0 0.0
      %5808 = vmatpush2.xpose.msra.mxu0 0.0
      %5809 = vmatprep.subr.mxu0 0.0
      %5810 = vmatpush2.xpose.msra.mxu0 0.0
      %5811 = vmatprep.subr.mxu0 0.0
      %5812 = vmatpush2.xpose.msra.mxu0 0.0
      %5813 = vmatprep.subr.mxu0 0.0
      %5814 = vmatpush2.xpose.msra.mxu0 0.0
      %5815 = vmatprep.subr.mxu0 0.0
      %5816 = vmatpush2.xpose.msra.mxu0 0.0
      %5817 = vmatprep.subr.mxu0 0.0
      %5818 = vmatpush2.xpose.msra.mxu0 0.0
      %5819 = vmatprep.subr.mxu0 0.0
      %5820 = vmatpush2.xpose.msra.mxu0 0.0
      %5821 = vmatprep.subr.mxu0 0.0
      %5822 = vmatpush2.xpose.msra.mxu0 0.0
      %5823 = vmatprep.subr.mxu0 0.0
      %5824 = vmatpush2.xpose.msra.mxu0 0.0
      %5825 = vmatprep.subr.mxu0 0.0
      %5826 = vmatpush2.xpose.msra.mxu0 0.0
      %5827 = vmatprep.subr.mxu0 0.0
      %5828 = vmatpush2.xpose.msra.mxu0 0.0
      %5829 = vmatprep.mubr.f32.mxu0 0.0
      %v5830 = vand.u32 %v4623, 4294901760
      %5831 = vmatmul.mubr.f32.gmra.mxu0 %v5830
      %v5832 = vpop.f32.mrf.mxu0
      %v5833 = vadd.f32 %v5728, %v5832
      %v5834 = vpop.f32.mrf.mxu0
      %5835 = vmatprep.mubr.f32.mxu0 0.0
      %v5836 = vand.u32 %v4624, 4294901760
      %5837 = vmatmul.mubr.f32.gmra.mxu0 %v5836
      %v5838 = vpop.f32.mrf.mxu0
      %v5839 = vadd.f32 %v5736, %v5838
      %v5840 = vpop.f32.mrf.mxu0
      %5841 = vmatprep.mubr.f32.mxu0 0.0
      %v5842 = vand.u32 %v4625, 4294901760
      %5843 = vmatmul.mubr.f32.gmra.mxu0 %v5842
      %v5844 = vpop.f32.mrf.mxu0
      %v5845 = vadd.f32 %v5744, %v5844
      %v5846 = vpop.f32.mrf.mxu0
      %5847 = vdwg.mxu0
      %5848 = vmatprep.subr.mxu0 0.0
      %5849 = vmatpush1.xpose.msra.mxu0 0.0
      %5850 = vmatprep.subr.mxu0 0.0
      %5851 = vmatpush1.xpose.msra.mxu0 0.0
      %5852 = vmatprep.subr.mxu0 0.0
      %5853 = vmatpush1.xpose.msra.mxu0 0.0
      %5854 = vmatprep.subr.mxu0 0.0
      %5855 = vmatpush1.xpose.msra.mxu0 0.0
      %5856 = vmatprep.subr.mxu0 0.0
      %5857 = vmatpush1.xpose.msra.mxu0 0.0
      %5858 = vmatprep.subr.mxu0 0.0
      %5859 = vmatpush1.xpose.msra.mxu0 0.0
      %5860 = vmatprep.subr.mxu0 0.0
      %5861 = vmatpush1.xpose.msra.mxu0 0.0
      %5862 = vmatprep.subr.mxu0 0.0
      %5863 = vmatpush1.xpose.msra.mxu0 0.0
      %5864 = vmatprep.subr.mxu0 0.0
      %5865 = vmatpush1.xpose.msra.mxu0 0.0
      %5866 = vmatprep.subr.mxu0 0.0
      %5867 = vmatpush1.xpose.msra.mxu0 0.0
      %5868 = vmatprep.subr.mxu0 0.0
      %v5869 = vand.u32 %v4742, 4294901760
      %5870 = vmatpush1.xpose.msra.mxu0 %v5869
      %5871 = vmatprep.subr.mxu0 0.0
      %v5872 = vand.u32 %v4741, 4294901760
      %5873 = vmatpush1.xpose.msra.mxu0 %v5872
      %5874 = vmatprep.subr.mxu0 0.0
      %v5875 = vand.u32 %v4740, 4294901760
      %5876 = vmatpush1.xpose.msra.mxu0 %v5875
      %5877 = vmatprep.subr.mxu0 0.0
      %v5878 = vand.u32 %v4739, 4294901760
      %5879 = vmatpush1.xpose.msra.mxu0 %v5878
      %5880 = vmatprep.subr.mxu0 0.0
      %v5881 = vand.u32 %v4738, 4294901760
      %5882 = vmatpush1.xpose.msra.mxu0 %v5881
      %5883 = vmatprep.subr.mxu0 0.0
      %v5884 = vand.u32 %v4737, 4294901760
      %5885 = vmatpush1.xpose.msra.mxu0 %v5884
      %5886 = vmatprep.subr.mxu0 0.0
      %5887 = vmatpush2.xpose.msra.mxu0 0.0
      %5888 = vmatprep.subr.mxu0 0.0
      %5889 = vmatpush2.xpose.msra.mxu0 0.0
      %5890 = vmatprep.subr.mxu0 0.0
      %5891 = vmatpush2.xpose.msra.mxu0 0.0
      %5892 = vmatprep.subr.mxu0 0.0
      %5893 = vmatpush2.xpose.msra.mxu0 0.0
      %5894 = vmatprep.subr.mxu0 0.0
      %5895 = vmatpush2.xpose.msra.mxu0 0.0
      %5896 = vmatprep.subr.mxu0 0.0
      %5897 = vmatpush2.xpose.msra.mxu0 0.0
      %5898 = vmatprep.subr.mxu0 0.0
      %5899 = vmatpush2.xpose.msra.mxu0 0.0
      %5900 = vmatprep.subr.mxu0 0.0
      %5901 = vmatpush2.xpose.msra.mxu0 0.0
      %5902 = vmatprep.subr.mxu0 0.0
      %5903 = vmatpush2.xpose.msra.mxu0 0.0
      %5904 = vmatprep.subr.mxu0 0.0
      %5905 = vmatpush2.xpose.msra.mxu0 0.0
      %5906 = vmatprep.subr.mxu0 0.0
      %5907 = vmatpush2.xpose.msra.mxu0 0.0
      %5908 = vmatprep.subr.mxu0 0.0
      %5909 = vmatpush2.xpose.msra.mxu0 0.0
      %5910 = vmatprep.subr.mxu0 0.0
      %5911 = vmatpush2.xpose.msra.mxu0 0.0
      %5912 = vmatprep.subr.mxu0 0.0
      %5913 = vmatpush2.xpose.msra.mxu0 0.0
      %5914 = vmatprep.subr.mxu0 0.0
      %5915 = vmatpush2.xpose.msra.mxu0 0.0
      %5916 = vmatprep.subr.mxu0 0.0
      %5917 = vmatpush2.xpose.msra.mxu0 0.0
      %5918 = vmatprep.mubr.f32.mxu0 0.0
      %v5919 = vand.u32 %v4623, 4294901760
      %5920 = vmatmul.mubr.f32.gmra.mxu0 %v5919
      %v5921 = vpop.f32.mrf.mxu0
      %v5922 = vadd.f32 %v5833, %v5921
      %v5923 = vpop.f32.mrf.mxu0
      %5924 = vmatprep.mubr.f32.mxu0 0.0
      %v5925 = vand.u32 %v4624, 4294901760
      %5926 = vmatmul.mubr.f32.gmra.mxu0 %v5925
      %v5927 = vpop.f32.mrf.mxu0
      %v5928 = vadd.f32 %v5839, %v5927
      %v5929 = vpop.f32.mrf.mxu0
      %5930 = vmatprep.mubr.f32.mxu0 0.0
      %v5931 = vand.u32 %v4625, 4294901760
      %5932 = vmatmul.mubr.f32.gmra.mxu0 %v5931
      %v5933 = vpop.f32.mrf.mxu0
      %v5934 = vadd.f32 %v5845, %v5933
      %v5935 = vpop.f32.mrf.mxu0
      %5936 = vdwg.mxu0
      %5943 = vrot.lane.b32.xlu0 %v5325, 45
      %v5944 = vpop.permute.xlu0 %5943
      %5945 = vrot.lane.b32.xlu0 %v5331, 45
      %v5946 = vpop.permute.xlu0 %5945
      %5947 = vrot.lane.b32.xlu0 %v5337, 45
      %v5948 = vpop.permute.xlu0 %5947
      %5949 = vrot.lane.b32.xlu0 %v5922, 45
      %v5950 = vpop.permute.xlu0 %5949
      %5951 = vrot.lane.b32.xlu0 %v5928, 45
      %v5952 = vpop.permute.xlu0 %5951
      %5953 = vrot.lane.b32.xlu0 %v5934, 45
      %v5954 = vpop.permute.xlu0 %5953
      %5961 = vrot.lane.b32.xlu0 %v5325, 90
      %v5962 = vpop.permute.xlu0 %5961
      %5963 = vrot.lane.b32.xlu0 %v5331, 90
      %v5964 = vpop.permute.xlu0 %5963
      %5965 = vrot.lane.b32.xlu0 %v5337, 90
      %v5966 = vpop.permute.xlu0 %5965
      %5967 = vrot.lane.b32.xlu0 %v5922, 90
      %v5968 = vpop.permute.xlu0 %5967
      %5969 = vrot.lane.b32.xlu0 %v5928, 90
      %v5970 = vpop.permute.xlu0 %5969
      %5971 = vrot.lane.b32.xlu0 %v5934, 90
      %v5972 = vpop.permute.xlu0 %5971
      %5979 = vrot.lane.b32.xlu0 %v5325, 7
      %v5980 = vpop.permute.xlu0 %5979
      %5981 = vrot.lane.b32.xlu0 %v5331, 7
      %v5982 = vpop.permute.xlu0 %5981
      %5983 = vrot.lane.b32.xlu0 %v5337, 7
      %v5984 = vpop.permute.xlu0 %5983
      %5985 = vrot.lane.b32.xlu0 %v5922, 7
      %v5986 = vpop.permute.xlu0 %5985
      %5987 = vrot.lane.b32.xlu0 %v5928, 7
      %v5988 = vpop.permute.xlu0 %5987
      %5989 = vrot.lane.b32.xlu0 %v5934, 7
      %v5990 = vpop.permute.xlu0 %5989
      %5997 = vrot.lane.b32.xlu0 %v5325, 52
      %v5998 = vpop.permute.xlu0 %5997
      %5999 = vrot.lane.b32.xlu0 %v5331, 52
      %v6000 = vpop.permute.xlu0 %5999
      %6001 = vrot.lane.b32.xlu0 %v5337, 52
      %v6002 = vpop.permute.xlu0 %6001
      %6003 = vrot.lane.b32.xlu0 %v5922, 52
      %v6004 = vpop.permute.xlu0 %6003
      %6005 = vrot.lane.b32.xlu0 %v5928, 52
      %v6006 = vpop.permute.xlu0 %6005
      %6007 = vrot.lane.b32.xlu0 %v5934, 52
      %v6008 = vpop.permute.xlu0 %6007
      %6015 = vrot.lane.b32.xlu0 %v5325, 97
      %v6016 = vpop.permute.xlu0 %6015
      %6017 = vrot.lane.b32.xlu0 %v5331, 97
      %v6018 = vpop.permute.xlu0 %6017
      %6019 = vrot.lane.b32.xlu0 %v5337, 97
      %v6020 = vpop.permute.xlu0 %6019
      %6021 = vrot.lane.b32.xlu0 %v5922, 97
      %v6022 = vpop.permute.xlu0 %6021
      %6023 = vrot.lane.b32.xlu0 %v5928, 97
      %v6024 = vpop.permute.xlu0 %6023
      %6025 = vrot.lane.b32.xlu0 %v5934, 97
      %v6026 = vpop.permute.xlu0 %6025
      %6033 = vrot.lane.b32.xlu0 %v5325, 14
      %v6034 = vpop.permute.xlu0 %6033
      %6035 = vrot.lane.b32.xlu0 %v5331, 14
      %v6036 = vpop.permute.xlu0 %6035
      %6037 = vrot.lane.b32.xlu0 %v5337, 14
      %v6038 = vpop.permute.xlu0 %6037
      %6039 = vrot.lane.b32.xlu0 %v5922, 14
      %v6040 = vpop.permute.xlu0 %6039
      %6041 = vrot.lane.b32.xlu0 %v5928, 14
      %v6042 = vpop.permute.xlu0 %6041
      %6043 = vrot.lane.b32.xlu0 %v5934, 14
      %v6044 = vpop.permute.xlu0 %6043
      %6051 = vrot.lane.b32.xlu0 %v5325, 59
      %v6052 = vpop.permute.xlu0 %6051
      %6053 = vrot.lane.b32.xlu0 %v5331, 59
      %v6054 = vpop.permute.xlu0 %6053
      %6055 = vrot.lane.b32.xlu0 %v5337, 59
      %v6056 = vpop.permute.xlu0 %6055
      %6057 = vrot.lane.b32.xlu0 %v5922, 59
      %v6058 = vpop.permute.xlu0 %6057
      %6059 = vrot.lane.b32.xlu0 %v5928, 59
      %v6060 = vpop.permute.xlu0 %6059
      %6061 = vrot.lane.b32.xlu0 %v5934, 59
      %v6062 = vpop.permute.xlu0 %6061
      %6069 = vrot.lane.b32.xlu0 %v5325, 104
      %v6070 = vpop.permute.xlu0 %6069
      %6071 = vrot.lane.b32.xlu0 %v5331, 104
      %v6072 = vpop.permute.xlu0 %6071
      %6073 = vrot.lane.b32.xlu0 %v5337, 104
      %v6074 = vpop.permute.xlu0 %6073
      %6075 = vrot.lane.b32.xlu0 %v5922, 104
      %v6076 = vpop.permute.xlu0 %6075
      %6077 = vrot.lane.b32.xlu0 %v5928, 104
      %v6078 = vpop.permute.xlu0 %6077
      %6079 = vrot.lane.b32.xlu0 %v5934, 104
      %v6080 = vpop.permute.xlu0 %6079
      %6087 = vrot.lane.b32.xlu0 %v5325, 21
      %v6088 = vpop.permute.xlu0 %6087
      %6089 = vrot.lane.b32.xlu0 %v5331, 21
      %v6090 = vpop.permute.xlu0 %6089
      %6091 = vrot.lane.b32.xlu0 %v5337, 21
      %v6092 = vpop.permute.xlu0 %6091
      %6093 = vrot.lane.b32.xlu0 %v5922, 21
      %v6094 = vpop.permute.xlu0 %6093
      %6095 = vrot.lane.b32.xlu0 %v5928, 21
      %v6096 = vpop.permute.xlu0 %6095
      %6097 = vrot.lane.b32.xlu0 %v5934, 21
      %v6098 = vpop.permute.xlu0 %6097
      %6105 = vrot.lane.b32.xlu0 %v5325, 66
      %v6106 = vpop.permute.xlu0 %6105
      %6107 = vrot.lane.b32.xlu0 %v5331, 66
      %v6108 = vpop.permute.xlu0 %6107
      %6109 = vrot.lane.b32.xlu0 %v5337, 66
      %v6110 = vpop.permute.xlu0 %6109
      %6111 = vrot.lane.b32.xlu0 %v5922, 66
      %v6112 = vpop.permute.xlu0 %6111
      %6113 = vrot.lane.b32.xlu0 %v5928, 66
      %v6114 = vpop.permute.xlu0 %6113
      %6115 = vrot.lane.b32.xlu0 %v5934, 66
      %v6116 = vpop.permute.xlu0 %6115
      %vm6123 = vcmask 367616
      %v6124 = vsel %vm6123, %v5325, %v5944
      %v6125 = vsel %vm6123, %v5331, %v5946
      %v6126 = vsel %vm6123, %v5337, %v5948
      %v6127 = vsel %vm6123, %v5922, %v5950
      %v6128 = vsel %vm6123, %v5928, %v5952
      %v6129 = vsel %vm6123, %v5934, %v5954
      %vm6130 = vcmask 736256
      %v6131 = vsel %vm6130, %v6124, %v5962
      %v6132 = vsel %vm6130, %v6125, %v5964
      %v6133 = vsel %vm6130, %v6126, %v5966
      %v6134 = vsel %vm6130, %v6127, %v5968
      %v6135 = vsel %vm6130, %v6128, %v5970
      %v6136 = vsel %vm6130, %v6129, %v5972
      %vm6137 = vcmask 56320
      %v6138 = vsel %vm6137, %v5962, %v5980
      %v6139 = vsel %vm6137, %v5964, %v5982
      %v6140 = vsel %vm6137, %v5966, %v5984
      %v6141 = vsel %vm6137, %v5968, %v5986
      %v6142 = vsel %vm6137, %v5970, %v5988
      %v6143 = vsel %vm6137, %v5972, %v5990
      %vm6144 = vcmask 424960
      %v6145 = vsel %vm6144, %v6138, %v5998
      %v6146 = vsel %vm6144, %v6139, %v6000
      %v6147 = vsel %vm6144, %v6140, %v6002
      %v6148 = vsel %vm6144, %v6141, %v6004
      %v6149 = vsel %vm6144, %v6142, %v6006
      %v6150 = vsel %vm6144, %v6143, %v6008
      %vm6151 = vcmask 793600
      %v6152 = vsel %vm6151, %v6145, %v6016
      %v6153 = vsel %vm6151, %v6146, %v6018
      %v6154 = vsel %vm6151, %v6147, %v6020
      %v6155 = vsel %vm6151, %v6148, %v6022
      %v6156 = vsel %vm6151, %v6149, %v6024
      %v6157 = vsel %vm6151, %v6150, %v6026
      %vm6158 = vcmask 113664
      %v6159 = vsel %vm6158, %v6016, %v6034
      %v6160 = vsel %vm6158, %v6018, %v6036
      %v6161 = vsel %vm6158, %v6020, %v6038
      %v6162 = vsel %vm6158, %v6022, %v6040
      %v6163 = vsel %vm6158, %v6024, %v6042
      %v6164 = vsel %vm6158, %v6026, %v6044
      %vm6165 = vcmask 482304
      %v6166 = vsel %vm6165, %v6159, %v6052
      %v6167 = vsel %vm6165, %v6160, %v6054
      %v6168 = vsel %vm6165, %v6161, %v6056
      %v6169 = vsel %vm6165, %v6162, %v6058
      %v6170 = vsel %vm6165, %v6163, %v6060
      %v6171 = vsel %vm6165, %v6164, %v6062
      %vm6172 = vcmask 850944
      %v6173 = vsel %vm6172, %v6166, %v6070
      %v6174 = vsel %vm6172, %v6167, %v6072
      %v6175 = vsel %vm6172, %v6168, %v6074
      %v6176 = vsel %vm6172, %v6169, %v6076
      %v6177 = vsel %vm6172, %v6170, %v6078
      %v6178 = vsel %vm6172, %v6171, %v6080
      %vm6179 = vcmask 171008
      %v6180 = vsel %vm6179, %v6070, %v6088
      %v6181 = vsel %vm6179, %v6072, %v6090
      %v6182 = vsel %vm6179, %v6074, %v6092
      %v6183 = vsel %vm6179, %v6076, %v6094
      %v6184 = vsel %vm6179, %v6078, %v6096
      %v6185 = vsel %vm6179, %v6080, %v6098
      %vm6186 = vcmask 539648
      %v6187 = vsel %vm6186, %v6180, %v6106
      %v6188 = vsel %vm6186, %v6181, %v6108
      %v6189 = vsel %vm6186, %v6182, %v6110
      %v6190 = vsel %vm6186, %v6183, %v6112
      %v6191 = vsel %vm6186, %v6184, %v6114
      %v6192 = vsel %vm6186, %v6185, %v6116
      %v6193 = vld [vmem:[%s6] sm:$0xf]
      %v6195 = vlaneseq
      %v6196 = vshrl.u32 %v6195, 7
      %v6197 = vsub.s32 0, %v6196
      %v6198 = vrot.slane %v6193, %v6197
      %v6199 = vlaneseq
      %v6200 = vshrl.u32 %v6199, 7
      %v6201 = vsub.s32 1, %v6200
      %v6202 = vrot.slane %v6193, %v6201
      %v6203 = vlaneseq
      %v6204 = vshrl.u32 %v6203, 7
      %v6205 = vsub.s32 2, %v6204
      %v6206 = vrot.slane %v6193, %v6205
      %v6207 = vlaneseq
      %v6208 = vshrl.u32 %v6207, 7
      %v6209 = vsub.s32 3, %v6208
      %v6210 = vrot.slane %v6193, %v6209
      %v6215 = vsub.f32 %v6131, %v6198
      %v6216 = vsub.f32 %v6152, %v6202
      %v6217 = vsub.f32 %v6173, %v6206
      %v6218 = vsub.f32 %v6187, %v6210
      %v6219 = vsub.f32 %v6132, %v6198
      %v6220 = vsub.f32 %v6153, %v6202
      %v6221 = vsub.f32 %v6174, %v6206
      %v6222 = vsub.f32 %v6188, %v6210
      %v6223 = vsub.f32 %v6133, %v6198
      %v6224 = vsub.f32 %v6154, %v6202
      %v6225 = vsub.f32 %v6175, %v6206
      %v6226 = vsub.f32 %v6189, %v6210
      %v6227 = vsub.f32 %v6134, %v6198
      %v6228 = vsub.f32 %v6155, %v6202
      %v6229 = vsub.f32 %v6176, %v6206
      %v6230 = vsub.f32 %v6190, %v6210
      %v6231 = vsub.f32 %v6135, %v6198
      %v6232 = vsub.f32 %v6156, %v6202
      %v6233 = vsub.f32 %v6177, %v6206
      %v6234 = vsub.f32 %v6191, %v6210
      %v6235 = vsub.f32 %v6136, %v6198
      %v6236 = vsub.f32 %v6157, %v6202
      %v6237 = vsub.f32 %v6178, %v6206
      %v6238 = vsub.f32 %v6192, %v6210
      %v6239 = vmul.f32 %v6215, %v6215
      %v6240 = vmul.f32 %v6216, %v6216
      %v6241 = vmul.f32 %v6217, %v6217
      %v6242 = vmul.f32 %v6218, %v6218
      %v6243 = vmul.f32 %v6219, %v6219
      %v6244 = vmul.f32 %v6220, %v6220
      %v6245 = vmul.f32 %v6221, %v6221
      %v6246 = vmul.f32 %v6222, %v6222
      %v6247 = vmul.f32 %v6223, %v6223
      %v6248 = vmul.f32 %v6224, %v6224
      %v6249 = vmul.f32 %v6225, %v6225
      %v6250 = vmul.f32 %v6226, %v6226
      %v6251 = vmul.f32 %v6227, %v6227
      %v6252 = vmul.f32 %v6228, %v6228
      %v6253 = vmul.f32 %v6229, %v6229
      %v6254 = vmul.f32 %v6230, %v6230
      %v6255 = vmul.f32 %v6231, %v6231
      %v6256 = vmul.f32 %v6232, %v6232
      %v6257 = vmul.f32 %v6233, %v6233
      %v6258 = vmul.f32 %v6234, %v6234
      %v6259 = vmul.f32 %v6235, %v6235
      %v6260 = vmul.f32 %v6236, %v6236
      %v6261 = vmul.f32 %v6237, %v6237
      %v6262 = vmul.f32 %v6238, %v6238
      %v6263 = vld [vmem:[%s7] sm:$0xf]
      %v6265 = vlaneseq
      %v6266 = vshrl.u32 %v6265, 7
      %v6267 = vsub.s32 0, %v6266
      %v6268 = vrot.slane %v6263, %v6267
      %v6269 = vlaneseq
      %v6270 = vshrl.u32 %v6269, 7
      %v6271 = vsub.s32 1, %v6270
      %v6272 = vrot.slane %v6263, %v6271
      %v6273 = vlaneseq
      %v6274 = vshrl.u32 %v6273, 7
      %v6275 = vsub.s32 2, %v6274
      %v6276 = vrot.slane %v6263, %v6275
      %v6277 = vlaneseq
      %v6278 = vshrl.u32 %v6277, 7
      %v6279 = vsub.s32 3, %v6278
      %v6280 = vrot.slane %v6263, %v6279
      %v6285 = vmul.f32 %v6239, %v6268
      %v6286 = vmul.f32 %v6240, %v6272
      %v6287 = vmul.f32 %v6241, %v6276
      %v6288 = vmul.f32 %v6242, %v6280
      %v6289 = vmul.f32 %v6243, %v6268
      %v6290 = vmul.f32 %v6244, %v6272
      %v6291 = vmul.f32 %v6245, %v6276
      %v6292 = vmul.f32 %v6246, %v6280
      %v6293 = vmul.f32 %v6247, %v6268
      %v6294 = vmul.f32 %v6248, %v6272
      %v6295 = vmul.f32 %v6249, %v6276
      %v6296 = vmul.f32 %v6250, %v6280
      %v6297 = vmul.f32 %v6251, %v6268
      %v6298 = vmul.f32 %v6252, %v6272
      %v6299 = vmul.f32 %v6253, %v6276
      %v6300 = vmul.f32 %v6254, %v6280
      %v6301 = vmul.f32 %v6255, %v6268
      %v6302 = vmul.f32 %v6256, %v6272
      %v6303 = vmul.f32 %v6257, %v6276
      %v6304 = vmul.f32 %v6258, %v6280
      %v6305 = vmul.f32 %v6259, %v6268
      %v6306 = vmul.f32 %v6260, %v6272
      %v6307 = vmul.f32 %v6261, %v6276
      %v6308 = vmul.f32 %v6262, %v6280
      %v6309 = vmul.f32 %v6285, 1.442695
      %v6310 = vpow.pop %v6309
      %v6311 = vmul.f32 %v6286, 1.442695
      %v6312 = vpow.pop %v6311
      %v6313 = vmul.f32 %v6287, 1.442695
      %v6314 = vpow.pop %v6313
      %v6315 = vmul.f32 %v6288, 1.442695
      %v6316 = vpow.pop %v6315
      %v6317 = vmul.f32 %v6289, 1.442695
      %v6318 = vpow.pop %v6317
      %v6319 = vmul.f32 %v6290, 1.442695
      %v6320 = vpow.pop %v6319
      %v6321 = vmul.f32 %v6291, 1.442695
      %v6322 = vpow.pop %v6321
      %v6323 = vmul.f32 %v6292, 1.442695
      %v6324 = vpow.pop %v6323
      %v6325 = vmul.f32 %v6293, 1.442695
      %v6326 = vpow.pop %v6325
      %v6327 = vmul.f32 %v6294, 1.442695
      %v6328 = vpow.pop %v6327
      %v6329 = vmul.f32 %v6295, 1.442695
      %v6330 = vpow.pop %v6329
      %v6331 = vmul.f32 %v6296, 1.442695
      %v6332 = vpow.pop %v6331
      %v6333 = vmul.f32 %v6297, 1.442695
      %v6334 = vpow.pop %v6333
      %v6335 = vmul.f32 %v6298, 1.442695
      %v6336 = vpow.pop %v6335
      %v6337 = vmul.f32 %v6299, 1.442695
      %v6338 = vpow.pop %v6337
      %v6339 = vmul.f32 %v6300, 1.442695
      %v6340 = vpow.pop %v6339
      %v6341 = vmul.f32 %v6301, 1.442695
      %v6342 = vpow.pop %v6341
      %v6343 = vmul.f32 %v6302, 1.442695
      %v6344 = vpow.pop %v6343
      %v6345 = vmul.f32 %v6303, 1.442695
      %v6346 = vpow.pop %v6345
      %v6347 = vmul.f32 %v6304, 1.442695
      %v6348 = vpow.pop %v6347
      %v6349 = vmul.f32 %v6305, 1.442695
      %v6350 = vpow.pop %v6349
      %v6351 = vmul.f32 %v6306, 1.442695
      %v6352 = vpow.pop %v6351
      %v6353 = vmul.f32 %v6307, 1.442695
      %v6354 = vpow.pop %v6353
      %v6355 = vmul.f32 %v6308, 1.442695
      %v6356 = vpow.pop %v6355
      %v6357 = vld [vmem:[%s5] sm:$0xf]
      %v6358 = vld [vmem:[%s535] sm:$0x1]
      %v6359 = vld [vmem:[%s535 + $0x1] sm:$0x1]
      %6360 = vset.pattern.permute.xlu0 0
      %6361 = vperm.xlu0 %6360, %v6358
      %v6362 = vpop.permute.xlu0 %6361
      %v6363 = vlaneseq
      %v6364 = vshrl.u32 %v6363, 7
      %v6365 = vsub.s32 0, %v6364
      %v6366 = vrot.slane %v6362, %v6365
      %6367 = vset.pattern.permute.xlu0 0
      %6368 = vperm.xlu0 %6367, %v6359
      %v6369 = vpop.permute.xlu0 %6368
      %v6370 = vlaneseq
      %v6371 = vshrl.u32 %v6370, 7
      %v6372 = vsub.s32 0, %v6371
      %v6373 = vrot.slane %v6369, %v6372
      %vm6374 = vcmp.lt.s32.totalorder %v6357, %v6366
      %vm6375 = vcmp.lt.s32.totalorder %v6357, %v6373
      %v6376 = vsel %vm6374, 1, 0
      %v6377 = vsel %vm6375, 1, 0
      %v6378 = vcvt.s32.f32 %v6376
      %v6379 = vcvt.s32.f32 %v6377
      %v6382 = vlaneseq
      %v6383 = vshrl.u32 %v6382, 7
      %v6384 = vsub.s32 0, %v6383
      %v6385 = vrot.slane %v6378, %v6384
      %v6386 = vlaneseq
      %v6387 = vshrl.u32 %v6386, 7
      %v6388 = vsub.s32 1, %v6387
      %v6389 = vrot.slane %v6378, %v6388
      %v6390 = vlaneseq
      %v6391 = vshrl.u32 %v6390, 7
      %v6392 = vsub.s32 2, %v6391
      %v6393 = vrot.slane %v6378, %v6392
      %v6394 = vlaneseq
      %v6395 = vshrl.u32 %v6394, 7
      %v6396 = vsub.s32 3, %v6395
      %v6397 = vrot.slane %v6378, %v6396
      %v6398 = vlaneseq
      %v6399 = vshrl.u32 %v6398, 7
      %v6400 = vsub.s32 0, %v6399
      %v6401 = vrot.slane %v6379, %v6400
      %v6402 = vlaneseq
      %v6403 = vshrl.u32 %v6402, 7
      %v6404 = vsub.s32 1, %v6403
      %v6405 = vrot.slane %v6379, %v6404
      %v6406 = vlaneseq
      %v6407 = vshrl.u32 %v6406, 7
      %v6408 = vsub.s32 2, %v6407
      %v6409 = vrot.slane %v6379, %v6408
      %v6410 = vlaneseq
      %v6411 = vshrl.u32 %v6410, 7
      %v6412 = vsub.s32 3, %v6411
      %v6413 = vrot.slane %v6379, %v6412
      %v6422 = vmul.f32 %v6310, %v6385
      %v6423 = vmul.f32 %v6312, %v6389
      %v6424 = vmul.f32 %v6314, %v6393
      %v6425 = vmul.f32 %v6316, %v6397
      %v6426 = vmul.f32 %v6318, %v6385
      %v6427 = vmul.f32 %v6320, %v6389
      %v6428 = vmul.f32 %v6322, %v6393
      %v6429 = vmul.f32 %v6324, %v6397
      %v6430 = vmul.f32 %v6326, %v6385
      %v6431 = vmul.f32 %v6328, %v6389
      %v6432 = vmul.f32 %v6330, %v6393
      %v6433 = vmul.f32 %v6332, %v6397
      %v6434 = vmul.f32 %v6334, %v6401
      %v6435 = vmul.f32 %v6336, %v6405
      %v6436 = vmul.f32 %v6338, %v6409
      %v6437 = vmul.f32 %v6340, %v6413
      %v6438 = vmul.f32 %v6342, %v6401
      %v6439 = vmul.f32 %v6344, %v6405
      %v6440 = vmul.f32 %v6346, %v6409
      %v6441 = vmul.f32 %v6348, %v6413
      %v6442 = vmul.f32 %v6350, %v6401
      %v6443 = vmul.f32 %v6352, %v6405
      %v6444 = vmul.f32 %v6354, %v6409
      %v6445 = vmul.f32 %v6356, %v6413
      %v6446 = vld [vmem:[%s10] sm:$0xff]
      %v6447 = vld [vmem:[%s10 + $0x8] sm:$0xff]
      %v6448 = vld [vmem:[%s10 + $0x10] sm:$0xff]
      %v6449 = vld [vmem:[%s10 + $0x18] sm:$0xff]
      %v6450 = vld [vmem:[%s10 + $0x20] sm:$0xff]
      %v6451 = vld [vmem:[%s10 + $0x28] sm:$0xff]
      %v6452 = vld [vmem:[%s10 + $0x30] sm:$0xff]
      %v6453 = vld [vmem:[%s10 + $0x38] sm:$0xff]
      %v6454 = vld [vmem:[%s10 + $0x40] sm:$0xff]
      %v6455 = vld [vmem:[%s10 + $0x48] sm:$0xff]
      %v6456 = vld [vmem:[%s10 + $0x50] sm:$0xff]
      %v6457 = vld [vmem:[%s10 + $0x58] sm:$0xff]
      %v6458 = vld [vmem:[%s10 + $0x60] sm:$0xff]
      %v6459 = vld [vmem:[%s10 + $0x68] sm:$0xff]
      %v6460 = vld [vmem:[%s10 + $0x70] sm:$0xff]
      %v6461 = vld [vmem:[%s10 + $0x78] sm:$0xff]
      %v6462 = vld [vmem:[%s10 + $0x80] sm:$0xff]
      %v6463 = vld [vmem:[%s10 + $0x88] sm:$0xff]
      %v6464 = vld [vmem:[%s10 + $0x90] sm:$0xff]
      %v6465 = vld [vmem:[%s10 + $0x98] sm:$0xff]
      %v6466 = vld [vmem:[%s10 + $0xa0] sm:$0xff]
      %v6467 = vld [vmem:[%s10 + $0xa8] sm:$0xff]
      %v6468 = vld [vmem:[%s10 + $0xb0] sm:$0xff]
      %v6469 = vld [vmem:[%s10 + $0xb8] sm:$0xff]
      %v6470 = vld [vmem:[%s10 + $0xc0] sm:$0xff]
      %v6471 = vld [vmem:[%s10 + $0xc8] sm:$0xff]
      %v6472 = vld [vmem:[%s10 + $0xd0] sm:$0xff]
      %v6473 = vld [vmem:[%s10 + $0xd8] sm:$0xff]
      %v6474 = vld [vmem:[%s10 + $0xe0] sm:$0xff]
      %v6475 = vld [vmem:[%s10 + $0xe8] sm:$0xff]
      %v6476 = vld [vmem:[%s10 + $0xf0] sm:$0xff]
      %v6477 = vld [vmem:[%s10 + $0xf8] sm:$0xff]
      %v6478 = vld [vmem:[%s10 + $0x100] sm:$0xff]
      %v6479 = vld [vmem:[%s10 + $0x108] sm:$0xff]
      %v6480 = vld [vmem:[%s10 + $0x110] sm:$0xff]
      %v6481 = vld [vmem:[%s10 + $0x118] sm:$0xff]
      %v6482 = vld [vmem:[%s10 + $0x120] sm:$0xff]
      %v6483 = vld [vmem:[%s10 + $0x128] sm:$0xff]
      %v6484 = vld [vmem:[%s10 + $0x130] sm:$0xff]
      %v6485 = vld [vmem:[%s10 + $0x138] sm:$0xff]
      %v6486 = vld [vmem:[%s10 + $0x140] sm:$0xff]
      %v6487 = vld [vmem:[%s10 + $0x148] sm:$0xff]
      %v6488 = vld [vmem:[%s10 + $0x150] sm:$0xff]
      %v6489 = vld [vmem:[%s10 + $0x158] sm:$0xff]
      %v6490 = vld [vmem:[%s10 + $0x160] sm:$0xff]
      %v6491 = vld [vmem:[%s10 + $0x168] sm:$0xff]
      %v6492 = vld [vmem:[%s10 + $0x170] sm:$0xff]
      %v6493 = vld [vmem:[%s10 + $0x178] sm:$0xff]
      %v6494 = vld [vmem:[%s10 + $0x180] sm:$0xff]
      %v6495 = vld [vmem:[%s10 + $0x188] sm:$0xff]
      %v6496 = vld [vmem:[%s10 + $0x190] sm:$0xff]
      %v6497 = vld [vmem:[%s10 + $0x198] sm:$0xff]
      %v6498 = vld [vmem:[%s10 + $0x1a0] sm:$0xff]
      %v6499 = vld [vmem:[%s10 + $0x1a8] sm:$0xff]
      %v6500 = vld [vmem:[%s10 + $0x1b0] sm:$0xff]
      %v6501 = vld [vmem:[%s10 + $0x1b8] sm:$0xff]
      %v6502 = vld [vmem:[%s10 + $0x1c0] sm:$0xff]
      %v6503 = vld [vmem:[%s10 + $0x1c8] sm:$0xff]
      %v6504 = vld [vmem:[%s10 + $0x1d0] sm:$0xff]
      %v6505 = vld [vmem:[%s10 + $0x1d8] sm:$0xff]
      %v6506 = vld [vmem:[%s10 + $0x1e0] sm:$0xff]
      %v6507 = vld [vmem:[%s10 + $0x1e8] sm:$0x7f]
      %vm6508 = vcmask 908288
      %v6510 = vsel %vm6508, %v6425, 0
      %v6513 = vsel %vm6508, %v6429, 0
      %v6516 = vsel %vm6508, %v6433, 0
      %v6519 = vsel %vm6508, %v6437, 0
      %v6522 = vsel %vm6508, %v6441, 0
      %v6525 = vsel %vm6508, %v6445, 0
      %v6528 = vsel %vm4458, %v6507, 0
      %6530 = vmatprep.subr.mxu0 0.0
      %v6531 = vand.u32 %v6461, 4294901760
      %6532 = vmatpush1.msra.mxu0 %v6531
      %6533 = vmatprep.subr.mxu0 0.0
      %v6534 = vand.u32 %v6460, 4294901760
      %6535 = vmatpush1.msra.mxu0 %v6534
      %6536 = vmatprep.subr.mxu0 0.0
      %v6537 = vand.u32 %v6459, 4294901760
      %6538 = vmatpush1.msra.mxu0 %v6537
      %6539 = vmatprep.subr.mxu0 0.0
      %v6540 = vand.u32 %v6458, 4294901760
      %6541 = vmatpush1.msra.mxu0 %v6540
      %6542 = vmatprep.subr.mxu0 0.0
      %v6543 = vand.u32 %v6457, 4294901760
      %6544 = vmatpush1.msra.mxu0 %v6543
      %6545 = vmatprep.subr.mxu0 0.0
      %v6546 = vand.u32 %v6456, 4294901760
      %6547 = vmatpush1.msra.mxu0 %v6546
      %6548 = vmatprep.subr.mxu0 0.0
      %v6549 = vand.u32 %v6455, 4294901760
      %6550 = vmatpush1.msra.mxu0 %v6549
      %6551 = vmatprep.subr.mxu0 0.0
      %v6552 = vand.u32 %v6454, 4294901760
      %6553 = vmatpush1.msra.mxu0 %v6552
      %6554 = vmatprep.subr.mxu0 0.0
      %v6555 = vand.u32 %v6453, 4294901760
      %6556 = vmatpush1.msra.mxu0 %v6555
      %6557 = vmatprep.subr.mxu0 0.0
      %v6558 = vand.u32 %v6452, 4294901760
      %6559 = vmatpush1.msra.mxu0 %v6558
      %6560 = vmatprep.subr.mxu0 0.0
      %v6561 = vand.u32 %v6451, 4294901760
      %6562 = vmatpush1.msra.mxu0 %v6561
      %6563 = vmatprep.subr.mxu0 0.0
      %v6564 = vand.u32 %v6450, 4294901760
      %6565 = vmatpush1.msra.mxu0 %v6564
      %6566 = vmatprep.subr.mxu0 0.0
      %v6567 = vand.u32 %v6449, 4294901760
      %6568 = vmatpush1.msra.mxu0 %v6567
      %6569 = vmatprep.subr.mxu0 0.0
      %v6570 = vand.u32 %v6448, 4294901760
      %6571 = vmatpush1.msra.mxu0 %v6570
      %6572 = vmatprep.subr.mxu0 0.0
      %v6573 = vand.u32 %v6447, 4294901760
      %6574 = vmatpush1.msra.mxu0 %v6573
      %6575 = vmatprep.subr.mxu0 0.0
      %v6576 = vand.u32 %v6446, 4294901760
      %6577 = vmatpush1.msra.mxu0 %v6576
      %6578 = vmatprep.subr.mxu0 0.0
      %v6579 = vand.u32 %v6477, 4294901760
      %6580 = vmatpush2.msra.mxu0 %v6579
      %6581 = vmatprep.subr.mxu0 0.0
      %v6582 = vand.u32 %v6476, 4294901760
      %6583 = vmatpush2.msra.mxu0 %v6582
      %6584 = vmatprep.subr.mxu0 0.0
      %v6585 = vand.u32 %v6475, 4294901760
      %6586 = vmatpush2.msra.mxu0 %v6585
      %6587 = vmatprep.subr.mxu0 0.0
      %v6588 = vand.u32 %v6474, 4294901760
      %6589 = vmatpush2.msra.mxu0 %v6588
      %6590 = vmatprep.subr.mxu0 0.0
      %v6591 = vand.u32 %v6473, 4294901760
      %6592 = vmatpush2.msra.mxu0 %v6591
      %6593 = vmatprep.subr.mxu0 0.0
      %v6594 = vand.u32 %v6472, 4294901760
      %6595 = vmatpush2.msra.mxu0 %v6594
      %6596 = vmatprep.subr.mxu0 0.0
      %v6597 = vand.u32 %v6471, 4294901760
      %6598 = vmatpush2.msra.mxu0 %v6597
      %6599 = vmatprep.subr.mxu0 0.0
      %v6600 = vand.u32 %v6470, 4294901760
      %6601 = vmatpush2.msra.mxu0 %v6600
      %6602 = vmatprep.subr.mxu0 0.0
      %v6603 = vand.u32 %v6469, 4294901760
      %6604 = vmatpush2.msra.mxu0 %v6603
      %6605 = vmatprep.subr.mxu0 0.0
      %v6606 = vand.u32 %v6468, 4294901760
      %6607 = vmatpush2.msra.mxu0 %v6606
      %6608 = vmatprep.subr.mxu0 0.0
      %v6609 = vand.u32 %v6467, 4294901760
      %6610 = vmatpush2.msra.mxu0 %v6609
      %6611 = vmatprep.subr.mxu0 0.0
      %v6612 = vand.u32 %v6466, 4294901760
      %6613 = vmatpush2.msra.mxu0 %v6612
      %6614 = vmatprep.subr.mxu0 0.0
      %v6615 = vand.u32 %v6465, 4294901760
      %6616 = vmatpush2.msra.mxu0 %v6615
      %6617 = vmatprep.subr.mxu0 0.0
      %v6618 = vand.u32 %v6464, 4294901760
      %6619 = vmatpush2.msra.mxu0 %v6618
      %6620 = vmatprep.subr.mxu0 0.0
      %v6621 = vand.u32 %v6463, 4294901760
      %6622 = vmatpush2.msra.mxu0 %v6621
      %6623 = vmatprep.subr.mxu0 0.0
      %v6624 = vand.u32 %v6462, 4294901760
      %6625 = vmatpush2.msra.mxu0 %v6624
      %v6626 = vand.u32 %v6423, 4294901760
      %v6627 = vsub.f32 %v6423, %v6626
      %v6628 = vand.u32 %v6627, 4294901760
      %v6629 = vsub.f32 %v6627, %v6628
      %v6630 = vand.u32 %v6629, 4294901760
      %6631 = vmatprep.mubr.f32.mxu0 %v6630
      %v6632 = vand.u32 %v6422, 4294901760
      %v6633 = vsub.f32 %v6422, %v6632
      %v6634 = vand.u32 %v6633, 4294901760
      %v6635 = vsub.f32 %v6633, %v6634
      %v6636 = vand.u32 %v6635, 4294901760
      %6637 = vmatmul.mubr.f32.gmra.mxu0 %v6636
      %v6638 = vpop.f32.mrf.mxu0
      %v6639 = vadd.f32 0.0, %v6638
      %v6640 = vpop.f32.mrf.mxu0
      %v6641 = vand.u32 %v6427, 4294901760
      %v6642 = vsub.f32 %v6427, %v6641
      %v6643 = vand.u32 %v6642, 4294901760
      %v6644 = vsub.f32 %v6642, %v6643
      %v6645 = vand.u32 %v6644, 4294901760
      %6646 = vmatprep.mubr.f32.mxu0 %v6645
      %v6647 = vand.u32 %v6426, 4294901760
      %v6648 = vsub.f32 %v6426, %v6647
      %v6649 = vand.u32 %v6648, 4294901760
      %v6650 = vsub.f32 %v6648, %v6649
      %v6651 = vand.u32 %v6650, 4294901760
      %6652 = vmatmul.mubr.f32.gmra.mxu0 %v6651
      %v6653 = vpop.f32.mrf.mxu0
      %v6654 = vadd.f32 0.0, %v6653
      %v6655 = vpop.f32.mrf.mxu0
      %v6656 = vand.u32 %v6431, 4294901760
      %v6657 = vsub.f32 %v6431, %v6656
      %v6658 = vand.u32 %v6657, 4294901760
      %v6659 = vsub.f32 %v6657, %v6658
      %v6660 = vand.u32 %v6659, 4294901760
      %6661 = vmatprep.mubr.f32.mxu0 %v6660
      %v6662 = vand.u32 %v6430, 4294901760
      %v6663 = vsub.f32 %v6430, %v6662
      %v6664 = vand.u32 %v6663, 4294901760
      %v6665 = vsub.f32 %v6663, %v6664
      %v6666 = vand.u32 %v6665, 4294901760
      %6667 = vmatmul.mubr.f32.gmra.mxu0 %v6666
      %v6668 = vpop.f32.mrf.mxu0
      %v6669 = vadd.f32 0.0, %v6668
      %v6670 = vpop.f32.mrf.mxu0
      %v6671 = vand.u32 %v6435, 4294901760
      %v6672 = vsub.f32 %v6435, %v6671
      %v6673 = vand.u32 %v6672, 4294901760
      %v6674 = vsub.f32 %v6672, %v6673
      %v6675 = vand.u32 %v6674, 4294901760
      %6676 = vmatprep.mubr.f32.mxu0 %v6675
      %v6677 = vand.u32 %v6434, 4294901760
      %v6678 = vsub.f32 %v6434, %v6677
      %v6679 = vand.u32 %v6678, 4294901760
      %v6680 = vsub.f32 %v6678, %v6679
      %v6681 = vand.u32 %v6680, 4294901760
      %6682 = vmatmul.mubr.f32.gmra.mxu0 %v6681
      %v6683 = vpop.f32.mrf.mxu0
      %v6684 = vadd.f32 0.0, %v6683
      %v6685 = vpop.f32.mrf.mxu0
      %v6686 = vand.u32 %v6439, 4294901760
      %v6687 = vsub.f32 %v6439, %v6686
      %v6688 = vand.u32 %v6687, 4294901760
      %v6689 = vsub.f32 %v6687, %v6688
      %v6690 = vand.u32 %v6689, 4294901760
      %6691 = vmatprep.mubr.f32.mxu0 %v6690
      %v6692 = vand.u32 %v6438, 4294901760
      %v6693 = vsub.f32 %v6438, %v6692
      %v6694 = vand.u32 %v6693, 4294901760
      %v6695 = vsub.f32 %v6693, %v6694
      %v6696 = vand.u32 %v6695, 4294901760
      %6697 = vmatmul.mubr.f32.gmra.mxu0 %v6696
      %v6698 = vpop.f32.mrf.mxu0
      %v6699 = vadd.f32 0.0, %v6698
      %v6700 = vpop.f32.mrf.mxu0
      %v6701 = vand.u32 %v6443, 4294901760
      %v6702 = vsub.f32 %v6443, %v6701
      %v6703 = vand.u32 %v6702, 4294901760
      %v6704 = vsub.f32 %v6702, %v6703
      %v6705 = vand.u32 %v6704, 4294901760
      %6706 = vmatprep.mubr.f32.mxu0 %v6705
      %v6707 = vand.u32 %v6442, 4294901760
      %v6708 = vsub.f32 %v6442, %v6707
      %v6709 = vand.u32 %v6708, 4294901760
      %v6710 = vsub.f32 %v6708, %v6709
      %v6711 = vand.u32 %v6710, 4294901760
      %6712 = vmatmul.mubr.f32.gmra.mxu0 %v6711
      %v6713 = vpop.f32.mrf.mxu0
      %v6714 = vadd.f32 0.0, %v6713
      %v6715 = vpop.f32.mrf.mxu0
      %6716 = vdwg.mxu0
      %6717 = vmatprep.subr.mxu0 0.0
      %v6718 = vand.u32 %v6461, 4294901760
      %v6719 = vsub.f32 %v6461, %v6718
      %v6720 = vand.u32 %v6719, 4294901760
      %v6721 = vsub.f32 %v6719, %v6720
      %v6722 = vand.u32 %v6721, 4294901760
      %6723 = vmatpush1.msra.mxu0 %v6722
      %6724 = vmatprep.subr.mxu0 0.0
      %v6725 = vand.u32 %v6460, 4294901760
      %v6726 = vsub.f32 %v6460, %v6725
      %v6727 = vand.u32 %v6726, 4294901760
      %v6728 = vsub.f32 %v6726, %v6727
      %v6729 = vand.u32 %v6728, 4294901760
      %6730 = vmatpush1.msra.mxu0 %v6729
      %6731 = vmatprep.subr.mxu0 0.0
      %v6732 = vand.u32 %v6459, 4294901760
      %v6733 = vsub.f32 %v6459, %v6732
      %v6734 = vand.u32 %v6733, 4294901760
      %v6735 = vsub.f32 %v6733, %v6734
      %v6736 = vand.u32 %v6735, 4294901760
      %6737 = vmatpush1.msra.mxu0 %v6736
      %6738 = vmatprep.subr.mxu0 0.0
      %v6739 = vand.u32 %v6458, 4294901760
      %v6740 = vsub.f32 %v6458, %v6739
      %v6741 = vand.u32 %v6740, 4294901760
      %v6742 = vsub.f32 %v6740, %v6741
      %v6743 = vand.u32 %v6742, 4294901760
      %6744 = vmatpush1.msra.mxu0 %v6743
      %6745 = vmatprep.subr.mxu0 0.0
      %v6746 = vand.u32 %v6457, 4294901760
      %v6747 = vsub.f32 %v6457, %v6746
      %v6748 = vand.u32 %v6747, 4294901760
      %v6749 = vsub.f32 %v6747, %v6748
      %v6750 = vand.u32 %v6749, 4294901760
      %6751 = vmatpush1.msra.mxu0 %v6750
      %6752 = vmatprep.subr.mxu0 0.0
      %v6753 = vand.u32 %v6456, 4294901760
      %v6754 = vsub.f32 %v6456, %v6753
      %v6755 = vand.u32 %v6754, 4294901760
      %v6756 = vsub.f32 %v6754, %v6755
      %v6757 = vand.u32 %v6756, 4294901760
      %6758 = vmatpush1.msra.mxu0 %v6757
      %6759 = vmatprep.subr.mxu0 0.0
      %v6760 = vand.u32 %v6455, 4294901760
      %v6761 = vsub.f32 %v6455, %v6760
      %v6762 = vand.u32 %v6761, 4294901760
      %v6763 = vsub.f32 %v6761, %v6762
      %v6764 = vand.u32 %v6763, 4294901760
      %6765 = vmatpush1.msra.mxu0 %v6764
      %6766 = vmatprep.subr.mxu0 0.0
      %v6767 = vand.u32 %v6454, 4294901760
      %v6768 = vsub.f32 %v6454, %v6767
      %v6769 = vand.u32 %v6768, 4294901760
      %v6770 = vsub.f32 %v6768, %v6769
      %v6771 = vand.u32 %v6770, 4294901760
      %6772 = vmatpush1.msra.mxu0 %v6771
      %6773 = vmatprep.subr.mxu0 0.0
      %v6774 = vand.u32 %v6453, 4294901760
      %v6775 = vsub.f32 %v6453, %v6774
      %v6776 = vand.u32 %v6775, 4294901760
      %v6777 = vsub.f32 %v6775, %v6776
      %v6778 = vand.u32 %v6777, 4294901760
      %6779 = vmatpush1.msra.mxu0 %v6778
      %6780 = vmatprep.subr.mxu0 0.0
      %v6781 = vand.u32 %v6452, 4294901760
      %v6782 = vsub.f32 %v6452, %v6781
      %v6783 = vand.u32 %v6782, 4294901760
      %v6784 = vsub.f32 %v6782, %v6783
      %v6785 = vand.u32 %v6784, 4294901760
      %6786 = vmatpush1.msra.mxu0 %v6785
      %6787 = vmatprep.subr.mxu0 0.0
      %v6788 = vand.u32 %v6451, 4294901760
      %v6789 = vsub.f32 %v6451, %v6788
      %v6790 = vand.u32 %v6789, 4294901760
      %v6791 = vsub.f32 %v6789, %v6790
      %v6792 = vand.u32 %v6791, 4294901760
      %6793 = vmatpush1.msra.mxu0 %v6792
      %6794 = vmatprep.subr.mxu0 0.0
      %v6795 = vand.u32 %v6450, 4294901760
      %v6796 = vsub.f32 %v6450, %v6795
      %v6797 = vand.u32 %v6796, 4294901760
      %v6798 = vsub.f32 %v6796, %v6797
      %v6799 = vand.u32 %v6798, 4294901760
      %6800 = vmatpush1.msra.mxu0 %v6799
      %6801 = vmatprep.subr.mxu0 0.0
      %v6802 = vand.u32 %v6449, 4294901760
      %v6803 = vsub.f32 %v6449, %v6802
      %v6804 = vand.u32 %v6803, 4294901760
      %v6805 = vsub.f32 %v6803, %v6804
      %v6806 = vand.u32 %v6805, 4294901760
      %6807 = vmatpush1.msra.mxu0 %v6806
      %6808 = vmatprep.subr.mxu0 0.0
      %v6809 = vand.u32 %v6448, 4294901760
      %v6810 = vsub.f32 %v6448, %v6809
      %v6811 = vand.u32 %v6810, 4294901760
      %v6812 = vsub.f32 %v6810, %v6811
      %v6813 = vand.u32 %v6812, 4294901760
      %6814 = vmatpush1.msra.mxu0 %v6813
      %6815 = vmatprep.subr.mxu0 0.0
      %v6816 = vand.u32 %v6447, 4294901760
      %v6817 = vsub.f32 %v6447, %v6816
      %v6818 = vand.u32 %v6817, 4294901760
      %v6819 = vsub.f32 %v6817, %v6818
      %v6820 = vand.u32 %v6819, 4294901760
      %6821 = vmatpush1.msra.mxu0 %v6820
      %6822 = vmatprep.subr.mxu0 0.0
      %v6823 = vand.u32 %v6446, 4294901760
      %v6824 = vsub.f32 %v6446, %v6823
      %v6825 = vand.u32 %v6824, 4294901760
      %v6826 = vsub.f32 %v6824, %v6825
      %v6827 = vand.u32 %v6826, 4294901760
      %6828 = vmatpush1.msra.mxu0 %v6827
      %6829 = vmatprep.subr.mxu0 0.0
      %v6830 = vand.u32 %v6477, 4294901760
      %v6831 = vsub.f32 %v6477, %v6830
      %v6832 = vand.u32 %v6831, 4294901760
      %v6833 = vsub.f32 %v6831, %v6832
      %v6834 = vand.u32 %v6833, 4294901760
      %6835 = vmatpush2.msra.mxu0 %v6834
      %6836 = vmatprep.subr.mxu0 0.0
      %v6837 = vand.u32 %v6476, 4294901760
      %v6838 = vsub.f32 %v6476, %v6837
      %v6839 = vand.u32 %v6838, 4294901760
      %v6840 = vsub.f32 %v6838, %v6839
      %v6841 = vand.u32 %v6840, 4294901760
      %6842 = vmatpush2.msra.mxu0 %v6841
      %6843 = vmatprep.subr.mxu0 0.0
      %v6844 = vand.u32 %v6475, 4294901760
      %v6845 = vsub.f32 %v6475, %v6844
      %v6846 = vand.u32 %v6845, 4294901760
      %v6847 = vsub.f32 %v6845, %v6846
      %v6848 = vand.u32 %v6847, 4294901760
      %6849 = vmatpush2.msra.mxu0 %v6848
      %6850 = vmatprep.subr.mxu0 0.0
      %v6851 = vand.u32 %v6474, 4294901760
      %v6852 = vsub.f32 %v6474, %v6851
      %v6853 = vand.u32 %v6852, 4294901760
      %v6854 = vsub.f32 %v6852, %v6853
      %v6855 = vand.u32 %v6854, 4294901760
      %6856 = vmatpush2.msra.mxu0 %v6855
      %6857 = vmatprep.subr.mxu0 0.0
      %v6858 = vand.u32 %v6473, 4294901760
      %v6859 = vsub.f32 %v6473, %v6858
      %v6860 = vand.u32 %v6859, 4294901760
      %v6861 = vsub.f32 %v6859, %v6860
      %v6862 = vand.u32 %v6861, 4294901760
      %6863 = vmatpush2.msra.mxu0 %v6862
      %6864 = vmatprep.subr.mxu0 0.0
      %v6865 = vand.u32 %v6472, 4294901760
      %v6866 = vsub.f32 %v6472, %v6865
      %v6867 = vand.u32 %v6866, 4294901760
      %v6868 = vsub.f32 %v6866, %v6867
      %v6869 = vand.u32 %v6868, 4294901760
      %6870 = vmatpush2.msra.mxu0 %v6869
      %6871 = vmatprep.subr.mxu0 0.0
      %v6872 = vand.u32 %v6471, 4294901760
      %v6873 = vsub.f32 %v6471, %v6872
      %v6874 = vand.u32 %v6873, 4294901760
      %v6875 = vsub.f32 %v6873, %v6874
      %v6876 = vand.u32 %v6875, 4294901760
      %6877 = vmatpush2.msra.mxu0 %v6876
      %6878 = vmatprep.subr.mxu0 0.0
      %v6879 = vand.u32 %v6470, 4294901760
      %v6880 = vsub.f32 %v6470, %v6879
      %v6881 = vand.u32 %v6880, 4294901760
      %v6882 = vsub.f32 %v6880, %v6881
      %v6883 = vand.u32 %v6882, 4294901760
      %6884 = vmatpush2.msra.mxu0 %v6883
      %6885 = vmatprep.subr.mxu0 0.0
      %v6886 = vand.u32 %v6469, 4294901760
      %v6887 = vsub.f32 %v6469, %v6886
      %v6888 = vand.u32 %v6887, 4294901760
      %v6889 = vsub.f32 %v6887, %v6888
      %v6890 = vand.u32 %v6889, 4294901760
      %6891 = vmatpush2.msra.mxu0 %v6890
      %6892 = vmatprep.subr.mxu0 0.0
      %v6893 = vand.u32 %v6468, 4294901760
      %v6894 = vsub.f32 %v6468, %v6893
      %v6895 = vand.u32 %v6894, 4294901760
      %v6896 = vsub.f32 %v6894, %v6895
      %v6897 = vand.u32 %v6896, 4294901760
      %6898 = vmatpush2.msra.mxu0 %v6897
      %6899 = vmatprep.subr.mxu0 0.0
      %v6900 = vand.u32 %v6467, 4294901760
      %v6901 = vsub.f32 %v6467, %v6900
      %v6902 = vand.u32 %v6901, 4294901760
      %v6903 = vsub.f32 %v6901, %v6902
      %v6904 = vand.u32 %v6903, 4294901760
      %6905 = vmatpush2.msra.mxu0 %v6904
      %6906 = vmatprep.subr.mxu0 0.0
      %v6907 = vand.u32 %v6466, 4294901760
      %v6908 = vsub.f32 %v6466, %v6907
      %v6909 = vand.u32 %v6908, 4294901760
      %v6910 = vsub.f32 %v6908, %v6909
      %v6911 = vand.u32 %v6910, 4294901760
      %6912 = vmatpush2.msra.mxu0 %v6911
      %6913 = vmatprep.subr.mxu0 0.0
      %v6914 = vand.u32 %v6465, 4294901760
      %v6915 = vsub.f32 %v6465, %v6914
      %v6916 = vand.u32 %v6915, 4294901760
      %v6917 = vsub.f32 %v6915, %v6916
      %v6918 = vand.u32 %v6917, 4294901760
      %6919 = vmatpush2.msra.mxu0 %v6918
      %6920 = vmatprep.subr.mxu0 0.0
      %v6921 = vand.u32 %v6464, 4294901760
      %v6922 = vsub.f32 %v6464, %v6921
      %v6923 = vand.u32 %v6922, 4294901760
      %v6924 = vsub.f32 %v6922, %v6923
      %v6925 = vand.u32 %v6924, 4294901760
      %6926 = vmatpush2.msra.mxu0 %v6925
      %6927 = vmatprep.subr.mxu0 0.0
      %v6928 = vand.u32 %v6463, 4294901760
      %v6929 = vsub.f32 %v6463, %v6928
      %v6930 = vand.u32 %v6929, 4294901760
      %v6931 = vsub.f32 %v6929, %v6930
      %v6932 = vand.u32 %v6931, 4294901760
      %6933 = vmatpush2.msra.mxu0 %v6932
      %6934 = vmatprep.subr.mxu0 0.0
      %v6935 = vand.u32 %v6462, 4294901760
      %v6936 = vsub.f32 %v6462, %v6935
      %v6937 = vand.u32 %v6936, 4294901760
      %v6938 = vsub.f32 %v6936, %v6937
      %v6939 = vand.u32 %v6938, 4294901760
      %6940 = vmatpush2.msra.mxu0 %v6939
      %v6941 = vand.u32 %v6423, 4294901760
      %6942 = vmatprep.mubr.f32.mxu0 %v6941
      %v6943 = vand.u32 %v6422, 4294901760
      %6944 = vmatmul.mubr.f32.gmra.mxu0 %v6943
      %v6945 = vpop.f32.mrf.mxu0
      %v6946 = vadd.f32 %v6639, %v6945
      %v6947 = vpop.f32.mrf.mxu0
      %v6948 = vand.u32 %v6427, 4294901760
      %6949 = vmatprep.mubr.f32.mxu0 %v6948
      %v6950 = vand.u32 %v6426, 4294901760
      %6951 = vmatmul.mubr.f32.gmra.mxu0 %v6950
      %v6952 = vpop.f32.mrf.mxu0
      %v6953 = vadd.f32 %v6654, %v6952
      %v6954 = vpop.f32.mrf.mxu0
      %v6955 = vand.u32 %v6431, 4294901760
      %6956 = vmatprep.mubr.f32.mxu0 %v6955
      %v6957 = vand.u32 %v6430, 4294901760
      %6958 = vmatmul.mubr.f32.gmra.mxu0 %v6957
      %v6959 = vpop.f32.mrf.mxu0
      %v6960 = vadd.f32 %v6669, %v6959
      %v6961 = vpop.f32.mrf.mxu0
      %v6962 = vand.u32 %v6435, 4294901760
      %6963 = vmatprep.mubr.f32.mxu0 %v6962
      %v6964 = vand.u32 %v6434, 4294901760
      %6965 = vmatmul.mubr.f32.gmra.mxu0 %v6964
      %v6966 = vpop.f32.mrf.mxu0
      %v6967 = vadd.f32 %v6684, %v6966
      %v6968 = vpop.f32.mrf.mxu0
      %v6969 = vand.u32 %v6439, 4294901760
      %6970 = vmatprep.mubr.f32.mxu0 %v6969
      %v6971 = vand.u32 %v6438, 4294901760
      %6972 = vmatmul.mubr.f32.gmra.mxu0 %v6971
      %v6973 = vpop.f32.mrf.mxu0
      %v6974 = vadd.f32 %v6699, %v6973
      %v6975 = vpop.f32.mrf.mxu0
      %v6976 = vand.u32 %v6443, 4294901760
      %6977 = vmatprep.mubr.f32.mxu0 %v6976
      %v6978 = vand.u32 %v6442, 4294901760
      %6979 = vmatmul.mubr.f32.gmra.mxu0 %v6978
      %v6980 = vpop.f32.mrf.mxu0
      %v6981 = vadd.f32 %v6714, %v6980
      %v6982 = vpop.f32.mrf.mxu0
      %6983 = vdwg.mxu0
      %6984 = vmatprep.subr.mxu0 0.0
      %v6985 = vand.u32 %v6461, 4294901760
      %v6986 = vsub.f32 %v6461, %v6985
      %6987 = vmatpush1.msra.mxu0 %v6986
      %6988 = vmatprep.subr.mxu0 0.0
      %v6989 = vand.u32 %v6460, 4294901760
      %v6990 = vsub.f32 %v6460, %v6989
      %6991 = vmatpush1.msra.mxu0 %v6990
      %6992 = vmatprep.subr.mxu0 0.0
      %v6993 = vand.u32 %v6459, 4294901760
      %v6994 = vsub.f32 %v6459, %v6993
      %6995 = vmatpush1.msra.mxu0 %v6994
      %6996 = vmatprep.subr.mxu0 0.0
      %v6997 = vand.u32 %v6458, 4294901760
      %v6998 = vsub.f32 %v6458, %v6997
      %6999 = vmatpush1.msra.mxu0 %v6998
      %7000 = vmatprep.subr.mxu0 0.0
      %v7001 = vand.u32 %v6457, 4294901760
      %v7002 = vsub.f32 %v6457, %v7001
      %7003 = vmatpush1.msra.mxu0 %v7002
      %7004 = vmatprep.subr.mxu0 0.0
      %v7005 = vand.u32 %v6456, 4294901760
      %v7006 = vsub.f32 %v6456, %v7005
      %7007 = vmatpush1.msra.mxu0 %v7006
      %7008 = vmatprep.subr.mxu0 0.0
      %v7009 = vand.u32 %v6455, 4294901760
      %v7010 = vsub.f32 %v6455, %v7009
      %7011 = vmatpush1.msra.mxu0 %v7010
      %7012 = vmatprep.subr.mxu0 0.0
      %v7013 = vand.u32 %v6454, 4294901760
      %v7014 = vsub.f32 %v6454, %v7013
      %7015 = vmatpush1.msra.mxu0 %v7014
      %7016 = vmatprep.subr.mxu0 0.0
      %v7017 = vand.u32 %v6453, 4294901760
      %v7018 = vsub.f32 %v6453, %v7017
      %7019 = vmatpush1.msra.mxu0 %v7018
      %7020 = vmatprep.subr.mxu0 0.0
      %v7021 = vand.u32 %v6452, 4294901760
      %v7022 = vsub.f32 %v6452, %v7021
      %7023 = vmatpush1.msra.mxu0 %v7022
      %7024 = vmatprep.subr.mxu0 0.0
      %v7025 = vand.u32 %v6451, 4294901760
      %v7026 = vsub.f32 %v6451, %v7025
      %7027 = vmatpush1.msra.mxu0 %v7026
      %7028 = vmatprep.subr.mxu0 0.0
      %v7029 = vand.u32 %v6450, 4294901760
      %v7030 = vsub.f32 %v6450, %v7029
      %7031 = vmatpush1.msra.mxu0 %v7030
      %7032 = vmatprep.subr.mxu0 0.0
      %v7033 = vand.u32 %v6449, 4294901760
      %v7034 = vsub.f32 %v6449, %v7033
      %7035 = vmatpush1.msra.mxu0 %v7034
      %7036 = vmatprep.subr.mxu0 0.0
      %v7037 = vand.u32 %v6448, 4294901760
      %v7038 = vsub.f32 %v6448, %v7037
      %7039 = vmatpush1.msra.mxu0 %v7038
      %7040 = vmatprep.subr.mxu0 0.0
      %v7041 = vand.u32 %v6447, 4294901760
      %v7042 = vsub.f32 %v6447, %v7041
      %7043 = vmatpush1.msra.mxu0 %v7042
      %7044 = vmatprep.subr.mxu0 0.0
      %v7045 = vand.u32 %v6446, 4294901760
      %v7046 = vsub.f32 %v6446, %v7045
      %7047 = vmatpush1.msra.mxu0 %v7046
      %7048 = vmatprep.subr.mxu0 0.0
      %v7049 = vand.u32 %v6477, 4294901760
      %v7050 = vsub.f32 %v6477, %v7049
      %7051 = vmatpush2.msra.mxu0 %v7050
      %7052 = vmatprep.subr.mxu0 0.0
      %v7053 = vand.u32 %v6476, 4294901760
      %v7054 = vsub.f32 %v6476, %v7053
      %7055 = vmatpush2.msra.mxu0 %v7054
      %7056 = vmatprep.subr.mxu0 0.0
      %v7057 = vand.u32 %v6475, 4294901760
      %v7058 = vsub.f32 %v6475, %v7057
      %7059 = vmatpush2.msra.mxu0 %v7058
      %7060 = vmatprep.subr.mxu0 0.0
      %v7061 = vand.u32 %v6474, 4294901760
      %v7062 = vsub.f32 %v6474, %v7061
      %7063 = vmatpush2.msra.mxu0 %v7062
      %7064 = vmatprep.subr.mxu0 0.0
      %v7065 = vand.u32 %v6473, 4294901760
      %v7066 = vsub.f32 %v6473, %v7065
      %7067 = vmatpush2.msra.mxu0 %v7066
      %7068 = vmatprep.subr.mxu0 0.0
      %v7069 = vand.u32 %v6472, 4294901760
      %v7070 = vsub.f32 %v6472, %v7069
      %7071 = vmatpush2.msra.mxu0 %v7070
      %7072 = vmatprep.subr.mxu0 0.0
      %v7073 = vand.u32 %v6471, 4294901760
      %v7074 = vsub.f32 %v6471, %v7073
      %7075 = vmatpush2.msra.mxu0 %v7074
      %7076 = vmatprep.subr.mxu0 0.0
      %v7077 = vand.u32 %v6470, 4294901760
      %v7078 = vsub.f32 %v6470, %v7077
      %7079 = vmatpush2.msra.mxu0 %v7078
      %7080 = vmatprep.subr.mxu0 0.0
      %v7081 = vand.u32 %v6469, 4294901760
      %v7082 = vsub.f32 %v6469, %v7081
      %7083 = vmatpush2.msra.mxu0 %v7082
      %7084 = vmatprep.subr.mxu0 0.0
      %v7085 = vand.u32 %v6468, 4294901760
      %v7086 = vsub.f32 %v6468, %v7085
      %7087 = vmatpush2.msra.mxu0 %v7086
      %7088 = vmatprep.subr.mxu0 0.0
      %v7089 = vand.u32 %v6467, 4294901760
      %v7090 = vsub.f32 %v6467, %v7089
      %7091 = vmatpush2.msra.mxu0 %v7090
      %7092 = vmatprep.subr.mxu0 0.0
      %v7093 = vand.u32 %v6466, 4294901760
      %v7094 = vsub.f32 %v6466, %v7093
      %7095 = vmatpush2.msra.mxu0 %v7094
      %7096 = vmatprep.subr.mxu0 0.0
      %v7097 = vand.u32 %v6465, 4294901760
      %v7098 = vsub.f32 %v6465, %v7097
      %7099 = vmatpush2.msra.mxu0 %v7098
      %7100 = vmatprep.subr.mxu0 0.0
      %v7101 = vand.u32 %v6464, 4294901760
      %v7102 = vsub.f32 %v6464, %v7101
      %7103 = vmatpush2.msra.mxu0 %v7102
      %7104 = vmatprep.subr.mxu0 0.0
      %v7105 = vand.u32 %v6463, 4294901760
      %v7106 = vsub.f32 %v6463, %v7105
      %7107 = vmatpush2.msra.mxu0 %v7106
      %7108 = vmatprep.subr.mxu0 0.0
      %v7109 = vand.u32 %v6462, 4294901760
      %v7110 = vsub.f32 %v6462, %v7109
      %7111 = vmatpush2.msra.mxu0 %v7110
      %v7112 = vand.u32 %v6423, 4294901760
      %v7113 = vsub.f32 %v6423, %v7112
      %7114 = vmatprep.mubr.f32.mxu0 %v7113
      %v7115 = vand.u32 %v6422, 4294901760
      %v7116 = vsub.f32 %v6422, %v7115
      %7117 = vmatmul.mubr.f32.gmra.mxu0 %v7116
      %v7118 = vpop.f32.mrf.mxu0
      %v7119 = vadd.f32 %v6946, %v7118
      %v7120 = vpop.f32.mrf.mxu0
      %v7121 = vand.u32 %v6427, 4294901760
      %v7122 = vsub.f32 %v6427, %v7121
      %7123 = vmatprep.mubr.f32.mxu0 %v7122
      %v7124 = vand.u32 %v6426, 4294901760
      %v7125 = vsub.f32 %v6426, %v7124
      %7126 = vmatmul.mubr.f32.gmra.mxu0 %v7125
      %v7127 = vpop.f32.mrf.mxu0
      %v7128 = vadd.f32 %v6953, %v7127
      %v7129 = vpop.f32.mrf.mxu0
      %v7130 = vand.u32 %v6431, 4294901760
      %v7131 = vsub.f32 %v6431, %v7130
      %7132 = vmatprep.mubr.f32.mxu0 %v7131
      %v7133 = vand.u32 %v6430, 4294901760
      %v7134 = vsub.f32 %v6430, %v7133
      %7135 = vmatmul.mubr.f32.gmra.mxu0 %v7134
      %v7136 = vpop.f32.mrf.mxu0
      %v7137 = vadd.f32 %v6960, %v7136
      %v7138 = vpop.f32.mrf.mxu0
      %v7139 = vand.u32 %v6435, 4294901760
      %v7140 = vsub.f32 %v6435, %v7139
      %7141 = vmatprep.mubr.f32.mxu0 %v7140
      %v7142 = vand.u32 %v6434, 4294901760
      %v7143 = vsub.f32 %v6434, %v7142
      %7144 = vmatmul.mubr.f32.gmra.mxu0 %v7143
      %v7145 = vpop.f32.mrf.mxu0
      %v7146 = vadd.f32 %v6967, %v7145
      %v7147 = vpop.f32.mrf.mxu0
      %v7148 = vand.u32 %v6439, 4294901760
      %v7149 = vsub.f32 %v6439, %v7148
      %7150 = vmatprep.mubr.f32.mxu0 %v7149
      %v7151 = vand.u32 %v6438, 4294901760
      %v7152 = vsub.f32 %v6438, %v7151
      %7153 = vmatmul.mubr.f32.gmra.mxu0 %v7152
      %v7154 = vpop.f32.mrf.mxu0
      %v7155 = vadd.f32 %v6974, %v7154
      %v7156 = vpop.f32.mrf.mxu0
      %v7157 = vand.u32 %v6443, 4294901760
      %v7158 = vsub.f32 %v6443, %v7157
      %7159 = vmatprep.mubr.f32.mxu0 %v7158
      %v7160 = vand.u32 %v6442, 4294901760
      %v7161 = vsub.f32 %v6442, %v7160
      %7162 = vmatmul.mubr.f32.gmra.mxu0 %v7161
      %v7163 = vpop.f32.mrf.mxu0
      %v7164 = vadd.f32 %v6981, %v7163
      %v7165 = vpop.f32.mrf.mxu0
      %7166 = vdwg.mxu0
      %7167 = vmatprep.subr.mxu0 0.0
      %v7168 = vand.u32 %v6461, 4294901760
      %7169 = vmatpush1.msra.mxu0 %v7168
      %7170 = vmatprep.subr.mxu0 0.0
      %v7171 = vand.u32 %v6460, 4294901760
      %7172 = vmatpush1.msra.mxu0 %v7171
      %7173 = vmatprep.subr.mxu0 0.0
      %v7174 = vand.u32 %v6459, 4294901760
      %7175 = vmatpush1.msra.mxu0 %v7174
      %7176 = vmatprep.subr.mxu0 0.0
      %v7177 = vand.u32 %v6458, 4294901760
      %7178 = vmatpush1.msra.mxu0 %v7177
      %7179 = vmatprep.subr.mxu0 0.0
      %v7180 = vand.u32 %v6457, 4294901760
      %7181 = vmatpush1.msra.mxu0 %v7180
      %7182 = vmatprep.subr.mxu0 0.0
      %v7183 = vand.u32 %v6456, 4294901760
      %7184 = vmatpush1.msra.mxu0 %v7183
      %7185 = vmatprep.subr.mxu0 0.0
      %v7186 = vand.u32 %v6455, 4294901760
      %7187 = vmatpush1.msra.mxu0 %v7186
      %7188 = vmatprep.subr.mxu0 0.0
      %v7189 = vand.u32 %v6454, 4294901760
      %7190 = vmatpush1.msra.mxu0 %v7189
      %7191 = vmatprep.subr.mxu0 0.0
      %v7192 = vand.u32 %v6453, 4294901760
      %7193 = vmatpush1.msra.mxu0 %v7192
      %7194 = vmatprep.subr.mxu0 0.0
      %v7195 = vand.u32 %v6452, 4294901760
      %7196 = vmatpush1.msra.mxu0 %v7195
      %7197 = vmatprep.subr.mxu0 0.0
      %v7198 = vand.u32 %v6451, 4294901760
      %7199 = vmatpush1.msra.mxu0 %v7198
      %7200 = vmatprep.subr.mxu0 0.0
      %v7201 = vand.u32 %v6450, 4294901760
      %7202 = vmatpush1.msra.mxu0 %v7201
      %7203 = vmatprep.subr.mxu0 0.0
      %v7204 = vand.u32 %v6449, 4294901760
      %7205 = vmatpush1.msra.mxu0 %v7204
      %7206 = vmatprep.subr.mxu0 0.0
      %v7207 = vand.u32 %v6448, 4294901760
      %7208 = vmatpush1.msra.mxu0 %v7207
      %7209 = vmatprep.subr.mxu0 0.0
      %v7210 = vand.u32 %v6447, 4294901760
      %7211 = vmatpush1.msra.mxu0 %v7210
      %7212 = vmatprep.subr.mxu0 0.0
      %v7213 = vand.u32 %v6446, 4294901760
      %7214 = vmatpush1.msra.mxu0 %v7213
      %7215 = vmatprep.subr.mxu0 0.0
      %v7216 = vand.u32 %v6477, 4294901760
      %7217 = vmatpush2.msra.mxu0 %v7216
      %7218 = vmatprep.subr.mxu0 0.0
      %v7219 = vand.u32 %v6476, 4294901760
      %7220 = vmatpush2.msra.mxu0 %v7219
      %7221 = vmatprep.subr.mxu0 0.0
      %v7222 = vand.u32 %v6475, 4294901760
      %7223 = vmatpush2.msra.mxu0 %v7222
      %7224 = vmatprep.subr.mxu0 0.0
      %v7225 = vand.u32 %v6474, 4294901760
      %7226 = vmatpush2.msra.mxu0 %v7225
      %7227 = vmatprep.subr.mxu0 0.0
      %v7228 = vand.u32 %v6473, 4294901760
      %7229 = vmatpush2.msra.mxu0 %v7228
      %7230 = vmatprep.subr.mxu0 0.0
      %v7231 = vand.u32 %v6472, 4294901760
      %7232 = vmatpush2.msra.mxu0 %v7231
      %7233 = vmatprep.subr.mxu0 0.0
      %v7234 = vand.u32 %v6471, 4294901760
      %7235 = vmatpush2.msra.mxu0 %v7234
      %7236 = vmatprep.subr.mxu0 0.0
      %v7237 = vand.u32 %v6470, 4294901760
      %7238 = vmatpush2.msra.mxu0 %v7237
      %7239 = vmatprep.subr.mxu0 0.0
      %v7240 = vand.u32 %v6469, 4294901760
      %7241 = vmatpush2.msra.mxu0 %v7240
      %7242 = vmatprep.subr.mxu0 0.0
      %v7243 = vand.u32 %v6468, 4294901760
      %7244 = vmatpush2.msra.mxu0 %v7243
      %7245 = vmatprep.subr.mxu0 0.0
      %v7246 = vand.u32 %v6467, 4294901760
      %7247 = vmatpush2.msra.mxu0 %v7246
      %7248 = vmatprep.subr.mxu0 0.0
      %v7249 = vand.u32 %v6466, 4294901760
      %7250 = vmatpush2.msra.mxu0 %v7249
      %7251 = vmatprep.subr.mxu0 0.0
      %v7252 = vand.u32 %v6465, 4294901760
      %7253 = vmatpush2.msra.mxu0 %v7252
      %7254 = vmatprep.subr.mxu0 0.0
      %v7255 = vand.u32 %v6464, 4294901760
      %7256 = vmatpush2.msra.mxu0 %v7255
      %7257 = vmatprep.subr.mxu0 0.0
      %v7258 = vand.u32 %v6463, 4294901760
      %7259 = vmatpush2.msra.mxu0 %v7258
      %7260 = vmatprep.subr.mxu0 0.0
      %v7261 = vand.u32 %v6462, 4294901760
      %7262 = vmatpush2.msra.mxu0 %v7261
      %v7263 = vand.u32 %v6423, 4294901760
      %v7264 = vsub.f32 %v6423, %v7263
      %v7265 = vand.u32 %v7264, 4294901760
      %7266 = vmatprep.mubr.f32.mxu0 %v7265
      %v7267 = vand.u32 %v6422, 4294901760
      %v7268 = vsub.f32 %v6422, %v7267
      %v7269 = vand.u32 %v7268, 4294901760
      %7270 = vmatmul.mubr.f32.gmra.mxu0 %v7269
      %v7271 = vpop.f32.mrf.mxu0
      %v7272 = vadd.f32 %v7119, %v7271
      %v7273 = vpop.f32.mrf.mxu0
      %v7274 = vand.u32 %v6427, 4294901760
      %v7275 = vsub.f32 %v6427, %v7274
      %v7276 = vand.u32 %v7275, 4294901760
      %7277 = vmatprep.mubr.f32.mxu0 %v7276
      %v7278 = vand.u32 %v6426, 4294901760
      %v7279 = vsub.f32 %v6426, %v7278
      %v7280 = vand.u32 %v7279, 4294901760
      %7281 = vmatmul.mubr.f32.gmra.mxu0 %v7280
      %v7282 = vpop.f32.mrf.mxu0
      %v7283 = vadd.f32 %v7128, %v7282
      %v7284 = vpop.f32.mrf.mxu0
      %v7285 = vand.u32 %v6431, 4294901760
      %v7286 = vsub.f32 %v6431, %v7285
      %v7287 = vand.u32 %v7286, 4294901760
      %7288 = vmatprep.mubr.f32.mxu0 %v7287
      %v7289 = vand.u32 %v6430, 4294901760
      %v7290 = vsub.f32 %v6430, %v7289
      %v7291 = vand.u32 %v7290, 4294901760
      %7292 = vmatmul.mubr.f32.gmra.mxu0 %v7291
      %v7293 = vpop.f32.mrf.mxu0
      %v7294 = vadd.f32 %v7137, %v7293
      %v7295 = vpop.f32.mrf.mxu0
      %v7296 = vand.u32 %v6435, 4294901760
      %v7297 = vsub.f32 %v6435, %v7296
      %v7298 = vand.u32 %v7297, 4294901760
      %7299 = vmatprep.mubr.f32.mxu0 %v7298
      %v7300 = vand.u32 %v6434, 4294901760
      %v7301 = vsub.f32 %v6434, %v7300
      %v7302 = vand.u32 %v7301, 4294901760
      %7303 = vmatmul.mubr.f32.gmra.mxu0 %v7302
      %v7304 = vpop.f32.mrf.mxu0
      %v7305 = vadd.f32 %v7146, %v7304
      %v7306 = vpop.f32.mrf.mxu0
      %v7307 = vand.u32 %v6439, 4294901760
      %v7308 = vsub.f32 %v6439, %v7307
      %v7309 = vand.u32 %v7308, 4294901760
      %7310 = vmatprep.mubr.f32.mxu0 %v7309
      %v7311 = vand.u32 %v6438, 4294901760
      %v7312 = vsub.f32 %v6438, %v7311
      %v7313 = vand.u32 %v7312, 4294901760
      %7314 = vmatmul.mubr.f32.gmra.mxu0 %v7313
      %v7315 = vpop.f32.mrf.mxu0
      %v7316 = vadd.f32 %v7155, %v7315
      %v7317 = vpop.f32.mrf.mxu0
      %v7318 = vand.u32 %v6443, 4294901760
      %v7319 = vsub.f32 %v6443, %v7318
      %v7320 = vand.u32 %v7319, 4294901760
      %7321 = vmatprep.mubr.f32.mxu0 %v7320
      %v7322 = vand.u32 %v6442, 4294901760
      %v7323 = vsub.f32 %v6442, %v7322
      %v7324 = vand.u32 %v7323, 4294901760
      %7325 = vmatmul.mubr.f32.gmra.mxu0 %v7324
      %v7326 = vpop.f32.mrf.mxu0
      %v7327 = vadd.f32 %v7164, %v7326
      %v7328 = vpop.f32.mrf.mxu0
      %7329 = vdwg.mxu0
      %7330 = vmatprep.subr.mxu0 0.0
      %v7331 = vand.u32 %v6461, 4294901760
      %v7332 = vsub.f32 %v6461, %v7331
      %v7333 = vand.u32 %v7332, 4294901760
      %7334 = vmatpush1.msra.mxu0 %v7333
      %7335 = vmatprep.subr.mxu0 0.0
      %v7336 = vand.u32 %v6460, 4294901760
      %v7337 = vsub.f32 %v6460, %v7336
      %v7338 = vand.u32 %v7337, 4294901760
      %7339 = vmatpush1.msra.mxu0 %v7338
      %7340 = vmatprep.subr.mxu0 0.0
      %v7341 = vand.u32 %v6459, 4294901760
      %v7342 = vsub.f32 %v6459, %v7341
      %v7343 = vand.u32 %v7342, 4294901760
      %7344 = vmatpush1.msra.mxu0 %v7343
      %7345 = vmatprep.subr.mxu0 0.0
      %v7346 = vand.u32 %v6458, 4294901760
      %v7347 = vsub.f32 %v6458, %v7346
      %v7348 = vand.u32 %v7347, 4294901760
      %7349 = vmatpush1.msra.mxu0 %v7348
      %7350 = vmatprep.subr.mxu0 0.0
      %v7351 = vand.u32 %v6457, 4294901760
      %v7352 = vsub.f32 %v6457, %v7351
      %v7353 = vand.u32 %v7352, 4294901760
      %7354 = vmatpush1.msra.mxu0 %v7353
      %7355 = vmatprep.subr.mxu0 0.0
      %v7356 = vand.u32 %v6456, 4294901760
      %v7357 = vsub.f32 %v6456, %v7356
      %v7358 = vand.u32 %v7357, 4294901760
      %7359 = vmatpush1.msra.mxu0 %v7358
      %7360 = vmatprep.subr.mxu0 0.0
      %v7361 = vand.u32 %v6455, 4294901760
      %v7362 = vsub.f32 %v6455, %v7361
      %v7363 = vand.u32 %v7362, 4294901760
      %7364 = vmatpush1.msra.mxu0 %v7363
      %7365 = vmatprep.subr.mxu0 0.0
      %v7366 = vand.u32 %v6454, 4294901760
      %v7367 = vsub.f32 %v6454, %v7366
      %v7368 = vand.u32 %v7367, 4294901760
      %7369 = vmatpush1.msra.mxu0 %v7368
      %7370 = vmatprep.subr.mxu0 0.0
      %v7371 = vand.u32 %v6453, 4294901760
      %v7372 = vsub.f32 %v6453, %v7371
      %v7373 = vand.u32 %v7372, 4294901760
      %7374 = vmatpush1.msra.mxu0 %v7373
      %7375 = vmatprep.subr.mxu0 0.0
      %v7376 = vand.u32 %v6452, 4294901760
      %v7377 = vsub.f32 %v6452, %v7376
      %v7378 = vand.u32 %v7377, 4294901760
      %7379 = vmatpush1.msra.mxu0 %v7378
      %7380 = vmatprep.subr.mxu0 0.0
      %v7381 = vand.u32 %v6451, 4294901760
      %v7382 = vsub.f32 %v6451, %v7381
      %v7383 = vand.u32 %v7382, 4294901760
      %7384 = vmatpush1.msra.mxu0 %v7383
      %7385 = vmatprep.subr.mxu0 0.0
      %v7386 = vand.u32 %v6450, 4294901760
      %v7387 = vsub.f32 %v6450, %v7386
      %v7388 = vand.u32 %v7387, 4294901760
      %7389 = vmatpush1.msra.mxu0 %v7388
      %7390 = vmatprep.subr.mxu0 0.0
      %v7391 = vand.u32 %v6449, 4294901760
      %v7392 = vsub.f32 %v6449, %v7391
      %v7393 = vand.u32 %v7392, 4294901760
      %7394 = vmatpush1.msra.mxu0 %v7393
      %7395 = vmatprep.subr.mxu0 0.0
      %v7396 = vand.u32 %v6448, 4294901760
      %v7397 = vsub.f32 %v6448, %v7396
      %v7398 = vand.u32 %v7397, 4294901760
      %7399 = vmatpush1.msra.mxu0 %v7398
      %7400 = vmatprep.subr.mxu0 0.0
      %v7401 = vand.u32 %v6447, 4294901760
      %v7402 = vsub.f32 %v6447, %v7401
      %v7403 = vand.u32 %v7402, 4294901760
      %7404 = vmatpush1.msra.mxu0 %v7403
      %7405 = vmatprep.subr.mxu0 0.0
      %v7406 = vand.u32 %v6446, 4294901760
      %v7407 = vsub.f32 %v6446, %v7406
      %v7408 = vand.u32 %v7407, 4294901760
      %7409 = vmatpush1.msra.mxu0 %v7408
      %7410 = vmatprep.subr.mxu0 0.0
      %v7411 = vand.u32 %v6477, 4294901760
      %v7412 = vsub.f32 %v6477, %v7411
      %v7413 = vand.u32 %v7412, 4294901760
      %7414 = vmatpush2.msra.mxu0 %v7413
      %7415 = vmatprep.subr.mxu0 0.0
      %v7416 = vand.u32 %v6476, 4294901760
      %v7417 = vsub.f32 %v6476, %v7416
      %v7418 = vand.u32 %v7417, 4294901760
      %7419 = vmatpush2.msra.mxu0 %v7418
      %7420 = vmatprep.subr.mxu0 0.0
      %v7421 = vand.u32 %v6475, 4294901760
      %v7422 = vsub.f32 %v6475, %v7421
      %v7423 = vand.u32 %v7422, 4294901760
      %7424 = vmatpush2.msra.mxu0 %v7423
      %7425 = vmatprep.subr.mxu0 0.0
      %v7426 = vand.u32 %v6474, 4294901760
      %v7427 = vsub.f32 %v6474, %v7426
      %v7428 = vand.u32 %v7427, 4294901760
      %7429 = vmatpush2.msra.mxu0 %v7428
      %7430 = vmatprep.subr.mxu0 0.0
      %v7431 = vand.u32 %v6473, 4294901760
      %v7432 = vsub.f32 %v6473, %v7431
      %v7433 = vand.u32 %v7432, 4294901760
      %7434 = vmatpush2.msra.mxu0 %v7433
      %7435 = vmatprep.subr.mxu0 0.0
      %v7436 = vand.u32 %v6472, 4294901760
      %v7437 = vsub.f32 %v6472, %v7436
      %v7438 = vand.u32 %v7437, 4294901760
      %7439 = vmatpush2.msra.mxu0 %v7438
      %7440 = vmatprep.subr.mxu0 0.0
      %v7441 = vand.u32 %v6471, 4294901760
      %v7442 = vsub.f32 %v6471, %v7441
      %v7443 = vand.u32 %v7442, 4294901760
      %7444 = vmatpush2.msra.mxu0 %v7443
      %7445 = vmatprep.subr.mxu0 0.0
      %v7446 = vand.u32 %v6470, 4294901760
      %v7447 = vsub.f32 %v6470, %v7446
      %v7448 = vand.u32 %v7447, 4294901760
      %7449 = vmatpush2.msra.mxu0 %v7448
      %7450 = vmatprep.subr.mxu0 0.0
      %v7451 = vand.u32 %v6469, 4294901760
      %v7452 = vsub.f32 %v6469, %v7451
      %v7453 = vand.u32 %v7452, 4294901760
      %7454 = vmatpush2.msra.mxu0 %v7453
      %7455 = vmatprep.subr.mxu0 0.0
      %v7456 = vand.u32 %v6468, 4294901760
      %v7457 = vsub.f32 %v6468, %v7456
      %v7458 = vand.u32 %v7457, 4294901760
      %7459 = vmatpush2.msra.mxu0 %v7458
      %7460 = vmatprep.subr.mxu0 0.0
      %v7461 = vand.u32 %v6467, 4294901760
      %v7462 = vsub.f32 %v6467, %v7461
      %v7463 = vand.u32 %v7462, 4294901760
      %7464 = vmatpush2.msra.mxu0 %v7463
      %7465 = vmatprep.subr.mxu0 0.0
      %v7466 = vand.u32 %v6466, 4294901760
      %v7467 = vsub.f32 %v6466, %v7466
      %v7468 = vand.u32 %v7467, 4294901760
      %7469 = vmatpush2.msra.mxu0 %v7468
      %7470 = vmatprep.subr.mxu0 0.0
      %v7471 = vand.u32 %v6465, 4294901760
      %v7472 = vsub.f32 %v6465, %v7471
      %v7473 = vand.u32 %v7472, 4294901760
      %7474 = vmatpush2.msra.mxu0 %v7473
      %7475 = vmatprep.subr.mxu0 0.0
      %v7476 = vand.u32 %v6464, 4294901760
      %v7477 = vsub.f32 %v6464, %v7476
      %v7478 = vand.u32 %v7477, 4294901760
      %7479 = vmatpush2.msra.mxu0 %v7478
      %7480 = vmatprep.subr.mxu0 0.0
      %v7481 = vand.u32 %v6463, 4294901760
      %v7482 = vsub.f32 %v6463, %v7481
      %v7483 = vand.u32 %v7482, 4294901760
      %7484 = vmatpush2.msra.mxu0 %v7483
      %7485 = vmatprep.subr.mxu0 0.0
      %v7486 = vand.u32 %v6462, 4294901760
      %v7487 = vsub.f32 %v6462, %v7486
      %v7488 = vand.u32 %v7487, 4294901760
      %7489 = vmatpush2.msra.mxu0 %v7488
      %v7490 = vand.u32 %v6423, 4294901760
      %7491 = vmatprep.mubr.f32.mxu0 %v7490
      %v7492 = vand.u32 %v6422, 4294901760
      %7493 = vmatmul.mubr.f32.gmra.mxu0 %v7492
      %v7494 = vpop.f32.mrf.mxu0
      %v7495 = vadd.f32 %v7272, %v7494
      %v7496 = vpop.f32.mrf.mxu0
      %v7497 = vand.u32 %v6427, 4294901760
      %7498 = vmatprep.mubr.f32.mxu0 %v7497
      %v7499 = vand.u32 %v6426, 4294901760
      %7500 = vmatmul.mubr.f32.gmra.mxu0 %v7499
      %v7501 = vpop.f32.mrf.mxu0
      %v7502 = vadd.f32 %v7283, %v7501
      %v7503 = vpop.f32.mrf.mxu0
      %v7504 = vand.u32 %v6431, 4294901760
      %7505 = vmatprep.mubr.f32.mxu0 %v7504
      %v7506 = vand.u32 %v6430, 4294901760
      %7507 = vmatmul.mubr.f32.gmra.mxu0 %v7506
      %v7508 = vpop.f32.mrf.mxu0
      %v7509 = vadd.f32 %v7294, %v7508
      %v7510 = vpop.f32.mrf.mxu0
      %v7511 = vand.u32 %v6435, 4294901760
      %7512 = vmatprep.mubr.f32.mxu0 %v7511
      %v7513 = vand.u32 %v6434, 4294901760
      %7514 = vmatmul.mubr.f32.gmra.mxu0 %v7513
      %v7515 = vpop.f32.mrf.mxu0
      %v7516 = vadd.f32 %v7305, %v7515
      %v7517 = vpop.f32.mrf.mxu0
      %v7518 = vand.u32 %v6439, 4294901760
      %7519 = vmatprep.mubr.f32.mxu0 %v7518
      %v7520 = vand.u32 %v6438, 4294901760
      %7521 = vmatmul.mubr.f32.gmra.mxu0 %v7520
      %v7522 = vpop.f32.mrf.mxu0
      %v7523 = vadd.f32 %v7316, %v7522
      %v7524 = vpop.f32.mrf.mxu0
      %v7525 = vand.u32 %v6443, 4294901760
      %7526 = vmatprep.mubr.f32.mxu0 %v7525
      %v7527 = vand.u32 %v6442, 4294901760
      %7528 = vmatmul.mubr.f32.gmra.mxu0 %v7527
      %v7529 = vpop.f32.mrf.mxu0
      %v7530 = vadd.f32 %v7327, %v7529
      %v7531 = vpop.f32.mrf.mxu0
      %7532 = vdwg.mxu0
      %7533 = vmatprep.subr.mxu0 0.0
      %v7534 = vand.u32 %v6461, 4294901760
      %7535 = vmatpush1.msra.mxu0 %v7534
      %7536 = vmatprep.subr.mxu0 0.0
      %v7537 = vand.u32 %v6460, 4294901760
      %7538 = vmatpush1.msra.mxu0 %v7537
      %7539 = vmatprep.subr.mxu0 0.0
      %v7540 = vand.u32 %v6459, 4294901760
      %7541 = vmatpush1.msra.mxu0 %v7540
      %7542 = vmatprep.subr.mxu0 0.0
      %v7543 = vand.u32 %v6458, 4294901760
      %7544 = vmatpush1.msra.mxu0 %v7543
      %7545 = vmatprep.subr.mxu0 0.0
      %v7546 = vand.u32 %v6457, 4294901760
      %7547 = vmatpush1.msra.mxu0 %v7546
      %7548 = vmatprep.subr.mxu0 0.0
      %v7549 = vand.u32 %v6456, 4294901760
      %7550 = vmatpush1.msra.mxu0 %v7549
      %7551 = vmatprep.subr.mxu0 0.0
      %v7552 = vand.u32 %v6455, 4294901760
      %7553 = vmatpush1.msra.mxu0 %v7552
      %7554 = vmatprep.subr.mxu0 0.0
      %v7555 = vand.u32 %v6454, 4294901760
      %7556 = vmatpush1.msra.mxu0 %v7555
      %7557 = vmatprep.subr.mxu0 0.0
      %v7558 = vand.u32 %v6453, 4294901760
      %7559 = vmatpush1.msra.mxu0 %v7558
      %7560 = vmatprep.subr.mxu0 0.0
      %v7561 = vand.u32 %v6452, 4294901760
      %7562 = vmatpush1.msra.mxu0 %v7561
      %7563 = vmatprep.subr.mxu0 0.0
      %v7564 = vand.u32 %v6451, 4294901760
      %7565 = vmatpush1.msra.mxu0 %v7564
      %7566 = vmatprep.subr.mxu0 0.0
      %v7567 = vand.u32 %v6450, 4294901760
      %7568 = vmatpush1.msra.mxu0 %v7567
      %7569 = vmatprep.subr.mxu0 0.0
      %v7570 = vand.u32 %v6449, 4294901760
      %7571 = vmatpush1.msra.mxu0 %v7570
      %7572 = vmatprep.subr.mxu0 0.0
      %v7573 = vand.u32 %v6448, 4294901760
      %7574 = vmatpush1.msra.mxu0 %v7573
      %7575 = vmatprep.subr.mxu0 0.0
      %v7576 = vand.u32 %v6447, 4294901760
      %7577 = vmatpush1.msra.mxu0 %v7576
      %7578 = vmatprep.subr.mxu0 0.0
      %v7579 = vand.u32 %v6446, 4294901760
      %7580 = vmatpush1.msra.mxu0 %v7579
      %7581 = vmatprep.subr.mxu0 0.0
      %v7582 = vand.u32 %v6477, 4294901760
      %7583 = vmatpush2.msra.mxu0 %v7582
      %7584 = vmatprep.subr.mxu0 0.0
      %v7585 = vand.u32 %v6476, 4294901760
      %7586 = vmatpush2.msra.mxu0 %v7585
      %7587 = vmatprep.subr.mxu0 0.0
      %v7588 = vand.u32 %v6475, 4294901760
      %7589 = vmatpush2.msra.mxu0 %v7588
      %7590 = vmatprep.subr.mxu0 0.0
      %v7591 = vand.u32 %v6474, 4294901760
      %7592 = vmatpush2.msra.mxu0 %v7591
      %7593 = vmatprep.subr.mxu0 0.0
      %v7594 = vand.u32 %v6473, 4294901760
      %7595 = vmatpush2.msra.mxu0 %v7594
      %7596 = vmatprep.subr.mxu0 0.0
      %v7597 = vand.u32 %v6472, 4294901760
      %7598 = vmatpush2.msra.mxu0 %v7597
      %7599 = vmatprep.subr.mxu0 0.0
      %v7600 = vand.u32 %v6471, 4294901760
      %7601 = vmatpush2.msra.mxu0 %v7600
      %7602 = vmatprep.subr.mxu0 0.0
      %v7603 = vand.u32 %v6470, 4294901760
      %7604 = vmatpush2.msra.mxu0 %v7603
      %7605 = vmatprep.subr.mxu0 0.0
      %v7606 = vand.u32 %v6469, 4294901760
      %7607 = vmatpush2.msra.mxu0 %v7606
      %7608 = vmatprep.subr.mxu0 0.0
      %v7609 = vand.u32 %v6468, 4294901760
      %7610 = vmatpush2.msra.mxu0 %v7609
      %7611 = vmatprep.subr.mxu0 0.0
      %v7612 = vand.u32 %v6467, 4294901760
      %7613 = vmatpush2.msra.mxu0 %v7612
      %7614 = vmatprep.subr.mxu0 0.0
      %v7615 = vand.u32 %v6466, 4294901760
      %7616 = vmatpush2.msra.mxu0 %v7615
      %7617 = vmatprep.subr.mxu0 0.0
      %v7618 = vand.u32 %v6465, 4294901760
      %7619 = vmatpush2.msra.mxu0 %v7618
      %7620 = vmatprep.subr.mxu0 0.0
      %v7621 = vand.u32 %v6464, 4294901760
      %7622 = vmatpush2.msra.mxu0 %v7621
      %7623 = vmatprep.subr.mxu0 0.0
      %v7624 = vand.u32 %v6463, 4294901760
      %7625 = vmatpush2.msra.mxu0 %v7624
      %7626 = vmatprep.subr.mxu0 0.0
      %v7627 = vand.u32 %v6462, 4294901760
      %7628 = vmatpush2.msra.mxu0 %v7627
      %v7629 = vand.u32 %v6423, 4294901760
      %7630 = vmatprep.mubr.f32.mxu0 %v7629
      %v7631 = vand.u32 %v6422, 4294901760
      %7632 = vmatmul.mubr.f32.gmra.mxu0 %v7631
      %v7633 = vpop.f32.mrf.mxu0
      %v7634 = vadd.f32 %v7495, %v7633
      %v7635 = vpop.f32.mrf.mxu0
      %v7636 = vand.u32 %v6427, 4294901760
      %7637 = vmatprep.mubr.f32.mxu0 %v7636
      %v7638 = vand.u32 %v6426, 4294901760
      %7639 = vmatmul.mubr.f32.gmra.mxu0 %v7638
      %v7640 = vpop.f32.mrf.mxu0
      %v7641 = vadd.f32 %v7502, %v7640
      %v7642 = vpop.f32.mrf.mxu0
      %v7643 = vand.u32 %v6431, 4294901760
      %7644 = vmatprep.mubr.f32.mxu0 %v7643
      %v7645 = vand.u32 %v6430, 4294901760
      %7646 = vmatmul.mubr.f32.gmra.mxu0 %v7645
      %v7647 = vpop.f32.mrf.mxu0
      %v7648 = vadd.f32 %v7509, %v7647
      %v7649 = vpop.f32.mrf.mxu0
      %v7650 = vand.u32 %v6435, 4294901760
      %7651 = vmatprep.mubr.f32.mxu0 %v7650
      %v7652 = vand.u32 %v6434, 4294901760
      %7653 = vmatmul.mubr.f32.gmra.mxu0 %v7652
      %v7654 = vpop.f32.mrf.mxu0
      %v7655 = vadd.f32 %v7516, %v7654
      %v7656 = vpop.f32.mrf.mxu0
      %v7657 = vand.u32 %v6439, 4294901760
      %7658 = vmatprep.mubr.f32.mxu0 %v7657
      %v7659 = vand.u32 %v6438, 4294901760
      %7660 = vmatmul.mubr.f32.gmra.mxu0 %v7659
      %v7661 = vpop.f32.mrf.mxu0
      %v7662 = vadd.f32 %v7523, %v7661
      %v7663 = vpop.f32.mrf.mxu0
      %v7664 = vand.u32 %v6443, 4294901760
      %7665 = vmatprep.mubr.f32.mxu0 %v7664
      %v7666 = vand.u32 %v6442, 4294901760
      %7667 = vmatmul.mubr.f32.gmra.mxu0 %v7666
      %v7668 = vpop.f32.mrf.mxu0
      %v7669 = vadd.f32 %v7530, %v7668
      %v7670 = vpop.f32.mrf.mxu0
      %7671 = vdwg.mxu0
      %7672 = vmatprep.subr.mxu0 0.0
      %v7673 = vand.u32 %v6493, 4294901760
      %7674 = vmatpush1.msra.mxu0 %v7673
      %7675 = vmatprep.subr.mxu0 0.0
      %v7676 = vand.u32 %v6492, 4294901760
      %7677 = vmatpush1.msra.mxu0 %v7676
      %7678 = vmatprep.subr.mxu0 0.0
      %v7679 = vand.u32 %v6491, 4294901760
      %7680 = vmatpush1.msra.mxu0 %v7679
      %7681 = vmatprep.subr.mxu0 0.0
      %v7682 = vand.u32 %v6490, 4294901760
      %7683 = vmatpush1.msra.mxu0 %v7682
      %7684 = vmatprep.subr.mxu0 0.0
      %v7685 = vand.u32 %v6489, 4294901760
      %7686 = vmatpush1.msra.mxu0 %v7685
      %7687 = vmatprep.subr.mxu0 0.0
      %v7688 = vand.u32 %v6488, 4294901760
      %7689 = vmatpush1.msra.mxu0 %v7688
      %7690 = vmatprep.subr.mxu0 0.0
      %v7691 = vand.u32 %v6487, 4294901760
      %7692 = vmatpush1.msra.mxu0 %v7691
      %7693 = vmatprep.subr.mxu0 0.0
      %v7694 = vand.u32 %v6486, 4294901760
      %7695 = vmatpush1.msra.mxu0 %v7694
      %7696 = vmatprep.subr.mxu0 0.0
      %v7697 = vand.u32 %v6485, 4294901760
      %7698 = vmatpush1.msra.mxu0 %v7697
      %7699 = vmatprep.subr.mxu0 0.0
      %v7700 = vand.u32 %v6484, 4294901760
      %7701 = vmatpush1.msra.mxu0 %v7700
      %7702 = vmatprep.subr.mxu0 0.0
      %v7703 = vand.u32 %v6483, 4294901760
      %7704 = vmatpush1.msra.mxu0 %v7703
      %7705 = vmatprep.subr.mxu0 0.0
      %v7706 = vand.u32 %v6482, 4294901760
      %7707 = vmatpush1.msra.mxu0 %v7706
      %7708 = vmatprep.subr.mxu0 0.0
      %v7709 = vand.u32 %v6481, 4294901760
      %7710 = vmatpush1.msra.mxu0 %v7709
      %7711 = vmatprep.subr.mxu0 0.0
      %v7712 = vand.u32 %v6480, 4294901760
      %7713 = vmatpush1.msra.mxu0 %v7712
      %7714 = vmatprep.subr.mxu0 0.0
      %v7715 = vand.u32 %v6479, 4294901760
      %7716 = vmatpush1.msra.mxu0 %v7715
      %7717 = vmatprep.subr.mxu0 0.0
      %v7718 = vand.u32 %v6478, 4294901760
      %7719 = vmatpush1.msra.mxu0 %v7718
      %7720 = vmatprep.subr.mxu0 0.0
      %7721 = vmatpush2.msra.mxu0 0.0
      %7722 = vmatprep.subr.mxu0 0.0
      %7723 = vmatpush2.msra.mxu0 0.0
      %7724 = vmatprep.subr.mxu0 0.0
      %v7725 = vand.u32 %v6528, 4294901760
      %7726 = vmatpush2.msra.mxu0 %v7725
      %7727 = vmatprep.subr.mxu0 0.0
      %v7728 = vand.u32 %v6506, 4294901760
      %7729 = vmatpush2.msra.mxu0 %v7728
      %7730 = vmatprep.subr.mxu0 0.0
      %v7731 = vand.u32 %v6505, 4294901760
      %7732 = vmatpush2.msra.mxu0 %v7731
      %7733 = vmatprep.subr.mxu0 0.0
      %v7734 = vand.u32 %v6504, 4294901760
      %7735 = vmatpush2.msra.mxu0 %v7734
      %7736 = vmatprep.subr.mxu0 0.0
      %v7737 = vand.u32 %v6503, 4294901760
      %7738 = vmatpush2.msra.mxu0 %v7737
      %7739 = vmatprep.subr.mxu0 0.0
      %v7740 = vand.u32 %v6502, 4294901760
      %7741 = vmatpush2.msra.mxu0 %v7740
      %7742 = vmatprep.subr.mxu0 0.0
      %v7743 = vand.u32 %v6501, 4294901760
      %7744 = vmatpush2.msra.mxu0 %v7743
      %7745 = vmatprep.subr.mxu0 0.0
      %v7746 = vand.u32 %v6500, 4294901760
      %7747 = vmatpush2.msra.mxu0 %v7746
      %7748 = vmatprep.subr.mxu0 0.0
      %v7749 = vand.u32 %v6499, 4294901760
      %7750 = vmatpush2.msra.mxu0 %v7749
      %7751 = vmatprep.subr.mxu0 0.0
      %v7752 = vand.u32 %v6498, 4294901760
      %7753 = vmatpush2.msra.mxu0 %v7752
      %7754 = vmatprep.subr.mxu0 0.0
      %v7755 = vand.u32 %v6497, 4294901760
      %7756 = vmatpush2.msra.mxu0 %v7755
      %7757 = vmatprep.subr.mxu0 0.0
      %v7758 = vand.u32 %v6496, 4294901760
      %7759 = vmatpush2.msra.mxu0 %v7758
      %7760 = vmatprep.subr.mxu0 0.0
      %v7761 = vand.u32 %v6495, 4294901760
      %7762 = vmatpush2.msra.mxu0 %v7761
      %7763 = vmatprep.subr.mxu0 0.0
      %v7764 = vand.u32 %v6494, 4294901760
      %7765 = vmatpush2.msra.mxu0 %v7764
      %v7766 = vand.u32 %v6510, 4294901760
      %v7767 = vsub.f32 %v6510, %v7766
      %v7768 = vand.u32 %v7767, 4294901760
      %v7769 = vsub.f32 %v7767, %v7768
      %v7770 = vand.u32 %v7769, 4294901760
      %7771 = vmatprep.mubr.f32.mxu0 %v7770
      %v7772 = vand.u32 %v6424, 4294901760
      %v7773 = vsub.f32 %v6424, %v7772
      %v7774 = vand.u32 %v7773, 4294901760
      %v7775 = vsub.f32 %v7773, %v7774
      %v7776 = vand.u32 %v7775, 4294901760
      %7777 = vmatmul.mubr.f32.gmra.mxu0 %v7776
      %v7778 = vpop.f32.mrf.mxu0
      %v7779 = vadd.f32 %v7634, %v7778
      %v7780 = vpop.f32.mrf.mxu0
      %v7781 = vand.u32 %v6513, 4294901760
      %v7782 = vsub.f32 %v6513, %v7781
      %v7783 = vand.u32 %v7782, 4294901760
      %v7784 = vsub.f32 %v7782, %v7783
      %v7785 = vand.u32 %v7784, 4294901760
      %7786 = vmatprep.mubr.f32.mxu0 %v7785
      %v7787 = vand.u32 %v6428, 4294901760
      %v7788 = vsub.f32 %v6428, %v7787
      %v7789 = vand.u32 %v7788, 4294901760
      %v7790 = vsub.f32 %v7788, %v7789
      %v7791 = vand.u32 %v7790, 4294901760
      %7792 = vmatmul.mubr.f32.gmra.mxu0 %v7791
      %v7793 = vpop.f32.mrf.mxu0
      %v7794 = vadd.f32 %v7641, %v7793
      %v7795 = vpop.f32.mrf.mxu0
      %v7796 = vand.u32 %v6516, 4294901760
      %v7797 = vsub.f32 %v6516, %v7796
      %v7798 = vand.u32 %v7797, 4294901760
      %v7799 = vsub.f32 %v7797, %v7798
      %v7800 = vand.u32 %v7799, 4294901760
      %7801 = vmatprep.mubr.f32.mxu0 %v7800
      %v7802 = vand.u32 %v6432, 4294901760
      %v7803 = vsub.f32 %v6432, %v7802
      %v7804 = vand.u32 %v7803, 4294901760
      %v7805 = vsub.f32 %v7803, %v7804
      %v7806 = vand.u32 %v7805, 4294901760
      %7807 = vmatmul.mubr.f32.gmra.mxu0 %v7806
      %v7808 = vpop.f32.mrf.mxu0
      %v7809 = vadd.f32 %v7648, %v7808
      %v7810 = vpop.f32.mrf.mxu0
      %v7811 = vand.u32 %v6519, 4294901760
      %v7812 = vsub.f32 %v6519, %v7811
      %v7813 = vand.u32 %v7812, 4294901760
      %v7814 = vsub.f32 %v7812, %v7813
      %v7815 = vand.u32 %v7814, 4294901760
      %7816 = vmatprep.mubr.f32.mxu0 %v7815
      %v7817 = vand.u32 %v6436, 4294901760
      %v7818 = vsub.f32 %v6436, %v7817
      %v7819 = vand.u32 %v7818, 4294901760
      %v7820 = vsub.f32 %v7818, %v7819
      %v7821 = vand.u32 %v7820, 4294901760
      %7822 = vmatmul.mubr.f32.gmra.mxu0 %v7821
      %v7823 = vpop.f32.mrf.mxu0
      %v7824 = vadd.f32 %v7655, %v7823
      %v7825 = vpop.f32.mrf.mxu0
      %v7826 = vand.u32 %v6522, 4294901760
      %v7827 = vsub.f32 %v6522, %v7826
      %v7828 = vand.u32 %v7827, 4294901760
      %v7829 = vsub.f32 %v7827, %v7828
      %v7830 = vand.u32 %v7829, 4294901760
      %7831 = vmatprep.mubr.f32.mxu0 %v7830
      %v7832 = vand.u32 %v6440, 4294901760
      %v7833 = vsub.f32 %v6440, %v7832
      %v7834 = vand.u32 %v7833, 4294901760
      %v7835 = vsub.f32 %v7833, %v7834
      %v7836 = vand.u32 %v7835, 4294901760
      %7837 = vmatmul.mubr.f32.gmra.mxu0 %v7836
      %v7838 = vpop.f32.mrf.mxu0
      %v7839 = vadd.f32 %v7662, %v7838
      %v7840 = vpop.f32.mrf.mxu0
      %v7841 = vand.u32 %v6525, 4294901760
      %v7842 = vsub.f32 %v6525, %v7841
      %v7843 = vand.u32 %v7842, 4294901760
      %v7844 = vsub.f32 %v7842, %v7843
      %v7845 = vand.u32 %v7844, 4294901760
      %7846 = vmatprep.mubr.f32.mxu0 %v7845
      %v7847 = vand.u32 %v6444, 4294901760
      %v7848 = vsub.f32 %v6444, %v7847
      %v7849 = vand.u32 %v7848, 4294901760
      %v7850 = vsub.f32 %v7848, %v7849
      %v7851 = vand.u32 %v7850, 4294901760
      %7852 = vmatmul.mubr.f32.gmra.mxu0 %v7851
      %v7853 = vpop.f32.mrf.mxu0
      %v7854 = vadd.f32 %v7669, %v7853
      %v7855 = vpop.f32.mrf.mxu0
      %7856 = vdwg.mxu0
      %7857 = vmatprep.subr.mxu0 0.0
      %v7858 = vand.u32 %v6493, 4294901760
      %v7859 = vsub.f32 %v6493, %v7858
      %v7860 = vand.u32 %v7859, 4294901760
      %v7861 = vsub.f32 %v7859, %v7860
      %v7862 = vand.u32 %v7861, 4294901760
      %7863 = vmatpush1.msra.mxu0 %v7862
      %7864 = vmatprep.subr.mxu0 0.0
      %v7865 = vand.u32 %v6492, 4294901760
      %v7866 = vsub.f32 %v6492, %v7865
      %v7867 = vand.u32 %v7866, 4294901760
      %v7868 = vsub.f32 %v7866, %v7867
      %v7869 = vand.u32 %v7868, 4294901760
      %7870 = vmatpush1.msra.mxu0 %v7869
      %7871 = vmatprep.subr.mxu0 0.0
      %v7872 = vand.u32 %v6491, 4294901760
      %v7873 = vsub.f32 %v6491, %v7872
      %v7874 = vand.u32 %v7873, 4294901760
      %v7875 = vsub.f32 %v7873, %v7874
      %v7876 = vand.u32 %v7875, 4294901760
      %7877 = vmatpush1.msra.mxu0 %v7876
      %7878 = vmatprep.subr.mxu0 0.0
      %v7879 = vand.u32 %v6490, 4294901760
      %v7880 = vsub.f32 %v6490, %v7879
      %v7881 = vand.u32 %v7880, 4294901760
      %v7882 = vsub.f32 %v7880, %v7881
      %v7883 = vand.u32 %v7882, 4294901760
      %7884 = vmatpush1.msra.mxu0 %v7883
      %7885 = vmatprep.subr.mxu0 0.0
      %v7886 = vand.u32 %v6489, 4294901760
      %v7887 = vsub.f32 %v6489, %v7886
      %v7888 = vand.u32 %v7887, 4294901760
      %v7889 = vsub.f32 %v7887, %v7888
      %v7890 = vand.u32 %v7889, 4294901760
      %7891 = vmatpush1.msra.mxu0 %v7890
      %7892 = vmatprep.subr.mxu0 0.0
      %v7893 = vand.u32 %v6488, 4294901760
      %v7894 = vsub.f32 %v6488, %v7893
      %v7895 = vand.u32 %v7894, 4294901760
      %v7896 = vsub.f32 %v7894, %v7895
      %v7897 = vand.u32 %v7896, 4294901760
      %7898 = vmatpush1.msra.mxu0 %v7897
      %7899 = vmatprep.subr.mxu0 0.0
      %v7900 = vand.u32 %v6487, 4294901760
      %v7901 = vsub.f32 %v6487, %v7900
      %v7902 = vand.u32 %v7901, 4294901760
      %v7903 = vsub.f32 %v7901, %v7902
      %v7904 = vand.u32 %v7903, 4294901760
      %7905 = vmatpush1.msra.mxu0 %v7904
      %7906 = vmatprep.subr.mxu0 0.0
      %v7907 = vand.u32 %v6486, 4294901760
      %v7908 = vsub.f32 %v6486, %v7907
      %v7909 = vand.u32 %v7908, 4294901760
      %v7910 = vsub.f32 %v7908, %v7909
      %v7911 = vand.u32 %v7910, 4294901760
      %7912 = vmatpush1.msra.mxu0 %v7911
      %7913 = vmatprep.subr.mxu0 0.0
      %v7914 = vand.u32 %v6485, 4294901760
      %v7915 = vsub.f32 %v6485, %v7914
      %v7916 = vand.u32 %v7915, 4294901760
      %v7917 = vsub.f32 %v7915, %v7916
      %v7918 = vand.u32 %v7917, 4294901760
      %7919 = vmatpush1.msra.mxu0 %v7918
      %7920 = vmatprep.subr.mxu0 0.0
      %v7921 = vand.u32 %v6484, 4294901760
      %v7922 = vsub.f32 %v6484, %v7921
      %v7923 = vand.u32 %v7922, 4294901760
      %v7924 = vsub.f32 %v7922, %v7923
      %v7925 = vand.u32 %v7924, 4294901760
      %7926 = vmatpush1.msra.mxu0 %v7925
      %7927 = vmatprep.subr.mxu0 0.0
      %v7928 = vand.u32 %v6483, 4294901760
      %v7929 = vsub.f32 %v6483, %v7928
      %v7930 = vand.u32 %v7929, 4294901760
      %v7931 = vsub.f32 %v7929, %v7930
      %v7932 = vand.u32 %v7931, 4294901760
      %7933 = vmatpush1.msra.mxu0 %v7932
      %7934 = vmatprep.subr.mxu0 0.0
      %v7935 = vand.u32 %v6482, 4294901760
      %v7936 = vsub.f32 %v6482, %v7935
      %v7937 = vand.u32 %v7936, 4294901760
      %v7938 = vsub.f32 %v7936, %v7937
      %v7939 = vand.u32 %v7938, 4294901760
      %7940 = vmatpush1.msra.mxu0 %v7939
      %7941 = vmatprep.subr.mxu0 0.0
      %v7942 = vand.u32 %v6481, 4294901760
      %v7943 = vsub.f32 %v6481, %v7942
      %v7944 = vand.u32 %v7943, 4294901760
      %v7945 = vsub.f32 %v7943, %v7944
      %v7946 = vand.u32 %v7945, 4294901760
      %7947 = vmatpush1.msra.mxu0 %v7946
      %7948 = vmatprep.subr.mxu0 0.0
      %v7949 = vand.u32 %v6480, 4294901760
      %v7950 = vsub.f32 %v6480, %v7949
      %v7951 = vand.u32 %v7950, 4294901760
      %v7952 = vsub.f32 %v7950, %v7951
      %v7953 = vand.u32 %v7952, 4294901760
      %7954 = vmatpush1.msra.mxu0 %v7953
      %7955 = vmatprep.subr.mxu0 0.0
      %v7956 = vand.u32 %v6479, 4294901760
      %v7957 = vsub.f32 %v6479, %v7956
      %v7958 = vand.u32 %v7957, 4294901760
      %v7959 = vsub.f32 %v7957, %v7958
      %v7960 = vand.u32 %v7959, 4294901760
      %7961 = vmatpush1.msra.mxu0 %v7960
      %7962 = vmatprep.subr.mxu0 0.0
      %v7963 = vand.u32 %v6478, 4294901760
      %v7964 = vsub.f32 %v6478, %v7963
      %v7965 = vand.u32 %v7964, 4294901760
      %v7966 = vsub.f32 %v7964, %v7965
      %v7967 = vand.u32 %v7966, 4294901760
      %7968 = vmatpush1.msra.mxu0 %v7967
      %7969 = vmatprep.subr.mxu0 0.0
      %7970 = vmatpush2.msra.mxu0 0.0
      %7971 = vmatprep.subr.mxu0 0.0
      %7972 = vmatpush2.msra.mxu0 0.0
      %7973 = vmatprep.subr.mxu0 0.0
      %v7974 = vand.u32 %v6528, 4294901760
      %v7975 = vsub.f32 %v6528, %v7974
      %v7976 = vand.u32 %v7975, 4294901760
      %v7977 = vsub.f32 %v7975, %v7976
      %v7978 = vand.u32 %v7977, 4294901760
      %7979 = vmatpush2.msra.mxu0 %v7978
      %7980 = vmatprep.subr.mxu0 0.0
      %v7981 = vand.u32 %v6506, 4294901760
      %v7982 = vsub.f32 %v6506, %v7981
      %v7983 = vand.u32 %v7982, 4294901760
      %v7984 = vsub.f32 %v7982, %v7983
      %v7985 = vand.u32 %v7984, 4294901760
      %7986 = vmatpush2.msra.mxu0 %v7985
      %7987 = vmatprep.subr.mxu0 0.0
      %v7988 = vand.u32 %v6505, 4294901760
      %v7989 = vsub.f32 %v6505, %v7988
      %v7990 = vand.u32 %v7989, 4294901760
      %v7991 = vsub.f32 %v7989, %v7990
      %v7992 = vand.u32 %v7991, 4294901760
      %7993 = vmatpush2.msra.mxu0 %v7992
      %7994 = vmatprep.subr.mxu0 0.0
      %v7995 = vand.u32 %v6504, 4294901760
      %v7996 = vsub.f32 %v6504, %v7995
      %v7997 = vand.u32 %v7996, 4294901760
      %v7998 = vsub.f32 %v7996, %v7997
      %v7999 = vand.u32 %v7998, 4294901760
      %8000 = vmatpush2.msra.mxu0 %v7999
      %8001 = vmatprep.subr.mxu0 0.0
      %v8002 = vand.u32 %v6503, 4294901760
      %v8003 = vsub.f32 %v6503, %v8002
      %v8004 = vand.u32 %v8003, 4294901760
      %v8005 = vsub.f32 %v8003, %v8004
      %v8006 = vand.u32 %v8005, 4294901760
      %8007 = vmatpush2.msra.mxu0 %v8006
      %8008 = vmatprep.subr.mxu0 0.0
      %v8009 = vand.u32 %v6502, 4294901760
      %v8010 = vsub.f32 %v6502, %v8009
      %v8011 = vand.u32 %v8010, 4294901760
      %v8012 = vsub.f32 %v8010, %v8011
      %v8013 = vand.u32 %v8012, 4294901760
      %8014 = vmatpush2.msra.mxu0 %v8013
      %8015 = vmatprep.subr.mxu0 0.0
      %v8016 = vand.u32 %v6501, 4294901760
      %v8017 = vsub.f32 %v6501, %v8016
      %v8018 = vand.u32 %v8017, 4294901760
      %v8019 = vsub.f32 %v8017, %v8018
      %v8020 = vand.u32 %v8019, 4294901760
      %8021 = vmatpush2.msra.mxu0 %v8020
      %8022 = vmatprep.subr.mxu0 0.0
      %v8023 = vand.u32 %v6500, 4294901760
      %v8024 = vsub.f32 %v6500, %v8023
      %v8025 = vand.u32 %v8024, 4294901760
      %v8026 = vsub.f32 %v8024, %v8025
      %v8027 = vand.u32 %v8026, 4294901760
      %8028 = vmatpush2.msra.mxu0 %v8027
      %8029 = vmatprep.subr.mxu0 0.0
      %v8030 = vand.u32 %v6499, 4294901760
      %v8031 = vsub.f32 %v6499, %v8030
      %v8032 = vand.u32 %v8031, 4294901760
      %v8033 = vsub.f32 %v8031, %v8032
      %v8034 = vand.u32 %v8033, 4294901760
      %8035 = vmatpush2.msra.mxu0 %v8034
      %8036 = vmatprep.subr.mxu0 0.0
      %v8037 = vand.u32 %v6498, 4294901760
      %v8038 = vsub.f32 %v6498, %v8037
      %v8039 = vand.u32 %v8038, 4294901760
      %v8040 = vsub.f32 %v8038, %v8039
      %v8041 = vand.u32 %v8040, 4294901760
      %8042 = vmatpush2.msra.mxu0 %v8041
      %8043 = vmatprep.subr.mxu0 0.0
      %v8044 = vand.u32 %v6497, 4294901760
      %v8045 = vsub.f32 %v6497, %v8044
      %v8046 = vand.u32 %v8045, 4294901760
      %v8047 = vsub.f32 %v8045, %v8046
      %v8048 = vand.u32 %v8047, 4294901760
      %8049 = vmatpush2.msra.mxu0 %v8048
      %8050 = vmatprep.subr.mxu0 0.0
      %v8051 = vand.u32 %v6496, 4294901760
      %v8052 = vsub.f32 %v6496, %v8051
      %v8053 = vand.u32 %v8052, 4294901760
      %v8054 = vsub.f32 %v8052, %v8053
      %v8055 = vand.u32 %v8054, 4294901760
      %8056 = vmatpush2.msra.mxu0 %v8055
      %8057 = vmatprep.subr.mxu0 0.0
      %v8058 = vand.u32 %v6495, 4294901760
      %v8059 = vsub.f32 %v6495, %v8058
      %v8060 = vand.u32 %v8059, 4294901760
      %v8061 = vsub.f32 %v8059, %v8060
      %v8062 = vand.u32 %v8061, 4294901760
      %8063 = vmatpush2.msra.mxu0 %v8062
      %8064 = vmatprep.subr.mxu0 0.0
      %v8065 = vand.u32 %v6494, 4294901760
      %v8066 = vsub.f32 %v6494, %v8065
      %v8067 = vand.u32 %v8066, 4294901760
      %v8068 = vsub.f32 %v8066, %v8067
      %v8069 = vand.u32 %v8068, 4294901760
      %8070 = vmatpush2.msra.mxu0 %v8069
      %v8071 = vand.u32 %v6510, 4294901760
      %8072 = vmatprep.mubr.f32.mxu0 %v8071
      %v8073 = vand.u32 %v6424, 4294901760
      %8074 = vmatmul.mubr.f32.gmra.mxu0 %v8073
      %v8075 = vpop.f32.mrf.mxu0
      %v8076 = vadd.f32 %v7779, %v8075
      %v8077 = vpop.f32.mrf.mxu0
      %v8078 = vand.u32 %v6513, 4294901760
      %8079 = vmatprep.mubr.f32.mxu0 %v8078
      %v8080 = vand.u32 %v6428, 4294901760
      %8081 = vmatmul.mubr.f32.gmra.mxu0 %v8080
      %v8082 = vpop.f32.mrf.mxu0
      %v8083 = vadd.f32 %v7794, %v8082
      %v8084 = vpop.f32.mrf.mxu0
      %v8085 = vand.u32 %v6516, 4294901760
      %8086 = vmatprep.mubr.f32.mxu0 %v8085
      %v8087 = vand.u32 %v6432, 4294901760
      %8088 = vmatmul.mubr.f32.gmra.mxu0 %v8087
      %v8089 = vpop.f32.mrf.mxu0
      %v8090 = vadd.f32 %v7809, %v8089
      %v8091 = vpop.f32.mrf.mxu0
      %v8092 = vand.u32 %v6519, 4294901760
      %8093 = vmatprep.mubr.f32.mxu0 %v8092
      %v8094 = vand.u32 %v6436, 4294901760
      %8095 = vmatmul.mubr.f32.gmra.mxu0 %v8094
      %v8096 = vpop.f32.mrf.mxu0
      %v8097 = vadd.f32 %v7824, %v8096
      %v8098 = vpop.f32.mrf.mxu0
      %v8099 = vand.u32 %v6522, 4294901760
      %8100 = vmatprep.mubr.f32.mxu0 %v8099
      %v8101 = vand.u32 %v6440, 4294901760
      %8102 = vmatmul.mubr.f32.gmra.mxu0 %v8101
      %v8103 = vpop.f32.mrf.mxu0
      %v8104 = vadd.f32 %v7839, %v8103
      %v8105 = vpop.f32.mrf.mxu0
      %v8106 = vand.u32 %v6525, 4294901760
      %8107 = vmatprep.mubr.f32.mxu0 %v8106
      %v8108 = vand.u32 %v6444, 4294901760
      %8109 = vmatmul.mubr.f32.gmra.mxu0 %v8108
      %v8110 = vpop.f32.mrf.mxu0
      %v8111 = vadd.f32 %v7854, %v8110
      %v8112 = vpop.f32.mrf.mxu0
      %8113 = vdwg.mxu0
      %8114 = vmatprep.subr.mxu0 0.0
      %v8115 = vand.u32 %v6493, 4294901760
      %v8116 = vsub.f32 %v6493, %v8115
      %8117 = vmatpush1.msra.mxu0 %v8116
      %8118 = vmatprep.subr.mxu0 0.0
      %v8119 = vand.u32 %v6492, 4294901760
      %v8120 = vsub.f32 %v6492, %v8119
      %8121 = vmatpush1.msra.mxu0 %v8120
      %8122 = vmatprep.subr.mxu0 0.0
      %v8123 = vand.u32 %v6491, 4294901760
      %v8124 = vsub.f32 %v6491, %v8123
      %8125 = vmatpush1.msra.mxu0 %v8124
      %8126 = vmatprep.subr.mxu0 0.0
      %v8127 = vand.u32 %v6490, 4294901760
      %v8128 = vsub.f32 %v6490, %v8127
      %8129 = vmatpush1.msra.mxu0 %v8128
      %8130 = vmatprep.subr.mxu0 0.0
      %v8131 = vand.u32 %v6489, 4294901760
      %v8132 = vsub.f32 %v6489, %v8131
      %8133 = vmatpush1.msra.mxu0 %v8132
      %8134 = vmatprep.subr.mxu0 0.0
      %v8135 = vand.u32 %v6488, 4294901760
      %v8136 = vsub.f32 %v6488, %v8135
      %8137 = vmatpush1.msra.mxu0 %v8136
      %8138 = vmatprep.subr.mxu0 0.0
      %v8139 = vand.u32 %v6487, 4294901760
      %v8140 = vsub.f32 %v6487, %v8139
      %8141 = vmatpush1.msra.mxu0 %v8140
      %8142 = vmatprep.subr.mxu0 0.0
      %v8143 = vand.u32 %v6486, 4294901760
      %v8144 = vsub.f32 %v6486, %v8143
      %8145 = vmatpush1.msra.mxu0 %v8144
      %8146 = vmatprep.subr.mxu0 0.0
      %v8147 = vand.u32 %v6485, 4294901760
      %v8148 = vsub.f32 %v6485, %v8147
      %8149 = vmatpush1.msra.mxu0 %v8148
      %8150 = vmatprep.subr.mxu0 0.0
      %v8151 = vand.u32 %v6484, 4294901760
      %v8152 = vsub.f32 %v6484, %v8151
      %8153 = vmatpush1.msra.mxu0 %v8152
      %8154 = vmatprep.subr.mxu0 0.0
      %v8155 = vand.u32 %v6483, 4294901760
      %v8156 = vsub.f32 %v6483, %v8155
      %8157 = vmatpush1.msra.mxu0 %v8156
      %8158 = vmatprep.subr.mxu0 0.0
      %v8159 = vand.u32 %v6482, 4294901760
      %v8160 = vsub.f32 %v6482, %v8159
      %8161 = vmatpush1.msra.mxu0 %v8160
      %8162 = vmatprep.subr.mxu0 0.0
      %v8163 = vand.u32 %v6481, 4294901760
      %v8164 = vsub.f32 %v6481, %v8163
      %8165 = vmatpush1.msra.mxu0 %v8164
      %8166 = vmatprep.subr.mxu0 0.0
      %v8167 = vand.u32 %v6480, 4294901760
      %v8168 = vsub.f32 %v6480, %v8167
      %8169 = vmatpush1.msra.mxu0 %v8168
      %8170 = vmatprep.subr.mxu0 0.0
      %v8171 = vand.u32 %v6479, 4294901760
      %v8172 = vsub.f32 %v6479, %v8171
      %8173 = vmatpush1.msra.mxu0 %v8172
      %8174 = vmatprep.subr.mxu0 0.0
      %v8175 = vand.u32 %v6478, 4294901760
      %v8176 = vsub.f32 %v6478, %v8175
      %8177 = vmatpush1.msra.mxu0 %v8176
      %8178 = vmatprep.subr.mxu0 0.0
      %8179 = vmatpush2.msra.mxu0 0.0
      %8180 = vmatprep.subr.mxu0 0.0
      %8181 = vmatpush2.msra.mxu0 0.0
      %8182 = vmatprep.subr.mxu0 0.0
      %v8183 = vand.u32 %v6528, 4294901760
      %v8184 = vsub.f32 %v6528, %v8183
      %8185 = vmatpush2.msra.mxu0 %v8184
      %8186 = vmatprep.subr.mxu0 0.0
      %v8187 = vand.u32 %v6506, 4294901760
      %v8188 = vsub.f32 %v6506, %v8187
      %8189 = vmatpush2.msra.mxu0 %v8188
      %8190 = vmatprep.subr.mxu0 0.0
      %v8191 = vand.u32 %v6505, 4294901760
      %v8192 = vsub.f32 %v6505, %v8191
      %8193 = vmatpush2.msra.mxu0 %v8192
      %8194 = vmatprep.subr.mxu0 0.0
      %v8195 = vand.u32 %v6504, 4294901760
      %v8196 = vsub.f32 %v6504, %v8195
      %8197 = vmatpush2.msra.mxu0 %v8196
      %8198 = vmatprep.subr.mxu0 0.0
      %v8199 = vand.u32 %v6503, 4294901760
      %v8200 = vsub.f32 %v6503, %v8199
      %8201 = vmatpush2.msra.mxu0 %v8200
      %8202 = vmatprep.subr.mxu0 0.0
      %v8203 = vand.u32 %v6502, 4294901760
      %v8204 = vsub.f32 %v6502, %v8203
      %8205 = vmatpush2.msra.mxu0 %v8204
      %8206 = vmatprep.subr.mxu0 0.0
      %v8207 = vand.u32 %v6501, 4294901760
      %v8208 = vsub.f32 %v6501, %v8207
      %8209 = vmatpush2.msra.mxu0 %v8208
      %8210 = vmatprep.subr.mxu0 0.0
      %v8211 = vand.u32 %v6500, 4294901760
      %v8212 = vsub.f32 %v6500, %v8211
      %8213 = vmatpush2.msra.mxu0 %v8212
      %8214 = vmatprep.subr.mxu0 0.0
      %v8215 = vand.u32 %v6499, 4294901760
      %v8216 = vsub.f32 %v6499, %v8215
      %8217 = vmatpush2.msra.mxu0 %v8216
      %8218 = vmatprep.subr.mxu0 0.0
      %v8219 = vand.u32 %v6498, 4294901760
      %v8220 = vsub.f32 %v6498, %v8219
      %8221 = vmatpush2.msra.mxu0 %v8220
      %8222 = vmatprep.subr.mxu0 0.0
      %v8223 = vand.u32 %v6497, 4294901760
      %v8224 = vsub.f32 %v6497, %v8223
      %8225 = vmatpush2.msra.mxu0 %v8224
      %8226 = vmatprep.subr.mxu0 0.0
      %v8227 = vand.u32 %v6496, 4294901760
      %v8228 = vsub.f32 %v6496, %v8227
      %8229 = vmatpush2.msra.mxu0 %v8228
      %8230 = vmatprep.subr.mxu0 0.0
      %v8231 = vand.u32 %v6495, 4294901760
      %v8232 = vsub.f32 %v6495, %v8231
      %8233 = vmatpush2.msra.mxu0 %v8232
      %8234 = vmatprep.subr.mxu0 0.0
      %v8235 = vand.u32 %v6494, 4294901760
      %v8236 = vsub.f32 %v6494, %v8235
      %8237 = vmatpush2.msra.mxu0 %v8236
      %v8238 = vand.u32 %v6510, 4294901760
      %v8239 = vsub.f32 %v6510, %v8238
      %8240 = vmatprep.mubr.f32.mxu0 %v8239
      %v8241 = vand.u32 %v6424, 4294901760
      %v8242 = vsub.f32 %v6424, %v8241
      %8243 = vmatmul.mubr.f32.gmra.mxu0 %v8242
      %v8244 = vpop.f32.mrf.mxu0
      %v8245 = vadd.f32 %v8076, %v8244
      %v8246 = vpop.f32.mrf.mxu0
      %v8247 = vand.u32 %v6513, 4294901760
      %v8248 = vsub.f32 %v6513, %v8247
      %8249 = vmatprep.mubr.f32.mxu0 %v8248
      %v8250 = vand.u32 %v6428, 4294901760
      %v8251 = vsub.f32 %v6428, %v8250
      %8252 = vmatmul.mubr.f32.gmra.mxu0 %v8251
      %v8253 = vpop.f32.mrf.mxu0
      %v8254 = vadd.f32 %v8083, %v8253
      %v8255 = vpop.f32.mrf.mxu0
      %v8256 = vand.u32 %v6516, 4294901760
      %v8257 = vsub.f32 %v6516, %v8256
      %8258 = vmatprep.mubr.f32.mxu0 %v8257
      %v8259 = vand.u32 %v6432, 4294901760
      %v8260 = vsub.f32 %v6432, %v8259
      %8261 = vmatmul.mubr.f32.gmra.mxu0 %v8260
      %v8262 = vpop.f32.mrf.mxu0
      %v8263 = vadd.f32 %v8090, %v8262
      %v8264 = vpop.f32.mrf.mxu0
      %v8265 = vand.u32 %v6519, 4294901760
      %v8266 = vsub.f32 %v6519, %v8265
      %8267 = vmatprep.mubr.f32.mxu0 %v8266
      %v8268 = vand.u32 %v6436, 4294901760
      %v8269 = vsub.f32 %v6436, %v8268
      %8270 = vmatmul.mubr.f32.gmra.mxu0 %v8269
      %v8271 = vpop.f32.mrf.mxu0
      %v8272 = vadd.f32 %v8097, %v8271
      %v8273 = vpop.f32.mrf.mxu0
      %v8274 = vand.u32 %v6522, 4294901760
      %v8275 = vsub.f32 %v6522, %v8274
      %8276 = vmatprep.mubr.f32.mxu0 %v8275
      %v8277 = vand.u32 %v6440, 4294901760
      %v8278 = vsub.f32 %v6440, %v8277
      %8279 = vmatmul.mubr.f32.gmra.mxu0 %v8278
      %v8280 = vpop.f32.mrf.mxu0
      %v8281 = vadd.f32 %v8104, %v8280
      %v8282 = vpop.f32.mrf.mxu0
      %v8283 = vand.u32 %v6525, 4294901760
      %v8284 = vsub.f32 %v6525, %v8283
      %8285 = vmatprep.mubr.f32.mxu0 %v8284
      %v8286 = vand.u32 %v6444, 4294901760
      %v8287 = vsub.f32 %v6444, %v8286
      %8288 = vmatmul.mubr.f32.gmra.mxu0 %v8287
      %v8289 = vpop.f32.mrf.mxu0
      %v8290 = vadd.f32 %v8111, %v8289
      %v8291 = vpop.f32.mrf.mxu0
      %8292 = vdwg.mxu0
      %8293 = vmatprep.subr.mxu0 0.0
      %v8294 = vand.u32 %v6493, 4294901760
      %8295 = vmatpush1.msra.mxu0 %v8294
      %8296 = vmatprep.subr.mxu0 0.0
      %v8297 = vand.u32 %v6492, 4294901760
      %8298 = vmatpush1.msra.mxu0 %v8297
      %8299 = vmatprep.subr.mxu0 0.0
      %v8300 = vand.u32 %v6491, 4294901760
      %8301 = vmatpush1.msra.mxu0 %v8300
      %8302 = vmatprep.subr.mxu0 0.0
      %v8303 = vand.u32 %v6490, 4294901760
      %8304 = vmatpush1.msra.mxu0 %v8303
      %8305 = vmatprep.subr.mxu0 0.0
      %v8306 = vand.u32 %v6489, 4294901760
      %8307 = vmatpush1.msra.mxu0 %v8306
      %8308 = vmatprep.subr.mxu0 0.0
      %v8309 = vand.u32 %v6488, 4294901760
      %8310 = vmatpush1.msra.mxu0 %v8309
      %8311 = vmatprep.subr.mxu0 0.0
      %v8312 = vand.u32 %v6487, 4294901760
      %8313 = vmatpush1.msra.mxu0 %v8312
      %8314 = vmatprep.subr.mxu0 0.0
      %v8315 = vand.u32 %v6486, 4294901760
      %8316 = vmatpush1.msra.mxu0 %v8315
      %8317 = vmatprep.subr.mxu0 0.0
      %v8318 = vand.u32 %v6485, 4294901760
      %8319 = vmatpush1.msra.mxu0 %v8318
      %8320 = vmatprep.subr.mxu0 0.0
      %v8321 = vand.u32 %v6484, 4294901760
      %8322 = vmatpush1.msra.mxu0 %v8321
      %8323 = vmatprep.subr.mxu0 0.0
      %v8324 = vand.u32 %v6483, 4294901760
      %8325 = vmatpush1.msra.mxu0 %v8324
      %8326 = vmatprep.subr.mxu0 0.0
      %v8327 = vand.u32 %v6482, 4294901760
      %8328 = vmatpush1.msra.mxu0 %v8327
      %8329 = vmatprep.subr.mxu0 0.0
      %v8330 = vand.u32 %v6481, 4294901760
      %8331 = vmatpush1.msra.mxu0 %v8330
      %8332 = vmatprep.subr.mxu0 0.0
      %v8333 = vand.u32 %v6480, 4294901760
      %8334 = vmatpush1.msra.mxu0 %v8333
      %8335 = vmatprep.subr.mxu0 0.0
      %v8336 = vand.u32 %v6479, 4294901760
      %8337 = vmatpush1.msra.mxu0 %v8336
      %8338 = vmatprep.subr.mxu0 0.0
      %v8339 = vand.u32 %v6478, 4294901760
      %8340 = vmatpush1.msra.mxu0 %v8339
      %8341 = vmatprep.subr.mxu0 0.0
      %8342 = vmatpush2.msra.mxu0 0.0
      %8343 = vmatprep.subr.mxu0 0.0
      %8344 = vmatpush2.msra.mxu0 0.0
      %8345 = vmatprep.subr.mxu0 0.0
      %v8346 = vand.u32 %v6528, 4294901760
      %8347 = vmatpush2.msra.mxu0 %v8346
      %8348 = vmatprep.subr.mxu0 0.0
      %v8349 = vand.u32 %v6506, 4294901760
      %8350 = vmatpush2.msra.mxu0 %v8349
      %8351 = vmatprep.subr.mxu0 0.0
      %v8352 = vand.u32 %v6505, 4294901760
      %8353 = vmatpush2.msra.mxu0 %v8352
      %8354 = vmatprep.subr.mxu0 0.0
      %v8355 = vand.u32 %v6504, 4294901760
      %8356 = vmatpush2.msra.mxu0 %v8355
      %8357 = vmatprep.subr.mxu0 0.0
      %v8358 = vand.u32 %v6503, 4294901760
      %8359 = vmatpush2.msra.mxu0 %v8358
      %8360 = vmatprep.subr.mxu0 0.0
      %v8361 = vand.u32 %v6502, 4294901760
      %8362 = vmatpush2.msra.mxu0 %v8361
      %8363 = vmatprep.subr.mxu0 0.0
      %v8364 = vand.u32 %v6501, 4294901760
      %8365 = vmatpush2.msra.mxu0 %v8364
      %8366 = vmatprep.subr.mxu0 0.0
      %v8367 = vand.u32 %v6500, 4294901760
      %8368 = vmatpush2.msra.mxu0 %v8367
      %8369 = vmatprep.subr.mxu0 0.0
      %v8370 = vand.u32 %v6499, 4294901760
      %8371 = vmatpush2.msra.mxu0 %v8370
      %8372 = vmatprep.subr.mxu0 0.0
      %v8373 = vand.u32 %v6498, 4294901760
      %8374 = vmatpush2.msra.mxu0 %v8373
      %8375 = vmatprep.subr.mxu0 0.0
      %v8376 = vand.u32 %v6497, 4294901760
      %8377 = vmatpush2.msra.mxu0 %v8376
      %8378 = vmatprep.subr.mxu0 0.0
      %v8379 = vand.u32 %v6496, 4294901760
      %8380 = vmatpush2.msra.mxu0 %v8379
      %8381 = vmatprep.subr.mxu0 0.0
      %v8382 = vand.u32 %v6495, 4294901760
      %8383 = vmatpush2.msra.mxu0 %v8382
      %8384 = vmatprep.subr.mxu0 0.0
      %v8385 = vand.u32 %v6494, 4294901760
      %8386 = vmatpush2.msra.mxu0 %v8385
      %v8387 = vand.u32 %v6510, 4294901760
      %v8388 = vsub.f32 %v6510, %v8387
      %v8389 = vand.u32 %v8388, 4294901760
      %8390 = vmatprep.mubr.f32.mxu0 %v8389
      %v8391 = vand.u32 %v6424, 4294901760
      %v8392 = vsub.f32 %v6424, %v8391
      %v8393 = vand.u32 %v8392, 4294901760
      %8394 = vmatmul.mubr.f32.gmra.mxu0 %v8393
      %v8395 = vpop.f32.mrf.mxu0
      %v8396 = vadd.f32 %v8245, %v8395
      %v8397 = vpop.f32.mrf.mxu0
      %v8398 = vand.u32 %v6513, 4294901760
      %v8399 = vsub.f32 %v6513, %v8398
      %v8400 = vand.u32 %v8399, 4294901760
      %8401 = vmatprep.mubr.f32.mxu0 %v8400
      %v8402 = vand.u32 %v6428, 4294901760
      %v8403 = vsub.f32 %v6428, %v8402
      %v8404 = vand.u32 %v8403, 4294901760
      %8405 = vmatmul.mubr.f32.gmra.mxu0 %v8404
      %v8406 = vpop.f32.mrf.mxu0
      %v8407 = vadd.f32 %v8254, %v8406
      %v8408 = vpop.f32.mrf.mxu0
      %v8409 = vand.u32 %v6516, 4294901760
      %v8410 = vsub.f32 %v6516, %v8409
      %v8411 = vand.u32 %v8410, 4294901760
      %8412 = vmatprep.mubr.f32.mxu0 %v8411
      %v8413 = vand.u32 %v6432, 4294901760
      %v8414 = vsub.f32 %v6432, %v8413
      %v8415 = vand.u32 %v8414, 4294901760
      %8416 = vmatmul.mubr.f32.gmra.mxu0 %v8415
      %v8417 = vpop.f32.mrf.mxu0
      %v8418 = vadd.f32 %v8263, %v8417
      %v8419 = vpop.f32.mrf.mxu0
      %v8420 = vand.u32 %v6519, 4294901760
      %v8421 = vsub.f32 %v6519, %v8420
      %v8422 = vand.u32 %v8421, 4294901760
      %8423 = vmatprep.mubr.f32.mxu0 %v8422
      %v8424 = vand.u32 %v6436, 4294901760
      %v8425 = vsub.f32 %v6436, %v8424
      %v8426 = vand.u32 %v8425, 4294901760
      %8427 = vmatmul.mubr.f32.gmra.mxu0 %v8426
      %v8428 = vpop.f32.mrf.mxu0
      %v8429 = vadd.f32 %v8272, %v8428
      %v8430 = vpop.f32.mrf.mxu0
      %v8431 = vand.u32 %v6522, 4294901760
      %v8432 = vsub.f32 %v6522, %v8431
      %v8433 = vand.u32 %v8432, 4294901760
      %8434 = vmatprep.mubr.f32.mxu0 %v8433
      %v8435 = vand.u32 %v6440, 4294901760
      %v8436 = vsub.f32 %v6440, %v8435
      %v8437 = vand.u32 %v8436, 4294901760
      %8438 = vmatmul.mubr.f32.gmra.mxu0 %v8437
      %v8439 = vpop.f32.mrf.mxu0
      %v8440 = vadd.f32 %v8281, %v8439
      %v8441 = vpop.f32.mrf.mxu0
      %v8442 = vand.u32 %v6525, 4294901760
      %v8443 = vsub.f32 %v6525, %v8442
      %v8444 = vand.u32 %v8443, 4294901760
      %8445 = vmatprep.mubr.f32.mxu0 %v8444
      %v8446 = vand.u32 %v6444, 4294901760
      %v8447 = vsub.f32 %v6444, %v8446
      %v8448 = vand.u32 %v8447, 4294901760
      %8449 = vmatmul.mubr.f32.gmra.mxu0 %v8448
      %v8450 = vpop.f32.mrf.mxu0
      %v8451 = vadd.f32 %v8290, %v8450
      %v8452 = vpop.f32.mrf.mxu0
      %8453 = vdwg.mxu0
      %8454 = vmatprep.subr.mxu0 0.0
      %v8455 = vand.u32 %v6493, 4294901760
      %v8456 = vsub.f32 %v6493, %v8455
      %v8457 = vand.u32 %v8456, 4294901760
      %8458 = vmatpush1.msra.mxu0 %v8457
      %8459 = vmatprep.subr.mxu0 0.0
      %v8460 = vand.u32 %v6492, 4294901760
      %v8461 = vsub.f32 %v6492, %v8460
      %v8462 = vand.u32 %v8461, 4294901760
      %8463 = vmatpush1.msra.mxu0 %v8462
      %8464 = vmatprep.subr.mxu0 0.0
      %v8465 = vand.u32 %v6491, 4294901760
      %v8466 = vsub.f32 %v6491, %v8465
      %v8467 = vand.u32 %v8466, 4294901760
      %8468 = vmatpush1.msra.mxu0 %v8467
      %8469 = vmatprep.subr.mxu0 0.0
      %v8470 = vand.u32 %v6490, 4294901760
      %v8471 = vsub.f32 %v6490, %v8470
      %v8472 = vand.u32 %v8471, 4294901760
      %8473 = vmatpush1.msra.mxu0 %v8472
      %8474 = vmatprep.subr.mxu0 0.0
      %v8475 = vand.u32 %v6489, 4294901760
      %v8476 = vsub.f32 %v6489, %v8475
      %v8477 = vand.u32 %v8476, 4294901760
      %8478 = vmatpush1.msra.mxu0 %v8477
      %8479 = vmatprep.subr.mxu0 0.0
      %v8480 = vand.u32 %v6488, 4294901760
      %v8481 = vsub.f32 %v6488, %v8480
      %v8482 = vand.u32 %v8481, 4294901760
      %8483 = vmatpush1.msra.mxu0 %v8482
      %8484 = vmatprep.subr.mxu0 0.0
      %v8485 = vand.u32 %v6487, 4294901760
      %v8486 = vsub.f32 %v6487, %v8485
      %v8487 = vand.u32 %v8486, 4294901760
      %8488 = vmatpush1.msra.mxu0 %v8487
      %8489 = vmatprep.subr.mxu0 0.0
      %v8490 = vand.u32 %v6486, 4294901760
      %v8491 = vsub.f32 %v6486, %v8490
      %v8492 = vand.u32 %v8491, 4294901760
      %8493 = vmatpush1.msra.mxu0 %v8492
      %8494 = vmatprep.subr.mxu0 0.0
      %v8495 = vand.u32 %v6485, 4294901760
      %v8496 = vsub.f32 %v6485, %v8495
      %v8497 = vand.u32 %v8496, 4294901760
      %8498 = vmatpush1.msra.mxu0 %v8497
      %8499 = vmatprep.subr.mxu0 0.0
      %v8500 = vand.u32 %v6484, 4294901760
      %v8501 = vsub.f32 %v6484, %v8500
      %v8502 = vand.u32 %v8501, 4294901760
      %8503 = vmatpush1.msra.mxu0 %v8502
      %8504 = vmatprep.subr.mxu0 0.0
      %v8505 = vand.u32 %v6483, 4294901760
      %v8506 = vsub.f32 %v6483, %v8505
      %v8507 = vand.u32 %v8506, 4294901760
      %8508 = vmatpush1.msra.mxu0 %v8507
      %8509 = vmatprep.subr.mxu0 0.0
      %v8510 = vand.u32 %v6482, 4294901760
      %v8511 = vsub.f32 %v6482, %v8510
      %v8512 = vand.u32 %v8511, 4294901760
      %8513 = vmatpush1.msra.mxu0 %v8512
      %8514 = vmatprep.subr.mxu0 0.0
      %v8515 = vand.u32 %v6481, 4294901760
      %v8516 = vsub.f32 %v6481, %v8515
      %v8517 = vand.u32 %v8516, 4294901760
      %8518 = vmatpush1.msra.mxu0 %v8517
      %8519 = vmatprep.subr.mxu0 0.0
      %v8520 = vand.u32 %v6480, 4294901760
      %v8521 = vsub.f32 %v6480, %v8520
      %v8522 = vand.u32 %v8521, 4294901760
      %8523 = vmatpush1.msra.mxu0 %v8522
      %8524 = vmatprep.subr.mxu0 0.0
      %v8525 = vand.u32 %v6479, 4294901760
      %v8526 = vsub.f32 %v6479, %v8525
      %v8527 = vand.u32 %v8526, 4294901760
      %8528 = vmatpush1.msra.mxu0 %v8527
      %8529 = vmatprep.subr.mxu0 0.0
      %v8530 = vand.u32 %v6478, 4294901760
      %v8531 = vsub.f32 %v6478, %v8530
      %v8532 = vand.u32 %v8531, 4294901760
      %8533 = vmatpush1.msra.mxu0 %v8532
      %8534 = vmatprep.subr.mxu0 0.0
      %8535 = vmatpush2.msra.mxu0 0.0
      %8536 = vmatprep.subr.mxu0 0.0
      %8537 = vmatpush2.msra.mxu0 0.0
      %8538 = vmatprep.subr.mxu0 0.0
      %v8539 = vand.u32 %v6528, 4294901760
      %v8540 = vsub.f32 %v6528, %v8539
      %v8541 = vand.u32 %v8540, 4294901760
      %8542 = vmatpush2.msra.mxu0 %v8541
      %8543 = vmatprep.subr.mxu0 0.0
      %v8544 = vand.u32 %v6506, 4294901760
      %v8545 = vsub.f32 %v6506, %v8544
      %v8546 = vand.u32 %v8545, 4294901760
      %8547 = vmatpush2.msra.mxu0 %v8546
      %8548 = vmatprep.subr.mxu0 0.0
      %v8549 = vand.u32 %v6505, 4294901760
      %v8550 = vsub.f32 %v6505, %v8549
      %v8551 = vand.u32 %v8550, 4294901760
      %8552 = vmatpush2.msra.mxu0 %v8551
      %8553 = vmatprep.subr.mxu0 0.0
      %v8554 = vand.u32 %v6504, 4294901760
      %v8555 = vsub.f32 %v6504, %v8554
      %v8556 = vand.u32 %v8555, 4294901760
      %8557 = vmatpush2.msra.mxu0 %v8556
      %8558 = vmatprep.subr.mxu0 0.0
      %v8559 = vand.u32 %v6503, 4294901760
      %v8560 = vsub.f32 %v6503, %v8559
      %v8561 = vand.u32 %v8560, 4294901760
      %8562 = vmatpush2.msra.mxu0 %v8561
      %8563 = vmatprep.subr.mxu0 0.0
      %v8564 = vand.u32 %v6502, 4294901760
      %v8565 = vsub.f32 %v6502, %v8564
      %v8566 = vand.u32 %v8565, 4294901760
      %8567 = vmatpush2.msra.mxu0 %v8566
      %8568 = vmatprep.subr.mxu0 0.0
      %v8569 = vand.u32 %v6501, 4294901760
      %v8570 = vsub.f32 %v6501, %v8569
      %v8571 = vand.u32 %v8570, 4294901760
      %8572 = vmatpush2.msra.mxu0 %v8571
      %8573 = vmatprep.subr.mxu0 0.0
      %v8574 = vand.u32 %v6500, 4294901760
      %v8575 = vsub.f32 %v6500, %v8574
      %v8576 = vand.u32 %v8575, 4294901760
      %8577 = vmatpush2.msra.mxu0 %v8576
      %8578 = vmatprep.subr.mxu0 0.0
      %v8579 = vand.u32 %v6499, 4294901760
      %v8580 = vsub.f32 %v6499, %v8579
      %v8581 = vand.u32 %v8580, 4294901760
      %8582 = vmatpush2.msra.mxu0 %v8581
      %8583 = vmatprep.subr.mxu0 0.0
      %v8584 = vand.u32 %v6498, 4294901760
      %v8585 = vsub.f32 %v6498, %v8584
      %v8586 = vand.u32 %v8585, 4294901760
      %8587 = vmatpush2.msra.mxu0 %v8586
      %8588 = vmatprep.subr.mxu0 0.0
      %v8589 = vand.u32 %v6497, 4294901760
      %v8590 = vsub.f32 %v6497, %v8589
      %v8591 = vand.u32 %v8590, 4294901760
      %8592 = vmatpush2.msra.mxu0 %v8591
      %8593 = vmatprep.subr.mxu0 0.0
      %v8594 = vand.u32 %v6496, 4294901760
      %v8595 = vsub.f32 %v6496, %v8594
      %v8596 = vand.u32 %v8595, 4294901760
      %8597 = vmatpush2.msra.mxu0 %v8596
      %8598 = vmatprep.subr.mxu0 0.0
      %v8599 = vand.u32 %v6495, 4294901760
      %v8600 = vsub.f32 %v6495, %v8599
      %v8601 = vand.u32 %v8600, 4294901760
      %8602 = vmatpush2.msra.mxu0 %v8601
      %8603 = vmatprep.subr.mxu0 0.0
      %v8604 = vand.u32 %v6494, 4294901760
      %v8605 = vsub.f32 %v6494, %v8604
      %v8606 = vand.u32 %v8605, 4294901760
      %8607 = vmatpush2.msra.mxu0 %v8606
      %v8608 = vand.u32 %v6510, 4294901760
      %8609 = vmatprep.mubr.f32.mxu0 %v8608
      %v8610 = vand.u32 %v6424, 4294901760
      %8611 = vmatmul.mubr.f32.gmra.mxu0 %v8610
      %v8612 = vpop.f32.mrf.mxu0
      %v8613 = vadd.f32 %v8396, %v8612
      %v8614 = vpop.f32.mrf.mxu0
      %v8615 = vand.u32 %v6513, 4294901760
      %8616 = vmatprep.mubr.f32.mxu0 %v8615
      %v8617 = vand.u32 %v6428, 4294901760
      %8618 = vmatmul.mubr.f32.gmra.mxu0 %v8617
      %v8619 = vpop.f32.mrf.mxu0
      %v8620 = vadd.f32 %v8407, %v8619
      %v8621 = vpop.f32.mrf.mxu0
      %v8622 = vand.u32 %v6516, 4294901760
      %8623 = vmatprep.mubr.f32.mxu0 %v8622
      %v8624 = vand.u32 %v6432, 4294901760
      %8625 = vmatmul.mubr.f32.gmra.mxu0 %v8624
      %v8626 = vpop.f32.mrf.mxu0
      %v8627 = vadd.f32 %v8418, %v8626
      %v8628 = vpop.f32.mrf.mxu0
      %v8629 = vand.u32 %v6519, 4294901760
      %8630 = vmatprep.mubr.f32.mxu0 %v8629
      %v8631 = vand.u32 %v6436, 4294901760
      %8632 = vmatmul.mubr.f32.gmra.mxu0 %v8631
      %v8633 = vpop.f32.mrf.mxu0
      %v8634 = vadd.f32 %v8429, %v8633
      %v8635 = vpop.f32.mrf.mxu0
      %v8636 = vand.u32 %v6522, 4294901760
      %8637 = vmatprep.mubr.f32.mxu0 %v8636
      %v8638 = vand.u32 %v6440, 4294901760
      %8639 = vmatmul.mubr.f32.gmra.mxu0 %v8638
      %v8640 = vpop.f32.mrf.mxu0
      %v8641 = vadd.f32 %v8440, %v8640
      %v8642 = vpop.f32.mrf.mxu0
      %v8643 = vand.u32 %v6525, 4294901760
      %8644 = vmatprep.mubr.f32.mxu0 %v8643
      %v8645 = vand.u32 %v6444, 4294901760
      %8646 = vmatmul.mubr.f32.gmra.mxu0 %v8645
      %v8647 = vpop.f32.mrf.mxu0
      %v8648 = vadd.f32 %v8451, %v8647
      %v8649 = vpop.f32.mrf.mxu0
      %8650 = vdwg.mxu0
      %8651 = vmatprep.subr.mxu0 0.0
      %v8652 = vand.u32 %v6493, 4294901760
      %8653 = vmatpush1.msra.mxu0 %v8652
      %8654 = vmatprep.subr.mxu0 0.0
      %v8655 = vand.u32 %v6492, 4294901760
      %8656 = vmatpush1.msra.mxu0 %v8655
      %8657 = vmatprep.subr.mxu0 0.0
      %v8658 = vand.u32 %v6491, 4294901760
      %8659 = vmatpush1.msra.mxu0 %v8658
      %8660 = vmatprep.subr.mxu0 0.0
      %v8661 = vand.u32 %v6490, 4294901760
      %8662 = vmatpush1.msra.mxu0 %v8661
      %8663 = vmatprep.subr.mxu0 0.0
      %v8664 = vand.u32 %v6489, 4294901760
      %8665 = vmatpush1.msra.mxu0 %v8664
      %8666 = vmatprep.subr.mxu0 0.0
      %v8667 = vand.u32 %v6488, 4294901760
      %8668 = vmatpush1.msra.mxu0 %v8667
      %8669 = vmatprep.subr.mxu0 0.0
      %v8670 = vand.u32 %v6487, 4294901760
      %8671 = vmatpush1.msra.mxu0 %v8670
      %8672 = vmatprep.subr.mxu0 0.0
      %v8673 = vand.u32 %v6486, 4294901760
      %8674 = vmatpush1.msra.mxu0 %v8673
      %8675 = vmatprep.subr.mxu0 0.0
      %v8676 = vand.u32 %v6485, 4294901760
      %8677 = vmatpush1.msra.mxu0 %v8676
      %8678 = vmatprep.subr.mxu0 0.0
      %v8679 = vand.u32 %v6484, 4294901760
      %8680 = vmatpush1.msra.mxu0 %v8679
      %8681 = vmatprep.subr.mxu0 0.0
      %v8682 = vand.u32 %v6483, 4294901760
      %8683 = vmatpush1.msra.mxu0 %v8682
      %8684 = vmatprep.subr.mxu0 0.0
      %v8685 = vand.u32 %v6482, 4294901760
      %8686 = vmatpush1.msra.mxu0 %v8685
      %8687 = vmatprep.subr.mxu0 0.0
      %v8688 = vand.u32 %v6481, 4294901760
      %8689 = vmatpush1.msra.mxu0 %v8688
      %8690 = vmatprep.subr.mxu0 0.0
      %v8691 = vand.u32 %v6480, 4294901760
      %8692 = vmatpush1.msra.mxu0 %v8691
      %8693 = vmatprep.subr.mxu0 0.0
      %v8694 = vand.u32 %v6479, 4294901760
      %8695 = vmatpush1.msra.mxu0 %v8694
      %8696 = vmatprep.subr.mxu0 0.0
      %v8697 = vand.u32 %v6478, 4294901760
      %8698 = vmatpush1.msra.mxu0 %v8697
      %8699 = vmatprep.subr.mxu0 0.0
      %8700 = vmatpush2.msra.mxu0 0.0
      %8701 = vmatprep.subr.mxu0 0.0
      %8702 = vmatpush2.msra.mxu0 0.0
      %8703 = vmatprep.subr.mxu0 0.0
      %v8704 = vand.u32 %v6528, 4294901760
      %8705 = vmatpush2.msra.mxu0 %v8704
      %8706 = vmatprep.subr.mxu0 0.0
      %v8707 = vand.u32 %v6506, 4294901760
      %8708 = vmatpush2.msra.mxu0 %v8707
      %8709 = vmatprep.subr.mxu0 0.0
      %v8710 = vand.u32 %v6505, 4294901760
      %8711 = vmatpush2.msra.mxu0 %v8710
      %8712 = vmatprep.subr.mxu0 0.0
      %v8713 = vand.u32 %v6504, 4294901760
      %8714 = vmatpush2.msra.mxu0 %v8713
      %8715 = vmatprep.subr.mxu0 0.0
      %v8716 = vand.u32 %v6503, 4294901760
      %8717 = vmatpush2.msra.mxu0 %v8716
      %8718 = vmatprep.subr.mxu0 0.0
      %v8719 = vand.u32 %v6502, 4294901760
      %8720 = vmatpush2.msra.mxu0 %v8719
      %8721 = vmatprep.subr.mxu0 0.0
      %v8722 = vand.u32 %v6501, 4294901760
      %8723 = vmatpush2.msra.mxu0 %v8722
      %8724 = vmatprep.subr.mxu0 0.0
      %v8725 = vand.u32 %v6500, 4294901760
      %8726 = vmatpush2.msra.mxu0 %v8725
      %8727 = vmatprep.subr.mxu0 0.0
      %v8728 = vand.u32 %v6499, 4294901760
      %8729 = vmatpush2.msra.mxu0 %v8728
      %8730 = vmatprep.subr.mxu0 0.0
      %v8731 = vand.u32 %v6498, 4294901760
      %8732 = vmatpush2.msra.mxu0 %v8731
      %8733 = vmatprep.subr.mxu0 0.0
      %v8734 = vand.u32 %v6497, 4294901760
      %8735 = vmatpush2.msra.mxu0 %v8734
      %8736 = vmatprep.subr.mxu0 0.0
      %v8737 = vand.u32 %v6496, 4294901760
      %8738 = vmatpush2.msra.mxu0 %v8737
      %8739 = vmatprep.subr.mxu0 0.0
      %v8740 = vand.u32 %v6495, 4294901760
      %8741 = vmatpush2.msra.mxu0 %v8740
      %8742 = vmatprep.subr.mxu0 0.0
      %v8743 = vand.u32 %v6494, 4294901760
      %8744 = vmatpush2.msra.mxu0 %v8743
      %v8745 = vand.u32 %v6510, 4294901760
      %8746 = vmatprep.mubr.f32.mxu0 %v8745
      %v8747 = vand.u32 %v6424, 4294901760
      %8748 = vmatmul.mubr.f32.gmra.mxu0 %v8747
      %v8749 = vpop.f32.mrf.mxu0
      %v8750 = vadd.f32 %v8613, %v8749
      %v8751 = vpop.f32.mrf.mxu0
      %v8752 = vand.u32 %v6513, 4294901760
      %8753 = vmatprep.mubr.f32.mxu0 %v8752
      %v8754 = vand.u32 %v6428, 4294901760
      %8755 = vmatmul.mubr.f32.gmra.mxu0 %v8754
      %v8756 = vpop.f32.mrf.mxu0
      %v8757 = vadd.f32 %v8620, %v8756
      %v8758 = vpop.f32.mrf.mxu0
      %v8759 = vand.u32 %v6516, 4294901760
      %8760 = vmatprep.mubr.f32.mxu0 %v8759
      %v8761 = vand.u32 %v6432, 4294901760
      %8762 = vmatmul.mubr.f32.gmra.mxu0 %v8761
      %v8763 = vpop.f32.mrf.mxu0
      %v8764 = vadd.f32 %v8627, %v8763
      %v8765 = vpop.f32.mrf.mxu0
      %v8766 = vand.u32 %v6519, 4294901760
      %8767 = vmatprep.mubr.f32.mxu0 %v8766
      %v8768 = vand.u32 %v6436, 4294901760
      %8769 = vmatmul.mubr.f32.gmra.mxu0 %v8768
      %v8770 = vpop.f32.mrf.mxu0
      %v8771 = vadd.f32 %v8634, %v8770
      %v8772 = vpop.f32.mrf.mxu0
      %v8773 = vand.u32 %v6522, 4294901760
      %8774 = vmatprep.mubr.f32.mxu0 %v8773
      %v8775 = vand.u32 %v6440, 4294901760
      %8776 = vmatmul.mubr.f32.gmra.mxu0 %v8775
      %v8777 = vpop.f32.mrf.mxu0
      %v8778 = vadd.f32 %v8641, %v8777
      %v8779 = vpop.f32.mrf.mxu0
      %v8780 = vand.u32 %v6525, 4294901760
      %8781 = vmatprep.mubr.f32.mxu0 %v8780
      %v8782 = vand.u32 %v6444, 4294901760
      %8783 = vmatmul.mubr.f32.gmra.mxu0 %v8782
      %v8784 = vpop.f32.mrf.mxu0
      %v8785 = vadd.f32 %v8648, %v8784
      %v8786 = vpop.f32.mrf.mxu0
      %8787 = vdwg.mxu0
      %v8788 = vmax.f32 %v8750, 1e-10
      %v8789 = vmax.f32 %v8757, 1e-10
      %v8790 = vmax.f32 %v8764, 1e-10
      %v8791 = vmax.f32 %v8771, 1e-10
      %v8792 = vmax.f32 %v8778, 1e-10
      %v8793 = vmax.f32 %v8785, 1e-10
      %v8794 = vlog2.pop %v8788
      %v8795 = vmul.f32 %v8794, 0.6931472
      %v8796 = vlog2.pop %v8789
      %v8797 = vmul.f32 %v8796, 0.6931472
      %v8798 = vlog2.pop %v8790
      %v8799 = vmul.f32 %v8798, 0.6931472
      %v8800 = vlog2.pop %v8791
      %v8801 = vmul.f32 %v8800, 0.6931472
      %v8802 = vlog2.pop %v8792
      %v8803 = vmul.f32 %v8802, 0.6931472
      %v8804 = vlog2.pop %v8793
      %v8805 = vmul.f32 %v8804, 0.6931472
      %v8806 = vld [vmem:[%s4] sm:$0xff]
      %v8807 = vld [vmem:[%s4 + $0x8] sm:$0xff]
      %v8808 = vld [vmem:[%s4 + $0x10] sm:$0xff]
      %v8809 = vld [vmem:[%s530] sm:$0x1]
      %v8810 = vld [vmem:[%s530 + $0x1] sm:$0x1]
      %v8811 = vlaneseq
      %v8812 = vshrl.u32 %v8811, 7
      %v8813 = vsub.s32 0, %v8812
      %v8814 = vrot.slane %v8809, %v8813
      %v8815 = vlaneseq
      %v8816 = vshrl.u32 %v8815, 7
      %v8817 = vsub.s32 0, %v8816
      %v8818 = vrot.slane %v8810, %v8817
      %vm8819 = vcmp.lt.s32.totalorder %v8806, %v8814
      %vm8820 = vcmp.lt.s32.totalorder %v8807, %v8814
      %vm8821 = vcmp.lt.s32.totalorder %v8808, %v8814
      %vm8822 = vcmp.lt.s32.totalorder %v8806, %v8818
      %vm8823 = vcmp.lt.s32.totalorder %v8807, %v8818
      %vm8824 = vcmp.lt.s32.totalorder %v8808, %v8818
      %v8825 = vsel %vm8819, 1, 0
      %v8826 = vsel %vm8820, 1, 0
      %v8827 = vsel %vm8821, 1, 0
      %v8828 = vsel %vm8822, 1, 0
      %v8829 = vsel %vm8823, 1, 0
      %v8830 = vsel %vm8824, 1, 0
      %v8831 = vcvt.s32.f32 %v8825
      %v8832 = vcvt.s32.f32 %v8826
      %v8833 = vcvt.s32.f32 %v8827
      %v8834 = vcvt.s32.f32 %v8828
      %v8835 = vcvt.s32.f32 %v8829
      %v8836 = vcvt.s32.f32 %v8830
      %8838 = vset.pattern.permute.xlu0 0
      %8839 = vperm.xlu0 %8838, %v8831
      %v8840 = vpop.permute.xlu0 %8839
      %8843 = vset.pattern.permute.xlu0 0
      %8844 = vperm.xlu0 %8843, %v8832
      %v8845 = vpop.permute.xlu0 %8844
      %8848 = vset.pattern.permute.xlu0 0
      %8849 = vperm.xlu0 %8848, %v8833
      %v8850 = vpop.permute.xlu0 %8849
      %8853 = vset.pattern.permute.xlu0 0
      %8854 = vperm.xlu0 %8853, %v8834
      %v8855 = vpop.permute.xlu0 %8854
      %8858 = vset.pattern.permute.xlu0 0
      %8859 = vperm.xlu0 %8858, %v8835
      %v8860 = vpop.permute.xlu0 %8859
      %8863 = vset.pattern.permute.xlu0 0
      %8864 = vperm.xlu0 %8863, %v8836
      %v8865 = vpop.permute.xlu0 %8864
      %v8867 = vmul.f32 %v8795, %v8840
      %v8868 = vmul.f32 %v8797, %v8845
      %v8869 = vmul.f32 %v8799, %v8850
      %v8870 = vmul.f32 %v8801, %v8855
      %v8871 = vmul.f32 %v8803, %v8860
      %v8872 = vmul.f32 %v8805, %v8865
      %vm8873 = vcmask 269312
      %v8874 = vsel %vm8873, %v8867, 0.0
      %v8875 = vrot.slane %v8874, 4
      %v8876 = vadd.f32 %v8874, %v8875
      %v8877 = vrot.slane %v8876, 2
      %v8878 = vadd.f32 %v8876, %v8877
      %v8879 = vrot.slane %v8878, 1
      %v8880 = vadd.f32 %v8878, %v8879
      %v8881 = vsel %vm8873, %v8870, 0.0
      %v8882 = vrot.slane %v8881, 4
      %v8883 = vadd.f32 %v8881, %v8882
      %v8884 = vrot.slane %v8883, 2
      %v8885 = vadd.f32 %v8883, %v8884
      %v8886 = vrot.slane %v8885, 1
      %v8887 = vadd.f32 %v8885, %v8886
      %v8888 = vsel %vm8873, %v8868, 0.0
      %v8889 = vrot.slane %v8888, 4
      %v8890 = vadd.f32 %v8888, %v8889
      %v8891 = vrot.slane %v8890, 2
      %v8892 = vadd.f32 %v8890, %v8891
      %v8893 = vrot.slane %v8892, 1
      %v8894 = vadd.f32 %v8892, %v8893
      %v8895 = vsel %vm8873, %v8871, 0.0
      %v8896 = vrot.slane %v8895, 4
      %v8897 = vadd.f32 %v8895, %v8896
      %v8898 = vrot.slane %v8897, 2
      %v8899 = vadd.f32 %v8897, %v8898
      %v8900 = vrot.slane %v8899, 1
      %v8901 = vadd.f32 %v8899, %v8900
      %v8902 = vsel %vm8873, %v8869, 0.0
      %v8903 = vrot.slane %v8902, 4
      %v8904 = vadd.f32 %v8902, %v8903
      %v8905 = vrot.slane %v8904, 2
      %v8906 = vadd.f32 %v8904, %v8905
      %v8907 = vrot.slane %v8906, 1
      %v8908 = vadd.f32 %v8906, %v8907
      %v8909 = vsel %vm8873, %v8872, 0.0
      %v8910 = vrot.slane %v8909, 4
      %v8911 = vadd.f32 %v8909, %v8910
      %v8912 = vrot.slane %v8911, 2
      %v8913 = vadd.f32 %v8911, %v8912
      %v8914 = vrot.slane %v8913, 1
      %v8915 = vadd.f32 %v8913, %v8914
      %vm8916 = vcmask 1040384
      %v8917 = vsel %vm8916, %v8880, %v8894
      %v8918 = vsel %vm8916, %v8887, %v8901
      %vm8919 = vcmask 1041408
      %v8920 = vsel %vm8919, %v8917, %v8908
      %v8921 = vsel %vm8919, %v8918, %v8915
      %v8922 = vld [vmem:[%s11] sm:$0x7]
      %v8923 = vmul.f32 %v8920, %v8922
      %v8924 = vmul.f32 %v8921, %v8922
      %vm8925 = vcmask 264192
      %v8926 = vsel %vm8925, %v8923, 0.0
      %8927 = vadd.xlane.f32.xlu0 %v8926
      %v8928 = vpop.xlane.xlu0 %8927
      %v8929 = vsel %vm8925, %v8924, 0.0
      %8930 = vadd.xlane.f32.xlu0 %v8929
      %v8931 = vpop.xlane.xlu0 %8930
      %v8934 = vrot.slane %v8928, 1
      %v8935 = vrot.slane %v8931, 1
      %v8938 = vadd.f32 %v8928, %v8934
      %v8939 = vadd.f32 %v8931, %v8935
      %v8940 = vrot.slane %v8928, 2
      %v8941 = vrot.slane %v8931, 2
      %v8944 = vadd.f32 %v8938, %v8940
      %v8945 = vadd.f32 %v8939, %v8941
      %v8946 = vld [vmem:[#allocation2] sm:$0x1]
      %v8947 = vadd.f32 %v8944, %v8946
      %v8948 = vadd.f32 %v8945, %v8946
      %8949 = vst.msk [vmem:[%s541] sm:$0x7] %vm8925, %v8920
      %8950 = vst.msk [vmem:[%s541 + $0x4] sm:$0x7] %vm8925, %v8921
      %vm8951 = vcmask 0
      %8952 = vst.msk [vmem:[%s546] sm:$0x1] %vm8951, %v8947
      %8953 = vst.msk [vmem:[%s546 + $0x1] sm:$0x1] %vm8951, %v8948
      %s8954 = smul.u32 2, %s28
      %p8955 = scmp.lt.s32.totalorder %s8954, 3
      %s8956 = scalar_select %p8955, %s8954, 3
      %s8957 = smul.addr %s8956, 4
      %s8958 = scalar_lea.vmem %s13, %s8957
      %s8959 = smul.u32 2, %s28
      %p8960 = scmp.lt.s32.totalorder %s8959, 3
      %s8961 = scalar_select %p8960, %s8959, 3
      %s8962 = scalar_lea.vmem %s14, %s8961
      // Predicated region
      $region73: #{tpu_custom_call.1} parent=71 // pred_check
        %p8963 = pneg %p339
      $region74: #{tpu_custom_call.1} parent=71 // pred_check_branch
        %8965 = sbr.rel (%p8963) target = $region76
      $region75: #{tpu_custom_call.1} parent=71 // pred_region
        %s8966 = smul.u32 2, %s28
      $region76: #{tpu_custom_call.1} parent=71 // pred_fallthru
        _
      // Predicated region
      $region77: #{tpu_custom_call.1} parent=71 // pred_check
        %p8967 = pneg %p365
      $region78: #{tpu_custom_call.1} parent=71 // pred_check_branch
        %8969 = sbr.rel (%p8967) target = $region80
      $region79: #{tpu_custom_call.1} parent=71 // pred_region
        %s8970 = smul.u32 2, %s28
      $region80: #{tpu_custom_call.1} parent=71 // pred_fallthru
        _
    $region72: #{tpu_custom_call.1} parent=5 // pred_fallthru
      _
    %p8971 = scmp.le.s32.totalorder 2, %s23
    // Predicated region
    $region81: #{tpu_custom_call.1} parent=5 // pred_check
      %p8972 = pneg %p8971
    $region82: #{tpu_custom_call.1} parent=5 // pred_check_branch
      %8974 = sbr.rel (%p8972) target = $region84
    $region83: #{tpu_custom_call.1} parent=5 // pred_region
      %s8975 = ssub.s32 %s23, 2
      // Predicated region
      $region85: #{tpu_custom_call.1} parent=83 // pred_check
        %p8976 = pneg %p345
      $region86: #{tpu_custom_call.1} parent=83 // pred_check_branch
        %8978 = sbr.rel (%p8976) target = $region88
      $region87: #{tpu_custom_call.1} parent=83 // pred_region
        %s8979 = smul.u32 2, %s29
        %p8980 = scmp.lt.s32.totalorder %s8979, 3
        %s8981 = scalar_select %p8980, %s8979, 3
        %s8982 = smul.addr %s8981, 4
        %s8983 = scalar_lea.vmem %s13, %s8982
      $region88: #{tpu_custom_call.1} parent=83 // pred_fallthru
        _
      // Predicated region
      $region89: #{tpu_custom_call.1} parent=83 // pred_check
        %p8984 = pneg %p371
      $region90: #{tpu_custom_call.1} parent=83 // pred_check_branch
        %8986 = sbr.rel (%p8984) target = $region92
      $region91: #{tpu_custom_call.1} parent=83 // pred_region
        %s8987 = smul.u32 2, %s29
        %p8988 = scmp.lt.s32.totalorder %s8987, 3
        %s8989 = scalar_select %p8988, %s8987, 3
        %s8990 = scalar_lea.vmem %s14, %s8989
      $region92: #{tpu_custom_call.1} parent=83 // pred_fallthru
        _
    $region84: #{tpu_custom_call.1} parent=5 // pred_fallthru
      _
  $region6: #{tpu_custom_call.1} parent=0 // loop_footer
    %s27 = sadd.s32 1, %s23
  $region7: #{tpu_custom_call.1} parent=0 // loop_footer_branch
    %22 = sbr.rel target = $region3
  $region8: #{tpu_custom_call.1} parent=0 // loop_exit
    _

</llo_original>
